<compile_context>
chip_gen: v7x
topology: tpu7x:2x2x1
jax: 0.10.0
libtpu: 0.0.40
codegen_flags: <defaults>
</compile_context>

<pallas_src>
import functools

import numpy as np
import jax
import jax.numpy as jnp
from jax.experimental import pallas as pl
from jax.experimental.pallas import tpu as pltpu

WIDTH = 4                # analogue of 64 in the real ResNet-50
BINS = (1, 2, 3, 6)
CLASSES = 2
BLOCKS = (3, 4, 6, 3)    # layers=50
BN_EPS = 1e-5


def _ceil_to(x, m):
    return ((x + m - 1) // m) * m


# ----------------------------------------------------------------------------
# Fused Pallas kernels:  out = relu?( (A @ B) * scale + bias [+ residual] )
# ----------------------------------------------------------------------------
def _mm_bn_kernel(a_ref, b_ref, s_ref, c_ref, o_ref, *, relu):
    y = jnp.dot(a_ref[...], b_ref[...], preferred_element_type=jnp.float32)
    y = y * s_ref[...] + c_ref[...]
    if relu:
        y = jnp.maximum(y, 0.0)
    o_ref[...] = y


def _mm_bn_res_kernel(a_ref, b_ref, s_ref, c_ref, r_ref, o_ref, *, relu):
    y = jnp.dot(a_ref[...], b_ref[...], preferred_element_type=jnp.float32)
    y = y * s_ref[...] + c_ref[...] + r_ref[...]
    if relu:
        y = jnp.maximum(y, 0.0)
    o_ref[...] = y


def fused_matmul(a, b, scale, bias, *, relu, residual=None):
    """(M,K)@(K,N) with fused per-column affine (+residual, +ReLU) epilogue.

    Operands go to the MXU in bf16 (f32 accumulation).  Dims < 128 use
    full-extent blocks (no 128 padding); dims >= 128 are tiled at 128.
    """
    M, K = a.shape
    K2, N = b.shape
    assert K == K2

    Mp = _ceil_to(M, 16) if M < 128 else _ceil_to(M, 128)
    bm = Mp if Mp <= 128 else 128
    Kp = _ceil_to(K, 16)
    if N < 128:
        Np, bn = N, N
    else:
        Np = _ceil_to(N, 128)
        bn = 128

    a_p = a.astype(jnp.bfloat16)
    if (Mp, Kp) != (M, K):
        a_p = jnp.pad(a_p, ((0, Mp - M), (0, Kp - K)))
    b_p = b.astype(jnp.bfloat16)
    if (Kp, Np) != (K, N):
        b_p = jnp.pad(b_p, ((0, Kp - K), (0, Np - N)))
    s_p = scale.astype(jnp.float32).reshape(1, N)
    c_p = bias.astype(jnp.float32).reshape(1, N)
    if Np != N:
        s_p = jnp.pad(s_p, ((0, 0), (0, Np - N)))
        c_p = jnp.pad(c_p, ((0, 0), (0, Np - N)))

    in_specs = [pl.BlockSpec((bm, Kp), lambda i, j: (i, 0)),
                pl.BlockSpec((Kp, bn), lambda i, j: (0, j)),
                pl.BlockSpec((1, bn), lambda i, j: (0, j)),
                pl.BlockSpec((1, bn), lambda i, j: (0, j))]
    args = [a_p, b_p, s_p, c_p]
    if residual is not None:
        r_p = residual.astype(jnp.float32)
        if (Mp, Np) != (M, N):
            r_p = jnp.pad(r_p, ((0, Mp - M), (0, Np - N)))
        in_specs.append(pl.BlockSpec((bm, bn), lambda i, j: (i, j)))
        args.append(r_p)
        kern = functools.partial(_mm_bn_res_kernel, relu=relu)
    else:
        kern = functools.partial(_mm_bn_kernel, relu=relu)

    out = pl.pallas_call(
        kern,
        out_shape=jax.ShapeDtypeStruct((Mp, Np), jnp.float32),
        grid=(Mp // bm, Np // bn),
        in_specs=in_specs,
        out_specs=pl.BlockSpec((bm, bn), lambda i, j: (i, j)),
        compiler_params=pltpu.CompilerParams(
            dimension_semantics=("parallel", "parallel")),
    )(*args)
    if (Mp, Np) != (M, N):
        out = out[:M, :N]
    return out


# ----------------------------------------------------------------------------
# NN building blocks (glue in plain JAX inside one jit, compute in Pallas)
# ----------------------------------------------------------------------------
def _bn_fold(bn):
    """Inference-mode BatchNorm2d folded to (scale, bias)."""
    gamma, beta, mean, var = bn
    scale = gamma * jax.lax.rsqrt(var + BN_EPS)
    bias = beta - mean * scale
    return scale, bias


def conv_bn(x, w, scale, bias, *, stride=1, padding=0, dilation=1,
            relu=True, residual=None):
    """Conv2d (NHWC, weight (kh,kw,Cin,Cout)) with BN affine (+residual,+ReLU)
    fused into a single Pallas MXU matmul."""
    B, H, W, C = x.shape
    kh, kw, Cin, Cout = w.shape
    if kh == 1 and kw == 1 and padding == 0:
        xs = x[:, ::stride, ::stride, :]
        _, Ho, Wo, _ = xs.shape
        a = xs.reshape(-1, Cin)
        wm = w.reshape(Cin, Cout)
    else:
        # TODO(synk): im2col is materialized (inside the single jit); a
        # tap-indexed K grid axis would avoid the 9x patch tensor entirely.
        xp = jnp.pad(x, ((0, 0), (padding, padding), (padding, padding), (0, 0)))
        Ho = (H + 2 * padding - dilation * (kh - 1) - 1) // stride + 1
        Wo = (W + 2 * padding - dilation * (kw - 1) - 1) // stride + 1
        patches = []
        for i in range(kh):
            for j in range(kw):
                patches.append(
                    xp[:, i * dilation:i * dilation + (Ho - 1) * stride + 1:stride,
                          j * dilation:j * dilation + (Wo - 1) * stride + 1:stride, :])
        a = jnp.concatenate(patches, axis=-1).reshape(-1, kh * kw * Cin)
        wm = w.reshape(kh * kw * Cin, Cout)
    res2d = None if residual is None else residual.reshape(-1, Cout)
    out = fused_matmul(a, wm, scale, bias, relu=relu, residual=res2d)
    return out.reshape(B, Ho, Wo, Cout)


def maxpool_3x3_s2_p1(x):
    # TODO(synk): maxpool reduction kept in plain JAX (tiny, runs once, fused by XLA).
    B, H, W, C = x.shape
    xp = jnp.pad(x, ((0, 0), (1, 1), (1, 1), (0, 0)), constant_values=-jnp.inf)
    Ho = (H - 1) // 2 + 1
    Wo = (W - 1) // 2 + 1
    out = None
    for i in range(3):
        for j in range(3):
            sl = xp[:, i:i + (Ho - 1) * 2 + 1:2, j:j + (Wo - 1) * 2 + 1:2, :]
            out = sl if out is None else jnp.maximum(out, sl)
    return out


def adaptive_pool_matrix(out_size, in_size):
    """Row matrix reproducing nn.AdaptiveAvgPool2d semantics."""
    A = np.zeros((out_size, in_size), np.float32)
    for i in range(out_size):
        s = (i * in_size) // out_size
        e = -(-((i + 1) * in_size) // out_size)
        A[i, s:e] = 1.0 / (e - s)
    return jnp.asarray(A)


def bilinear_matrix(out_size, in_size):
    """Row matrix for F.interpolate(mode='bilinear', align_corners=True)."""
    A = np.zeros((out_size, in_size), np.float32)
    if in_size == 1:
        A[:, 0] = 1.0
        return jnp.asarray(A)
    for i in range(out_size):
        src = i * (in_size - 1) / (out_size - 1) if out_size > 1 else 0.0
        i0 = min(int(np.floor(src)), in_size - 2)
        f = src - i0
        A[i, i0] += 1.0 - f
        A[i, i0 + 1] += f
    return jnp.asarray(A)


def sep_resample(x, A_h, A_w):
    """Separable row/col weighted sum (adaptive pool or bilinear resize).
    Matrices are at most 32x6 -> plain jnp inside the single jit (routing them
    through padded 128x128 MXU calls would be >95% zeros)."""
    return jnp.einsum('ip,jq,bpqc->bijc', A_h, A_w, x)


# ----------------------------------------------------------------------------
# Parameters (deterministic synthetic init) + static architecture description
# ----------------------------------------------------------------------------
class _Init:
    def __init__(self, key):
        self._key = key

    def _next(self):
        self._key, k = jax.random.split(self._key)
        return k

    def conv(self, kh, kw, cin, cout):
        return 0.05 * jax.random.normal(self._next(), (kh, kw, cin, cout), jnp.float32)

    def bn(self, c):
        gamma = 1.0 + 0.1 * jax.random.normal(self._next(), (c,), jnp.float32)
        beta = 0.1 * jax.random.normal(self._next(), (c,), jnp.float32)
        return (gamma, beta, jnp.zeros((c,), jnp.float32), jnp.ones((c,), jnp.float32))

    def bias(self, c):
        return 0.1 * jax.random.normal(self._next(), (c,), jnp.float32)


def _make_arch():
    # Static per-block (conv2_stride, dilation, has_downsample, down_stride).
    # dilation>1 emulates the PSPNet patch on layer3/layer4:
    #   conv2: dilation=d, padding=d, stride=1 ; downsample.0: stride=1
    arch = []
    for (stride, dilation), blocks in zip(((1, 1), (2, 1), (2, 2), (2, 4)), BLOCKS):
        conv2_stride = 1 if dilation > 1 else stride
        down_stride = 1 if dilation > 1 else stride
        layer = [(conv2_stride, dilation, True, down_stride)]
        layer += [(1, dilation, False, 1)] * (blocks - 1)
        arch.append(tuple(layer))
    return tuple(arch)


ARCH = _make_arch()   # static Python config (kept outside the jitted pytree)


def init_pspnet_params(key):
    init = _Init(key)
    w = WIDTH
    params = {"stem": {"conv1": init.conv(3, 3, 3, w), "bn1": init.bn(w),
                       "conv2": init.conv(3, 3, w, w), "bn2": init.bn(w),
                       "conv3": init.conv(3, 3, w, 2 * w), "bn3": init.bn(2 * w)}}
    inplanes = 2 * w
    for li, planes in enumerate((w, 2 * w, 4 * w, 8 * w)):
        layer = []
        for b in range(BLOCKS[li]):
            inp = inplanes if b == 0 else planes * 4
            p = {"conv1": init.conv(1, 1, inp, planes), "bn1": init.bn(planes),
                 "conv2": init.conv(3, 3, planes, planes), "bn2": init.bn(planes),
                 "conv3": init.conv(1, 1, planes, planes * 4), "bn3": init.bn(planes * 4)}
            if b == 0:
                p["down_conv"] = init.conv(1, 1, inp, planes * 4)
                p["down_bn"] = init.bn(planes * 4)
            layer.append(p)
        params["layer%d" % (li + 1)] = layer
        inplanes = planes * 4

    fea_dim = inplanes                       # 32*w (analogue of 2048)
    red = fea_dim // len(BINS)               # analogue of 512
    params["ppm"] = [{"conv": init.conv(1, 1, fea_dim, red), "bn": init.bn(red)}
                     for _ in BINS]
    fea_dim2 = fea_dim * 2                   # after PPM concat
    mid = 8 * w                              # analogue of 512
    params["cls"] = {"conv1": init.conv(3, 3, fea_dim2, mid), "bn1": init.bn(mid),
                     "conv2": init.conv(1, 1, mid, CLASSES), "bias2": init.bias(CLASSES)}
    aux_in, aux_mid = 16 * w, 4 * w          # analogues of 1024 / 256
    params["aux"] = {"conv1": init.conv(3, 3, aux_in, aux_mid), "bn1": init.bn(aux_mid),
                     "conv2": init.conv(1, 1, aux_mid, CLASSES), "bias2": init.bias(CLASSES)}
    return params


# ----------------------------------------------------------------------------
# Forward pass (single jax.jit over everything)
# ----------------------------------------------------------------------------
def bottleneck_forward(x, p, cfg):
    conv2_stride, dilation, has_down, down_stride = cfg
    s1, b1 = _bn_fold(p["bn1"])
    s2, b2 = _bn_fold(p["bn2"])
    s3, b3 = _bn_fold(p["bn3"])
    out = conv_bn(x, p["conv1"], s1, b1, relu=True)
    out = conv_bn(out, p["conv2"], s2, b2, stride=conv2_stride,
                  padding=dilation, dilation=dilation, relu=True)
    if has_down:
        sd, bd = _bn_fold(p["down_bn"])
        shortcut = conv_bn(x, p["down_conv"], sd, bd, stride=down_stride, relu=False)
    else:
        shortcut = x
    # conv3 + BN + residual add + ReLU all fused in one Pallas epilogue
    return conv_bn(out, p["conv3"], s3, b3, relu=True, residual=shortcut)


def ppm_forward(x, ppm_params):
    B, H, W, C = x.shape
    outs = [x]
    for b, p in zip(BINS, ppm_params):
        pooled = sep_resample(x, adaptive_pool_matrix(b, H),
                              adaptive_pool_matrix(b, W))
        s, bb = _bn_fold(p["bn"])
        f = conv_bn(pooled, p["conv"], s, bb, relu=True)
        outs.append(sep_resample(f, bilinear_matrix(H, b), bilinear_matrix(W, b)))
    return jnp.concatenate(outs, axis=-1)


@jax.jit
def pspnet_forward(params, x_nchw):
    x = jnp.transpose(x_nchw.astype(jnp.float32), (0, 2, 3, 1))   # NCHW -> NHWC
    h, w_in = x.shape[1], x.shape[2]

    s = params["stem"]
    sc, bc = _bn_fold(s["bn1"])
    x = conv_bn(x, s["conv1"], sc, bc, stride=2, padding=1, relu=True)
    sc, bc = _bn_fold(s["bn2"])
    x = conv_bn(x, s["conv2"], sc, bc, stride=1, padding=1, relu=True)
    sc, bc = _bn_fold(s["bn3"])
    x = conv_bn(x, s["conv3"], sc, bc, stride=1, padding=1, relu=True)
    x = maxpool_3x3_s2_p1(x)

    x_tmp = None
    for li in range(4):
        for blk_p, blk_cfg in zip(params["layer%d" % (li + 1)], ARCH[li]):
            x = bottleneck_forward(x, blk_p, blk_cfg)
        if li == 2:
            x_tmp = x                        # output of layer3 feeds the aux head

    x = ppm_forward(x, params["ppm"])

    c = params["cls"]
    sc, bc = _bn_fold(c["bn1"])
    y = conv_bn(x, c["conv1"], sc, bc, padding=1, relu=True)
    # nn.Dropout2d(p=0.1): inference mode -> identity
    y = conv_bn(y, c["conv2"], jnp.ones((CLASSES,), jnp.float32), c["bias2"],
                relu=False)
    y = sep_resample(y, bilinear_matrix(h, y.shape[1]),
                     bilinear_matrix(w_in, y.shape[2]))

    a = params["aux"]
    sc, bc = _bn_fold(a["bn1"])
    z = conv_bn(x_tmp, a["conv1"], sc, bc, padding=1, relu=True)
    # nn.Dropout2d(p=0.1): inference mode -> identity
    z = conv_bn(z, a["conv2"], jnp.ones((CLASSES,), jnp.float32), a["bias2"],
                relu=False)
    z = sep_resample(z, bilinear_matrix(h, z.shape[1]),
                     bilinear_matrix(w_in, z.shape[2]))

    # back to NCHW to match the PyTorch output convention
    return jnp.transpose(y, (0, 3, 1, 2)), jnp.transpose(z, (0, 3, 1, 2))


if __name__ == "__main__":
    key = jax.random.PRNGKey(0)
    pkey, xkey = jax.random.split(key)
    params = init_pspnet_params(pkey)
    x = jax.random.normal(xkey, (2, 3, 32, 32), jnp.float32)   # NCHW input
    out, aux = pspnet_forward(params, x)
    out = jax.block_until_ready(out)
    aux = jax.block_until_ready(aux)
    assert out.shape == (2, CLASSES, 32, 32), out.shape
    assert aux.shape == (2, CLASSES, 32, 32), aux.shape
    assert bool(jnp.all(jnp.isfinite(out))) and bool(jnp.all(jnp.isfinite(aux)))
    print("KERNEL_OK")
</pallas_src>

<mosaic_0001>
module attributes {stable_mosaic.version = 11 : i64} {
  func.func @_mm_bn_kernel(%arg0: i32, %arg1: i32, %arg2: memref<128x32xbf16, #tpu.memory_space<vmem>>, %arg3: memref<32x4xbf16, #tpu.memory_space<vmem>>, %arg4: memref<1x4xf32, #tpu.memory_space<vmem>>, %arg5: memref<1x4xf32, #tpu.memory_space<vmem>>, %arg6: memref<128x4xf32, #tpu.memory_space<vmem>>) attributes {dimension_semantics = [#tpu.dimension_semantics<parallel>, #tpu.dimension_semantics<parallel>], iteration_bounds = array<i64: 4, 1>, scalar_prefetch = 0 : i64, scratch_operands = 0 : i64, tpu.core_type = #tpu.core_type<tc>, window_params = [{transform_indices = @transform_0, window_bounds = array<i64: 128, 32>}, {transform_indices = @transform_1, window_bounds = array<i64: 32, 4>}, {transform_indices = @transform_2, window_bounds = array<i64: 1, 4>}, {transform_indices = @transform_3, window_bounds = array<i64: 1, 4>}, {transform_indices = @transform_4, window_bounds = array<i64: 128, 4>}]} {
    %c0 = arith.constant 0 : index
    %c0_0 = arith.constant 0 : index
    %0 = vector.load %arg2[%c0, %c0_0] : memref<128x32xbf16, #tpu.memory_space<vmem>>, vector<128x32xbf16>
    %c0_1 = arith.constant 0 : index
    %c0_2 = arith.constant 0 : index
    %1 = vector.load %arg3[%c0_1, %c0_2] : memref<32x4xbf16, #tpu.memory_space<vmem>>, vector<32x4xbf16>
    %cst = arith.constant dense<0.000000e+00> : vector<128x4xf32>
    %2 = tpu.matmul %0, %1, %cst {dimension_numbers = #tpu.dot_dimension_numbers<[1], [0], [0], [1], [0, 0, 1, 1], [], []>} : vector<128x32xbf16>, vector<32x4xbf16>, vector<128x4xf32> -> vector<128x4xf32>
    %c0_3 = arith.constant 0 : index
    %c0_4 = arith.constant 0 : index
    %3 = vector.load %arg4[%c0_3, %c0_4] : memref<1x4xf32, #tpu.memory_space<vmem>>, vector<1x4xf32>
    %4 = vector.broadcast %3 : vector<1x4xf32> to vector<128x4xf32>
    %5 = arith.mulf %2, %4 : vector<128x4xf32>
    %c0_5 = arith.constant 0 : index
    %c0_6 = arith.constant 0 : index
    %6 = vector.load %arg5[%c0_5, %c0_6] : memref<1x4xf32, #tpu.memory_space<vmem>>, vector<1x4xf32>
    %7 = vector.broadcast %6 : vector<1x4xf32> to vector<128x4xf32>
    %8 = arith.addf %5, %7 : vector<128x4xf32>
    %cst_7 = arith.constant 0.000000e+00 : f32
    %9 = vector.broadcast %cst_7 : f32 to vector<128x4xf32>
    %10 = arith.maximumf %8, %9 : vector<128x4xf32>
    %c0_8 = arith.constant 0 : index
    %c0_9 = arith.constant 0 : index
    %11 = vector.load %arg6[%c0_8, %c0_9] : memref<128x4xf32, #tpu.memory_space<vmem>>, vector<128x4xf32>
    tpu.vector_store %arg6[%c0_8, %c0_9], %10 {strides = array<i32>} : memref<128x4xf32, #tpu.memory_space<vmem>>, vector<128x4xf32>,
    return
  }
  func.func @transform_0(%arg0: i32, %arg1: i32) -> (i32, i32) {
    %c0_i32 = arith.constant 0 : i32
    %c0_i32_0 = arith.constant 0 : i32
    return %arg0, %c0_i32 : i32, i32
  }
  func.func @transform_1(%arg0: i32, %arg1: i32) -> (i32, i32) {
    %c0_i32 = arith.constant 0 : i32
    %c0_i32_0 = arith.constant 0 : i32
    return %c0_i32, %arg1 : i32, i32
  }
  func.func @transform_2(%arg0: i32, %arg1: i32) -> (i32, i32) {
    %c0_i32 = arith.constant 0 : i32
    %c0_i32_0 = arith.constant 0 : i32
    return %c0_i32, %arg1 : i32, i32
  }
  func.func @transform_3(%arg0: i32, %arg1: i32) -> (i32, i32) {
    %c0_i32 = arith.constant 0 : i32
    %c0_i32_0 = arith.constant 0 : i32
    return %c0_i32, %arg1 : i32, i32
  }
  func.func @transform_4(%arg0: i32, %arg1: i32) -> (i32, i32) {
    %c0_i32 = arith.constant 0 : i32
    return %arg0, %arg1 : i32, i32
  }
}

module attributes {stable_mosaic.version = 11 : i64} {
  func.func @_mm_bn_kernel(%arg0: i32, %arg1: i32, %arg2: memref<128x48xbf16, #tpu.memory_space<vmem>>, %arg3: memref<48x4xbf16, #tpu.memory_space<vmem>>, %arg4: memref<1x4xf32, #tpu.memory_space<vmem>>, %arg5: memref<1x4xf32, #tpu.memory_space<vmem>>, %arg6: memref<128x4xf32, #tpu.memory_space<vmem>>) attributes {dimension_semantics = [#tpu.dimension_semantics<parallel>, #tpu.dimension_semantics<parallel>], iteration_bounds = array<i64: 4, 1>, scalar_prefetch = 0 : i64, scratch_operands = 0 : i64, tpu.core_type = #tpu.core_type<tc>, window_params = [{transform_indices = @transform_0, window_bounds = array<i64: 128, 48>}, {transform_indices = @transform_1, window_bounds = array<i64: 48, 4>}, {transform_indices = @transform_2, window_bounds = array<i64: 1, 4>}, {transform_indices = @transform_3, window_bounds = array<i64: 1, 4>}, {transform_indices = @transform_4, window_bounds = array<i64: 128, 4>}]} {
    %c0 = arith.constant 0 : index
    %c0_0 = arith.constant 0 : index
    %0 = vector.load %arg2[%c0, %c0_0] : memref<128x48xbf16, #tpu.memory_space<vmem>>, vector<128x48xbf16>
    %c0_1 = arith.constant 0 : index
    %c0_2 = arith.constant 0 : index
    %1 = vector.load %arg3[%c0_1, %c0_2] : memref<48x4xbf16, #tpu.memory_space<vmem>>, vector<48x4xbf16>
    %cst = arith.constant dense<0.000000e+00> : vector<128x4xf32>
    %2 = tpu.matmul %0, %1, %cst {dimension_numbers = #tpu.dot_dimension_numbers<[1], [0], [0], [1], [0, 0, 1, 1], [], []>} : vector<128x48xbf16>, vector<48x4xbf16>, vector<128x4xf32> -> vector<128x4xf32>
    %c0_3 = arith.constant 0 : index
    %c0_4 = arith.constant 0 : index
    %3 = vector.load %arg4[%c0_3, %c0_4] : memref<1x4xf32, #tpu.memory_space<vmem>>, vector<1x4xf32>
    %4 = vector.broadcast %3 : vector<1x4xf32> to vector<128x4xf32>
    %5 = arith.mulf %2, %4 : vector<128x4xf32>
    %c0_5 = arith.constant 0 : index
    %c0_6 = arith.constant 0 : index
    %6 = vector.load %arg5[%c0_5, %c0_6] : memref<1x4xf32, #tpu.memory_space<vmem>>, vector<1x4xf32>
    %7 = vector.broadcast %6 : vector<1x4xf32> to vector<128x4xf32>
    %8 = arith.addf %5, %7 : vector<128x4xf32>
    %cst_7 = arith.constant 0.000000e+00 : f32
    %9 = vector.broadcast %cst_7 : f32 to vector<128x4xf32>
    %10 = arith.maximumf %8, %9 : vector<128x4xf32>
    %c0_8 = arith.constant 0 : index
    %c0_9 = arith.constant 0 : index
    %11 = vector.load %arg6[%c0_8, %c0_9] : memref<128x4xf32, #tpu.memory_space<vmem>>, vector<128x4xf32>
    tpu.vector_store %arg6[%c0_8, %c0_9], %10 {strides = array<i32>} : memref<128x4xf32, #tpu.memory_space<vmem>>, vector<128x4xf32>,
    return
  }
  func.func @transform_0(%arg0: i32, %arg1: i32) -> (i32, i32) {
    %c0_i32 = arith.constant 0 : i32
    %c0_i32_0 = arith.constant 0 : i32
    return %arg0, %c0_i32 : i32, i32
  }
  func.func @transform_1(%arg0: i32, %arg1: i32) -> (i32, i32) {
    %c0_i32 = arith.constant 0 : i32
    %c0_i32_0 = arith.constant 0 : i32
    return %c0_i32, %arg1 : i32, i32
  }
  func.func @transform_2(%arg0: i32, %arg1: i32) -> (i32, i32) {
    %c0_i32 = arith.constant 0 : i32
    %c0_i32_0 = arith.constant 0 : i32
    return %c0_i32, %arg1 : i32, i32
  }
  func.func @transform_3(%arg0: i32, %arg1: i32) -> (i32, i32) {
    %c0_i32 = arith.constant 0 : i32
    %c0_i32_0 = arith.constant 0 : i32
    return %c0_i32, %arg1 : i32, i32
  }
  func.func @transform_4(%arg0: i32, %arg1: i32) -> (i32, i32) {
    %c0_i32 = arith.constant 0 : i32
    return %arg0, %arg1 : i32, i32
  }
}

module attributes {stable_mosaic.version = 11 : i64} {
  func.func @_mm_bn_kernel(%arg0: i32, %arg1: i32, %arg2: memref<128x48xbf16, #tpu.memory_space<vmem>>, %arg3: memref<48x8xbf16, #tpu.memory_space<vmem>>, %arg4: memref<1x8xf32, #tpu.memory_space<vmem>>, %arg5: memref<1x8xf32, #tpu.memory_space<vmem>>, %arg6: memref<128x8xf32, #tpu.memory_space<vmem>>) attributes {dimension_semantics = [#tpu.dimension_semantics<parallel>, #tpu.dimension_semantics<parallel>], iteration_bounds = array<i64: 4, 1>, scalar_prefetch = 0 : i64, scratch_operands = 0 : i64, tpu.core_type = #tpu.core_type<tc>, window_params = [{transform_indices = @transform_0, window_bounds = array<i64: 128, 48>}, {transform_indices = @transform_1, window_bounds = array<i64: 48, 8>}, {transform_indices = @transform_2, window_bounds = array<i64: 1, 8>}, {transform_indices = @transform_3, window_bounds = array<i64: 1, 8>}, {transform_indices = @transform_4, window_bounds = array<i64: 128, 8>}]} {
    %c0 = arith.constant 0 : index
    %c0_0 = arith.constant 0 : index
    %0 = vector.load %arg2[%c0, %c0_0] : memref<128x48xbf16, #tpu.memory_space<vmem>>, vector<128x48xbf16>
    %c0_1 = arith.constant 0 : index
    %c0_2 = arith.constant 0 : index
    %1 = vector.load %arg3[%c0_1, %c0_2] : memref<48x8xbf16, #tpu.memory_space<vmem>>, vector<48x8xbf16>
    %cst = arith.constant dense<0.000000e+00> : vector<128x8xf32>
    %2 = tpu.matmul %0, %1, %cst {dimension_numbers = #tpu.dot_dimension_numbers<[1], [0], [0], [1], [0, 0, 1, 1], [], []>} : vector<128x48xbf16>, vector<48x8xbf16>, vector<128x8xf32> -> vector<128x8xf32>
    %c0_3 = arith.constant 0 : index
    %c0_4 = arith.constant 0 : index
    %3 = vector.load %arg4[%c0_3, %c0_4] : memref<1x8xf32, #tpu.memory_space<vmem>>, vector<1x8xf32>
    %4 = vector.broadcast %3 : vector<1x8xf32> to vector<128x8xf32>
    %5 = arith.mulf %2, %4 : vector<128x8xf32>
    %c0_5 = arith.constant 0 : index
    %c0_6 = arith.constant 0 : index
    %6 = vector.load %arg5[%c0_5, %c0_6] : memref<1x8xf32, #tpu.memory_space<vmem>>, vector<1x8xf32>
    %7 = vector.broadcast %6 : vector<1x8xf32> to vector<128x8xf32>
    %8 = arith.addf %5, %7 : vector<128x8xf32>
    %cst_7 = arith.constant 0.000000e+00 : f32
    %9 = vector.broadcast %cst_7 : f32 to vector<128x8xf32>
    %10 = arith.maximumf %8, %9 : vector<128x8xf32>
    %c0_8 = arith.constant 0 : index
    %c0_9 = arith.constant 0 : index
    %11 = vector.load %arg6[%c0_8, %c0_9] : memref<128x8xf32, #tpu.memory_space<vmem>>, vector<128x8xf32>
    tpu.vector_store %arg6[%c0_8, %c0_9], %10 {strides = array<i32>} : memref<128x8xf32, #tpu.memory_space<vmem>>, vector<128x8xf32>,
    return
  }
  func.func @transform_0(%arg0: i32, %arg1: i32) -> (i32, i32) {
    %c0_i32 = arith.constant 0 : i32
    %c0_i32_0 = arith.constant 0 : i32
    return %arg0, %c0_i32 : i32, i32
  }
  func.func @transform_1(%arg0: i32, %arg1: i32) -> (i32, i32) {
    %c0_i32 = arith.constant 0 : i32
    %c0_i32_0 = arith.constant 0 : i32
    return %c0_i32, %arg1 : i32, i32
  }
  func.func @transform_2(%arg0: i32, %arg1: i32) -> (i32, i32) {
    %c0_i32 = arith.constant 0 : i32
    %c0_i32_0 = arith.constant 0 : i32
    return %c0_i32, %arg1 : i32, i32
  }
  func.func @transform_3(%arg0: i32, %arg1: i32) -> (i32, i32) {
    %c0_i32 = arith.constant 0 : i32
    %c0_i32_0 = arith.constant 0 : i32
    return %c0_i32, %arg1 : i32, i32
  }
  func.func @transform_4(%arg0: i32, %arg1: i32) -> (i32, i32) {
    %c0_i32 = arith.constant 0 : i32
    return %arg0, %arg1 : i32, i32
  }
}

module attributes {stable_mosaic.version = 11 : i64} {
  func.func @_mm_bn_kernel(%arg0: i32, %arg1: i32, %arg2: memref<128x16xbf16, #tpu.memory_space<vmem>>, %arg3: memref<16x4xbf16, #tpu.memory_space<vmem>>, %arg4: memref<1x4xf32, #tpu.memory_space<vmem>>, %arg5: memref<1x4xf32, #tpu.memory_space<vmem>>, %arg6: memref<128x4xf32, #tpu.memory_space<vmem>>) attributes {dimension_semantics = [#tpu.dimension_semantics<parallel>, #tpu.dimension_semantics<parallel>], iteration_bounds = array<i64: 1, 1>, scalar_prefetch = 0 : i64, scratch_operands = 0 : i64, tpu.core_type = #tpu.core_type<tc>, window_params = [{transform_indices = @transform_0, window_bounds = array<i64: 128, 16>}, {transform_indices = @transform_1, window_bounds = array<i64: 16, 4>}, {transform_indices = @transform_2, window_bounds = array<i64: 1, 4>}, {transform_indices = @transform_3, window_bounds = array<i64: 1, 4>}, {transform_indices = @transform_4, window_bounds = array<i64: 128, 4>}]} {
    %c0 = arith.constant 0 : index
    %c0_0 = arith.constant 0 : index
    %0 = vector.load %arg2[%c0, %c0_0] : memref<128x16xbf16, #tpu.memory_space<vmem>>, vector<128x16xbf16>
    %c0_1 = arith.constant 0 : index
    %c0_2 = arith.constant 0 : index
    %1 = vector.load %arg3[%c0_1, %c0_2] : memref<16x4xbf16, #tpu.memory_space<vmem>>, vector<16x4xbf16>
    %cst = arith.constant dense<0.000000e+00> : vector<128x4xf32>
    %2 = tpu.matmul %0, %1, %cst {dimension_numbers = #tpu.dot_dimension_numbers<[1], [0], [0], [1], [0, 0, 1, 1], [], []>} : vector<128x16xbf16>, vector<16x4xbf16>, vector<128x4xf32> -> vector<128x4xf32>
    %c0_3 = arith.constant 0 : index
    %c0_4 = arith.constant 0 : index
    %3 = vector.load %arg4[%c0_3, %c0_4] : memref<1x4xf32, #tpu.memory_space<vmem>>, vector<1x4xf32>
    %4 = vector.broadcast %3 : vector<1x4xf32> to vector<128x4xf32>
    %5 = arith.mulf %2, %4 : vector<128x4xf32>
    %c0_5 = arith.constant 0 : index
    %c0_6 = arith.constant 0 : index
    %6 = vector.load %arg5[%c0_5, %c0_6] : memref<1x4xf32, #tpu.memory_space<vmem>>, vector<1x4xf32>
    %7 = vector.broadcast %6 : vector<1x4xf32> to vector<128x4xf32>
    %8 = arith.addf %5, %7 : vector<128x4xf32>
    %cst_7 = arith.constant 0.000000e+00 : f32
    %9 = vector.broadcast %cst_7 : f32 to vector<128x4xf32>
    %10 = arith.maximumf %8, %9 : vector<128x4xf32>
    %c0_8 = arith.constant 0 : index
    %c0_9 = arith.constant 0 : index
    %11 = vector.load %arg6[%c0_8, %c0_9] : memref<128x4xf32, #tpu.memory_space<vmem>>, vector<128x4xf32>
    tpu.vector_store %arg6[%c0_8, %c0_9], %10 {strides = array<i32>} : memref<128x4xf32, #tpu.memory_space<vmem>>, vector<128x4xf32>,
    return
  }
  func.func @transform_0(%arg0: i32, %arg1: i32) -> (i32, i32) {
    %c0_i32 = arith.constant 0 : i32
    %c0_i32_0 = arith.constant 0 : i32
    return %arg0, %c0_i32 : i32, i32
  }
  func.func @transform_1(%arg0: i32, %arg1: i32) -> (i32, i32) {
    %c0_i32 = arith.constant 0 : i32
    %c0_i32_0 = arith.constant 0 : i32
    return %c0_i32, %arg1 : i32, i32
  }
  func.func @transform_2(%arg0: i32, %arg1: i32) -> (i32, i32) {
    %c0_i32 = arith.constant 0 : i32
    %c0_i32_0 = arith.constant 0 : i32
    return %c0_i32, %arg1 : i32, i32
  }
  func.func @transform_3(%arg0: i32, %arg1: i32) -> (i32, i32) {
    %c0_i32 = arith.constant 0 : i32
    %c0_i32_0 = arith.constant 0 : i32
    return %c0_i32, %arg1 : i32, i32
  }
  func.func @transform_4(%arg0: i32, %arg1: i32) -> (i32, i32) {
    %c0_i32 = arith.constant 0 : i32
    return %arg0, %arg1 : i32, i32
  }
}

module attributes {stable_mosaic.version = 11 : i64} {
  func.func @_mm_bn_kernel(%arg0: i32, %arg1: i32, %arg2: memref<128x48xbf16, #tpu.memory_space<vmem>>, %arg3: memref<48x4xbf16, #tpu.memory_space<vmem>>, %arg4: memref<1x4xf32, #tpu.memory_space<vmem>>, %arg5: memref<1x4xf32, #tpu.memory_space<vmem>>, %arg6: memref<128x4xf32, #tpu.memory_space<vmem>>) attributes {dimension_semantics = [#tpu.dimension_semantics<parallel>, #tpu.dimension_semantics<parallel>], iteration_bounds = array<i64: 1, 1>, scalar_prefetch = 0 : i64, scratch_operands = 0 : i64, tpu.core_type = #tpu.core_type<tc>, window_params = [{transform_indices = @transform_0, window_bounds = array<i64: 128, 48>}, {transform_indices = @transform_1, window_bounds = array<i64: 48, 4>}, {transform_indices = @transform_2, window_bounds = array<i64: 1, 4>}, {transform_indices = @transform_3, window_bounds = array<i64: 1, 4>}, {transform_indices = @transform_4, window_bounds = array<i64: 128, 4>}]} {
    %c0 = arith.constant 0 : index
    %c0_0 = arith.constant 0 : index
    %0 = vector.load %arg2[%c0, %c0_0] : memref<128x48xbf16, #tpu.memory_space<vmem>>, vector<128x48xbf16>
    %c0_1 = arith.constant 0 : index
    %c0_2 = arith.constant 0 : index
    %1 = vector.load %arg3[%c0_1, %c0_2] : memref<48x4xbf16, #tpu.memory_space<vmem>>, vector<48x4xbf16>
    %cst = arith.constant dense<0.000000e+00> : vector<128x4xf32>
    %2 = tpu.matmul %0, %1, %cst {dimension_numbers = #tpu.dot_dimension_numbers<[1], [0], [0], [1], [0, 0, 1, 1], [], []>} : vector<128x48xbf16>, vector<48x4xbf16>, vector<128x4xf32> -> vector<128x4xf32>
    %c0_3 = arith.constant 0 : index
    %c0_4 = arith.constant 0 : index
    %3 = vector.load %arg4[%c0_3, %c0_4] : memref<1x4xf32, #tpu.memory_space<vmem>>, vector<1x4xf32>
    %4 = vector.broadcast %3 : vector<1x4xf32> to vector<128x4xf32>
    %5 = arith.mulf %2, %4 : vector<128x4xf32>
    %c0_5 = arith.constant 0 : index
    %c0_6 = arith.constant 0 : index
    %6 = vector.load %arg5[%c0_5, %c0_6] : memref<1x4xf32, #tpu.memory_space<vmem>>, vector<1x4xf32>
    %7 = vector.broadcast %6 : vector<1x4xf32> to vector<128x4xf32>
    %8 = arith.addf %5, %7 : vector<128x4xf32>
    %cst_7 = arith.constant 0.000000e+00 : f32
    %9 = vector.broadcast %cst_7 : f32 to vector<128x4xf32>
    %10 = arith.maximumf %8, %9 : vector<128x4xf32>
    %c0_8 = arith.constant 0 : index
    %c0_9 = arith.constant 0 : index
    %11 = vector.load %arg6[%c0_8, %c0_9] : memref<128x4xf32, #tpu.memory_space<vmem>>, vector<128x4xf32>
    tpu.vector_store %arg6[%c0_8, %c0_9], %10 {strides = array<i32>} : memref<128x4xf32, #tpu.memory_space<vmem>>, vector<128x4xf32>,
    return
  }
  func.func @transform_0(%arg0: i32, %arg1: i32) -> (i32, i32) {
    %c0_i32 = arith.constant 0 : i32
    %c0_i32_0 = arith.constant 0 : i32
    return %arg0, %c0_i32 : i32, i32
  }
  func.func @transform_1(%arg0: i32, %arg1: i32) -> (i32, i32) {
    %c0_i32 = arith.constant 0 : i32
    %c0_i32_0 = arith.constant 0 : i32
    return %c0_i32, %arg1 : i32, i32
  }
  func.func @transform_2(%arg0: i32, %arg1: i32) -> (i32, i32) {
    %c0_i32 = arith.constant 0 : i32
    %c0_i32_0 = arith.constant 0 : i32
    return %c0_i32, %arg1 : i32, i32
  }
  func.func @transform_3(%arg0: i32, %arg1: i32) -> (i32, i32) {
    %c0_i32 = arith.constant 0 : i32
    %c0_i32_0 = arith.constant 0 : i32
    return %c0_i32, %arg1 : i32, i32
  }
  func.func @transform_4(%arg0: i32, %arg1: i32) -> (i32, i32) {
    %c0_i32 = arith.constant 0 : i32
    return %arg0, %arg1 : i32, i32
  }
}

module attributes {stable_mosaic.version = 11 : i64} {
  func.func @_mm_bn_kernel(%arg0: i32, %arg1: i32, %arg2: memref<128x16xbf16, #tpu.memory_space<vmem>>, %arg3: memref<16x16xbf16, #tpu.memory_space<vmem>>, %arg4: memref<1x16xf32, #tpu.memory_space<vmem>>, %arg5: memref<1x16xf32, #tpu.memory_space<vmem>>, %arg6: memref<128x16xf32, #tpu.memory_space<vmem>>) attributes {dimension_semantics = [#tpu.dimension_semantics<parallel>, #tpu.dimension_semantics<parallel>], iteration_bounds = array<i64: 1, 1>, scalar_prefetch = 0 : i64, scratch_operands = 0 : i64, tpu.core_type = #tpu.core_type<tc>, window_params = [{transform_indices = @transform_0, window_bounds = array<i64: 128, 16>}, {transform_indices = @transform_1, window_bounds = array<i64: 16, 16>}, {transform_indices = @transform_2, window_bounds = array<i64: 1, 16>}, {transform_indices = @transform_3, window_bounds = array<i64: 1, 16>}, {transform_indices = @transform_4, window_bounds = array<i64: 128, 16>}]} {
    %c0 = arith.constant 0 : index
    %c0_0 = arith.constant 0 : index
    %0 = vector.load %arg2[%c0, %c0_0] : memref<128x16xbf16, #tpu.memory_space<vmem>>, vector<128x16xbf16>
    %c0_1 = arith.constant 0 : index
    %c0_2 = arith.constant 0 : index
    %1 = vector.load %arg3[%c0_1, %c0_2] : memref<16x16xbf16, #tpu.memory_space<vmem>>, vector<16x16xbf16>
    %cst = arith.constant dense<0.000000e+00> : vector<128x16xf32>
    %2 = tpu.matmul %0, %1, %cst {dimension_numbers = #tpu.dot_dimension_numbers<[1], [0], [0], [1], [0, 0, 1, 1], [], []>} : vector<128x16xbf16>, vector<16x16xbf16>, vector<128x16xf32> -> vector<128x16xf32>
    %c0_3 = arith.constant 0 : index
    %c0_4 = arith.constant 0 : index
    %3 = vector.load %arg4[%c0_3, %c0_4] : memref<1x16xf32, #tpu.memory_space<vmem>>, vector<1x16xf32>
    %4 = vector.broadcast %3 : vector<1x16xf32> to vector<128x16xf32>
    %5 = arith.mulf %2, %4 : vector<128x16xf32>
    %c0_5 = arith.constant 0 : index
    %c0_6 = arith.constant 0 : index
    %6 = vector.load %arg5[%c0_5, %c0_6] : memref<1x16xf32, #tpu.memory_space<vmem>>, vector<1x16xf32>
    %7 = vector.broadcast %6 : vector<1x16xf32> to vector<128x16xf32>
    %8 = arith.addf %5, %7 : vector<128x16xf32>
    %c0_7 = arith.constant 0 : index
    %c0_8 = arith.constant 0 : index
    %9 = vector.load %arg6[%c0_7, %c0_8] : memref<128x16xf32, #tpu.memory_space<vmem>>, vector<128x16xf32>
    tpu.vector_store %arg6[%c0_7, %c0_8], %8 {strides = array<i32>} : memref<128x16xf32, #tpu.memory_space<vmem>>, vector<128x16xf32>,
    return
  }
  func.func @transform_0(%arg0: i32, %arg1: i32) -> (i32, i32) {
    %c0_i32 = arith.constant 0 : i32
    %c0_i32_0 = arith.constant 0 : i32
    return %arg0, %c0_i32 : i32, i32
  }
  func.func @transform_1(%arg0: i32, %arg1: i32) -> (i32, i32) {
    %c0_i32 = arith.constant 0 : i32
    %c0_i32_0 = arith.constant 0 : i32
    return %c0_i32, %arg1 : i32, i32
  }
  func.func @transform_2(%arg0: i32, %arg1: i32) -> (i32, i32) {
    %c0_i32 = arith.constant 0 : i32
    %c0_i32_0 = arith.constant 0 : i32
    return %c0_i32, %arg1 : i32, i32
  }
  func.func @transform_3(%arg0: i32, %arg1: i32) -> (i32, i32) {
    %c0_i32 = arith.constant 0 : i32
    %c0_i32_0 = arith.constant 0 : i32
    return %c0_i32, %arg1 : i32, i32
  }
  func.func @transform_4(%arg0: i32, %arg1: i32) -> (i32, i32) {
    %c0_i32 = arith.constant 0 : i32
    return %arg0, %arg1 : i32, i32
  }
}

module attributes {stable_mosaic.version = 11 : i64} {
  func.func @_mm_bn_res_kernel(%arg0: i32, %arg1: i32, %arg2: memref<128x16xbf16, #tpu.memory_space<vmem>>, %arg3: memref<16x16xbf16, #tpu.memory_space<vmem>>, %arg4: memref<1x16xf32, #tpu.memory_space<vmem>>, %arg5: memref<1x16xf32, #tpu.memory_space<vmem>>, %arg6: memref<128x16xf32, #tpu.memory_space<vmem>>, %arg7: memref<128x16xf32, #tpu.memory_space<vmem>>) attributes {dimension_semantics = [#tpu.dimension_semantics<parallel>, #tpu.dimension_semantics<parallel>], iteration_bounds = array<i64: 1, 1>, scalar_prefetch = 0 : i64, scratch_operands = 0 : i64, tpu.core_type = #tpu.core_type<tc>, window_params = [{transform_indices = @transform_0, window_bounds = array<i64: 128, 16>}, {transform_indices = @transform_1, window_bounds = array<i64: 16, 16>}, {transform_indices = @transform_2, window_bounds = array<i64: 1, 16>}, {transform_indices = @transform_3, window_bounds = array<i64: 1, 16>}, {transform_indices = @transform_4, window_bounds = array<i64: 128, 16>}, {transform_indices = @transform_5, window_bounds = array<i64: 128, 16>}]} {
    %c0 = arith.constant 0 : index
    %c0_0 = arith.constant 0 : index
    %0 = vector.load %arg2[%c0, %c0_0] : memref<128x16xbf16, #tpu.memory_space<vmem>>, vector<128x16xbf16>
    %c0_1 = arith.constant 0 : index
    %c0_2 = arith.constant 0 : index
    %1 = vector.load %arg3[%c0_1, %c0_2] : memref<16x16xbf16, #tpu.memory_space<vmem>>, vector<16x16xbf16>
    %cst = arith.constant dense<0.000000e+00> : vector<128x16xf32>
    %2 = tpu.matmul %0, %1, %cst {dimension_numbers = #tpu.dot_dimension_numbers<[1], [0], [0], [1], [0, 0, 1, 1], [], []>} : vector<128x16xbf16>, vector<16x16xbf16>, vector<128x16xf32> -> vector<128x16xf32>
    %c0_3 = arith.constant 0 : index
    %c0_4 = arith.constant 0 : index
    %3 = vector.load %arg4[%c0_3, %c0_4] : memref<1x16xf32, #tpu.memory_space<vmem>>, vector<1x16xf32>
    %4 = vector.broadcast %3 : vector<1x16xf32> to vector<128x16xf32>
    %5 = arith.mulf %2, %4 : vector<128x16xf32>
    %c0_5 = arith.constant 0 : index
    %c0_6 = arith.constant 0 : index
    %6 = vector.load %arg5[%c0_5, %c0_6] : memref<1x16xf32, #tpu.memory_space<vmem>>, vector<1x16xf32>
    %7 = vector.broadcast %6 : vector<1x16xf32> to vector<128x16xf32>
    %8 = arith.addf %5, %7 : vector<128x16xf32>
    %c0_7 = arith.constant 0 : index
    %c0_8 = arith.constant 0 : index
    %9 = vector.load %arg6[%c0_7, %c0_8] : memref<128x16xf32, #tpu.memory_space<vmem>>, vector<128x16xf32>
    %10 = arith.addf %8, %9 : vector<128x16xf32>
    %cst_9 = arith.constant 0.000000e+00 : f32
    %11 = vector.broadcast %cst_9 : f32 to vector<128x16xf32>
    %12 = arith.maximumf %10, %11 : vector<128x16xf32>
    %c0_10 = arith.constant 0 : index
    %c0_11 = arith.constant 0 : index
    %13 = vector.load %arg7[%c0_10, %c0_11] : memref<128x16xf32, #tpu.memory_space<vmem>>, vector<128x16xf32>
    tpu.vector_store %arg7[%c0_10, %c0_11], %12 {strides = array<i32>} : memref<128x16xf32, #tpu.memory_space<vmem>>, vector<128x16xf32>,
    return
  }
  func.func @transform_0(%arg0: i32, %arg1: i32) -> (i32, i32) {
    %c0_i32 = arith.constant 0 : i32
    %c0_i32_0 = arith.constant 0 : i32
    return %arg0, %c0_i32 : i32, i32
  }
  func.func @transform_1(%arg0: i32, %arg1: i32) -> (i32, i32) {
    %c0_i32 = arith.constant 0 : i32
    %c0_i32_0 = arith.constant 0 : i32
    return %c0_i32, %arg1 : i32, i32
  }
  func.func @transform_2(%arg0: i32, %arg1: i32) -> (i32, i32) {
    %c0_i32 = arith.constant 0 : i32
    %c0_i32_0 = arith.constant 0 : i32
    return %c0_i32, %arg1 : i32, i32
  }
  func.func @transform_3(%arg0: i32, %arg1: i32) -> (i32, i32) {
    %c0_i32 = arith.constant 0 : i32
    %c0_i32_0 = arith.constant 0 : i32
    return %c0_i32, %arg1 : i32, i32
  }
  func.func @transform_4(%arg0: i32, %arg1: i32) -> (i32, i32) {
    %c0_i32 = arith.constant 0 : i32
    return %arg0, %arg1 : i32, i32
  }
  func.func @transform_5(%arg0: i32, %arg1: i32) -> (i32, i32) {
    %c0_i32 = arith.constant 0 : i32
    return %arg0, %arg1 : i32, i32
  }
}

module attributes {stable_mosaic.version = 11 : i64} {
  func.func @_mm_bn_kernel(%arg0: i32, %arg1: i32, %arg2: memref<128x16xbf16, #tpu.memory_space<vmem>>, %arg3: memref<16x8xbf16, #tpu.memory_space<vmem>>, %arg4: memref<1x8xf32, #tpu.memory_space<vmem>>, %arg5: memref<1x8xf32, #tpu.memory_space<vmem>>, %arg6: memref<128x8xf32, #tpu.memory_space<vmem>>) attributes {dimension_semantics = [#tpu.dimension_semantics<parallel>, #tpu.dimension_semantics<parallel>], iteration_bounds = array<i64: 1, 1>, scalar_prefetch = 0 : i64, scratch_operands = 0 : i64, tpu.core_type = #tpu.core_type<tc>, window_params = [{transform_indices = @transform_0, window_bounds = array<i64: 128, 16>}, {transform_indices = @transform_1, window_bounds = array<i64: 16, 8>}, {transform_indices = @transform_2, window_bounds = array<i64: 1, 8>}, {transform_indices = @transform_3, window_bounds = array<i64: 1, 8>}, {transform_indices = @transform_4, window_bounds = array<i64: 128, 8>}]} {
    %c0 = arith.constant 0 : index
    %c0_0 = arith.constant 0 : index
    %0 = vector.load %arg2[%c0, %c0_0] : memref<128x16xbf16, #tpu.memory_space<vmem>>, vector<128x16xbf16>
    %c0_1 = arith.constant 0 : index
    %c0_2 = arith.constant 0 : index
    %1 = vector.load %arg3[%c0_1, %c0_2] : memref<16x8xbf16, #tpu.memory_space<vmem>>, vector<16x8xbf16>
    %cst = arith.constant dense<0.000000e+00> : vector<128x8xf32>
    %2 = tpu.matmul %0, %1, %cst {dimension_numbers = #tpu.dot_dimension_numbers<[1], [0], [0], [1], [0, 0, 1, 1], [], []>} : vector<128x16xbf16>, vector<16x8xbf16>, vector<128x8xf32> -> vector<128x8xf32>
    %c0_3 = arith.constant 0 : index
    %c0_4 = arith.constant 0 : index
    %3 = vector.load %arg4[%c0_3, %c0_4] : memref<1x8xf32, #tpu.memory_space<vmem>>, vector<1x8xf32>
    %4 = vector.broadcast %3 : vector<1x8xf32> to vector<128x8xf32>
    %5 = arith.mulf %2, %4 : vector<128x8xf32>
    %c0_5 = arith.constant 0 : index
    %c0_6 = arith.constant 0 : index
    %6 = vector.load %arg5[%c0_5, %c0_6] : memref<1x8xf32, #tpu.memory_space<vmem>>, vector<1x8xf32>
    %7 = vector.broadcast %6 : vector<1x8xf32> to vector<128x8xf32>
    %8 = arith.addf %5, %7 : vector<128x8xf32>
    %cst_7 = arith.constant 0.000000e+00 : f32
    %9 = vector.broadcast %cst_7 : f32 to vector<128x8xf32>
    %10 = arith.maximumf %8, %9 : vector<128x8xf32>
    %c0_8 = arith.constant 0 : index
    %c0_9 = arith.constant 0 : index
    %11 = vector.load %arg6[%c0_8, %c0_9] : memref<128x8xf32, #tpu.memory_space<vmem>>, vector<128x8xf32>
    tpu.vector_store %arg6[%c0_8, %c0_9], %10 {strides = array<i32>} : memref<128x8xf32, #tpu.memory_space<vmem>>, vector<128x8xf32>,
    return
  }
  func.func @transform_0(%arg0: i32, %arg1: i32) -> (i32, i32) {
    %c0_i32 = arith.constant 0 : i32
    %c0_i32_0 = arith.constant 0 : i32
    return %arg0, %c0_i32 : i32, i32
  }
  func.func @transform_1(%arg0: i32, %arg1: i32) -> (i32, i32) {
    %c0_i32 = arith.constant 0 : i32
    %c0_i32_0 = arith.constant 0 : i32
    return %c0_i32, %arg1 : i32, i32
  }
  func.func @transform_2(%arg0: i32, %arg1: i32) -> (i32, i32) {
    %c0_i32 = arith.constant 0 : i32
    %c0_i32_0 = arith.constant 0 : i32
    return %c0_i32, %arg1 : i32, i32
  }
  func.func @transform_3(%arg0: i32, %arg1: i32) -> (i32, i32) {
    %c0_i32 = arith.constant 0 : i32
    %c0_i32_0 = arith.constant 0 : i32
    return %c0_i32, %arg1 : i32, i32
  }
  func.func @transform_4(%arg0: i32, %arg1: i32) -> (i32, i32) {
    %c0_i32 = arith.constant 0 : i32
    return %arg0, %arg1 : i32, i32
  }
}

module attributes {stable_mosaic.version = 11 : i64} {
  func.func @_mm_bn_kernel(%arg0: i32, %arg1: i32, %arg2: memref<32x80xbf16, #tpu.memory_space<vmem>>, %arg3: memref<80x8xbf16, #tpu.memory_space<vmem>>, %arg4: memref<1x8xf32, #tpu.memory_space<vmem>>, %arg5: memref<1x8xf32, #tpu.memory_space<vmem>>, %arg6: memref<32x8xf32, #tpu.memory_space<vmem>>) attributes {dimension_semantics = [#tpu.dimension_semantics<parallel>, #tpu.dimension_semantics<parallel>], iteration_bounds = array<i64: 1, 1>, scalar_prefetch = 0 : i64, scratch_operands = 0 : i64, tpu.core_type = #tpu.core_type<tc>, window_params = [{transform_indices = @transform_0, window_bounds = array<i64: 32, 80>}, {transform_indices = @transform_1, window_bounds = array<i64: 80, 8>}, {transform_indices = @transform_2, window_bounds = array<i64: 1, 8>}, {transform_indices = @transform_3, window_bounds = array<i64: 1, 8>}, {transform_indices = @transform_4, window_bounds = array<i64: 32, 8>}]} {
    %c0 = arith.constant 0 : index
    %c0_0 = arith.constant 0 : index
    %0 = vector.load %arg2[%c0, %c0_0] : memref<32x80xbf16, #tpu.memory_space<vmem>>, vector<32x80xbf16>
    %c0_1 = arith.constant 0 : index
    %c0_2 = arith.constant 0 : index
    %1 = vector.load %arg3[%c0_1, %c0_2] : memref<80x8xbf16, #tpu.memory_space<vmem>>, vector<80x8xbf16>
    %cst = arith.constant dense<0.000000e+00> : vector<32x8xf32>
    %2 = tpu.matmul %0, %1, %cst {dimension_numbers = #tpu.dot_dimension_numbers<[1], [0], [0], [1], [0, 0, 1, 1], [], []>} : vector<32x80xbf16>, vector<80x8xbf16>, vector<32x8xf32> -> vector<32x8xf32>
    %c0_3 = arith.constant 0 : index
    %c0_4 = arith.constant 0 : index
    %3 = vector.load %arg4[%c0_3, %c0_4] : memref<1x8xf32, #tpu.memory_space<vmem>>, vector<1x8xf32>
    %4 = vector.broadcast %3 : vector<1x8xf32> to vector<32x8xf32>
    %5 = arith.mulf %2, %4 : vector<32x8xf32>
    %c0_5 = arith.constant 0 : index
    %c0_6 = arith.constant 0 : index
    %6 = vector.load %arg5[%c0_5, %c0_6] : memref<1x8xf32, #tpu.memory_space<vmem>>, vector<1x8xf32>
    %7 = vector.broadcast %6 : vector<1x8xf32> to vector<32x8xf32>
    %8 = arith.addf %5, %7 : vector<32x8xf32>
    %cst_7 = arith.constant 0.000000e+00 : f32
    %9 = vector.broadcast %cst_7 : f32 to vector<32x8xf32>
    %10 = arith.maximumf %8, %9 : vector<32x8xf32>
    %c0_8 = arith.constant 0 : index
    %c0_9 = arith.constant 0 : index
    %11 = vector.load %arg6[%c0_8, %c0_9] : memref<32x8xf32, #tpu.memory_space<vmem>>, vector<32x8xf32>
    tpu.vector_store %arg6[%c0_8, %c0_9], %10 {strides = array<i32>} : memref<32x8xf32, #tpu.memory_space<vmem>>, vector<32x8xf32>,
    return
  }
  func.func @transform_0(%arg0: i32, %arg1: i32) -> (i32, i32) {
    %c0_i32 = arith.constant 0 : i32
    %c0_i32_0 = arith.constant 0 : i32
    return %arg0, %c0_i32 : i32, i32
  }
  func.func @transform_1(%arg0: i32, %arg1: i32) -> (i32, i32) {
    %c0_i32 = arith.constant 0 : i32
    %c0_i32_0 = arith.constant 0 : i32
    return %c0_i32, %arg1 : i32, i32
  }
  func.func @transform_2(%arg0: i32, %arg1: i32) -> (i32, i32) {
    %c0_i32 = arith.constant 0 : i32
    %c0_i32_0 = arith.constant 0 : i32
    return %c0_i32, %arg1 : i32, i32
  }
  func.func @transform_3(%arg0: i32, %arg1: i32) -> (i32, i32) {
    %c0_i32 = arith.constant 0 : i32
    %c0_i32_0 = arith.constant 0 : i32
    return %c0_i32, %arg1 : i32, i32
  }
  func.func @transform_4(%arg0: i32, %arg1: i32) -> (i32, i32) {
    %c0_i32 = arith.constant 0 : i32
    return %arg0, %arg1 : i32, i32
  }
}

module attributes {stable_mosaic.version = 11 : i64} {
  func.func @_mm_bn_res_kernel(%arg0: i32, %arg1: i32, %arg2: memref<32x16xbf16, #tpu.memory_space<vmem>>, %arg3: memref<16x32xbf16, #tpu.memory_space<vmem>>, %arg4: memref<1x32xf32, #tpu.memory_space<vmem>>, %arg5: memref<1x32xf32, #tpu.memory_space<vmem>>, %arg6: memref<32x32xf32, #tpu.memory_space<vmem>>, %arg7: memref<32x32xf32, #tpu.memory_space<vmem>>) attributes {dimension_semantics = [#tpu.dimension_semantics<parallel>, #tpu.dimension_semantics<parallel>], iteration_bounds = array<i64: 1, 1>, scalar_prefetch = 0 : i64, scratch_operands = 0 : i64, tpu.core_type = #tpu.core_type<tc>, window_params = [{transform_indices = @transform_0, window_bounds = array<i64: 32, 16>}, {transform_indices = @transform_1, window_bounds = array<i64: 16, 32>}, {transform_indices = @transform_2, window_bounds = array<i64: 1, 32>}, {transform_indices = @transform_3, window_bounds = array<i64: 1, 32>}, {transform_indices = @transform_4, window_bounds = array<i64: 32, 32>}, {transform_indices = @transform_5, window_bounds = array<i64: 32, 32>}]} {
    %c0 = arith.constant 0 : index
    %c0_0 = arith.constant 0 : index
    %0 = vector.load %arg2[%c0, %c0_0] : memref<32x16xbf16, #tpu.memory_space<vmem>>, vector<32x16xbf16>
    %c0_1 = arith.constant 0 : index
    %c0_2 = arith.constant 0 : index
    %1 = vector.load %arg3[%c0_1, %c0_2] : memref<16x32xbf16, #tpu.memory_space<vmem>>, vector<16x32xbf16>
    %cst = arith.constant dense<0.000000e+00> : vector<32x32xf32>
    %2 = tpu.matmul %0, %1, %cst {dimension_numbers = #tpu.dot_dimension_numbers<[1], [0], [0], [1], [0, 0, 1, 1], [], []>} : vector<32x16xbf16>, vector<16x32xbf16>, vector<32x32xf32> -> vector<32x32xf32>
    %c0_3 = arith.constant 0 : index
    %c0_4 = arith.constant 0 : index
    %3 = vector.load %arg4[%c0_3, %c0_4] : memref<1x32xf32, #tpu.memory_space<vmem>>, vector<1x32xf32>
    %4 = vector.broadcast %3 : vector<1x32xf32> to vector<32x32xf32>
    %5 = arith.mulf %2, %4 : vector<32x32xf32>
    %c0_5 = arith.constant 0 : index
    %c0_6 = arith.constant 0 : index
    %6 = vector.load %arg5[%c0_5, %c0_6] : memref<1x32xf32, #tpu.memory_space<vmem>>, vector<1x32xf32>
    %7 = vector.broadcast %6 : vector<1x32xf32> to vector<32x32xf32>
    %8 = arith.addf %5, %7 : vector<32x32xf32>
    %c0_7 = arith.constant 0 : index
    %c0_8 = arith.constant 0 : index
    %9 = vector.load %arg6[%c0_7, %c0_8] : memref<32x32xf32, #tpu.memory_space<vmem>>, vector<32x32xf32>
    %10 = arith.addf %8, %9 : vector<32x32xf32>
    %cst_9 = arith.constant 0.000000e+00 : f32
    %11 = vector.broadcast %cst_9 : f32 to vector<32x32xf32>
    %12 = arith.maximumf %10, %11 : vector<32x32xf32>
    %c0_10 = arith.constant 0 : index
    %c0_11 = arith.constant 0 : index
    %13 = vector.load %arg7[%c0_10, %c0_11] : memref<32x32xf32, #tpu.memory_space<vmem>>, vector<32x32xf32>
    tpu.vector_store %arg7[%c0_10, %c0_11], %12 {strides = array<i32>} : memref<32x32xf32, #tpu.memory_space<vmem>>, vector<32x32xf32>,
    return
  }
  func.func @transform_0(%arg0: i32, %arg1: i32) -> (i32, i32) {
    %c0_i32 = arith.constant 0 : i32
    %c0_i32_0 = arith.constant 0 : i32
    return %arg0, %c0_i32 : i32, i32
  }
  func.func @transform_1(%arg0: i32, %arg1: i32) -> (i32, i32) {
    %c0_i32 = arith.constant 0 : i32
    %c0_i32_0 = arith.constant 0 : i32
    return %c0_i32, %arg1 : i32, i32
  }
  func.func @transform_2(%arg0: i32, %arg1: i32) -> (i32, i32) {
    %c0_i32 = arith.constant 0 : i32
    %c0_i32_0 = arith.constant 0 : i32
    return %c0_i32, %arg1 : i32, i32
  }
  func.func @transform_3(%arg0: i32, %arg1: i32) -> (i32, i32) {
    %c0_i32 = arith.constant 0 : i32
    %c0_i32_0 = arith.constant 0 : i32
    return %c0_i32, %arg1 : i32, i32
  }
  func.func @transform_4(%arg0: i32, %arg1: i32) -> (i32, i32) {
    %c0_i32 = arith.constant 0 : i32
    return %arg0, %arg1 : i32, i32
  }
  func.func @transform_5(%arg0: i32, %arg1: i32) -> (i32, i32) {
    %c0_i32 = arith.constant 0 : i32
    return %arg0, %arg1 : i32, i32
  }
}

module attributes {stable_mosaic.version = 11 : i64} {
  func.func @_mm_bn_kernel(%arg0: i32, %arg1: i32, %arg2: memref<32x16xbf16, #tpu.memory_space<vmem>>, %arg3: memref<16x32xbf16, #tpu.memory_space<vmem>>, %arg4: memref<1x32xf32, #tpu.memory_space<vmem>>, %arg5: memref<1x32xf32, #tpu.memory_space<vmem>>, %arg6: memref<32x32xf32, #tpu.memory_space<vmem>>) attributes {dimension_semantics = [#tpu.dimension_semantics<parallel>, #tpu.dimension_semantics<parallel>], iteration_bounds = array<i64: 1, 1>, scalar_prefetch = 0 : i64, scratch_operands = 0 : i64, tpu.core_type = #tpu.core_type<tc>, window_params = [{transform_indices = @transform_0, window_bounds = array<i64: 32, 16>}, {transform_indices = @transform_1, window_bounds = array<i64: 16, 32>}, {transform_indices = @transform_2, window_bounds = array<i64: 1, 32>}, {transform_indices = @transform_3, window_bounds = array<i64: 1, 32>}, {transform_indices = @transform_4, window_bounds = array<i64: 32, 32>}]} {
    %c0 = arith.constant 0 : index
    %c0_0 = arith.constant 0 : index
    %0 = vector.load %arg2[%c0, %c0_0] : memref<32x16xbf16, #tpu.memory_space<vmem>>, vector<32x16xbf16>
    %c0_1 = arith.constant 0 : index
    %c0_2 = arith.constant 0 : index
    %1 = vector.load %arg3[%c0_1, %c0_2] : memref<16x32xbf16, #tpu.memory_space<vmem>>, vector<16x32xbf16>
    %cst = arith.constant dense<0.000000e+00> : vector<32x32xf32>
    %2 = tpu.matmul %0, %1, %cst {dimension_numbers = #tpu.dot_dimension_numbers<[1], [0], [0], [1], [0, 0, 1, 1], [], []>} : vector<32x16xbf16>, vector<16x32xbf16>, vector<32x32xf32> -> vector<32x32xf32>
    %c0_3 = arith.constant 0 : index
    %c0_4 = arith.constant 0 : index
    %3 = vector.load %arg4[%c0_3, %c0_4] : memref<1x32xf32, #tpu.memory_space<vmem>>, vector<1x32xf32>
    %4 = vector.broadcast %3 : vector<1x32xf32> to vector<32x32xf32>
    %5 = arith.mulf %2, %4 : vector<32x32xf32>
    %c0_5 = arith.constant 0 : index
    %c0_6 = arith.constant 0 : index
    %6 = vector.load %arg5[%c0_5, %c0_6] : memref<1x32xf32, #tpu.memory_space<vmem>>, vector<1x32xf32>
    %7 = vector.broadcast %6 : vector<1x32xf32> to vector<32x32xf32>
    %8 = arith.addf %5, %7 : vector<32x32xf32>
    %c0_7 = arith.constant 0 : index
    %c0_8 = arith.constant 0 : index
    %9 = vector.load %arg6[%c0_7, %c0_8] : memref<32x32xf32, #tpu.memory_space<vmem>>, vector<32x32xf32>
    tpu.vector_store %arg6[%c0_7, %c0_8], %8 {strides = array<i32>} : memref<32x32xf32, #tpu.memory_space<vmem>>, vector<32x32xf32>,
    return
  }
  func.func @transform_0(%arg0: i32, %arg1: i32) -> (i32, i32) {
    %c0_i32 = arith.constant 0 : i32
    %c0_i32_0 = arith.constant 0 : i32
    return %arg0, %c0_i32 : i32, i32
  }
  func.func @transform_1(%arg0: i32, %arg1: i32) -> (i32, i32) {
    %c0_i32 = arith.constant 0 : i32
    %c0_i32_0 = arith.constant 0 : i32
    return %c0_i32, %arg1 : i32, i32
  }
  func.func @transform_2(%arg0: i32, %arg1: i32) -> (i32, i32) {
    %c0_i32 = arith.constant 0 : i32
    %c0_i32_0 = arith.constant 0 : i32
    return %c0_i32, %arg1 : i32, i32
  }
  func.func @transform_3(%arg0: i32, %arg1: i32) -> (i32, i32) {
    %c0_i32 = arith.constant 0 : i32
    %c0_i32_0 = arith.constant 0 : i32
    return %c0_i32, %arg1 : i32, i32
  }
  func.func @transform_4(%arg0: i32, %arg1: i32) -> (i32, i32) {
    %c0_i32 = arith.constant 0 : i32
    return %arg0, %arg1 : i32, i32
  }
}

module attributes {stable_mosaic.version = 11 : i64} {
  func.func @_mm_bn_kernel(%arg0: i32, %arg1: i32, %arg2: memref<32x32xbf16, #tpu.memory_space<vmem>>, %arg3: memref<32x8xbf16, #tpu.memory_space<vmem>>, %arg4: memref<1x8xf32, #tpu.memory_space<vmem>>, %arg5: memref<1x8xf32, #tpu.memory_space<vmem>>, %arg6: memref<32x8xf32, #tpu.memory_space<vmem>>) attributes {dimension_semantics = [#tpu.dimension_semantics<parallel>, #tpu.dimension_semantics<parallel>], iteration_bounds = array<i64: 1, 1>, scalar_prefetch = 0 : i64, scratch_operands = 0 : i64, tpu.core_type = #tpu.core_type<tc>, window_params = [{transform_indices = @transform_0, window_bounds = array<i64: 32, 32>}, {transform_indices = @transform_1, window_bounds = array<i64: 32, 8>}, {transform_indices = @transform_2, window_bounds = array<i64: 1, 8>}, {transform_indices = @transform_3, window_bounds = array<i64: 1, 8>}, {transform_indices = @transform_4, window_bounds = array<i64: 32, 8>}]} {
    %c0 = arith.constant 0 : index
    %c0_0 = arith.constant 0 : index
    %0 = vector.load %arg2[%c0, %c0_0] : memref<32x32xbf16, #tpu.memory_space<vmem>>, vector<32x32xbf16>
    %c0_1 = arith.constant 0 : index
    %c0_2 = arith.constant 0 : index
    %1 = vector.load %arg3[%c0_1, %c0_2] : memref<32x8xbf16, #tpu.memory_space<vmem>>, vector<32x8xbf16>
    %cst = arith.constant dense<0.000000e+00> : vector<32x8xf32>
    %2 = tpu.matmul %0, %1, %cst {dimension_numbers = #tpu.dot_dimension_numbers<[1], [0], [0], [1], [0, 0, 1, 1], [], []>} : vector<32x32xbf16>, vector<32x8xbf16>, vector<32x8xf32> -> vector<32x8xf32>
    %c0_3 = arith.constant 0 : index
    %c0_4 = arith.constant 0 : index
    %3 = vector.load %arg4[%c0_3, %c0_4] : memref<1x8xf32, #tpu.memory_space<vmem>>, vector<1x8xf32>
    %4 = vector.broadcast %3 : vector<1x8xf32> to vector<32x8xf32>
    %5 = arith.mulf %2, %4 : vector<32x8xf32>
    %c0_5 = arith.constant 0 : index
    %c0_6 = arith.constant 0 : index
    %6 = vector.load %arg5[%c0_5, %c0_6] : memref<1x8xf32, #tpu.memory_space<vmem>>, vector<1x8xf32>
    %7 = vector.broadcast %6 : vector<1x8xf32> to vector<32x8xf32>
    %8 = arith.addf %5, %7 : vector<32x8xf32>
    %cst_7 = arith.constant 0.000000e+00 : f32
    %9 = vector.broadcast %cst_7 : f32 to vector<32x8xf32>
    %10 = arith.maximumf %8, %9 : vector<32x8xf32>
    %c0_8 = arith.constant 0 : index
    %c0_9 = arith.constant 0 : index
    %11 = vector.load %arg6[%c0_8, %c0_9] : memref<32x8xf32, #tpu.memory_space<vmem>>, vector<32x8xf32>
    tpu.vector_store %arg6[%c0_8, %c0_9], %10 {strides = array<i32>} : memref<32x8xf32, #tpu.memory_space<vmem>>, vector<32x8xf32>,
    return
  }
  func.func @transform_0(%arg0: i32, %arg1: i32) -> (i32, i32) {
    %c0_i32 = arith.constant 0 : i32
    %c0_i32_0 = arith.constant 0 : i32
    return %arg0, %c0_i32 : i32, i32
  }
  func.func @transform_1(%arg0: i32, %arg1: i32) -> (i32, i32) {
    %c0_i32 = arith.constant 0 : i32
    %c0_i32_0 = arith.constant 0 : i32
    return %c0_i32, %arg1 : i32, i32
  }
  func.func @transform_2(%arg0: i32, %arg1: i32) -> (i32, i32) {
    %c0_i32 = arith.constant 0 : i32
    %c0_i32_0 = arith.constant 0 : i32
    return %c0_i32, %arg1 : i32, i32
  }
  func.func @transform_3(%arg0: i32, %arg1: i32) -> (i32, i32) {
    %c0_i32 = arith.constant 0 : i32
    %c0_i32_0 = arith.constant 0 : i32
    return %c0_i32, %arg1 : i32, i32
  }
  func.func @transform_4(%arg0: i32, %arg1: i32) -> (i32, i32) {
    %c0_i32 = arith.constant 0 : i32
    return %arg0, %arg1 : i32, i32
  }
}

module attributes {stable_mosaic.version = 11 : i64} {
  func.func @_mm_bn_kernel(%arg0: i32, %arg1: i32, %arg2: memref<32x32xbf16, #tpu.memory_space<vmem>>, %arg3: memref<32x16xbf16, #tpu.memory_space<vmem>>, %arg4: memref<1x16xf32, #tpu.memory_space<vmem>>, %arg5: memref<1x16xf32, #tpu.memory_space<vmem>>, %arg6: memref<32x16xf32, #tpu.memory_space<vmem>>) attributes {dimension_semantics = [#tpu.dimension_semantics<parallel>, #tpu.dimension_semantics<parallel>], iteration_bounds = array<i64: 1, 1>, scalar_prefetch = 0 : i64, scratch_operands = 0 : i64, tpu.core_type = #tpu.core_type<tc>, window_params = [{transform_indices = @transform_0, window_bounds = array<i64: 32, 32>}, {transform_indices = @transform_1, window_bounds = array<i64: 32, 16>}, {transform_indices = @transform_2, window_bounds = array<i64: 1, 16>}, {transform_indices = @transform_3, window_bounds = array<i64: 1, 16>}, {transform_indices = @transform_4, window_bounds = array<i64: 32, 16>}]} {
    %c0 = arith.constant 0 : index
    %c0_0 = arith.constant 0 : index
    %0 = vector.load %arg2[%c0, %c0_0] : memref<32x32xbf16, #tpu.memory_space<vmem>>, vector<32x32xbf16>
    %c0_1 = arith.constant 0 : index
    %c0_2 = arith.constant 0 : index
    %1 = vector.load %arg3[%c0_1, %c0_2] : memref<32x16xbf16, #tpu.memory_space<vmem>>, vector<32x16xbf16>
    %cst = arith.constant dense<0.000000e+00> : vector<32x16xf32>
    %2 = tpu.matmul %0, %1, %cst {dimension_numbers = #tpu.dot_dimension_numbers<[1], [0], [0], [1], [0, 0, 1, 1], [], []>} : vector<32x32xbf16>, vector<32x16xbf16>, vector<32x16xf32> -> vector<32x16xf32>
    %c0_3 = arith.constant 0 : index
    %c0_4 = arith.constant 0 : index
    %3 = vector.load %arg4[%c0_3, %c0_4] : memref<1x16xf32, #tpu.memory_space<vmem>>, vector<1x16xf32>
    %4 = vector.broadcast %3 : vector<1x16xf32> to vector<32x16xf32>
    %5 = arith.mulf %2, %4 : vector<32x16xf32>
    %c0_5 = arith.constant 0 : index
    %c0_6 = arith.constant 0 : index
    %6 = vector.load %arg5[%c0_5, %c0_6] : memref<1x16xf32, #tpu.memory_space<vmem>>, vector<1x16xf32>
    %7 = vector.broadcast %6 : vector<1x16xf32> to vector<32x16xf32>
    %8 = arith.addf %5, %7 : vector<32x16xf32>
    %cst_7 = arith.constant 0.000000e+00 : f32
    %9 = vector.broadcast %cst_7 : f32 to vector<32x16xf32>
    %10 = arith.maximumf %8, %9 : vector<32x16xf32>
    %c0_8 = arith.constant 0 : index
    %c0_9 = arith.constant 0 : index
    %11 = vector.load %arg6[%c0_8, %c0_9] : memref<32x16xf32, #tpu.memory_space<vmem>>, vector<32x16xf32>
    tpu.vector_store %arg6[%c0_8, %c0_9], %10 {strides = array<i32>} : memref<32x16xf32, #tpu.memory_space<vmem>>, vector<32x16xf32>,
    return
  }
  func.func @transform_0(%arg0: i32, %arg1: i32) -> (i32, i32) {
    %c0_i32 = arith.constant 0 : i32
    %c0_i32_0 = arith.constant 0 : i32
    return %arg0, %c0_i32 : i32, i32
  }
  func.func @transform_1(%arg0: i32, %arg1: i32) -> (i32, i32) {
    %c0_i32 = arith.constant 0 : i32
    %c0_i32_0 = arith.constant 0 : i32
    return %c0_i32, %arg1 : i32, i32
  }
  func.func @transform_2(%arg0: i32, %arg1: i32) -> (i32, i32) {
    %c0_i32 = arith.constant 0 : i32
    %c0_i32_0 = arith.constant 0 : i32
    return %c0_i32, %arg1 : i32, i32
  }
  func.func @transform_3(%arg0: i32, %arg1: i32) -> (i32, i32) {
    %c0_i32 = arith.constant 0 : i32
    %c0_i32_0 = arith.constant 0 : i32
    return %c0_i32, %arg1 : i32, i32
  }
  func.func @transform_4(%arg0: i32, %arg1: i32) -> (i32, i32) {
    %c0_i32 = arith.constant 0 : i32
    return %arg0, %arg1 : i32, i32
  }
}

module attributes {stable_mosaic.version = 11 : i64} {
  func.func @_mm_bn_res_kernel(%arg0: i32, %arg1: i32, %arg2: memref<32x16xbf16, #tpu.memory_space<vmem>>, %arg3: memref<16x64xbf16, #tpu.memory_space<vmem>>, %arg4: memref<1x64xf32, #tpu.memory_space<vmem>>, %arg5: memref<1x64xf32, #tpu.memory_space<vmem>>, %arg6: memref<32x64xf32, #tpu.memory_space<vmem>>, %arg7: memref<32x64xf32, #tpu.memory_space<vmem>>) attributes {dimension_semantics = [#tpu.dimension_semantics<parallel>, #tpu.dimension_semantics<parallel>], iteration_bounds = array<i64: 1, 1>, scalar_prefetch = 0 : i64, scratch_operands = 0 : i64, tpu.core_type = #tpu.core_type<tc>, window_params = [{transform_indices = @transform_0, window_bounds = array<i64: 32, 16>}, {transform_indices = @transform_1, window_bounds = array<i64: 16, 64>}, {transform_indices = @transform_2, window_bounds = array<i64: 1, 64>}, {transform_indices = @transform_3, window_bounds = array<i64: 1, 64>}, {transform_indices = @transform_4, window_bounds = array<i64: 32, 64>}, {transform_indices = @transform_5, window_bounds = array<i64: 32, 64>}]} {
    %c0 = arith.constant 0 : index
    %c0_0 = arith.constant 0 : index
    %0 = vector.load %arg2[%c0, %c0_0] : memref<32x16xbf16, #tpu.memory_space<vmem>>, vector<32x16xbf16>
    %c0_1 = arith.constant 0 : index
    %c0_2 = arith.constant 0 : index
    %1 = vector.load %arg3[%c0_1, %c0_2] : memref<16x64xbf16, #tpu.memory_space<vmem>>, vector<16x64xbf16>
    %cst = arith.constant dense<0.000000e+00> : vector<32x64xf32>
    %2 = tpu.matmul %0, %1, %cst {dimension_numbers = #tpu.dot_dimension_numbers<[1], [0], [0], [1], [0, 0, 1, 1], [], []>} : vector<32x16xbf16>, vector<16x64xbf16>, vector<32x64xf32> -> vector<32x64xf32>
    %c0_3 = arith.constant 0 : index
    %c0_4 = arith.constant 0 : index
    %3 = vector.load %arg4[%c0_3, %c0_4] : memref<1x64xf32, #tpu.memory_space<vmem>>, vector<1x64xf32>
    %4 = vector.broadcast %3 : vector<1x64xf32> to vector<32x64xf32>
    %5 = arith.mulf %2, %4 : vector<32x64xf32>
    %c0_5 = arith.constant 0 : index
    %c0_6 = arith.constant 0 : index
    %6 = vector.load %arg5[%c0_5, %c0_6] : memref<1x64xf32, #tpu.memory_space<vmem>>, vector<1x64xf32>
    %7 = vector.broadcast %6 : vector<1x64xf32> to vector<32x64xf32>
    %8 = arith.addf %5, %7 : vector<32x64xf32>
    %c0_7 = arith.constant 0 : index
    %c0_8 = arith.constant 0 : index
    %9 = vector.load %arg6[%c0_7, %c0_8] : memref<32x64xf32, #tpu.memory_space<vmem>>, vector<32x64xf32>
    %10 = arith.addf %8, %9 : vector<32x64xf32>
    %cst_9 = arith.constant 0.000000e+00 : f32
    %11 = vector.broadcast %cst_9 : f32 to vector<32x64xf32>
    %12 = arith.maximumf %10, %11 : vector<32x64xf32>
    %c0_10 = arith.constant 0 : index
    %c0_11 = arith.constant 0 : index
    %13 = vector.load %arg7[%c0_10, %c0_11] : memref<32x64xf32, #tpu.memory_space<vmem>>, vector<32x64xf32>
    tpu.vector_store %arg7[%c0_10, %c0_11], %12 {strides = array<i32>} : memref<32x64xf32, #tpu.memory_space<vmem>>, vector<32x64xf32>,
    return
  }
  func.func @transform_0(%arg0: i32, %arg1: i32) -> (i32, i32) {
    %c0_i32 = arith.constant 0 : i32
    %c0_i32_0 = arith.constant 0 : i32
    return %arg0, %c0_i32 : i32, i32
  }
  func.func @transform_1(%arg0: i32, %arg1: i32) -> (i32, i32) {
    %c0_i32 = arith.constant 0 : i32
    %c0_i32_0 = arith.constant 0 : i32
    return %c0_i32, %arg1 : i32, i32
  }
  func.func @transform_2(%arg0: i32, %arg1: i32) -> (i32, i32) {
    %c0_i32 = arith.constant 0 : i32
    %c0_i32_0 = arith.constant 0 : i32
    return %c0_i32, %arg1 : i32, i32
  }
  func.func @transform_3(%arg0: i32, %arg1: i32) -> (i32, i32) {
    %c0_i32 = arith.constant 0 : i32
    %c0_i32_0 = arith.constant 0 : i32
    return %c0_i32, %arg1 : i32, i32
  }
  func.func @transform_4(%arg0: i32, %arg1: i32) -> (i32, i32) {
    %c0_i32 = arith.constant 0 : i32
    return %arg0, %arg1 : i32, i32
  }
  func.func @transform_5(%arg0: i32, %arg1: i32) -> (i32, i32) {
    %c0_i32 = arith.constant 0 : i32
    return %arg0, %arg1 : i32, i32
  }
}

module attributes {stable_mosaic.version = 11 : i64} {
  func.func @_mm_bn_kernel(%arg0: i32, %arg1: i32, %arg2: memref<32x144xbf16, #tpu.memory_space<vmem>>, %arg3: memref<144x16xbf16, #tpu.memory_space<vmem>>, %arg4: memref<1x16xf32, #tpu.memory_space<vmem>>, %arg5: memref<1x16xf32, #tpu.memory_space<vmem>>, %arg6: memref<32x16xf32, #tpu.memory_space<vmem>>) attributes {dimension_semantics = [#tpu.dimension_semantics<parallel>, #tpu.dimension_semantics<parallel>], iteration_bounds = array<i64: 1, 1>, scalar_prefetch = 0 : i64, scratch_operands = 0 : i64, tpu.core_type = #tpu.core_type<tc>, window_params = [{transform_indices = @transform_0, window_bounds = array<i64: 32, 144>}, {transform_indices = @transform_1, window_bounds = array<i64: 144, 16>}, {transform_indices = @transform_2, window_bounds = array<i64: 1, 16>}, {transform_indices = @transform_3, window_bounds = array<i64: 1, 16>}, {transform_indices = @transform_4, window_bounds = array<i64: 32, 16>}]} {
    %c0 = arith.constant 0 : index
    %c0_0 = arith.constant 0 : index
    %0 = vector.load %arg2[%c0, %c0_0] : memref<32x144xbf16, #tpu.memory_space<vmem>>, vector<32x144xbf16>
    %c0_1 = arith.constant 0 : index
    %c0_2 = arith.constant 0 : index
    %1 = vector.load %arg3[%c0_1, %c0_2] : memref<144x16xbf16, #tpu.memory_space<vmem>>, vector<144x16xbf16>
    %cst = arith.constant dense<0.000000e+00> : vector<32x16xf32>
    %2 = tpu.matmul %0, %1, %cst {dimension_numbers = #tpu.dot_dimension_numbers<[1], [0], [0], [1], [0, 0, 1, 1], [], []>} : vector<32x144xbf16>, vector<144x16xbf16>, vector<32x16xf32> -> vector<32x16xf32>
    %c0_3 = arith.constant 0 : index
    %c0_4 = arith.constant 0 : index
    %3 = vector.load %arg4[%c0_3, %c0_4] : memref<1x16xf32, #tpu.memory_space<vmem>>, vector<1x16xf32>
    %4 = vector.broadcast %3 : vector<1x16xf32> to vector<32x16xf32>
    %5 = arith.mulf %2, %4 : vector<32x16xf32>
    %c0_5 = arith.constant 0 : index
    %c0_6 = arith.constant 0 : index
    %6 = vector.load %arg5[%c0_5, %c0_6] : memref<1x16xf32, #tpu.memory_space<vmem>>, vector<1x16xf32>
    %7 = vector.broadcast %6 : vector<1x16xf32> to vector<32x16xf32>
    %8 = arith.addf %5, %7 : vector<32x16xf32>
    %cst_7 = arith.constant 0.000000e+00 : f32
    %9 = vector.broadcast %cst_7 : f32 to vector<32x16xf32>
    %10 = arith.maximumf %8, %9 : vector<32x16xf32>
    %c0_8 = arith.constant 0 : index
    %c0_9 = arith.constant 0 : index
    %11 = vector.load %arg6[%c0_8, %c0_9] : memref<32x16xf32, #tpu.memory_space<vmem>>, vector<32x16xf32>
    tpu.vector_store %arg6[%c0_8, %c0_9], %10 {strides = array<i32>} : memref<32x16xf32, #tpu.memory_space<vmem>>, vector<32x16xf32>,
    return
  }
  func.func @transform_0(%arg0: i32, %arg1: i32) -> (i32, i32) {
    %c0_i32 = arith.constant 0 : i32
    %c0_i32_0 = arith.constant 0 : i32
    return %arg0, %c0_i32 : i32, i32
  }
  func.func @transform_1(%arg0: i32, %arg1: i32) -> (i32, i32) {
    %c0_i32 = arith.constant 0 : i32
    %c0_i32_0 = arith.constant 0 : i32
    return %c0_i32, %arg1 : i32, i32
  }
  func.func @transform_2(%arg0: i32, %arg1: i32) -> (i32, i32) {
    %c0_i32 = arith.constant 0 : i32
    %c0_i32_0 = arith.constant 0 : i32
    return %c0_i32, %arg1 : i32, i32
  }
  func.func @transform_3(%arg0: i32, %arg1: i32) -> (i32, i32) {
    %c0_i32 = arith.constant 0 : i32
    %c0_i32_0 = arith.constant 0 : i32
    return %c0_i32, %arg1 : i32, i32
  }
  func.func @transform_4(%arg0: i32, %arg1: i32) -> (i32, i32) {
    %c0_i32 = arith.constant 0 : i32
    return %arg0, %arg1 : i32, i32
  }
}

module attributes {stable_mosaic.version = 11 : i64} {
  func.func @_mm_bn_kernel(%arg0: i32, %arg1: i32, %arg2: memref<32x32xbf16, #tpu.memory_space<vmem>>, %arg3: memref<32x64xbf16, #tpu.memory_space<vmem>>, %arg4: memref<1x64xf32, #tpu.memory_space<vmem>>, %arg5: memref<1x64xf32, #tpu.memory_space<vmem>>, %arg6: memref<32x64xf32, #tpu.memory_space<vmem>>) attributes {dimension_semantics = [#tpu.dimension_semantics<parallel>, #tpu.dimension_semantics<parallel>], iteration_bounds = array<i64: 1, 1>, scalar_prefetch = 0 : i64, scratch_operands = 0 : i64, tpu.core_type = #tpu.core_type<tc>, window_params = [{transform_indices = @transform_0, window_bounds = array<i64: 32, 32>}, {transform_indices = @transform_1, window_bounds = array<i64: 32, 64>}, {transform_indices = @transform_2, window_bounds = array<i64: 1, 64>}, {transform_indices = @transform_3, window_bounds = array<i64: 1, 64>}, {transform_indices = @transform_4, window_bounds = array<i64: 32, 64>}]} {
    %c0 = arith.constant 0 : index
    %c0_0 = arith.constant 0 : index
    %0 = vector.load %arg2[%c0, %c0_0] : memref<32x32xbf16, #tpu.memory_space<vmem>>, vector<32x32xbf16>
    %c0_1 = arith.constant 0 : index
    %c0_2 = arith.constant 0 : index
    %1 = vector.load %arg3[%c0_1, %c0_2] : memref<32x64xbf16, #tpu.memory_space<vmem>>, vector<32x64xbf16>
    %cst = arith.constant dense<0.000000e+00> : vector<32x64xf32>
    %2 = tpu.matmul %0, %1, %cst {dimension_numbers = #tpu.dot_dimension_numbers<[1], [0], [0], [1], [0, 0, 1, 1], [], []>} : vector<32x32xbf16>, vector<32x64xbf16>, vector<32x64xf32> -> vector<32x64xf32>
    %c0_3 = arith.constant 0 : index
    %c0_4 = arith.constant 0 : index
    %3 = vector.load %arg4[%c0_3, %c0_4] : memref<1x64xf32, #tpu.memory_space<vmem>>, vector<1x64xf32>
    %4 = vector.broadcast %3 : vector<1x64xf32> to vector<32x64xf32>
    %5 = arith.mulf %2, %4 : vector<32x64xf32>
    %c0_5 = arith.constant 0 : index
    %c0_6 = arith.constant 0 : index
    %6 = vector.load %arg5[%c0_5, %c0_6] : memref<1x64xf32, #tpu.memory_space<vmem>>, vector<1x64xf32>
    %7 = vector.broadcast %6 : vector<1x64xf32> to vector<32x64xf32>
    %8 = arith.addf %5, %7 : vector<32x64xf32>
    %c0_7 = arith.constant 0 : index
    %c0_8 = arith.constant 0 : index
    %9 = vector.load %arg6[%c0_7, %c0_8] : memref<32x64xf32, #tpu.memory_space<vmem>>, vector<32x64xf32>
    tpu.vector_store %arg6[%c0_7, %c0_8], %8 {strides = array<i32>} : memref<32x64xf32, #tpu.memory_space<vmem>>, vector<32x64xf32>,
    return
  }
  func.func @transform_0(%arg0: i32, %arg1: i32) -> (i32, i32) {
    %c0_i32 = arith.constant 0 : i32
    %c0_i32_0 = arith.constant 0 : i32
    return %arg0, %c0_i32 : i32, i32
  }
  func.func @transform_1(%arg0: i32, %arg1: i32) -> (i32, i32) {
    %c0_i32 = arith.constant 0 : i32
    %c0_i32_0 = arith.constant 0 : i32
    return %c0_i32, %arg1 : i32, i32
  }
  func.func @transform_2(%arg0: i32, %arg1: i32) -> (i32, i32) {
    %c0_i32 = arith.constant 0 : i32
    %c0_i32_0 = arith.constant 0 : i32
    return %c0_i32, %arg1 : i32, i32
  }
  func.func @transform_3(%arg0: i32, %arg1: i32) -> (i32, i32) {
    %c0_i32 = arith.constant 0 : i32
    %c0_i32_0 = arith.constant 0 : i32
    return %c0_i32, %arg1 : i32, i32
  }
  func.func @transform_4(%arg0: i32, %arg1: i32) -> (i32, i32) {
    %c0_i32 = arith.constant 0 : i32
    return %arg0, %arg1 : i32, i32
  }
}

module attributes {stable_mosaic.version = 11 : i64} {
  func.func @_mm_bn_kernel(%arg0: i32, %arg1: i32, %arg2: memref<32x64xbf16, #tpu.memory_space<vmem>>, %arg3: memref<64x16xbf16, #tpu.memory_space<vmem>>, %arg4: memref<1x16xf32, #tpu.memory_space<vmem>>, %arg5: memref<1x16xf32, #tpu.memory_space<vmem>>, %arg6: memref<32x16xf32, #tpu.memory_space<vmem>>) attributes {dimension_semantics = [#tpu.dimension_semantics<parallel>, #tpu.dimension_semantics<parallel>], iteration_bounds = array<i64: 1, 1>, scalar_prefetch = 0 : i64, scratch_operands = 0 : i64, tpu.core_type = #tpu.core_type<tc>, window_params = [{transform_indices = @transform_0, window_bounds = array<i64: 32, 64>}, {transform_indices = @transform_1, window_bounds = array<i64: 64, 16>}, {transform_indices = @transform_2, window_bounds = array<i64: 1, 16>}, {transform_indices = @transform_3, window_bounds = array<i64: 1, 16>}, {transform_indices = @transform_4, window_bounds = array<i64: 32, 16>}]} {
    %c0 = arith.constant 0 : index
    %c0_0 = arith.constant 0 : index
    %0 = vector.load %arg2[%c0, %c0_0] : memref<32x64xbf16, #tpu.memory_space<vmem>>, vector<32x64xbf16>
    %c0_1 = arith.constant 0 : index
    %c0_2 = arith.constant 0 : index
    %1 = vector.load %arg3[%c0_1, %c0_2] : memref<64x16xbf16, #tpu.memory_space<vmem>>, vector<64x16xbf16>
    %cst = arith.constant dense<0.000000e+00> : vector<32x16xf32>
    %2 = tpu.matmul %0, %1, %cst {dimension_numbers = #tpu.dot_dimension_numbers<[1], [0], [0], [1], [0, 0, 1, 1], [], []>} : vector<32x64xbf16>, vector<64x16xbf16>, vector<32x16xf32> -> vector<32x16xf32>
    %c0_3 = arith.constant 0 : index
    %c0_4 = arith.constant 0 : index
    %3 = vector.load %arg4[%c0_3, %c0_4] : memref<1x16xf32, #tpu.memory_space<vmem>>, vector<1x16xf32>
    %4 = vector.broadcast %3 : vector<1x16xf32> to vector<32x16xf32>
    %5 = arith.mulf %2, %4 : vector<32x16xf32>
    %c0_5 = arith.constant 0 : index
    %c0_6 = arith.constant 0 : index
    %6 = vector.load %arg5[%c0_5, %c0_6] : memref<1x16xf32, #tpu.memory_space<vmem>>, vector<1x16xf32>
    %7 = vector.broadcast %6 : vector<1x16xf32> to vector<32x16xf32>
    %8 = arith.addf %5, %7 : vector<32x16xf32>
    %cst_7 = arith.constant 0.000000e+00 : f32
    %9 = vector.broadcast %cst_7 : f32 to vector<32x16xf32>
    %10 = arith.maximumf %8, %9 : vector<32x16xf32>
    %c0_8 = arith.constant 0 : index
    %c0_9 = arith.constant 0 : index
    %11 = vector.load %arg6[%c0_8, %c0_9] : memref<32x16xf32, #tpu.memory_space<vmem>>, vector<32x16xf32>
    tpu.vector_store %arg6[%c0_8, %c0_9], %10 {strides = array<i32>} : memref<32x16xf32, #tpu.memory_space<vmem>>, vector<32x16xf32>,
    return
  }
  func.func @transform_0(%arg0: i32, %arg1: i32) -> (i32, i32) {
    %c0_i32 = arith.constant 0 : i32
    %c0_i32_0 = arith.constant 0 : i32
    return %arg0, %c0_i32 : i32, i32
  }
  func.func @transform_1(%arg0: i32, %arg1: i32) -> (i32, i32) {
    %c0_i32 = arith.constant 0 : i32
    %c0_i32_0 = arith.constant 0 : i32
    return %c0_i32, %arg1 : i32, i32
  }
  func.func @transform_2(%arg0: i32, %arg1: i32) -> (i32, i32) {
    %c0_i32 = arith.constant 0 : i32
    %c0_i32_0 = arith.constant 0 : i32
    return %c0_i32, %arg1 : i32, i32
  }
  func.func @transform_3(%arg0: i32, %arg1: i32) -> (i32, i32) {
    %c0_i32 = arith.constant 0 : i32
    %c0_i32_0 = arith.constant 0 : i32
    return %c0_i32, %arg1 : i32, i32
  }
  func.func @transform_4(%arg0: i32, %arg1: i32) -> (i32, i32) {
    %c0_i32 = arith.constant 0 : i32
    return %arg0, %arg1 : i32, i32
  }
}

module attributes {stable_mosaic.version = 11 : i64} {
  func.func @_mm_bn_kernel(%arg0: i32, %arg1: i32, %arg2: memref<32x576xbf16, #tpu.memory_space<vmem>>, %arg3: memref<576x16xbf16, #tpu.memory_space<vmem>>, %arg4: memref<1x16xf32, #tpu.memory_space<vmem>>, %arg5: memref<1x16xf32, #tpu.memory_space<vmem>>, %arg6: memref<32x16xf32, #tpu.memory_space<vmem>>) attributes {dimension_semantics = [#tpu.dimension_semantics<parallel>, #tpu.dimension_semantics<parallel>], iteration_bounds = array<i64: 1, 1>, scalar_prefetch = 0 : i64, scratch_operands = 0 : i64, tpu.core_type = #tpu.core_type<tc>, window_params = [{transform_indices = @transform_0, window_bounds = array<i64: 32, 576>}, {transform_indices = @transform_1, window_bounds = array<i64: 576, 16>}, {transform_indices = @transform_2, window_bounds = array<i64: 1, 16>}, {transform_indices = @transform_3, window_bounds = array<i64: 1, 16>}, {transform_indices = @transform_4, window_bounds = array<i64: 32, 16>}]} {
    %c0 = arith.constant 0 : index
    %c0_0 = arith.constant 0 : index
    %0 = vector.load %arg2[%c0, %c0_0] : memref<32x576xbf16, #tpu.memory_space<vmem>>, vector<32x576xbf16>
    %c0_1 = arith.constant 0 : index
    %c0_2 = arith.constant 0 : index
    %1 = vector.load %arg3[%c0_1, %c0_2] : memref<576x16xbf16, #tpu.memory_space<vmem>>, vector<576x16xbf16>
    %cst = arith.constant dense<0.000000e+00> : vector<32x16xf32>
    %2 = tpu.matmul %0, %1, %cst {dimension_numbers = #tpu.dot_dimension_numbers<[1], [0], [0], [1], [0, 0, 1, 1], [], []>} : vector<32x576xbf16>, vector<576x16xbf16>, vector<32x16xf32> -> vector<32x16xf32>
    %c0_3 = arith.constant 0 : index
    %c0_4 = arith.constant 0 : index
    %3 = vector.load %arg4[%c0_3, %c0_4] : memref<1x16xf32, #tpu.memory_space<vmem>>, vector<1x16xf32>
    %4 = vector.broadcast %3 : vector<1x16xf32> to vector<32x16xf32>
    %5 = arith.mulf %2, %4 : vector<32x16xf32>
    %c0_5 = arith.constant 0 : index
    %c0_6 = arith.constant 0 : index
    %6 = vector.load %arg5[%c0_5, %c0_6] : memref<1x16xf32, #tpu.memory_space<vmem>>, vector<1x16xf32>
    %7 = vector.broadcast %6 : vector<1x16xf32> to vector<32x16xf32>
    %8 = arith.addf %5, %7 : vector<32x16xf32>
    %cst_7 = arith.constant 0.000000e+00 : f32
    %9 = vector.broadcast %cst_7 : f32 to vector<32x16xf32>
    %10 = arith.maximumf %8, %9 : vector<32x16xf32>
    %c0_8 = arith.constant 0 : index
    %c0_9 = arith.constant 0 : index
    %11 = vector.load %arg6[%c0_8, %c0_9] : memref<32x16xf32, #tpu.memory_space<vmem>>, vector<32x16xf32>
    tpu.vector_store %arg6[%c0_8, %c0_9], %10 {strides = array<i32>} : memref<32x16xf32, #tpu.memory_space<vmem>>, vector<32x16xf32>,
    return
  }
  func.func @transform_0(%arg0: i32, %arg1: i32) -> (i32, i32) {
    %c0_i32 = arith.constant 0 : i32
    %c0_i32_0 = arith.constant 0 : i32
    return %arg0, %c0_i32 : i32, i32
  }
  func.func @transform_1(%arg0: i32, %arg1: i32) -> (i32, i32) {
    %c0_i32 = arith.constant 0 : i32
    %c0_i32_0 = arith.constant 0 : i32
    return %c0_i32, %arg1 : i32, i32
  }
  func.func @transform_2(%arg0: i32, %arg1: i32) -> (i32, i32) {
    %c0_i32 = arith.constant 0 : i32
    %c0_i32_0 = arith.constant 0 : i32
    return %c0_i32, %arg1 : i32, i32
  }
  func.func @transform_3(%arg0: i32, %arg1: i32) -> (i32, i32) {
    %c0_i32 = arith.constant 0 : i32
    %c0_i32_0 = arith.constant 0 : i32
    return %c0_i32, %arg1 : i32, i32
  }
  func.func @transform_4(%arg0: i32, %arg1: i32) -> (i32, i32) {
    %c0_i32 = arith.constant 0 : i32
    return %arg0, %arg1 : i32, i32
  }
}

module attributes {stable_mosaic.version = 11 : i64} {
  func.func @_mm_bn_kernel(%arg0: i32, %arg1: i32, %arg2: memref<32x16xbf16, #tpu.memory_space<vmem>>, %arg3: memref<16x2xbf16, #tpu.memory_space<vmem>>, %arg4: memref<1x2xf32, #tpu.memory_space<vmem>>, %arg5: memref<1x2xf32, #tpu.memory_space<vmem>>, %arg6: memref<32x2xf32, #tpu.memory_space<vmem>>) attributes {dimension_semantics = [#tpu.dimension_semantics<parallel>, #tpu.dimension_semantics<parallel>], iteration_bounds = array<i64: 1, 1>, scalar_prefetch = 0 : i64, scratch_operands = 0 : i64, tpu.core_type = #tpu.core_type<tc>, window_params = [{transform_indices = @transform_0, window_bounds = array<i64: 32, 16>}, {transform_indices = @transform_1, window_bounds = array<i64: 16, 2>}, {transform_indices = @transform_2, window_bounds = array<i64: 1, 2>}, {transform_indices = @transform_3, window_bounds = array<i64: 1, 2>}, {transform_indices = @transform_4, window_bounds = array<i64: 32, 2>}]} {
    %c0 = arith.constant 0 : index
    %c0_0 = arith.constant 0 : index
    %0 = vector.load %arg2[%c0, %c0_0] : memref<32x16xbf16, #tpu.memory_space<vmem>>, vector<32x16xbf16>
    %c0_1 = arith.constant 0 : index
    %c0_2 = arith.constant 0 : index
    %1 = vector.load %arg3[%c0_1, %c0_2] : memref<16x2xbf16, #tpu.memory_space<vmem>>, vector<16x2xbf16>
    %cst = arith.constant dense<0.000000e+00> : vector<32x2xf32>
    %2 = tpu.matmul %0, %1, %cst {dimension_numbers = #tpu.dot_dimension_numbers<[1], [0], [0], [1], [0, 0, 1, 1], [], []>} : vector<32x16xbf16>, vector<16x2xbf16>, vector<32x2xf32> -> vector<32x2xf32>
    %c0_3 = arith.constant 0 : index
    %c0_4 = arith.constant 0 : index
    %3 = vector.load %arg4[%c0_3, %c0_4] : memref<1x2xf32, #tpu.memory_space<vmem>>, vector<1x2xf32>
    %4 = vector.broadcast %3 : vector<1x2xf32> to vector<32x2xf32>
    %5 = arith.mulf %2, %4 : vector<32x2xf32>
    %c0_5 = arith.constant 0 : index
    %c0_6 = arith.constant 0 : index
    %6 = vector.load %arg5[%c0_5, %c0_6] : memref<1x2xf32, #tpu.memory_space<vmem>>, vector<1x2xf32>
    %7 = vector.broadcast %6 : vector<1x2xf32> to vector<32x2xf32>
    %8 = arith.addf %5, %7 : vector<32x2xf32>
    %c0_7 = arith.constant 0 : index
    %c0_8 = arith.constant 0 : index
    %9 = vector.load %arg6[%c0_7, %c0_8] : memref<32x2xf32, #tpu.memory_space<vmem>>, vector<32x2xf32>
    tpu.vector_store %arg6[%c0_7, %c0_8], %8 {strides = array<i32>} : memref<32x2xf32, #tpu.memory_space<vmem>>, vector<32x2xf32>,
    return
  }
  func.func @transform_0(%arg0: i32, %arg1: i32) -> (i32, i32) {
    %c0_i32 = arith.constant 0 : i32
    %c0_i32_0 = arith.constant 0 : i32
    return %arg0, %c0_i32 : i32, i32
  }
  func.func @transform_1(%arg0: i32, %arg1: i32) -> (i32, i32) {
    %c0_i32 = arith.constant 0 : i32
    %c0_i32_0 = arith.constant 0 : i32
    return %c0_i32, %arg1 : i32, i32
  }
  func.func @transform_2(%arg0: i32, %arg1: i32) -> (i32, i32) {
    %c0_i32 = arith.constant 0 : i32
    %c0_i32_0 = arith.constant 0 : i32
    return %c0_i32, %arg1 : i32, i32
  }
  func.func @transform_3(%arg0: i32, %arg1: i32) -> (i32, i32) {
    %c0_i32 = arith.constant 0 : i32
    %c0_i32_0 = arith.constant 0 : i32
    return %c0_i32, %arg1 : i32, i32
  }
  func.func @transform_4(%arg0: i32, %arg1: i32) -> (i32, i32) {
    %c0_i32 = arith.constant 0 : i32
    return %arg0, %arg1 : i32, i32
  }
}

module attributes {stable_mosaic.version = 11 : i64} {
  func.func @_mm_bn_kernel(%arg0: i32, %arg1: i32, %arg2: memref<32x64xbf16, #tpu.memory_space<vmem>>, %arg3: memref<64x32xbf16, #tpu.memory_space<vmem>>, %arg4: memref<1x32xf32, #tpu.memory_space<vmem>>, %arg5: memref<1x32xf32, #tpu.memory_space<vmem>>, %arg6: memref<32x32xf32, #tpu.memory_space<vmem>>) attributes {dimension_semantics = [#tpu.dimension_semantics<parallel>, #tpu.dimension_semantics<parallel>], iteration_bounds = array<i64: 1, 1>, scalar_prefetch = 0 : i64, scratch_operands = 0 : i64, tpu.core_type = #tpu.core_type<tc>, window_params = [{transform_indices = @transform_0, window_bounds = array<i64: 32, 64>}, {transform_indices = @transform_1, window_bounds = array<i64: 64, 32>}, {transform_indices = @transform_2, window_bounds = array<i64: 1, 32>}, {transform_indices = @transform_3, window_bounds = array<i64: 1, 32>}, {transform_indices = @transform_4, window_bounds = array<i64: 32, 32>}]} {
    %c0 = arith.constant 0 : index
    %c0_0 = arith.constant 0 : index
    %0 = vector.load %arg2[%c0, %c0_0] : memref<32x64xbf16, #tpu.memory_space<vmem>>, vector<32x64xbf16>
    %c0_1 = arith.constant 0 : index
    %c0_2 = arith.constant 0 : index
    %1 = vector.load %arg3[%c0_1, %c0_2] : memref<64x32xbf16, #tpu.memory_space<vmem>>, vector<64x32xbf16>
    %cst = arith.constant dense<0.000000e+00> : vector<32x32xf32>
    %2 = tpu.matmul %0, %1, %cst {dimension_numbers = #tpu.dot_dimension_numbers<[1], [0], [0], [1], [0, 0, 1, 1], [], []>} : vector<32x64xbf16>, vector<64x32xbf16>, vector<32x32xf32> -> vector<32x32xf32>
    %c0_3 = arith.constant 0 : index
    %c0_4 = arith.constant 0 : index
    %3 = vector.load %arg4[%c0_3, %c0_4] : memref<1x32xf32, #tpu.memory_space<vmem>>, vector<1x32xf32>
    %4 = vector.broadcast %3 : vector<1x32xf32> to vector<32x32xf32>
    %5 = arith.mulf %2, %4 : vector<32x32xf32>
    %c0_5 = arith.constant 0 : index
    %c0_6 = arith.constant 0 : index
    %6 = vector.load %arg5[%c0_5, %c0_6] : memref<1x32xf32, #tpu.memory_space<vmem>>, vector<1x32xf32>
    %7 = vector.broadcast %6 : vector<1x32xf32> to vector<32x32xf32>
    %8 = arith.addf %5, %7 : vector<32x32xf32>
    %cst_7 = arith.constant 0.000000e+00 : f32
    %9 = vector.broadcast %cst_7 : f32 to vector<32x32xf32>
    %10 = arith.maximumf %8, %9 : vector<32x32xf32>
    %c0_8 = arith.constant 0 : index
    %c0_9 = arith.constant 0 : index
    %11 = vector.load %arg6[%c0_8, %c0_9] : memref<32x32xf32, #tpu.memory_space<vmem>>, vector<32x32xf32>
    tpu.vector_store %arg6[%c0_8, %c0_9], %10 {strides = array<i32>} : memref<32x32xf32, #tpu.memory_space<vmem>>, vector<32x32xf32>,
    return
  }
  func.func @transform_0(%arg0: i32, %arg1: i32) -> (i32, i32) {
    %c0_i32 = arith.constant 0 : i32
    %c0_i32_0 = arith.constant 0 : i32
    return %arg0, %c0_i32 : i32, i32
  }
  func.func @transform_1(%arg0: i32, %arg1: i32) -> (i32, i32) {
    %c0_i32 = arith.constant 0 : i32
    %c0_i32_0 = arith.constant 0 : i32
    return %c0_i32, %arg1 : i32, i32
  }
  func.func @transform_2(%arg0: i32, %arg1: i32) -> (i32, i32) {
    %c0_i32 = arith.constant 0 : i32
    %c0_i32_0 = arith.constant 0 : i32
    return %c0_i32, %arg1 : i32, i32
  }
  func.func @transform_3(%arg0: i32, %arg1: i32) -> (i32, i32) {
    %c0_i32 = arith.constant 0 : i32
    %c0_i32_0 = arith.constant 0 : i32
    return %c0_i32, %arg1 : i32, i32
  }
  func.func @transform_4(%arg0: i32, %arg1: i32) -> (i32, i32) {
    %c0_i32 = arith.constant 0 : i32
    return %arg0, %arg1 : i32, i32
  }
}

module attributes {stable_mosaic.version = 11 : i64} {
  func.func @_mm_bn_kernel(%arg0: i32, %arg1: i32, %arg2: memref<32x288xbf16, #tpu.memory_space<vmem>>, %arg3: memref<288x32xbf16, #tpu.memory_space<vmem>>, %arg4: memref<1x32xf32, #tpu.memory_space<vmem>>, %arg5: memref<1x32xf32, #tpu.memory_space<vmem>>, %arg6: memref<32x32xf32, #tpu.memory_space<vmem>>) attributes {dimension_semantics = [#tpu.dimension_semantics<parallel>, #tpu.dimension_semantics<parallel>], iteration_bounds = array<i64: 1, 1>, scalar_prefetch = 0 : i64, scratch_operands = 0 : i64, tpu.core_type = #tpu.core_type<tc>, window_params = [{transform_indices = @transform_0, window_bounds = array<i64: 32, 288>}, {transform_indices = @transform_1, window_bounds = array<i64: 288, 32>}, {transform_indices = @transform_2, window_bounds = array<i64: 1, 32>}, {transform_indices = @transform_3, window_bounds = array<i64: 1, 32>}, {transform_indices = @transform_4, window_bounds = array<i64: 32, 32>}]} {
    %c0 = arith.constant 0 : index
    %c0_0 = arith.constant 0 : index
    %0 = vector.load %arg2[%c0, %c0_0] : memref<32x288xbf16, #tpu.memory_space<vmem>>, vector<32x288xbf16>
    %c0_1 = arith.constant 0 : index
    %c0_2 = arith.constant 0 : index
    %1 = vector.load %arg3[%c0_1, %c0_2] : memref<288x32xbf16, #tpu.memory_space<vmem>>, vector<288x32xbf16>
    %cst = arith.constant dense<0.000000e+00> : vector<32x32xf32>
    %2 = tpu.matmul %0, %1, %cst {dimension_numbers = #tpu.dot_dimension_numbers<[1], [0], [0], [1], [0, 0, 1, 1], [], []>} : vector<32x288xbf16>, vector<288x32xbf16>, vector<32x32xf32> -> vector<32x32xf32>
    %c0_3 = arith.constant 0 : index
    %c0_4 = arith.constant 0 : index
    %3 = vector.load %arg4[%c0_3, %c0_4] : memref<1x32xf32, #tpu.memory_space<vmem>>, vector<1x32xf32>
    %4 = vector.broadcast %3 : vector<1x32xf32> to vector<32x32xf32>
    %5 = arith.mulf %2, %4 : vector<32x32xf32>
    %c0_5 = arith.constant 0 : index
    %c0_6 = arith.constant 0 : index
    %6 = vector.load %arg5[%c0_5, %c0_6] : memref<1x32xf32, #tpu.memory_space<vmem>>, vector<1x32xf32>
    %7 = vector.broadcast %6 : vector<1x32xf32> to vector<32x32xf32>
    %8 = arith.addf %5, %7 : vector<32x32xf32>
    %cst_7 = arith.constant 0.000000e+00 : f32
    %9 = vector.broadcast %cst_7 : f32 to vector<32x32xf32>
    %10 = arith.maximumf %8, %9 : vector<32x32xf32>
    %c0_8 = arith.constant 0 : index
    %c0_9 = arith.constant 0 : index
    %11 = vector.load %arg6[%c0_8, %c0_9] : memref<32x32xf32, #tpu.memory_space<vmem>>, vector<32x32xf32>
    tpu.vector_store %arg6[%c0_8, %c0_9], %10 {strides = array<i32>} : memref<32x32xf32, #tpu.memory_space<vmem>>, vector<32x32xf32>,
    return
  }
  func.func @transform_0(%arg0: i32, %arg1: i32) -> (i32, i32) {
    %c0_i32 = arith.constant 0 : i32
    %c0_i32_0 = arith.constant 0 : i32
    return %arg0, %c0_i32 : i32, i32
  }
  func.func @transform_1(%arg0: i32, %arg1: i32) -> (i32, i32) {
    %c0_i32 = arith.constant 0 : i32
    %c0_i32_0 = arith.constant 0 : i32
    return %c0_i32, %arg1 : i32, i32
  }
  func.func @transform_2(%arg0: i32, %arg1: i32) -> (i32, i32) {
    %c0_i32 = arith.constant 0 : i32
    %c0_i32_0 = arith.constant 0 : i32
    return %c0_i32, %arg1 : i32, i32
  }
  func.func @transform_3(%arg0: i32, %arg1: i32) -> (i32, i32) {
    %c0_i32 = arith.constant 0 : i32
    %c0_i32_0 = arith.constant 0 : i32
    return %c0_i32, %arg1 : i32, i32
  }
  func.func @transform_4(%arg0: i32, %arg1: i32) -> (i32, i32) {
    %c0_i32 = arith.constant 0 : i32
    return %arg0, %arg1 : i32, i32
  }
}

module attributes {stable_mosaic.version = 11 : i64} {
  func.func @_mm_bn_kernel(%arg0: i32, %arg1: i32, %arg2: memref<32x64xbf16, #tpu.memory_space<vmem>>, %arg3: memref<64x128xbf16, #tpu.memory_space<vmem>>, %arg4: memref<1x128xf32, #tpu.memory_space<vmem>>, %arg5: memref<1x128xf32, #tpu.memory_space<vmem>>, %arg6: memref<32x128xf32, #tpu.memory_space<vmem>>) attributes {dimension_semantics = [#tpu.dimension_semantics<parallel>, #tpu.dimension_semantics<parallel>], iteration_bounds = array<i64: 1, 1>, scalar_prefetch = 0 : i64, scratch_operands = 0 : i64, tpu.core_type = #tpu.core_type<tc>, window_params = [{transform_indices = @transform_0, window_bounds = array<i64: 32, 64>}, {transform_indices = @transform_1, window_bounds = array<i64: 64, 128>}, {transform_indices = @transform_2, window_bounds = array<i64: 1, 128>}, {transform_indices = @transform_3, window_bounds = array<i64: 1, 128>}, {transform_indices = @transform_4, window_bounds = array<i64: 32, 128>}]} {
    %c0 = arith.constant 0 : index
    %c0_0 = arith.constant 0 : index
    %0 = vector.load %arg2[%c0, %c0_0] : memref<32x64xbf16, #tpu.memory_space<vmem>>, vector<32x64xbf16>
    %c0_1 = arith.constant 0 : index
    %c0_2 = arith.constant 0 : index
    %1 = vector.load %arg3[%c0_1, %c0_2] : memref<64x128xbf16, #tpu.memory_space<vmem>>, vector<64x128xbf16>
    %cst = arith.constant dense<0.000000e+00> : vector<32x128xf32>
    %2 = tpu.matmul %0, %1, %cst {dimension_numbers = #tpu.dot_dimension_numbers<[1], [0], [0], [1], [0, 0, 1, 1], [], []>} : vector<32x64xbf16>, vector<64x128xbf16>, vector<32x128xf32> -> vector<32x128xf32>
    %c0_3 = arith.constant 0 : index
    %c0_4 = arith.constant 0 : index
    %3 = vector.load %arg4[%c0_3, %c0_4] : memref<1x128xf32, #tpu.memory_space<vmem>>, vector<1x128xf32>
    %4 = vector.broadcast %3 : vector<1x128xf32> to vector<32x128xf32>
    %5 = arith.mulf %2, %4 : vector<32x128xf32>
    %c0_5 = arith.constant 0 : index
    %c0_6 = arith.constant 0 : index
    %6 = vector.load %arg5[%c0_5, %c0_6] : memref<1x128xf32, #tpu.memory_space<vmem>>, vector<1x128xf32>
    %7 = vector.broadcast %6 : vector<1x128xf32> to vector<32x128xf32>
    %8 = arith.addf %5, %7 : vector<32x128xf32>
    %c0_7 = arith.constant 0 : index
    %c0_8 = arith.constant 0 : index
    %9 = vector.load %arg6[%c0_7, %c0_8] : memref<32x128xf32, #tpu.memory_space<vmem>>, vector<32x128xf32>
    tpu.vector_store %arg6[%c0_7, %c0_8], %8 {strides = array<i32>} : memref<32x128xf32, #tpu.memory_space<vmem>>, vector<32x128xf32>,
    return
  }
  func.func @transform_0(%arg0: i32, %arg1: i32) -> (i32, i32) {
    %c0_i32 = arith.constant 0 : i32
    %c0_i32_0 = arith.constant 0 : i32
    return %arg0, %c0_i32 : i32, i32
  }
  func.func @transform_1(%arg0: i32, %arg1: i32) -> (i32, i32) {
    %c0_i32 = arith.constant 0 : i32
    %c0_i32_0 = arith.constant 0 : i32
    return %c0_i32, %arg1 : i32, i32
  }
  func.func @transform_2(%arg0: i32, %arg1: i32) -> (i32, i32) {
    %c0_i32 = arith.constant 0 : i32
    %c0_i32_0 = arith.constant 0 : i32
    return %c0_i32, %arg1 : i32, i32
  }
  func.func @transform_3(%arg0: i32, %arg1: i32) -> (i32, i32) {
    %c0_i32 = arith.constant 0 : i32
    %c0_i32_0 = arith.constant 0 : i32
    return %c0_i32, %arg1 : i32, i32
  }
  func.func @transform_4(%arg0: i32, %arg1: i32) -> (i32, i32) {
    %c0_i32 = arith.constant 0 : i32
    return %arg0, %arg1 : i32, i32
  }
}

module attributes {stable_mosaic.version = 11 : i64} {
  func.func @_mm_bn_res_kernel(%arg0: i32, %arg1: i32, %arg2: memref<32x32xbf16, #tpu.memory_space<vmem>>, %arg3: memref<32x128xbf16, #tpu.memory_space<vmem>>, %arg4: memref<1x128xf32, #tpu.memory_space<vmem>>, %arg5: memref<1x128xf32, #tpu.memory_space<vmem>>, %arg6: memref<32x128xf32, #tpu.memory_space<vmem>>, %arg7: memref<32x128xf32, #tpu.memory_space<vmem>>) attributes {dimension_semantics = [#tpu.dimension_semantics<parallel>, #tpu.dimension_semantics<parallel>], iteration_bounds = array<i64: 1, 1>, scalar_prefetch = 0 : i64, scratch_operands = 0 : i64, tpu.core_type = #tpu.core_type<tc>, window_params = [{transform_indices = @transform_0, window_bounds = array<i64: 32, 32>}, {transform_indices = @transform_1, window_bounds = array<i64: 32, 128>}, {transform_indices = @transform_2, window_bounds = array<i64: 1, 128>}, {transform_indices = @transform_3, window_bounds = array<i64: 1, 128>}, {transform_indices = @transform_4, window_bounds = array<i64: 32, 128>}, {transform_indices = @transform_5, window_bounds = array<i64: 32, 128>}]} {
    %c0 = arith.constant 0 : index
    %c0_0 = arith.constant 0 : index
    %0 = vector.load %arg2[%c0, %c0_0] : memref<32x32xbf16, #tpu.memory_space<vmem>>, vector<32x32xbf16>
    %c0_1 = arith.constant 0 : index
    %c0_2 = arith.constant 0 : index
    %1 = vector.load %arg3[%c0_1, %c0_2] : memref<32x128xbf16, #tpu.memory_space<vmem>>, vector<32x128xbf16>
    %cst = arith.constant dense<0.000000e+00> : vector<32x128xf32>
    %2 = tpu.matmul %0, %1, %cst {dimension_numbers = #tpu.dot_dimension_numbers<[1], [0], [0], [1], [0, 0, 1, 1], [], []>} : vector<32x32xbf16>, vector<32x128xbf16>, vector<32x128xf32> -> vector<32x128xf32>
    %c0_3 = arith.constant 0 : index
    %c0_4 = arith.constant 0 : index
    %3 = vector.load %arg4[%c0_3, %c0_4] : memref<1x128xf32, #tpu.memory_space<vmem>>, vector<1x128xf32>
    %4 = vector.broadcast %3 : vector<1x128xf32> to vector<32x128xf32>
    %5 = arith.mulf %2, %4 : vector<32x128xf32>
    %c0_5 = arith.constant 0 : index
    %c0_6 = arith.constant 0 : index
    %6 = vector.load %arg5[%c0_5, %c0_6] : memref<1x128xf32, #tpu.memory_space<vmem>>, vector<1x128xf32>
    %7 = vector.broadcast %6 : vector<1x128xf32> to vector<32x128xf32>
    %8 = arith.addf %5, %7 : vector<32x128xf32>
    %c0_7 = arith.constant 0 : index
    %c0_8 = arith.constant 0 : index
    %9 = vector.load %arg6[%c0_7, %c0_8] : memref<32x128xf32, #tpu.memory_space<vmem>>, vector<32x128xf32>
    %10 = arith.addf %8, %9 : vector<32x128xf32>
    %cst_9 = arith.constant 0.000000e+00 : f32
    %11 = vector.broadcast %cst_9 : f32 to vector<32x128xf32>
    %12 = arith.maximumf %10, %11 : vector<32x128xf32>
    %c0_10 = arith.constant 0 : index
    %c0_11 = arith.constant 0 : index
    %13 = vector.load %arg7[%c0_10, %c0_11] : memref<32x128xf32, #tpu.memory_space<vmem>>, vector<32x128xf32>
    tpu.vector_store %arg7[%c0_10, %c0_11], %12 {strides = array<i32>} : memref<32x128xf32, #tpu.memory_space<vmem>>, vector<32x128xf32>,
    return
  }
  func.func @transform_0(%arg0: i32, %arg1: i32) -> (i32, i32) {
    %c0_i32 = arith.constant 0 : i32
    %c0_i32_0 = arith.constant 0 : i32
    return %arg0, %c0_i32 : i32, i32
  }
  func.func @transform_1(%arg0: i32, %arg1: i32) -> (i32, i32) {
    %c0_i32 = arith.constant 0 : i32
    %c0_i32_0 = arith.constant 0 : i32
    return %c0_i32, %arg1 : i32, i32
  }
  func.func @transform_2(%arg0: i32, %arg1: i32) -> (i32, i32) {
    %c0_i32 = arith.constant 0 : i32
    %c0_i32_0 = arith.constant 0 : i32
    return %c0_i32, %arg1 : i32, i32
  }
  func.func @transform_3(%arg0: i32, %arg1: i32) -> (i32, i32) {
    %c0_i32 = arith.constant 0 : i32
    %c0_i32_0 = arith.constant 0 : i32
    return %c0_i32, %arg1 : i32, i32
  }
  func.func @transform_4(%arg0: i32, %arg1: i32) -> (i32, i32) {
    %c0_i32 = arith.constant 0 : i32
    return %arg0, %arg1 : i32, i32
  }
  func.func @transform_5(%arg0: i32, %arg1: i32) -> (i32, i32) {
    %c0_i32 = arith.constant 0 : i32
    return %arg0, %arg1 : i32, i32
  }
}

module attributes {stable_mosaic.version = 11 : i64} {
  func.func @_mm_bn_kernel(%arg0: i32, %arg1: i32, %arg2: memref<32x128xbf16, #tpu.memory_space<vmem>>, %arg3: memref<128x32xbf16, #tpu.memory_space<vmem>>, %arg4: memref<1x32xf32, #tpu.memory_space<vmem>>, %arg5: memref<1x32xf32, #tpu.memory_space<vmem>>, %arg6: memref<32x32xf32, #tpu.memory_space<vmem>>) attributes {dimension_semantics = [#tpu.dimension_semantics<parallel>, #tpu.dimension_semantics<parallel>], iteration_bounds = array<i64: 1, 1>, scalar_prefetch = 0 : i64, scratch_operands = 0 : i64, tpu.core_type = #tpu.core_type<tc>, window_params = [{transform_indices = @transform_0, window_bounds = array<i64: 32, 128>}, {transform_indices = @transform_1, window_bounds = array<i64: 128, 32>}, {transform_indices = @transform_2, window_bounds = array<i64: 1, 32>}, {transform_indices = @transform_3, window_bounds = array<i64: 1, 32>}, {transform_indices = @transform_4, window_bounds = array<i64: 32, 32>}]} {
    %c0 = arith.constant 0 : index
    %c0_0 = arith.constant 0 : index
    %0 = vector.load %arg2[%c0, %c0_0] : memref<32x128xbf16, #tpu.memory_space<vmem>>, vector<32x128xbf16>
    %c0_1 = arith.constant 0 : index
    %c0_2 = arith.constant 0 : index
    %1 = vector.load %arg3[%c0_1, %c0_2] : memref<128x32xbf16, #tpu.memory_space<vmem>>, vector<128x32xbf16>
    %cst = arith.constant dense<0.000000e+00> : vector<32x32xf32>
    %2 = tpu.matmul %0, %1, %cst {dimension_numbers = #tpu.dot_dimension_numbers<[1], [0], [0], [1], [0, 0, 1, 1], [], []>} : vector<32x128xbf16>, vector<128x32xbf16>, vector<32x32xf32> -> vector<32x32xf32>
    %c0_3 = arith.constant 0 : index
    %c0_4 = arith.constant 0 : index
    %3 = vector.load %arg4[%c0_3, %c0_4] : memref<1x32xf32, #tpu.memory_space<vmem>>, vector<1x32xf32>
    %4 = vector.broadcast %3 : vector<1x32xf32> to vector<32x32xf32>
    %5 = arith.mulf %2, %4 : vector<32x32xf32>
    %c0_5 = arith.constant 0 : index
    %c0_6 = arith.constant 0 : index
    %6 = vector.load %arg5[%c0_5, %c0_6] : memref<1x32xf32, #tpu.memory_space<vmem>>, vector<1x32xf32>
    %7 = vector.broadcast %6 : vector<1x32xf32> to vector<32x32xf32>
    %8 = arith.addf %5, %7 : vector<32x32xf32>
    %cst_7 = arith.constant 0.000000e+00 : f32
    %9 = vector.broadcast %cst_7 : f32 to vector<32x32xf32>
    %10 = arith.maximumf %8, %9 : vector<32x32xf32>
    %c0_8 = arith.constant 0 : index
    %c0_9 = arith.constant 0 : index
    %11 = vector.load %arg6[%c0_8, %c0_9] : memref<32x32xf32, #tpu.memory_space<vmem>>, vector<32x32xf32>
    tpu.vector_store %arg6[%c0_8, %c0_9], %10 {strides = array<i32>} : memref<32x32xf32, #tpu.memory_space<vmem>>, vector<32x32xf32>,
    return
  }
  func.func @transform_0(%arg0: i32, %arg1: i32) -> (i32, i32) {
    %c0_i32 = arith.constant 0 : i32
    %c0_i32_0 = arith.constant 0 : i32
    return %arg0, %c0_i32 : i32, i32
  }
  func.func @transform_1(%arg0: i32, %arg1: i32) -> (i32, i32) {
    %c0_i32 = arith.constant 0 : i32
    %c0_i32_0 = arith.constant 0 : i32
    return %c0_i32, %arg1 : i32, i32
  }
  func.func @transform_2(%arg0: i32, %arg1: i32) -> (i32, i32) {
    %c0_i32 = arith.constant 0 : i32
    %c0_i32_0 = arith.constant 0 : i32
    return %c0_i32, %arg1 : i32, i32
  }
  func.func @transform_3(%arg0: i32, %arg1: i32) -> (i32, i32) {
    %c0_i32 = arith.constant 0 : i32
    %c0_i32_0 = arith.constant 0 : i32
    return %c0_i32, %arg1 : i32, i32
  }
  func.func @transform_4(%arg0: i32, %arg1: i32) -> (i32, i32) {
    %c0_i32 = arith.constant 0 : i32
    return %arg0, %arg1 : i32, i32
  }
}

module attributes {stable_mosaic.version = 11 : i64} {
  func.func @_mm_bn_kernel(%arg0: i32, %arg1: i32, %arg2: memref<80x128xbf16, #tpu.memory_space<vmem>>, %arg3: memref<128x32xbf16, #tpu.memory_space<vmem>>, %arg4: memref<1x32xf32, #tpu.memory_space<vmem>>, %arg5: memref<1x32xf32, #tpu.memory_space<vmem>>, %arg6: memref<80x32xf32, #tpu.memory_space<vmem>>) attributes {dimension_semantics = [#tpu.dimension_semantics<parallel>, #tpu.dimension_semantics<parallel>], iteration_bounds = array<i64: 1, 1>, scalar_prefetch = 0 : i64, scratch_operands = 0 : i64, tpu.core_type = #tpu.core_type<tc>, window_params = [{transform_indices = @transform_0, window_bounds = array<i64: 80, 128>}, {transform_indices = @transform_1, window_bounds = array<i64: 128, 32>}, {transform_indices = @transform_2, window_bounds = array<i64: 1, 32>}, {transform_indices = @transform_3, window_bounds = array<i64: 1, 32>}, {transform_indices = @transform_4, window_bounds = array<i64: 80, 32>}]} {
    %c0 = arith.constant 0 : index
    %c0_0 = arith.constant 0 : index
    %0 = vector.load %arg2[%c0, %c0_0] : memref<80x128xbf16, #tpu.memory_space<vmem>>, vector<80x128xbf16>
    %c0_1 = arith.constant 0 : index
    %c0_2 = arith.constant 0 : index
    %1 = vector.load %arg3[%c0_1, %c0_2] : memref<128x32xbf16, #tpu.memory_space<vmem>>, vector<128x32xbf16>
    %cst = arith.constant dense<0.000000e+00> : vector<80x32xf32>
    %2 = tpu.matmul %0, %1, %cst {dimension_numbers = #tpu.dot_dimension_numbers<[1], [0], [0], [1], [0, 0, 1, 1], [], []>} : vector<80x128xbf16>, vector<128x32xbf16>, vector<80x32xf32> -> vector<80x32xf32>
    %c0_3 = arith.constant 0 : index
    %c0_4 = arith.constant 0 : index
    %3 = vector.load %arg4[%c0_3, %c0_4] : memref<1x32xf32, #tpu.memory_space<vmem>>, vector<1x32xf32>
    %4 = vector.broadcast %3 : vector<1x32xf32> to vector<80x32xf32>
    %5 = arith.mulf %2, %4 : vector<80x32xf32>
    %c0_5 = arith.constant 0 : index
    %c0_6 = arith.constant 0 : index
    %6 = vector.load %arg5[%c0_5, %c0_6] : memref<1x32xf32, #tpu.memory_space<vmem>>, vector<1x32xf32>
    %7 = vector.broadcast %6 : vector<1x32xf32> to vector<80x32xf32>
    %8 = arith.addf %5, %7 : vector<80x32xf32>
    %cst_7 = arith.constant 0.000000e+00 : f32
    %9 = vector.broadcast %cst_7 : f32 to vector<80x32xf32>
    %10 = arith.maximumf %8, %9 : vector<80x32xf32>
    %c0_8 = arith.constant 0 : index
    %c0_9 = arith.constant 0 : index
    %11 = vector.load %arg6[%c0_8, %c0_9] : memref<80x32xf32, #tpu.memory_space<vmem>>, vector<80x32xf32>
    tpu.vector_store %arg6[%c0_8, %c0_9], %10 {strides = array<i32>} : memref<80x32xf32, #tpu.memory_space<vmem>>, vector<80x32xf32>,
    return
  }
  func.func @transform_0(%arg0: i32, %arg1: i32) -> (i32, i32) {
    %c0_i32 = arith.constant 0 : i32
    %c0_i32_0 = arith.constant 0 : i32
    return %arg0, %c0_i32 : i32, i32
  }
  func.func @transform_1(%arg0: i32, %arg1: i32) -> (i32, i32) {
    %c0_i32 = arith.constant 0 : i32
    %c0_i32_0 = arith.constant 0 : i32
    return %c0_i32, %arg1 : i32, i32
  }
  func.func @transform_2(%arg0: i32, %arg1: i32) -> (i32, i32) {
    %c0_i32 = arith.constant 0 : i32
    %c0_i32_0 = arith.constant 0 : i32
    return %c0_i32, %arg1 : i32, i32
  }
  func.func @transform_3(%arg0: i32, %arg1: i32) -> (i32, i32) {
    %c0_i32 = arith.constant 0 : i32
    %c0_i32_0 = arith.constant 0 : i32
    return %c0_i32, %arg1 : i32, i32
  }
  func.func @transform_4(%arg0: i32, %arg1: i32) -> (i32, i32) {
    %c0_i32 = arith.constant 0 : i32
    return %arg0, %arg1 : i32, i32
  }
}

module attributes {stable_mosaic.version = 11 : i64} {
  func.func @_mm_bn_kernel(%arg0: i32, %arg1: i32, %arg2: memref<16x128xbf16, #tpu.memory_space<vmem>>, %arg3: memref<128x32xbf16, #tpu.memory_space<vmem>>, %arg4: memref<1x32xf32, #tpu.memory_space<vmem>>, %arg5: memref<1x32xf32, #tpu.memory_space<vmem>>, %arg6: memref<16x32xf32, #tpu.memory_space<vmem>>) attributes {dimension_semantics = [#tpu.dimension_semantics<parallel>, #tpu.dimension_semantics<parallel>], iteration_bounds = array<i64: 1, 1>, scalar_prefetch = 0 : i64, scratch_operands = 0 : i64, tpu.core_type = #tpu.core_type<tc>, window_params = [{transform_indices = @transform_0, window_bounds = array<i64: 16, 128>}, {transform_indices = @transform_1, window_bounds = array<i64: 128, 32>}, {transform_indices = @transform_2, window_bounds = array<i64: 1, 32>}, {transform_indices = @transform_3, window_bounds = array<i64: 1, 32>}, {transform_indices = @transform_4, window_bounds = array<i64: 16, 32>}]} {
    %c0 = arith.constant 0 : index
    %c0_0 = arith.constant 0 : index
    %0 = vector.load %arg2[%c0, %c0_0] : memref<16x128xbf16, #tpu.memory_space<vmem>>, vector<16x128xbf16>
    %c0_1 = arith.constant 0 : index
    %c0_2 = arith.constant 0 : index
    %1 = vector.load %arg3[%c0_1, %c0_2] : memref<128x32xbf16, #tpu.memory_space<vmem>>, vector<128x32xbf16>
    %cst = arith.constant dense<0.000000e+00> : vector<16x32xf32>
    %2 = tpu.matmul %0, %1, %cst {dimension_numbers = #tpu.dot_dimension_numbers<[1], [0], [0], [1], [0, 0, 1, 1], [], []>} : vector<16x128xbf16>, vector<128x32xbf16>, vector<16x32xf32> -> vector<16x32xf32>
    %c0_3 = arith.constant 0 : index
    %c0_4 = arith.constant 0 : index
    %3 = vector.load %arg4[%c0_3, %c0_4] : memref<1x32xf32, #tpu.memory_space<vmem>>, vector<1x32xf32>
    %4 = vector.broadcast %3 : vector<1x32xf32> to vector<16x32xf32>
    %5 = arith.mulf %2, %4 : vector<16x32xf32>
    %c0_5 = arith.constant 0 : index
    %c0_6 = arith.constant 0 : index
    %6 = vector.load %arg5[%c0_5, %c0_6] : memref<1x32xf32, #tpu.memory_space<vmem>>, vector<1x32xf32>
    %7 = vector.broadcast %6 : vector<1x32xf32> to vector<16x32xf32>
    %8 = arith.addf %5, %7 : vector<16x32xf32>
    %cst_7 = arith.constant 0.000000e+00 : f32
    %9 = vector.broadcast %cst_7 : f32 to vector<16x32xf32>
    %10 = arith.maximumf %8, %9 : vector<16x32xf32>
    %c0_8 = arith.constant 0 : index
    %c0_9 = arith.constant 0 : index
    %11 = vector.load %arg6[%c0_8, %c0_9] : memref<16x32xf32, #tpu.memory_space<vmem>>, vector<16x32xf32>
    tpu.vector_store %arg6[%c0_8, %c0_9], %10 {strides = array<i32>} : memref<16x32xf32, #tpu.memory_space<vmem>>, vector<16x32xf32>,
    return
  }
  func.func @transform_0(%arg0: i32, %arg1: i32) -> (i32, i32) {
    %c0_i32 = arith.constant 0 : i32
    %c0_i32_0 = arith.constant 0 : i32
    return %arg0, %c0_i32 : i32, i32
  }
  func.func @transform_1(%arg0: i32, %arg1: i32) -> (i32, i32) {
    %c0_i32 = arith.constant 0 : i32
    %c0_i32_0 = arith.constant 0 : i32
    return %c0_i32, %arg1 : i32, i32
  }
  func.func @transform_2(%arg0: i32, %arg1: i32) -> (i32, i32) {
    %c0_i32 = arith.constant 0 : i32
    %c0_i32_0 = arith.constant 0 : i32
    return %c0_i32, %arg1 : i32, i32
  }
  func.func @transform_3(%arg0: i32, %arg1: i32) -> (i32, i32) {
    %c0_i32 = arith.constant 0 : i32
    %c0_i32_0 = arith.constant 0 : i32
    return %c0_i32, %arg1 : i32, i32
  }
  func.func @transform_4(%arg0: i32, %arg1: i32) -> (i32, i32) {
    %c0_i32 = arith.constant 0 : i32
    return %arg0, %arg1 : i32, i32
  }
}

module attributes {stable_mosaic.version = 11 : i64} {
  func.func @_mm_bn_kernel(%arg0: i32, %arg1: i32, %arg2: memref<32x2304xbf16, #tpu.memory_space<vmem>>, %arg3: memref<2304x32xbf16, #tpu.memory_space<vmem>>, %arg4: memref<1x32xf32, #tpu.memory_space<vmem>>, %arg5: memref<1x32xf32, #tpu.memory_space<vmem>>, %arg6: memref<32x32xf32, #tpu.memory_space<vmem>>) attributes {dimension_semantics = [#tpu.dimension_semantics<parallel>, #tpu.dimension_semantics<parallel>], iteration_bounds = array<i64: 1, 1>, scalar_prefetch = 0 : i64, scratch_operands = 0 : i64, tpu.core_type = #tpu.core_type<tc>, window_params = [{transform_indices = @transform_0, window_bounds = array<i64: 32, 2304>}, {transform_indices = @transform_1, window_bounds = array<i64: 2304, 32>}, {transform_indices = @transform_2, window_bounds = array<i64: 1, 32>}, {transform_indices = @transform_3, window_bounds = array<i64: 1, 32>}, {transform_indices = @transform_4, window_bounds = array<i64: 32, 32>}]} {
    %c0 = arith.constant 0 : index
    %c0_0 = arith.constant 0 : index
    %0 = vector.load %arg2[%c0, %c0_0] : memref<32x2304xbf16, #tpu.memory_space<vmem>>, vector<32x2304xbf16>
    %c0_1 = arith.constant 0 : index
    %c0_2 = arith.constant 0 : index
    %1 = vector.load %arg3[%c0_1, %c0_2] : memref<2304x32xbf16, #tpu.memory_space<vmem>>, vector<2304x32xbf16>
    %cst = arith.constant dense<0.000000e+00> : vector<32x32xf32>
    %2 = tpu.matmul %0, %1, %cst {dimension_numbers = #tpu.dot_dimension_numbers<[1], [0], [0], [1], [0, 0, 1, 1], [], []>} : vector<32x2304xbf16>, vector<2304x32xbf16>, vector<32x32xf32> -> vector<32x32xf32>
    %c0_3 = arith.constant 0 : index
    %c0_4 = arith.constant 0 : index
    %3 = vector.load %arg4[%c0_3, %c0_4] : memref<1x32xf32, #tpu.memory_space<vmem>>, vector<1x32xf32>
    %4 = vector.broadcast %3 : vector<1x32xf32> to vector<32x32xf32>
    %5 = arith.mulf %2, %4 : vector<32x32xf32>
    %c0_5 = arith.constant 0 : index
    %c0_6 = arith.constant 0 : index
    %6 = vector.load %arg5[%c0_5, %c0_6] : memref<1x32xf32, #tpu.memory_space<vmem>>, vector<1x32xf32>
    %7 = vector.broadcast %6 : vector<1x32xf32> to vector<32x32xf32>
    %8 = arith.addf %5, %7 : vector<32x32xf32>
    %cst_7 = arith.constant 0.000000e+00 : f32
    %9 = vector.broadcast %cst_7 : f32 to vector<32x32xf32>
    %10 = arith.maximumf %8, %9 : vector<32x32xf32>
    %c0_8 = arith.constant 0 : index
    %c0_9 = arith.constant 0 : index
    %11 = vector.load %arg6[%c0_8, %c0_9] : memref<32x32xf32, #tpu.memory_space<vmem>>, vector<32x32xf32>
    tpu.vector_store %arg6[%c0_8, %c0_9], %10 {strides = array<i32>} : memref<32x32xf32, #tpu.memory_space<vmem>>, vector<32x32xf32>,
    return
  }
  func.func @transform_0(%arg0: i32, %arg1: i32) -> (i32, i32) {
    %c0_i32 = arith.constant 0 : i32
    %c0_i32_0 = arith.constant 0 : i32
    return %arg0, %c0_i32 : i32, i32
  }
  func.func @transform_1(%arg0: i32, %arg1: i32) -> (i32, i32) {
    %c0_i32 = arith.constant 0 : i32
    %c0_i32_0 = arith.constant 0 : i32
    return %c0_i32, %arg1 : i32, i32
  }
  func.func @transform_2(%arg0: i32, %arg1: i32) -> (i32, i32) {
    %c0_i32 = arith.constant 0 : i32
    %c0_i32_0 = arith.constant 0 : i32
    return %c0_i32, %arg1 : i32, i32
  }
  func.func @transform_3(%arg0: i32, %arg1: i32) -> (i32, i32) {
    %c0_i32 = arith.constant 0 : i32
    %c0_i32_0 = arith.constant 0 : i32
    return %c0_i32, %arg1 : i32, i32
  }
  func.func @transform_4(%arg0: i32, %arg1: i32) -> (i32, i32) {
    %c0_i32 = arith.constant 0 : i32
    return %arg0, %arg1 : i32, i32
  }
}

module attributes {stable_mosaic.version = 11 : i64} {
  func.func @_mm_bn_kernel(%arg0: i32, %arg1: i32, %arg2: memref<32x32xbf16, #tpu.memory_space<vmem>>, %arg3: memref<32x2xbf16, #tpu.memory_space<vmem>>, %arg4: memref<1x2xf32, #tpu.memory_space<vmem>>, %arg5: memref<1x2xf32, #tpu.memory_space<vmem>>, %arg6: memref<32x2xf32, #tpu.memory_space<vmem>>) attributes {dimension_semantics = [#tpu.dimension_semantics<parallel>, #tpu.dimension_semantics<parallel>], iteration_bounds = array<i64: 1, 1>, scalar_prefetch = 0 : i64, scratch_operands = 0 : i64, tpu.core_type = #tpu.core_type<tc>, window_params = [{transform_indices = @transform_0, window_bounds = array<i64: 32, 32>}, {transform_indices = @transform_1, window_bounds = array<i64: 32, 2>}, {transform_indices = @transform_2, window_bounds = array<i64: 1, 2>}, {transform_indices = @transform_3, window_bounds = array<i64: 1, 2>}, {transform_indices = @transform_4, window_bounds = array<i64: 32, 2>}]} {
    %c0 = arith.constant 0 : index
    %c0_0 = arith.constant 0 : index
    %0 = vector.load %arg2[%c0, %c0_0] : memref<32x32xbf16, #tpu.memory_space<vmem>>, vector<32x32xbf16>
    %c0_1 = arith.constant 0 : index
    %c0_2 = arith.constant 0 : index
    %1 = vector.load %arg3[%c0_1, %c0_2] : memref<32x2xbf16, #tpu.memory_space<vmem>>, vector<32x2xbf16>
    %cst = arith.constant dense<0.000000e+00> : vector<32x2xf32>
    %2 = tpu.matmul %0, %1, %cst {dimension_numbers = #tpu.dot_dimension_numbers<[1], [0], [0], [1], [0, 0, 1, 1], [], []>} : vector<32x32xbf16>, vector<32x2xbf16>, vector<32x2xf32> -> vector<32x2xf32>
    %c0_3 = arith.constant 0 : index
    %c0_4 = arith.constant 0 : index
    %3 = vector.load %arg4[%c0_3, %c0_4] : memref<1x2xf32, #tpu.memory_space<vmem>>, vector<1x2xf32>
    %4 = vector.broadcast %3 : vector<1x2xf32> to vector<32x2xf32>
    %5 = arith.mulf %2, %4 : vector<32x2xf32>
    %c0_5 = arith.constant 0 : index
    %c0_6 = arith.constant 0 : index
    %6 = vector.load %arg5[%c0_5, %c0_6] : memref<1x2xf32, #tpu.memory_space<vmem>>, vector<1x2xf32>
    %7 = vector.broadcast %6 : vector<1x2xf32> to vector<32x2xf32>
    %8 = arith.addf %5, %7 : vector<32x2xf32>
    %c0_7 = arith.constant 0 : index
    %c0_8 = arith.constant 0 : index
    %9 = vector.load %arg6[%c0_7, %c0_8] : memref<32x2xf32, #tpu.memory_space<vmem>>, vector<32x2xf32>
    tpu.vector_store %arg6[%c0_7, %c0_8], %8 {strides = array<i32>} : memref<32x2xf32, #tpu.memory_space<vmem>>, vector<32x2xf32>,
    return
  }
  func.func @transform_0(%arg0: i32, %arg1: i32) -> (i32, i32) {
    %c0_i32 = arith.constant 0 : i32
    %c0_i32_0 = arith.constant 0 : i32
    return %arg0, %c0_i32 : i32, i32
  }
  func.func @transform_1(%arg0: i32, %arg1: i32) -> (i32, i32) {
    %c0_i32 = arith.constant 0 : i32
    %c0_i32_0 = arith.constant 0 : i32
    return %c0_i32, %arg1 : i32, i32
  }
  func.func @transform_2(%arg0: i32, %arg1: i32) -> (i32, i32) {
    %c0_i32 = arith.constant 0 : i32
    %c0_i32_0 = arith.constant 0 : i32
    return %c0_i32, %arg1 : i32, i32
  }
  func.func @transform_3(%arg0: i32, %arg1: i32) -> (i32, i32) {
    %c0_i32 = arith.constant 0 : i32
    %c0_i32_0 = arith.constant 0 : i32
    return %c0_i32, %arg1 : i32, i32
  }
  func.func @transform_4(%arg0: i32, %arg1: i32) -> (i32, i32) {
    %c0_i32 = arith.constant 0 : i32
    return %arg0, %arg1 : i32, i32
  }
}

</mosaic_0001>

<llo_original>
// kernel: pspnet_forward.63
$region0: #{pspnet_forward.63}
  #allocation0 [shape = 'u32[]', space=smem, size = 0x4, offset = 0x4, fixed_abs, tag = 'smem constant byte address 0x4 - core index']
  #allocation1 [shape = 'u32[144,128]{1,0:T(1,128)}', space=vmem, size = 0x12000, scoped, tag = 'internal scratch']
  %s0 = inlined_call_operand.vmem [shape: bf16[512,32], index: 0, kind: input, shape index: {}]
  %s1 = inlined_call_operand.vmem [shape: bf16[32,4], index: 1, kind: input, shape index: {}]
  %s2 = inlined_call_operand.vmem [shape: f32[1,4], index: 2, kind: input, shape index: {}]
  %s3 = inlined_call_operand.vmem [shape: f32[1,4], index: 3, kind: input, shape index: {}]
  %s4 = inlined_call_operand.vmem [shape: f32[512,4], index: 4, kind: output, shape index: {}]
  %s5 = sld [smem:[#allocation0]]
  $region49: #{pspnet_forward.63} parent=0
    _
  %s7 = ssub.s32 1, %s5
  %s8 = scalar_select 0, %s7, %s5
  loop: start=0, step=1, limit=6
  $region2: #{pspnet_forward.63} parent=0 // loop_pre_header
    _
  $region3: #{pspnet_forward.63} parent=0 // loop_header
    %s10 = sphi 0, %s14
    %p11 = scmp.ge.s32.totalorder %s10, 6
    %s17 = sphi 0, %s29
    %s18 = sphi 0, %s25
    %s19 = sphi 0, %s17
    %s20 = sphi 0, %s18
    %s21 = sphi 0, %s19
    %s22 = sphi 0, %s20
    %s32 = sphi 0, %s34
    %s35 = sphi 0, %s32
    %s36 = sphi 0, %s35
    %s52 = sphi 0, %s36
    %s58 = sphi 0, %s60
    %s61 = sphi 0, %s58
    %s62 = sphi 0, %s61
    %s78 = sphi 0, %s62
    %s84 = sphi 0, %s86
    %s87 = sphi 0, %s84
    %s88 = sphi 0, %s87
    %s104 = sphi 0, %s88
    %s110 = sphi 0, %s112
    %s113 = sphi 0, %s110
    %s114 = sphi 0, %s113
    %s130 = sphi 0, %s114
    %s138 = sphi 0, %s140
    %s141 = sphi 0, %s138
    %s142 = sphi 0, %s141
    %s158 = sphi 0, %s142
  $region4: #{pspnet_forward.63} parent=0 // loop_header_branch
    %13 = sbr.rel (%p11) target = $region8
  $region5: #{pspnet_forward.63} parent=0 // loop_body
    %s15 = ssub.s32 %s10, 1
    %s16 = ssub.s32 %s10, 2
    %s23 = sadd.s32 1, %s18
    %p24 = scmp.ge.s32.totalorder %s23, 1
    %s25 = scalar_select %p24, 0, %s23
    %s26 = sadd.s32 1, %s17
    %s27 = scalar_select %p24, %s26, %s17
    %p28 = scmp.ge.s32.totalorder %s27, 4
    %s29 = scalar_select %p28, 0, %s27
    %s30 = ssub.s32 %s17, %s29
    %p31 = scmp.eq.s32.totalorder %s30, 0
    %s33 = sadd.s32 %s32, 1
    %s34 = scalar_select %p31, %s32, %s33
    %p37 = pneg %p31
    %p38 = scmp.eq.s32.totalorder %s10, 3
    %p39 = por %p37, %p38
    %p40 = scmp.ne.s32.totalorder %s32, %s35
    %p41 = scmp.eq.s32.totalorder %s10, 0
    %p42 = por %p40, %p41
    %p43 = scmp.ne.s32.totalorder %s32, %s35
    %p44 = scmp.eq.s32.totalorder %s15, 3
    %p45 = por %p43, %p44
    %p46 = scmp.ne.s32.totalorder %s35, %s36
    %p47 = scmp.eq.s32.totalorder %s15, 0
    %p48 = por %p46, %p47
    %p49 = scmp.ne.s32.totalorder %s35, %s36
    %p50 = scmp.eq.s32.totalorder %s16, 3
    %p51 = por %p49, %p50
    %p53 = scmp.ne.s32.totalorder %s36, %s52
    %p54 = scmp.eq.s32.totalorder %s16, 0
    %p55 = por %p53, %p54
    %s56 = ssub.s32 %s18, %s25
    %p57 = scmp.eq.s32.totalorder %s56, 0
    %s59 = sadd.s32 %s58, 1
    %s60 = scalar_select %p57, %s58, %s59
    %p63 = pneg %p57
    %p64 = scmp.eq.s32.totalorder %s10, 3
    %p65 = por %p63, %p64
    %p66 = scmp.ne.s32.totalorder %s58, %s61
    %p67 = scmp.eq.s32.totalorder %s10, 0
    %p68 = por %p66, %p67
    %p69 = scmp.ne.s32.totalorder %s58, %s61
    %p70 = scmp.eq.s32.totalorder %s15, 3
    %p71 = por %p69, %p70
    %p72 = scmp.ne.s32.totalorder %s61, %s62
    %p73 = scmp.eq.s32.totalorder %s15, 0
    %p74 = por %p72, %p73
    %p75 = scmp.ne.s32.totalorder %s61, %s62
    %p76 = scmp.eq.s32.totalorder %s16, 3
    %p77 = por %p75, %p76
    %p79 = scmp.ne.s32.totalorder %s62, %s78
    %p80 = scmp.eq.s32.totalorder %s16, 0
    %p81 = por %p79, %p80
    %s82 = ssub.s32 %s18, %s25
    %p83 = scmp.eq.s32.totalorder %s82, 0
    %s85 = sadd.s32 %s84, 1
    %s86 = scalar_select %p83, %s84, %s85
    %p89 = pneg %p83
    %p90 = scmp.eq.s32.totalorder %s10, 3
    %p91 = por %p89, %p90
    %p92 = scmp.ne.s32.totalorder %s84, %s87
    %p93 = scmp.eq.s32.totalorder %s10, 0
    %p94 = por %p92, %p93
    %p95 = scmp.ne.s32.totalorder %s84, %s87
    %p96 = scmp.eq.s32.totalorder %s15, 3
    %p97 = por %p95, %p96
    %p98 = scmp.ne.s32.totalorder %s87, %s88
    %p99 = scmp.eq.s32.totalorder %s15, 0
    %p100 = por %p98, %p99
    %p101 = scmp.ne.s32.totalorder %s87, %s88
    %p102 = scmp.eq.s32.totalorder %s16, 3
    %p103 = por %p101, %p102
    %p105 = scmp.ne.s32.totalorder %s88, %s104
    %p106 = scmp.eq.s32.totalorder %s16, 0
    %p107 = por %p105, %p106
    %s108 = ssub.s32 %s18, %s25
    %p109 = scmp.eq.s32.totalorder %s108, 0
    %s111 = sadd.s32 %s110, 1
    %s112 = scalar_select %p109, %s110, %s111
    %p115 = pneg %p109
    %p116 = scmp.eq.s32.totalorder %s10, 3
    %p117 = por %p115, %p116
    %p118 = scmp.ne.s32.totalorder %s110, %s113
    %p119 = scmp.eq.s32.totalorder %s10, 0
    %p120 = por %p118, %p119
    %p121 = scmp.ne.s32.totalorder %s110, %s113
    %p122 = scmp.eq.s32.totalorder %s15, 3
    %p123 = por %p121, %p122
    %p124 = scmp.ne.s32.totalorder %s113, %s114
    %p125 = scmp.eq.s32.totalorder %s15, 0
    %p126 = por %p124, %p125
    %p127 = scmp.ne.s32.totalorder %s113, %s114
    %p128 = scmp.eq.s32.totalorder %s16, 3
    %p129 = por %p127, %p128
    %p131 = scmp.ne.s32.totalorder %s114, %s130
    %p132 = scmp.eq.s32.totalorder %s16, 0
    %p133 = por %p131, %p132
    %s134 = ssub.s32 %s17, %s29
    %s135 = ssub.s32 %s18, %s25
    %s136 = sor.u32 %s134, %s135
    %p137 = scmp.eq.s32.totalorder %s136, 0
    %s139 = sadd.s32 %s138, 1
    %s140 = scalar_select %p137, %s138, %s139
    %p143 = pneg %p137
    %p144 = scmp.eq.s32.totalorder %s10, 3
    %p145 = por %p143, %p144
    %p146 = scmp.ne.s32.totalorder %s138, %s141
    %p147 = scmp.eq.s32.totalorder %s10, 0
    %p148 = por %p146, %p147
    %p149 = scmp.ne.s32.totalorder %s138, %s141
    %p150 = scmp.eq.s32.totalorder %s15, 3
    %p151 = por %p149, %p150
    %p152 = scmp.ne.s32.totalorder %s141, %s142
    %p153 = scmp.eq.s32.totalorder %s15, 0
    %p154 = por %p152, %p153
    %p155 = scmp.ne.s32.totalorder %s141, %s142
    %p156 = scmp.eq.s32.totalorder %s16, 3
    %p157 = por %p155, %p156
    %p159 = scmp.ne.s32.totalorder %s142, %s158
    %p160 = scmp.eq.s32.totalorder %s16, 0
    %p161 = por %p159, %p160
    %p162 = scmp.le.s32.totalorder 1, %s10
    %p163 = scmp.lt.s32.totalorder %s10, 5
    %p164 = pnand %p162, %p163
    %p165 = pneg %p164
    // Predicated region
    $region9: #{pspnet_forward.63} parent=5 // pred_check
      _
    $region10: #{pspnet_forward.63} parent=5 // pred_check_branch
      %167 = sbr.rel (%p164) target = $region12
    $region11: #{pspnet_forward.63} parent=5 // pred_region
      %s168 = ssub.s32 %s10, 1
      // Predicated region
      $region13: #{pspnet_forward.63} parent=11 // pred_check
        %p169 = pneg %p74
      $region14: #{pspnet_forward.63} parent=11 // pred_check_branch
        %171 = sbr.rel (%p169) target = $region16
      $region15: #{pspnet_forward.63} parent=11 // pred_region
        %p172 = scmp.lt.s32.totalorder %s20, 0
        %s173 = scalar_select %p172, %s20, 0
        %s174 = smul.addr %s173, 4
        %s175 = scalar_lea.vmem %s1, %s174
      $region16: #{pspnet_forward.63} parent=11 // pred_fallthru
        _
      // Predicated region
      $region17: #{pspnet_forward.63} parent=11 // pred_check
        %p176 = pneg %p100
      $region18: #{pspnet_forward.63} parent=11 // pred_check_branch
        %178 = sbr.rel (%p176) target = $region20
      $region19: #{pspnet_forward.63} parent=11 // pred_region
        %p179 = scmp.lt.s32.totalorder %s20, 0
        %s180 = scalar_select %p179, %s20, 0
        %s181 = scalar_lea.vmem %s2, %s180
      $region20: #{pspnet_forward.63} parent=11 // pred_fallthru
        _
      // Predicated region
      $region21: #{pspnet_forward.63} parent=11 // pred_check
        %p182 = pneg %p126
      $region22: #{pspnet_forward.63} parent=11 // pred_check_branch
        %184 = sbr.rel (%p182) target = $region24
      $region23: #{pspnet_forward.63} parent=11 // pred_region
        %p185 = scmp.lt.s32.totalorder %s20, 0
        %s186 = scalar_select %p185, %s20, 0
        %s187 = scalar_lea.vmem %s3, %s186
      $region24: #{pspnet_forward.63} parent=11 // pred_fallthru
        _
    $region12: #{pspnet_forward.63} parent=5 // pred_fallthru
      _
    %p188 = scmp.lt.s32.totalorder %s10, 4
    // Predicated region
    $region25: #{pspnet_forward.63} parent=5 // pred_check
      %p189 = pneg %p188
    $region26: #{pspnet_forward.63} parent=5 // pred_check_branch
      %191 = sbr.rel (%p189) target = $region28
    $region27: #{pspnet_forward.63} parent=5 // pred_region
      // Predicated region
      $region29: #{pspnet_forward.63} parent=27 // pred_check
        %p192 = pneg %p42
      $region30: #{pspnet_forward.63} parent=27 // pred_check_branch
        %194 = sbr.rel (%p192) target = $region32
      $region31: #{pspnet_forward.63} parent=27 // pred_region
        %s195 = smul.u32 16, %s17
        %p196 = scmp.lt.s32.totalorder %s195, 63
        %s197 = scalar_select %p196, %s195, 63
        %s198 = smul.addr %s197, 4
        %s199 = scalar_lea.vmem %s0, %s198
        %s200 = smul.u32 16, %s17
      $region32: #{pspnet_forward.63} parent=27 // pred_fallthru
        _
    $region28: #{pspnet_forward.63} parent=5 // pred_fallthru
      _
    %p201 = scmp.le.s32.totalorder 1, %s10
    %p202 = scmp.lt.s32.totalorder %s10, 5
    %p203 = pnand %p201, %p202
    %p204 = pneg %p203
    // Predicated region
    $region33: #{pspnet_forward.63} parent=5 // pred_check
      _
    $region34: #{pspnet_forward.63} parent=5 // pred_check_branch
      %206 = sbr.rel (%p203) target = $region36
    $region35: #{pspnet_forward.63} parent=5 // pred_region
      %s207 = ssub.s32 %s10, 1
      %s208 = smul.u32 16, %s19
      %p209 = scmp.lt.s32.totalorder %s208, 63
      %s210 = scalar_select %p209, %s208, 63
      %s211 = smul.addr %s210, 4
      %s212 = scalar_lea.vmem %s0, %s211
      %p213 = pneg %p48
      %p214 = pneg %p45
      %p215 = scmp.lt.s32.totalorder %s20, 0
      %s216 = scalar_select %p215, %s20, 0
      %s217 = smul.addr %s216, 4
      %s218 = scalar_lea.vmem %s1, %s217
      %p219 = pneg %p74
      %p220 = pneg %p71
      %p221 = scmp.lt.s32.totalorder %s20, 0
      %s222 = scalar_select %p221, %s20, 0
      %s223 = scalar_lea.vmem %s2, %s222
      %p224 = pneg %p100
      %p225 = pneg %p97
      %p226 = scmp.lt.s32.totalorder %s20, 0
      %s227 = scalar_select %p226, %s20, 0
      %s228 = scalar_lea.vmem %s3, %s227
      %p229 = pneg %p126
      %p230 = pneg %p123
      %p231 = pneg %p154
      %p232 = pneg %p151
      %s233 = smul.u32 16, %s19
      %p234 = scmp.lt.s32.totalorder %s233, 63
      %s235 = scalar_select %p234, %s233, 63
      %p236 = scmp.lt.s32.totalorder %s20, 0
      %s237 = scalar_select %p236, %s20, 0
      %s238 = sadd.s32 %s237, %s235
      %s239 = smul.addr %s238, 8
      %s240 = scalar_lea.vmem %s4, %s239
      %s241 = smul.u32 16, %s19
      %p242 = scmp.lt.s32.totalorder %s241, 63
      %s243 = scalar_select %p242, %s241, 63
      %s244 = smul.addr %s243, 4
      %s245 = scalar_lea.vmem %s0, %s244
      %s246 = smul.u32 16, %s19
      %p247 = scmp.lt.s32.totalorder %s20, 0
      %s248 = scalar_select %p247, %s20, 0
      %s249 = smul.addr %s248, 4
      %s250 = scalar_lea.vmem %s1, %s249
      %p251 = scmp.lt.s32.totalorder %s20, 0
      %s252 = scalar_select %p251, %s20, 0
      %s253 = scalar_lea.vmem %s2, %s252
      %p254 = scmp.lt.s32.totalorder %s20, 0
      %s255 = scalar_select %p254, %s20, 0
      %s256 = scalar_lea.vmem %s3, %s255
      %s257 = smul.u32 16, %s19
      %p258 = scmp.lt.s32.totalorder %s257, 63
      %s259 = scalar_select %p258, %s257, 63
      %p260 = scmp.lt.s32.totalorder %s20, 0
      %s261 = scalar_select %p260, %s20, 0
      %s262 = sadd.s32 %s261, %s259
      %s263 = smul.addr %s262, 8
      %s264 = scalar_lea.vmem %s4, %s263
      %s265 = smul.u32 16, %s19
      %v267 = vld [vmem:[%s245] sm:$0xf]
      %v268 = vld [vmem:[%s245 + $0x4] sm:$0xf]
      %v269 = vld [vmem:[%s245 + $0x8] sm:$0xf]
      %v270 = vld [vmem:[%s245 + $0xc] sm:$0xf]
      %v271 = vld [vmem:[%s245 + $0x10] sm:$0xf]
      %v272 = vld [vmem:[%s245 + $0x14] sm:$0xf]
      %v273 = vld [vmem:[%s245 + $0x18] sm:$0xf]
      %v274 = vld [vmem:[%s245 + $0x1c] sm:$0xf]
      %v275 = vld [vmem:[%s245 + $0x20] sm:$0xf]
      %v276 = vld [vmem:[%s245 + $0x24] sm:$0xf]
      %v277 = vld [vmem:[%s245 + $0x28] sm:$0xf]
      %v278 = vld [vmem:[%s245 + $0x2c] sm:$0xf]
      %v279 = vld [vmem:[%s245 + $0x30] sm:$0xf]
      %v280 = vld [vmem:[%s245 + $0x34] sm:$0xf]
      %v281 = vld [vmem:[%s245 + $0x38] sm:$0xf]
      %v282 = vld [vmem:[%s245 + $0x3c] sm:$0xf]
      %v283 = vld [vmem:[%s250] sm:$0xf]
      %v284 = vld [vmem:[%s250 + $0x4] sm:$0xf]
      %v285 = vld [vmem:[%s250 + $0x8] sm:$0xf]
      %v286 = vld [vmem:[%s250 + $0xc] sm:$0xf]
      %v303 = vunpack.c.l.b16 %v267
      %v304 = vunpack.c.l.b16 %v268
      %v305 = vunpack.c.l.b16 %v269
      %v306 = vunpack.c.l.b16 %v270
      %v307 = vunpack.c.l.b16 %v271
      %v308 = vunpack.c.l.b16 %v272
      %v309 = vunpack.c.l.b16 %v273
      %v310 = vunpack.c.l.b16 %v274
      %v311 = vunpack.c.l.b16 %v275
      %v312 = vunpack.c.l.b16 %v276
      %v313 = vunpack.c.l.b16 %v277
      %v314 = vunpack.c.l.b16 %v278
      %v315 = vunpack.c.l.b16 %v279
      %v316 = vunpack.c.l.b16 %v280
      %v317 = vunpack.c.l.b16 %v281
      %v318 = vunpack.c.l.b16 %v282
      %v319 = vpack.c.b16 %v304, %v303
      %v320 = vpack.c.b16 %v306, %v305
      %v321 = vpack.c.b16 %v308, %v307
      %v322 = vpack.c.b16 %v310, %v309
      %v323 = vpack.c.b16 %v312, %v311
      %v324 = vpack.c.b16 %v314, %v313
      %v325 = vpack.c.b16 %v316, %v315
      %v326 = vpack.c.b16 %v318, %v317
      %v331 = vunpack.c.l.b16 %v283
      %v332 = vunpack.c.l.b16 %v284
      %v333 = vunpack.c.l.b16 %v285
      %v334 = vunpack.c.l.b16 %v286
      %v335 = vpack.c.b16 %v332, %v331
      %v336 = vpack.c.b16 %v334, %v333
      %vm339 = vcmask 261120
      %v341 = vsel %vm339, %v319, 0
      %v344 = vsel %vm339, %v320, 0
      %v347 = vsel %vm339, %v321, 0
      %v350 = vsel %vm339, %v322, 0
      %v353 = vsel %vm339, %v323, 0
      %v356 = vsel %vm339, %v324, 0
      %v359 = vsel %vm339, %v325, 0
      %v362 = vsel %vm339, %v326, 0
      %364 = vmatprep.subr.bf16.mxu0 0
      %365 = vmatpush1.bf16.msra.mxu0 %v335
      %366 = vmatprep.subr.bf16.mxu0 0
      %367 = vmatpush1.bf16.msra.mxu0 %v336
      %368 = vmatprep.subr.bf16.mxu0 0
      %369 = vmatpush1.bf16.msra.mxu0 0
      %370 = vmatprep.subr.bf16.mxu0 0
      %371 = vmatpush1.bf16.msra.mxu0 0
      %372 = vmatprep.subr.bf16.mxu0 0
      %373 = vmatpush1.bf16.msra.mxu0 0
      %374 = vmatprep.subr.bf16.mxu0 0
      %375 = vmatpush1.bf16.msra.mxu0 0
      %376 = vmatprep.subr.bf16.mxu0 0
      %377 = vmatpush1.bf16.msra.mxu0 0
      %378 = vmatprep.subr.bf16.mxu0 0
      %379 = vmatpush1.bf16.msra.mxu0 0
      %380 = vmatprep.subr.bf16.mxu0 0
      %381 = vmatpush1.bf16.msra.mxu0 0
      %382 = vmatprep.subr.bf16.mxu0 0
      %383 = vmatpush1.bf16.msra.mxu0 0
      %384 = vmatprep.subr.bf16.mxu0 0
      %385 = vmatpush1.bf16.msra.mxu0 0
      %386 = vmatprep.subr.bf16.mxu0 0
      %387 = vmatpush1.bf16.msra.mxu0 0
      %388 = vmatprep.subr.bf16.mxu0 0
      %389 = vmatpush1.bf16.msra.mxu0 0
      %390 = vmatprep.subr.bf16.mxu0 0
      %391 = vmatpush1.bf16.msra.mxu0 0
      %392 = vmatprep.subr.bf16.mxu0 0
      %393 = vmatpush1.bf16.msra.mxu0 0
      %394 = vmatprep.subr.bf16.mxu0 0
      %395 = vmatpush1.bf16.msra.mxu0 0
      %396 = vmatprep.mubr.bf16.mxu0 0
      %397 = vmatmul.mubr.bf16.gmra.mrb[0].mxu0 %v341
      %v398 = vpop.f32.mrb[0].mxu0
      %v399 = vadd.f32 0.0, %v398
      %v400 = vpop.f32.mrb[0].mxu0
      %v401 = vpop.f32.mrb[0].mxu0
      %v402 = vadd.f32 0.0, %v401
      %v403 = vpop.f32.mrb[0].mxu0
      %404 = vmatprep.mubr.bf16.mxu0 0
      %405 = vmatmul.mubr.bf16.gmra.mrb[0].mxu0 %v344
      %v406 = vpop.f32.mrb[0].mxu0
      %v407 = vadd.f32 0.0, %v406
      %v408 = vpop.f32.mrb[0].mxu0
      %v409 = vpop.f32.mrb[0].mxu0
      %v410 = vadd.f32 0.0, %v409
      %v411 = vpop.f32.mrb[0].mxu0
      %412 = vmatprep.mubr.bf16.mxu0 0
      %413 = vmatmul.mubr.bf16.gmra.mrb[0].mxu0 %v347
      %v414 = vpop.f32.mrb[0].mxu0
      %v415 = vadd.f32 0.0, %v414
      %v416 = vpop.f32.mrb[0].mxu0
      %v417 = vpop.f32.mrb[0].mxu0
      %v418 = vadd.f32 0.0, %v417
      %v419 = vpop.f32.mrb[0].mxu0
      %420 = vmatprep.mubr.bf16.mxu0 0
      %421 = vmatmul.mubr.bf16.gmra.mrb[0].mxu0 %v350
      %v422 = vpop.f32.mrb[0].mxu0
      %v423 = vadd.f32 0.0, %v422
      %v424 = vpop.f32.mrb[0].mxu0
      %v425 = vpop.f32.mrb[0].mxu0
      %v426 = vadd.f32 0.0, %v425
      %v427 = vpop.f32.mrb[0].mxu0
      %428 = vmatprep.mubr.bf16.mxu0 0
      %429 = vmatmul.mubr.bf16.gmra.mrb[0].mxu0 %v353
      %v430 = vpop.f32.mrb[0].mxu0
      %v431 = vadd.f32 0.0, %v430
      %v432 = vpop.f32.mrb[0].mxu0
      %v433 = vpop.f32.mrb[0].mxu0
      %v434 = vadd.f32 0.0, %v433
      %v435 = vpop.f32.mrb[0].mxu0
      %436 = vmatprep.mubr.bf16.mxu0 0
      %437 = vmatmul.mubr.bf16.gmra.mrb[0].mxu0 %v356
      %v438 = vpop.f32.mrb[0].mxu0
      %v439 = vadd.f32 0.0, %v438
      %v440 = vpop.f32.mrb[0].mxu0
      %v441 = vpop.f32.mrb[0].mxu0
      %v442 = vadd.f32 0.0, %v441
      %v443 = vpop.f32.mrb[0].mxu0
      %444 = vmatprep.mubr.bf16.mxu0 0
      %445 = vmatmul.mubr.bf16.gmra.mrb[0].mxu0 %v359
      %v446 = vpop.f32.mrb[0].mxu0
      %v447 = vadd.f32 0.0, %v446
      %v448 = vpop.f32.mrb[0].mxu0
      %v449 = vpop.f32.mrb[0].mxu0
      %v450 = vadd.f32 0.0, %v449
      %v451 = vpop.f32.mrb[0].mxu0
      %452 = vmatprep.mubr.bf16.mxu0 0
      %453 = vmatmul.mubr.bf16.gmra.mrb[0].mxu0 %v362
      %v454 = vpop.f32.mrb[0].mxu0
      %v455 = vadd.f32 0.0, %v454
      %v456 = vpop.f32.mrb[0].mxu0
      %v457 = vpop.f32.mrb[0].mxu0
      %v458 = vadd.f32 0.0, %v457
      %v459 = vpop.f32.mrb[0].mxu0
      %460 = vdwg.mxu0
      %v461 = vld [vmem:[%s253] sm:$0x1]
      %v463 = vlaneseq
      %v464 = vshrl.u32 %v463, 7
      %v465 = vsub.s32 0, %v464
      %v466 = vrot.slane %v461, %v465
      %v468 = vmul.f32 %v399, %v466
      %v469 = vmul.f32 %v402, %v466
      %v470 = vmul.f32 %v407, %v466
      %v471 = vmul.f32 %v410, %v466
      %v472 = vmul.f32 %v415, %v466
      %v473 = vmul.f32 %v418, %v466
      %v474 = vmul.f32 %v423, %v466
      %v475 = vmul.f32 %v426, %v466
      %v476 = vmul.f32 %v431, %v466
      %v477 = vmul.f32 %v434, %v466
      %v478 = vmul.f32 %v439, %v466
      %v479 = vmul.f32 %v442, %v466
      %v480 = vmul.f32 %v447, %v466
      %v481 = vmul.f32 %v450, %v466
      %v482 = vmul.f32 %v455, %v466
      %v483 = vmul.f32 %v458, %v466
      %v484 = vld [vmem:[%s256] sm:$0x1]
      %v486 = vlaneseq
      %v487 = vshrl.u32 %v486, 7
      %v488 = vsub.s32 0, %v487
      %v489 = vrot.slane %v484, %v488
      %v491 = vadd.f32 %v468, %v489
      %v492 = vadd.f32 %v469, %v489
      %v493 = vadd.f32 %v470, %v489
      %v494 = vadd.f32 %v471, %v489
      %v495 = vadd.f32 %v472, %v489
      %v496 = vadd.f32 %v473, %v489
      %v497 = vadd.f32 %v474, %v489
      %v498 = vadd.f32 %v475, %v489
      %v499 = vadd.f32 %v476, %v489
      %v500 = vadd.f32 %v477, %v489
      %v501 = vadd.f32 %v478, %v489
      %v502 = vadd.f32 %v479, %v489
      %v503 = vadd.f32 %v480, %v489
      %v504 = vadd.f32 %v481, %v489
      %v505 = vadd.f32 %v482, %v489
      %v506 = vadd.f32 %v483, %v489
      %v507 = vmax.f32 %v491, 0.0
      %v508 = vmax.f32 %v492, 0.0
      %v509 = vmax.f32 %v493, 0.0
      %v510 = vmax.f32 %v494, 0.0
      %v511 = vmax.f32 %v495, 0.0
      %v512 = vmax.f32 %v496, 0.0
      %v513 = vmax.f32 %v497, 0.0
      %v514 = vmax.f32 %v498, 0.0
      %v515 = vmax.f32 %v499, 0.0
      %v516 = vmax.f32 %v500, 0.0
      %v517 = vmax.f32 %v501, 0.0
      %v518 = vmax.f32 %v502, 0.0
      %v519 = vmax.f32 %v503, 0.0
      %v520 = vmax.f32 %v504, 0.0
      %v521 = vmax.f32 %v505, 0.0
      %v522 = vmax.f32 %v506, 0.0
      %vm523 = vcmask 31744
      %524 = vst.msk [vmem:[%s264] sm:$0xff] %vm523, %v507
      %525 = vst.msk [vmem:[%s264 + $0x8] sm:$0xff] %vm523, %v508
      %526 = vst.msk [vmem:[%s264 + $0x10] sm:$0xff] %vm523, %v509
      %527 = vst.msk [vmem:[%s264 + $0x18] sm:$0xff] %vm523, %v510
      %528 = vst.msk [vmem:[%s264 + $0x20] sm:$0xff] %vm523, %v511
      %529 = vst.msk [vmem:[%s264 + $0x28] sm:$0xff] %vm523, %v512
      %530 = vst.msk [vmem:[%s264 + $0x30] sm:$0xff] %vm523, %v513
      %531 = vst.msk [vmem:[%s264 + $0x38] sm:$0xff] %vm523, %v514
      %532 = vst.msk [vmem:[%s264 + $0x40] sm:$0xff] %vm523, %v515
      %533 = vst.msk [vmem:[%s264 + $0x48] sm:$0xff] %vm523, %v516
      %534 = vst.msk [vmem:[%s264 + $0x50] sm:$0xff] %vm523, %v517
      %535 = vst.msk [vmem:[%s264 + $0x58] sm:$0xff] %vm523, %v518
      %536 = vst.msk [vmem:[%s264 + $0x60] sm:$0xff] %vm523, %v519
      %537 = vst.msk [vmem:[%s264 + $0x68] sm:$0xff] %vm523, %v520
      %538 = vst.msk [vmem:[%s264 + $0x70] sm:$0xff] %vm523, %v521
      %539 = vst.msk [vmem:[%s264 + $0x78] sm:$0xff] %vm523, %v522
      %s540 = smul.u32 16, %s19
      %p541 = scmp.lt.s32.totalorder %s540, 63
      %s542 = scalar_select %p541, %s540, 63
      %p543 = scmp.lt.s32.totalorder %s20, 0
      %s544 = scalar_select %p543, %s20, 0
      %s545 = sadd.s32 %s544, %s542
      %s546 = smul.addr %s545, 8
      %s547 = scalar_lea.vmem %s4, %s546
      // Predicated region
      $region37: #{pspnet_forward.63} parent=35 // pred_check
        %p548 = pneg %p151
      $region38: #{pspnet_forward.63} parent=35 // pred_check_branch
        %550 = sbr.rel (%p548) target = $region40
      $region39: #{pspnet_forward.63} parent=35 // pred_region
        %s551 = smul.u32 16, %s19
      $region40: #{pspnet_forward.63} parent=35 // pred_fallthru
        _
    $region36: #{pspnet_forward.63} parent=5 // pred_fallthru
      _
    %p552 = scmp.le.s32.totalorder 2, %s10
    // Predicated region
    $region41: #{pspnet_forward.63} parent=5 // pred_check
      %p553 = pneg %p552
    $region42: #{pspnet_forward.63} parent=5 // pred_check_branch
      %555 = sbr.rel (%p553) target = $region44
    $region43: #{pspnet_forward.63} parent=5 // pred_region
      %s556 = ssub.s32 %s10, 2
      // Predicated region
      $region45: #{pspnet_forward.63} parent=43 // pred_check
        %p557 = pneg %p157
      $region46: #{pspnet_forward.63} parent=43 // pred_check_branch
        %559 = sbr.rel (%p557) target = $region48
      $region47: #{pspnet_forward.63} parent=43 // pred_region
        %s560 = smul.u32 16, %s21
        %p561 = scmp.lt.s32.totalorder %s560, 63
        %s562 = scalar_select %p561, %s560, 63
        %p563 = scmp.lt.s32.totalorder %s22, 0
        %s564 = scalar_select %p563, %s22, 0
        %s565 = sadd.s32 %s564, %s562
        %s566 = smul.addr %s565, 8
        %s567 = scalar_lea.vmem %s4, %s566
      $region48: #{pspnet_forward.63} parent=43 // pred_fallthru
        _
    $region44: #{pspnet_forward.63} parent=5 // pred_fallthru
      _
  $region6: #{pspnet_forward.63} parent=0 // loop_footer
    %s14 = sadd.s32 1, %s10
  $region7: #{pspnet_forward.63} parent=0 // loop_footer_branch
    %9 = sbr.rel target = $region3
  $region8: #{pspnet_forward.63} parent=0 // loop_exit
    _

// kernel: pspnet_forward.65
$region0: #{pspnet_forward.65}
  #allocation0 [shape = 'u32[]', space=smem, size = 0x4, offset = 0x4, fixed_abs, tag = 'smem constant byte address 0x4 - core index']
  #allocation1 [shape = 'u32[144,128]{1,0:T(1,128)}', space=vmem, size = 0x12000, scoped, tag = 'internal scratch']
  %s0 = inlined_call_operand.vmem [shape: bf16[512,48], index: 0, kind: input, shape index: {}]
  %s1 = inlined_call_operand.vmem [shape: bf16[48,8], index: 1, kind: input, shape index: {}]
  %s2 = inlined_call_operand.vmem [shape: f32[1,8], index: 2, kind: input, shape index: {}]
  %s3 = inlined_call_operand.vmem [shape: f32[1,8], index: 3, kind: input, shape index: {}]
  %s4 = inlined_call_operand.vmem [shape: f32[512,8], index: 4, kind: output, shape index: {}]
  %s5 = sld [smem:[#allocation0]]
  $region49: #{pspnet_forward.65} parent=0
    _
  %s7 = ssub.s32 1, %s5
  %s8 = scalar_select 0, %s7, %s5
  loop: start=0, step=1, limit=6
  $region2: #{pspnet_forward.65} parent=0 // loop_pre_header
    _
  $region3: #{pspnet_forward.65} parent=0 // loop_header
    %s10 = sphi 0, %s14
    %p11 = scmp.ge.s32.totalorder %s10, 6
    %s17 = sphi 0, %s29
    %s18 = sphi 0, %s25
    %s19 = sphi 0, %s17
    %s20 = sphi 0, %s18
    %s21 = sphi 0, %s19
    %s22 = sphi 0, %s20
    %s32 = sphi 0, %s34
    %s35 = sphi 0, %s32
    %s36 = sphi 0, %s35
    %s52 = sphi 0, %s36
    %s58 = sphi 0, %s60
    %s61 = sphi 0, %s58
    %s62 = sphi 0, %s61
    %s78 = sphi 0, %s62
    %s84 = sphi 0, %s86
    %s87 = sphi 0, %s84
    %s88 = sphi 0, %s87
    %s104 = sphi 0, %s88
    %s110 = sphi 0, %s112
    %s113 = sphi 0, %s110
    %s114 = sphi 0, %s113
    %s130 = sphi 0, %s114
    %s138 = sphi 0, %s140
    %s141 = sphi 0, %s138
    %s142 = sphi 0, %s141
    %s158 = sphi 0, %s142
  $region4: #{pspnet_forward.65} parent=0 // loop_header_branch
    %13 = sbr.rel (%p11) target = $region8
  $region5: #{pspnet_forward.65} parent=0 // loop_body
    %s15 = ssub.s32 %s10, 1
    %s16 = ssub.s32 %s10, 2
    %s23 = sadd.s32 1, %s18
    %p24 = scmp.ge.s32.totalorder %s23, 1
    %s25 = scalar_select %p24, 0, %s23
    %s26 = sadd.s32 1, %s17
    %s27 = scalar_select %p24, %s26, %s17
    %p28 = scmp.ge.s32.totalorder %s27, 4
    %s29 = scalar_select %p28, 0, %s27
    %s30 = ssub.s32 %s17, %s29
    %p31 = scmp.eq.s32.totalorder %s30, 0
    %s33 = sadd.s32 %s32, 1
    %s34 = scalar_select %p31, %s32, %s33
    %p37 = pneg %p31
    %p38 = scmp.eq.s32.totalorder %s10, 3
    %p39 = por %p37, %p38
    %p40 = scmp.ne.s32.totalorder %s32, %s35
    %p41 = scmp.eq.s32.totalorder %s10, 0
    %p42 = por %p40, %p41
    %p43 = scmp.ne.s32.totalorder %s32, %s35
    %p44 = scmp.eq.s32.totalorder %s15, 3
    %p45 = por %p43, %p44
    %p46 = scmp.ne.s32.totalorder %s35, %s36
    %p47 = scmp.eq.s32.totalorder %s15, 0
    %p48 = por %p46, %p47
    %p49 = scmp.ne.s32.totalorder %s35, %s36
    %p50 = scmp.eq.s32.totalorder %s16, 3
    %p51 = por %p49, %p50
    %p53 = scmp.ne.s32.totalorder %s36, %s52
    %p54 = scmp.eq.s32.totalorder %s16, 0
    %p55 = por %p53, %p54
    %s56 = ssub.s32 %s18, %s25
    %p57 = scmp.eq.s32.totalorder %s56, 0
    %s59 = sadd.s32 %s58, 1
    %s60 = scalar_select %p57, %s58, %s59
    %p63 = pneg %p57
    %p64 = scmp.eq.s32.totalorder %s10, 3
    %p65 = por %p63, %p64
    %p66 = scmp.ne.s32.totalorder %s58, %s61
    %p67 = scmp.eq.s32.totalorder %s10, 0
    %p68 = por %p66, %p67
    %p69 = scmp.ne.s32.totalorder %s58, %s61
    %p70 = scmp.eq.s32.totalorder %s15, 3
    %p71 = por %p69, %p70
    %p72 = scmp.ne.s32.totalorder %s61, %s62
    %p73 = scmp.eq.s32.totalorder %s15, 0
    %p74 = por %p72, %p73
    %p75 = scmp.ne.s32.totalorder %s61, %s62
    %p76 = scmp.eq.s32.totalorder %s16, 3
    %p77 = por %p75, %p76
    %p79 = scmp.ne.s32.totalorder %s62, %s78
    %p80 = scmp.eq.s32.totalorder %s16, 0
    %p81 = por %p79, %p80
    %s82 = ssub.s32 %s18, %s25
    %p83 = scmp.eq.s32.totalorder %s82, 0
    %s85 = sadd.s32 %s84, 1
    %s86 = scalar_select %p83, %s84, %s85
    %p89 = pneg %p83
    %p90 = scmp.eq.s32.totalorder %s10, 3
    %p91 = por %p89, %p90
    %p92 = scmp.ne.s32.totalorder %s84, %s87
    %p93 = scmp.eq.s32.totalorder %s10, 0
    %p94 = por %p92, %p93
    %p95 = scmp.ne.s32.totalorder %s84, %s87
    %p96 = scmp.eq.s32.totalorder %s15, 3
    %p97 = por %p95, %p96
    %p98 = scmp.ne.s32.totalorder %s87, %s88
    %p99 = scmp.eq.s32.totalorder %s15, 0
    %p100 = por %p98, %p99
    %p101 = scmp.ne.s32.totalorder %s87, %s88
    %p102 = scmp.eq.s32.totalorder %s16, 3
    %p103 = por %p101, %p102
    %p105 = scmp.ne.s32.totalorder %s88, %s104
    %p106 = scmp.eq.s32.totalorder %s16, 0
    %p107 = por %p105, %p106
    %s108 = ssub.s32 %s18, %s25
    %p109 = scmp.eq.s32.totalorder %s108, 0
    %s111 = sadd.s32 %s110, 1
    %s112 = scalar_select %p109, %s110, %s111
    %p115 = pneg %p109
    %p116 = scmp.eq.s32.totalorder %s10, 3
    %p117 = por %p115, %p116
    %p118 = scmp.ne.s32.totalorder %s110, %s113
    %p119 = scmp.eq.s32.totalorder %s10, 0
    %p120 = por %p118, %p119
    %p121 = scmp.ne.s32.totalorder %s110, %s113
    %p122 = scmp.eq.s32.totalorder %s15, 3
    %p123 = por %p121, %p122
    %p124 = scmp.ne.s32.totalorder %s113, %s114
    %p125 = scmp.eq.s32.totalorder %s15, 0
    %p126 = por %p124, %p125
    %p127 = scmp.ne.s32.totalorder %s113, %s114
    %p128 = scmp.eq.s32.totalorder %s16, 3
    %p129 = por %p127, %p128
    %p131 = scmp.ne.s32.totalorder %s114, %s130
    %p132 = scmp.eq.s32.totalorder %s16, 0
    %p133 = por %p131, %p132
    %s134 = ssub.s32 %s17, %s29
    %s135 = ssub.s32 %s18, %s25
    %s136 = sor.u32 %s134, %s135
    %p137 = scmp.eq.s32.totalorder %s136, 0
    %s139 = sadd.s32 %s138, 1
    %s140 = scalar_select %p137, %s138, %s139
    %p143 = pneg %p137
    %p144 = scmp.eq.s32.totalorder %s10, 3
    %p145 = por %p143, %p144
    %p146 = scmp.ne.s32.totalorder %s138, %s141
    %p147 = scmp.eq.s32.totalorder %s10, 0
    %p148 = por %p146, %p147
    %p149 = scmp.ne.s32.totalorder %s138, %s141
    %p150 = scmp.eq.s32.totalorder %s15, 3
    %p151 = por %p149, %p150
    %p152 = scmp.ne.s32.totalorder %s141, %s142
    %p153 = scmp.eq.s32.totalorder %s15, 0
    %p154 = por %p152, %p153
    %p155 = scmp.ne.s32.totalorder %s141, %s142
    %p156 = scmp.eq.s32.totalorder %s16, 3
    %p157 = por %p155, %p156
    %p159 = scmp.ne.s32.totalorder %s142, %s158
    %p160 = scmp.eq.s32.totalorder %s16, 0
    %p161 = por %p159, %p160
    %p162 = scmp.le.s32.totalorder 1, %s10
    %p163 = scmp.lt.s32.totalorder %s10, 5
    %p164 = pnand %p162, %p163
    %p165 = pneg %p164
    // Predicated region
    $region9: #{pspnet_forward.65} parent=5 // pred_check
      _
    $region10: #{pspnet_forward.65} parent=5 // pred_check_branch
      %167 = sbr.rel (%p164) target = $region12
    $region11: #{pspnet_forward.65} parent=5 // pred_region
      %s168 = ssub.s32 %s10, 1
      // Predicated region
      $region13: #{pspnet_forward.65} parent=11 // pred_check
        %p169 = pneg %p74
      $region14: #{pspnet_forward.65} parent=11 // pred_check_branch
        %171 = sbr.rel (%p169) target = $region16
      $region15: #{pspnet_forward.65} parent=11 // pred_region
        %p172 = scmp.lt.s32.totalorder %s20, 0
        %s173 = scalar_select %p172, %s20, 0
        %s174 = smul.addr %s173, 4
        %s175 = scalar_lea.vmem %s1, %s174
      $region16: #{pspnet_forward.65} parent=11 // pred_fallthru
        _
      // Predicated region
      $region17: #{pspnet_forward.65} parent=11 // pred_check
        %p176 = pneg %p100
      $region18: #{pspnet_forward.65} parent=11 // pred_check_branch
        %178 = sbr.rel (%p176) target = $region20
      $region19: #{pspnet_forward.65} parent=11 // pred_region
        %p179 = scmp.lt.s32.totalorder %s20, 0
        %s180 = scalar_select %p179, %s20, 0
        %s181 = scalar_lea.vmem %s2, %s180
      $region20: #{pspnet_forward.65} parent=11 // pred_fallthru
        _
      // Predicated region
      $region21: #{pspnet_forward.65} parent=11 // pred_check
        %p182 = pneg %p126
      $region22: #{pspnet_forward.65} parent=11 // pred_check_branch
        %184 = sbr.rel (%p182) target = $region24
      $region23: #{pspnet_forward.65} parent=11 // pred_region
        %p185 = scmp.lt.s32.totalorder %s20, 0
        %s186 = scalar_select %p185, %s20, 0
        %s187 = scalar_lea.vmem %s3, %s186
      $region24: #{pspnet_forward.65} parent=11 // pred_fallthru
        _
    $region12: #{pspnet_forward.65} parent=5 // pred_fallthru
      _
    %p188 = scmp.lt.s32.totalorder %s10, 4
    // Predicated region
    $region25: #{pspnet_forward.65} parent=5 // pred_check
      %p189 = pneg %p188
    $region26: #{pspnet_forward.65} parent=5 // pred_check_branch
      %191 = sbr.rel (%p189) target = $region28
    $region27: #{pspnet_forward.65} parent=5 // pred_region
      // Predicated region
      $region29: #{pspnet_forward.65} parent=27 // pred_check
        %p192 = pneg %p42
      $region30: #{pspnet_forward.65} parent=27 // pred_check_branch
        %194 = sbr.rel (%p192) target = $region32
      $region31: #{pspnet_forward.65} parent=27 // pred_region
        %s195 = smul.u32 16, %s17
        %p196 = scmp.lt.s32.totalorder %s195, 63
        %s197 = scalar_select %p196, %s195, 63
        %s198 = smul.addr %s197, 4
        %s199 = scalar_lea.vmem %s0, %s198
        %s200 = smul.u32 16, %s17
      $region32: #{pspnet_forward.65} parent=27 // pred_fallthru
        _
    $region28: #{pspnet_forward.65} parent=5 // pred_fallthru
      _
    %p201 = scmp.le.s32.totalorder 1, %s10
    %p202 = scmp.lt.s32.totalorder %s10, 5
    %p203 = pnand %p201, %p202
    %p204 = pneg %p203
    // Predicated region
    $region33: #{pspnet_forward.65} parent=5 // pred_check
      _
    $region34: #{pspnet_forward.65} parent=5 // pred_check_branch
      %206 = sbr.rel (%p203) target = $region36
    $region35: #{pspnet_forward.65} parent=5 // pred_region
      %s207 = ssub.s32 %s10, 1
      %s208 = smul.u32 16, %s19
      %p209 = scmp.lt.s32.totalorder %s208, 63
      %s210 = scalar_select %p209, %s208, 63
      %s211 = smul.addr %s210, 4
      %s212 = scalar_lea.vmem %s0, %s211
      %p213 = pneg %p48
      %p214 = pneg %p45
      %p215 = scmp.lt.s32.totalorder %s20, 0
      %s216 = scalar_select %p215, %s20, 0
      %s217 = smul.addr %s216, 4
      %s218 = scalar_lea.vmem %s1, %s217
      %p219 = pneg %p74
      %p220 = pneg %p71
      %p221 = scmp.lt.s32.totalorder %s20, 0
      %s222 = scalar_select %p221, %s20, 0
      %s223 = scalar_lea.vmem %s2, %s222
      %p224 = pneg %p100
      %p225 = pneg %p97
      %p226 = scmp.lt.s32.totalorder %s20, 0
      %s227 = scalar_select %p226, %s20, 0
      %s228 = scalar_lea.vmem %s3, %s227
      %p229 = pneg %p126
      %p230 = pneg %p123
      %p231 = pneg %p154
      %p232 = pneg %p151
      %s233 = smul.u32 16, %s19
      %p234 = scmp.lt.s32.totalorder %s233, 63
      %s235 = scalar_select %p234, %s233, 63
      %p236 = scmp.lt.s32.totalorder %s20, 0
      %s237 = scalar_select %p236, %s20, 0
      %s238 = sadd.s32 %s237, %s235
      %s239 = smul.addr %s238, 8
      %s240 = scalar_lea.vmem %s4, %s239
      %s241 = smul.u32 16, %s19
      %p242 = scmp.lt.s32.totalorder %s241, 63
      %s243 = scalar_select %p242, %s241, 63
      %s244 = smul.addr %s243, 4
      %s245 = scalar_lea.vmem %s0, %s244
      %s246 = smul.u32 16, %s19
      %p247 = scmp.lt.s32.totalorder %s20, 0
      %s248 = scalar_select %p247, %s20, 0
      %s249 = smul.addr %s248, 4
      %s250 = scalar_lea.vmem %s1, %s249
      %p251 = scmp.lt.s32.totalorder %s20, 0
      %s252 = scalar_select %p251, %s20, 0
      %s253 = scalar_lea.vmem %s2, %s252
      %p254 = scmp.lt.s32.totalorder %s20, 0
      %s255 = scalar_select %p254, %s20, 0
      %s256 = scalar_lea.vmem %s3, %s255
      %s257 = smul.u32 16, %s19
      %p258 = scmp.lt.s32.totalorder %s257, 63
      %s259 = scalar_select %p258, %s257, 63
      %p260 = scmp.lt.s32.totalorder %s20, 0
      %s261 = scalar_select %p260, %s20, 0
      %s262 = sadd.s32 %s261, %s259
      %s263 = smul.addr %s262, 8
      %s264 = scalar_lea.vmem %s4, %s263
      %s265 = smul.u32 16, %s19
      %v267 = vld [vmem:[%s245] sm:$0xf]
      %v268 = vld [vmem:[%s245 + $0x4] sm:$0xf]
      %v269 = vld [vmem:[%s245 + $0x8] sm:$0xf]
      %v270 = vld [vmem:[%s245 + $0xc] sm:$0xf]
      %v271 = vld [vmem:[%s245 + $0x10] sm:$0xf]
      %v272 = vld [vmem:[%s245 + $0x14] sm:$0xf]
      %v273 = vld [vmem:[%s245 + $0x18] sm:$0xf]
      %v274 = vld [vmem:[%s245 + $0x1c] sm:$0xf]
      %v275 = vld [vmem:[%s245 + $0x20] sm:$0xf]
      %v276 = vld [vmem:[%s245 + $0x24] sm:$0xf]
      %v277 = vld [vmem:[%s245 + $0x28] sm:$0xf]
      %v278 = vld [vmem:[%s245 + $0x2c] sm:$0xf]
      %v279 = vld [vmem:[%s245 + $0x30] sm:$0xf]
      %v280 = vld [vmem:[%s245 + $0x34] sm:$0xf]
      %v281 = vld [vmem:[%s245 + $0x38] sm:$0xf]
      %v282 = vld [vmem:[%s245 + $0x3c] sm:$0xf]
      %v283 = vld [vmem:[%s250] sm:$0xf]
      %v284 = vld [vmem:[%s250 + $0x4] sm:$0xf]
      %v285 = vld [vmem:[%s250 + $0x8] sm:$0xf]
      %v286 = vld [vmem:[%s250 + $0xc] sm:$0xf]
      %v287 = vld [vmem:[%s250 + $0x10] sm:$0xf]
      %v288 = vld [vmem:[%s250 + $0x14] sm:$0xf]
      %v305 = vunpack.c.l.b16 %v267
      %v306 = vunpack.c.l.b16 %v268
      %v307 = vunpack.c.l.b16 %v269
      %v308 = vunpack.c.l.b16 %v270
      %v309 = vunpack.c.l.b16 %v271
      %v310 = vunpack.c.l.b16 %v272
      %v311 = vunpack.c.l.b16 %v273
      %v312 = vunpack.c.l.b16 %v274
      %v313 = vunpack.c.l.b16 %v275
      %v314 = vunpack.c.l.b16 %v276
      %v315 = vunpack.c.l.b16 %v277
      %v316 = vunpack.c.l.b16 %v278
      %v317 = vunpack.c.l.b16 %v279
      %v318 = vunpack.c.l.b16 %v280
      %v319 = vunpack.c.l.b16 %v281
      %v320 = vunpack.c.l.b16 %v282
      %v321 = vpack.c.b16 %v306, %v305
      %v322 = vpack.c.b16 %v308, %v307
      %v323 = vpack.c.b16 %v310, %v309
      %v324 = vpack.c.b16 %v312, %v311
      %v325 = vpack.c.b16 %v314, %v313
      %v326 = vpack.c.b16 %v316, %v315
      %v327 = vpack.c.b16 %v318, %v317
      %v328 = vpack.c.b16 %v320, %v319
      %v335 = vunpack.c.l.b16 %v283
      %v336 = vunpack.c.l.b16 %v284
      %v337 = vunpack.c.l.b16 %v285
      %v338 = vunpack.c.l.b16 %v286
      %v339 = vunpack.c.l.b16 %v287
      %v340 = vunpack.c.l.b16 %v288
      %v341 = vpack.c.b16 %v336, %v335
      %v342 = vpack.c.b16 %v338, %v337
      %v343 = vpack.c.b16 %v340, %v339
      %vm347 = vcmask 392192
      %v349 = vsel %vm347, %v321, 0
      %v352 = vsel %vm347, %v322, 0
      %v355 = vsel %vm347, %v323, 0
      %v358 = vsel %vm347, %v324, 0
      %v361 = vsel %vm347, %v325, 0
      %v364 = vsel %vm347, %v326, 0
      %v367 = vsel %vm347, %v327, 0
      %v370 = vsel %vm347, %v328, 0
      %372 = vmatprep.subr.bf16.mxu0 0
      %373 = vmatpush1.bf16.msra.mxu0 %v341
      %374 = vmatprep.subr.bf16.mxu0 0
      %375 = vmatpush1.bf16.msra.mxu0 %v342
      %376 = vmatprep.subr.bf16.mxu0 0
      %377 = vmatpush1.bf16.msra.mxu0 %v343
      %378 = vmatprep.subr.bf16.mxu0 0
      %379 = vmatpush1.bf16.msra.mxu0 0
      %380 = vmatprep.subr.bf16.mxu0 0
      %381 = vmatpush1.bf16.msra.mxu0 0
      %382 = vmatprep.subr.bf16.mxu0 0
      %383 = vmatpush1.bf16.msra.mxu0 0
      %384 = vmatprep.subr.bf16.mxu0 0
      %385 = vmatpush1.bf16.msra.mxu0 0
      %386 = vmatprep.subr.bf16.mxu0 0
      %387 = vmatpush1.bf16.msra.mxu0 0
      %388 = vmatprep.subr.bf16.mxu0 0
      %389 = vmatpush1.bf16.msra.mxu0 0
      %390 = vmatprep.subr.bf16.mxu0 0
      %391 = vmatpush1.bf16.msra.mxu0 0
      %392 = vmatprep.subr.bf16.mxu0 0
      %393 = vmatpush1.bf16.msra.mxu0 0
      %394 = vmatprep.subr.bf16.mxu0 0
      %395 = vmatpush1.bf16.msra.mxu0 0
      %396 = vmatprep.subr.bf16.mxu0 0
      %397 = vmatpush1.bf16.msra.mxu0 0
      %398 = vmatprep.subr.bf16.mxu0 0
      %399 = vmatpush1.bf16.msra.mxu0 0
      %400 = vmatprep.subr.bf16.mxu0 0
      %401 = vmatpush1.bf16.msra.mxu0 0
      %402 = vmatprep.subr.bf16.mxu0 0
      %403 = vmatpush1.bf16.msra.mxu0 0
      %404 = vmatprep.mubr.bf16.mxu0 0
      %405 = vmatmul.mubr.bf16.gmra.mrb[0].mxu0 %v349
      %v406 = vpop.f32.mrb[0].mxu0
      %v407 = vadd.f32 0.0, %v406
      %v408 = vpop.f32.mrb[0].mxu0
      %v409 = vpop.f32.mrb[0].mxu0
      %v410 = vadd.f32 0.0, %v409
      %v411 = vpop.f32.mrb[0].mxu0
      %412 = vmatprep.mubr.bf16.mxu0 0
      %413 = vmatmul.mubr.bf16.gmra.mrb[0].mxu0 %v352
      %v414 = vpop.f32.mrb[0].mxu0
      %v415 = vadd.f32 0.0, %v414
      %v416 = vpop.f32.mrb[0].mxu0
      %v417 = vpop.f32.mrb[0].mxu0
      %v418 = vadd.f32 0.0, %v417
      %v419 = vpop.f32.mrb[0].mxu0
      %420 = vmatprep.mubr.bf16.mxu0 0
      %421 = vmatmul.mubr.bf16.gmra.mrb[0].mxu0 %v355
      %v422 = vpop.f32.mrb[0].mxu0
      %v423 = vadd.f32 0.0, %v422
      %v424 = vpop.f32.mrb[0].mxu0
      %v425 = vpop.f32.mrb[0].mxu0
      %v426 = vadd.f32 0.0, %v425
      %v427 = vpop.f32.mrb[0].mxu0
      %428 = vmatprep.mubr.bf16.mxu0 0
      %429 = vmatmul.mubr.bf16.gmra.mrb[0].mxu0 %v358
      %v430 = vpop.f32.mrb[0].mxu0
      %v431 = vadd.f32 0.0, %v430
      %v432 = vpop.f32.mrb[0].mxu0
      %v433 = vpop.f32.mrb[0].mxu0
      %v434 = vadd.f32 0.0, %v433
      %v435 = vpop.f32.mrb[0].mxu0
      %436 = vmatprep.mubr.bf16.mxu0 0
      %437 = vmatmul.mubr.bf16.gmra.mrb[0].mxu0 %v361
      %v438 = vpop.f32.mrb[0].mxu0
      %v439 = vadd.f32 0.0, %v438
      %v440 = vpop.f32.mrb[0].mxu0
      %v441 = vpop.f32.mrb[0].mxu0
      %v442 = vadd.f32 0.0, %v441
      %v443 = vpop.f32.mrb[0].mxu0
      %444 = vmatprep.mubr.bf16.mxu0 0
      %445 = vmatmul.mubr.bf16.gmra.mrb[0].mxu0 %v364
      %v446 = vpop.f32.mrb[0].mxu0
      %v447 = vadd.f32 0.0, %v446
      %v448 = vpop.f32.mrb[0].mxu0
      %v449 = vpop.f32.mrb[0].mxu0
      %v450 = vadd.f32 0.0, %v449
      %v451 = vpop.f32.mrb[0].mxu0
      %452 = vmatprep.mubr.bf16.mxu0 0
      %453 = vmatmul.mubr.bf16.gmra.mrb[0].mxu0 %v367
      %v454 = vpop.f32.mrb[0].mxu0
      %v455 = vadd.f32 0.0, %v454
      %v456 = vpop.f32.mrb[0].mxu0
      %v457 = vpop.f32.mrb[0].mxu0
      %v458 = vadd.f32 0.0, %v457
      %v459 = vpop.f32.mrb[0].mxu0
      %460 = vmatprep.mubr.bf16.mxu0 0
      %461 = vmatmul.mubr.bf16.gmra.mrb[0].mxu0 %v370
      %v462 = vpop.f32.mrb[0].mxu0
      %v463 = vadd.f32 0.0, %v462
      %v464 = vpop.f32.mrb[0].mxu0
      %v465 = vpop.f32.mrb[0].mxu0
      %v466 = vadd.f32 0.0, %v465
      %v467 = vpop.f32.mrb[0].mxu0
      %468 = vdwg.mxu0
      %v469 = vld [vmem:[%s253] sm:$0x1]
      %v471 = vlaneseq
      %v472 = vshrl.u32 %v471, 7
      %v473 = vsub.s32 0, %v472
      %v474 = vrot.slane %v469, %v473
      %v476 = vmul.f32 %v407, %v474
      %v477 = vmul.f32 %v410, %v474
      %v478 = vmul.f32 %v415, %v474
      %v479 = vmul.f32 %v418, %v474
      %v480 = vmul.f32 %v423, %v474
      %v481 = vmul.f32 %v426, %v474
      %v482 = vmul.f32 %v431, %v474
      %v483 = vmul.f32 %v434, %v474
      %v484 = vmul.f32 %v439, %v474
      %v485 = vmul.f32 %v442, %v474
      %v486 = vmul.f32 %v447, %v474
      %v487 = vmul.f32 %v450, %v474
      %v488 = vmul.f32 %v455, %v474
      %v489 = vmul.f32 %v458, %v474
      %v490 = vmul.f32 %v463, %v474
      %v491 = vmul.f32 %v466, %v474
      %v492 = vld [vmem:[%s256] sm:$0x1]
      %v494 = vlaneseq
      %v495 = vshrl.u32 %v494, 7
      %v496 = vsub.s32 0, %v495
      %v497 = vrot.slane %v492, %v496
      %v499 = vadd.f32 %v476, %v497
      %v500 = vadd.f32 %v477, %v497
      %v501 = vadd.f32 %v478, %v497
      %v502 = vadd.f32 %v479, %v497
      %v503 = vadd.f32 %v480, %v497
      %v504 = vadd.f32 %v481, %v497
      %v505 = vadd.f32 %v482, %v497
      %v506 = vadd.f32 %v483, %v497
      %v507 = vadd.f32 %v484, %v497
      %v508 = vadd.f32 %v485, %v497
      %v509 = vadd.f32 %v486, %v497
      %v510 = vadd.f32 %v487, %v497
      %v511 = vadd.f32 %v488, %v497
      %v512 = vadd.f32 %v489, %v497
      %v513 = vadd.f32 %v490, %v497
      %v514 = vadd.f32 %v491, %v497
      %v515 = vmax.f32 %v499, 0.0
      %v516 = vmax.f32 %v500, 0.0
      %v517 = vmax.f32 %v501, 0.0
      %v518 = vmax.f32 %v502, 0.0
      %v519 = vmax.f32 %v503, 0.0
      %v520 = vmax.f32 %v504, 0.0
      %v521 = vmax.f32 %v505, 0.0
      %v522 = vmax.f32 %v506, 0.0
      %v523 = vmax.f32 %v507, 0.0
      %v524 = vmax.f32 %v508, 0.0
      %v525 = vmax.f32 %v509, 0.0
      %v526 = vmax.f32 %v510, 0.0
      %v527 = vmax.f32 %v511, 0.0
      %v528 = vmax.f32 %v512, 0.0
      %v529 = vmax.f32 %v513, 0.0
      %v530 = vmax.f32 %v514, 0.0
      %vm531 = vcmask 64512
      %532 = vst.msk [vmem:[%s264] sm:$0xff] %vm531, %v515
      %533 = vst.msk [vmem:[%s264 + $0x8] sm:$0xff] %vm531, %v516
      %534 = vst.msk [vmem:[%s264 + $0x10] sm:$0xff] %vm531, %v517
      %535 = vst.msk [vmem:[%s264 + $0x18] sm:$0xff] %vm531, %v518
      %536 = vst.msk [vmem:[%s264 + $0x20] sm:$0xff] %vm531, %v519
      %537 = vst.msk [vmem:[%s264 + $0x28] sm:$0xff] %vm531, %v520
      %538 = vst.msk [vmem:[%s264 + $0x30] sm:$0xff] %vm531, %v521
      %539 = vst.msk [vmem:[%s264 + $0x38] sm:$0xff] %vm531, %v522
      %540 = vst.msk [vmem:[%s264 + $0x40] sm:$0xff] %vm531, %v523
      %541 = vst.msk [vmem:[%s264 + $0x48] sm:$0xff] %vm531, %v524
      %542 = vst.msk [vmem:[%s264 + $0x50] sm:$0xff] %vm531, %v525
      %543 = vst.msk [vmem:[%s264 + $0x58] sm:$0xff] %vm531, %v526
      %544 = vst.msk [vmem:[%s264 + $0x60] sm:$0xff] %vm531, %v527
      %545 = vst.msk [vmem:[%s264 + $0x68] sm:$0xff] %vm531, %v528
      %546 = vst.msk [vmem:[%s264 + $0x70] sm:$0xff] %vm531, %v529
      %547 = vst.msk [vmem:[%s264 + $0x78] sm:$0xff] %vm531, %v530
      %s548 = smul.u32 16, %s19
      %p549 = scmp.lt.s32.totalorder %s548, 63
      %s550 = scalar_select %p549, %s548, 63
      %p551 = scmp.lt.s32.totalorder %s20, 0
      %s552 = scalar_select %p551, %s20, 0
      %s553 = sadd.s32 %s552, %s550
      %s554 = smul.addr %s553, 8
      %s555 = scalar_lea.vmem %s4, %s554
      // Predicated region
      $region37: #{pspnet_forward.65} parent=35 // pred_check
        %p556 = pneg %p151
      $region38: #{pspnet_forward.65} parent=35 // pred_check_branch
        %558 = sbr.rel (%p556) target = $region40
      $region39: #{pspnet_forward.65} parent=35 // pred_region
        %s559 = smul.u32 16, %s19
      $region40: #{pspnet_forward.65} parent=35 // pred_fallthru
        _
    $region36: #{pspnet_forward.65} parent=5 // pred_fallthru
      _
    %p560 = scmp.le.s32.totalorder 2, %s10
    // Predicated region
    $region41: #{pspnet_forward.65} parent=5 // pred_check
      %p561 = pneg %p560
    $region42: #{pspnet_forward.65} parent=5 // pred_check_branch
      %563 = sbr.rel (%p561) target = $region44
    $region43: #{pspnet_forward.65} parent=5 // pred_region
      %s564 = ssub.s32 %s10, 2
      // Predicated region
      $region45: #{pspnet_forward.65} parent=43 // pred_check
        %p565 = pneg %p157
      $region46: #{pspnet_forward.65} parent=43 // pred_check_branch
        %567 = sbr.rel (%p565) target = $region48
      $region47: #{pspnet_forward.65} parent=43 // pred_region
        %s568 = smul.u32 16, %s21
        %p569 = scmp.lt.s32.totalorder %s568, 63
        %s570 = scalar_select %p569, %s568, 63
        %p571 = scmp.lt.s32.totalorder %s22, 0
        %s572 = scalar_select %p571, %s22, 0
        %s573 = sadd.s32 %s572, %s570
        %s574 = smul.addr %s573, 8
        %s575 = scalar_lea.vmem %s4, %s574
      $region48: #{pspnet_forward.65} parent=43 // pred_fallthru
        _
    $region44: #{pspnet_forward.65} parent=5 // pred_fallthru
      _
  $region6: #{pspnet_forward.65} parent=0 // loop_footer
    %s14 = sadd.s32 1, %s10
  $region7: #{pspnet_forward.65} parent=0 // loop_footer_branch
    %9 = sbr.rel target = $region3
  $region8: #{pspnet_forward.65} parent=0 // loop_exit
    _

// kernel: pspnet_forward.64
$region0: #{pspnet_forward.64}
  #allocation0 [shape = 'u32[]', space=smem, size = 0x4, offset = 0x4, fixed_abs, tag = 'smem constant byte address 0x4 - core index']
  #allocation1 [shape = 'u32[144,128]{1,0:T(1,128)}', space=vmem, size = 0x12000, scoped, tag = 'internal scratch']
  %s0 = inlined_call_operand.vmem [shape: bf16[512,48], index: 0, kind: input, shape index: {}]
  %s1 = inlined_call_operand.vmem [shape: bf16[48,4], index: 1, kind: input, shape index: {}]
  %s2 = inlined_call_operand.vmem [shape: f32[1,4], index: 2, kind: input, shape index: {}]
  %s3 = inlined_call_operand.vmem [shape: f32[1,4], index: 3, kind: input, shape index: {}]
  %s4 = inlined_call_operand.vmem [shape: f32[512,4], index: 4, kind: output, shape index: {}]
  %s5 = sld [smem:[#allocation0]]
  $region49: #{pspnet_forward.64} parent=0
    _
  %s7 = ssub.s32 1, %s5
  %s8 = scalar_select 0, %s7, %s5
  loop: start=0, step=1, limit=6
  $region2: #{pspnet_forward.64} parent=0 // loop_pre_header
    _
  $region3: #{pspnet_forward.64} parent=0 // loop_header
    %s10 = sphi 0, %s14
    %p11 = scmp.ge.s32.totalorder %s10, 6
    %s17 = sphi 0, %s29
    %s18 = sphi 0, %s25
    %s19 = sphi 0, %s17
    %s20 = sphi 0, %s18
    %s21 = sphi 0, %s19
    %s22 = sphi 0, %s20
    %s32 = sphi 0, %s34
    %s35 = sphi 0, %s32
    %s36 = sphi 0, %s35
    %s52 = sphi 0, %s36
    %s58 = sphi 0, %s60
    %s61 = sphi 0, %s58
    %s62 = sphi 0, %s61
    %s78 = sphi 0, %s62
    %s84 = sphi 0, %s86
    %s87 = sphi 0, %s84
    %s88 = sphi 0, %s87
    %s104 = sphi 0, %s88
    %s110 = sphi 0, %s112
    %s113 = sphi 0, %s110
    %s114 = sphi 0, %s113
    %s130 = sphi 0, %s114
    %s138 = sphi 0, %s140
    %s141 = sphi 0, %s138
    %s142 = sphi 0, %s141
    %s158 = sphi 0, %s142
  $region4: #{pspnet_forward.64} parent=0 // loop_header_branch
    %13 = sbr.rel (%p11) target = $region8
  $region5: #{pspnet_forward.64} parent=0 // loop_body
    %s15 = ssub.s32 %s10, 1
    %s16 = ssub.s32 %s10, 2
    %s23 = sadd.s32 1, %s18
    %p24 = scmp.ge.s32.totalorder %s23, 1
    %s25 = scalar_select %p24, 0, %s23
    %s26 = sadd.s32 1, %s17
    %s27 = scalar_select %p24, %s26, %s17
    %p28 = scmp.ge.s32.totalorder %s27, 4
    %s29 = scalar_select %p28, 0, %s27
    %s30 = ssub.s32 %s17, %s29
    %p31 = scmp.eq.s32.totalorder %s30, 0
    %s33 = sadd.s32 %s32, 1
    %s34 = scalar_select %p31, %s32, %s33
    %p37 = pneg %p31
    %p38 = scmp.eq.s32.totalorder %s10, 3
    %p39 = por %p37, %p38
    %p40 = scmp.ne.s32.totalorder %s32, %s35
    %p41 = scmp.eq.s32.totalorder %s10, 0
    %p42 = por %p40, %p41
    %p43 = scmp.ne.s32.totalorder %s32, %s35
    %p44 = scmp.eq.s32.totalorder %s15, 3
    %p45 = por %p43, %p44
    %p46 = scmp.ne.s32.totalorder %s35, %s36
    %p47 = scmp.eq.s32.totalorder %s15, 0
    %p48 = por %p46, %p47
    %p49 = scmp.ne.s32.totalorder %s35, %s36
    %p50 = scmp.eq.s32.totalorder %s16, 3
    %p51 = por %p49, %p50
    %p53 = scmp.ne.s32.totalorder %s36, %s52
    %p54 = scmp.eq.s32.totalorder %s16, 0
    %p55 = por %p53, %p54
    %s56 = ssub.s32 %s18, %s25
    %p57 = scmp.eq.s32.totalorder %s56, 0
    %s59 = sadd.s32 %s58, 1
    %s60 = scalar_select %p57, %s58, %s59
    %p63 = pneg %p57
    %p64 = scmp.eq.s32.totalorder %s10, 3
    %p65 = por %p63, %p64
    %p66 = scmp.ne.s32.totalorder %s58, %s61
    %p67 = scmp.eq.s32.totalorder %s10, 0
    %p68 = por %p66, %p67
    %p69 = scmp.ne.s32.totalorder %s58, %s61
    %p70 = scmp.eq.s32.totalorder %s15, 3
    %p71 = por %p69, %p70
    %p72 = scmp.ne.s32.totalorder %s61, %s62
    %p73 = scmp.eq.s32.totalorder %s15, 0
    %p74 = por %p72, %p73
    %p75 = scmp.ne.s32.totalorder %s61, %s62
    %p76 = scmp.eq.s32.totalorder %s16, 3
    %p77 = por %p75, %p76
    %p79 = scmp.ne.s32.totalorder %s62, %s78
    %p80 = scmp.eq.s32.totalorder %s16, 0
    %p81 = por %p79, %p80
    %s82 = ssub.s32 %s18, %s25
    %p83 = scmp.eq.s32.totalorder %s82, 0
    %s85 = sadd.s32 %s84, 1
    %s86 = scalar_select %p83, %s84, %s85
    %p89 = pneg %p83
    %p90 = scmp.eq.s32.totalorder %s10, 3
    %p91 = por %p89, %p90
    %p92 = scmp.ne.s32.totalorder %s84, %s87
    %p93 = scmp.eq.s32.totalorder %s10, 0
    %p94 = por %p92, %p93
    %p95 = scmp.ne.s32.totalorder %s84, %s87
    %p96 = scmp.eq.s32.totalorder %s15, 3
    %p97 = por %p95, %p96
    %p98 = scmp.ne.s32.totalorder %s87, %s88
    %p99 = scmp.eq.s32.totalorder %s15, 0
    %p100 = por %p98, %p99
    %p101 = scmp.ne.s32.totalorder %s87, %s88
    %p102 = scmp.eq.s32.totalorder %s16, 3
    %p103 = por %p101, %p102
    %p105 = scmp.ne.s32.totalorder %s88, %s104
    %p106 = scmp.eq.s32.totalorder %s16, 0
    %p107 = por %p105, %p106
    %s108 = ssub.s32 %s18, %s25
    %p109 = scmp.eq.s32.totalorder %s108, 0
    %s111 = sadd.s32 %s110, 1
    %s112 = scalar_select %p109, %s110, %s111
    %p115 = pneg %p109
    %p116 = scmp.eq.s32.totalorder %s10, 3
    %p117 = por %p115, %p116
    %p118 = scmp.ne.s32.totalorder %s110, %s113
    %p119 = scmp.eq.s32.totalorder %s10, 0
    %p120 = por %p118, %p119
    %p121 = scmp.ne.s32.totalorder %s110, %s113
    %p122 = scmp.eq.s32.totalorder %s15, 3
    %p123 = por %p121, %p122
    %p124 = scmp.ne.s32.totalorder %s113, %s114
    %p125 = scmp.eq.s32.totalorder %s15, 0
    %p126 = por %p124, %p125
    %p127 = scmp.ne.s32.totalorder %s113, %s114
    %p128 = scmp.eq.s32.totalorder %s16, 3
    %p129 = por %p127, %p128
    %p131 = scmp.ne.s32.totalorder %s114, %s130
    %p132 = scmp.eq.s32.totalorder %s16, 0
    %p133 = por %p131, %p132
    %s134 = ssub.s32 %s17, %s29
    %s135 = ssub.s32 %s18, %s25
    %s136 = sor.u32 %s134, %s135
    %p137 = scmp.eq.s32.totalorder %s136, 0
    %s139 = sadd.s32 %s138, 1
    %s140 = scalar_select %p137, %s138, %s139
    %p143 = pneg %p137
    %p144 = scmp.eq.s32.totalorder %s10, 3
    %p145 = por %p143, %p144
    %p146 = scmp.ne.s32.totalorder %s138, %s141
    %p147 = scmp.eq.s32.totalorder %s10, 0
    %p148 = por %p146, %p147
    %p149 = scmp.ne.s32.totalorder %s138, %s141
    %p150 = scmp.eq.s32.totalorder %s15, 3
    %p151 = por %p149, %p150
    %p152 = scmp.ne.s32.totalorder %s141, %s142
    %p153 = scmp.eq.s32.totalorder %s15, 0
    %p154 = por %p152, %p153
    %p155 = scmp.ne.s32.totalorder %s141, %s142
    %p156 = scmp.eq.s32.totalorder %s16, 3
    %p157 = por %p155, %p156
    %p159 = scmp.ne.s32.totalorder %s142, %s158
    %p160 = scmp.eq.s32.totalorder %s16, 0
    %p161 = por %p159, %p160
    %p162 = scmp.le.s32.totalorder 1, %s10
    %p163 = scmp.lt.s32.totalorder %s10, 5
    %p164 = pnand %p162, %p163
    %p165 = pneg %p164
    // Predicated region
    $region9: #{pspnet_forward.64} parent=5 // pred_check
      _
    $region10: #{pspnet_forward.64} parent=5 // pred_check_branch
      %167 = sbr.rel (%p164) target = $region12
    $region11: #{pspnet_forward.64} parent=5 // pred_region
      %s168 = ssub.s32 %s10, 1
      // Predicated region
      $region13: #{pspnet_forward.64} parent=11 // pred_check
        %p169 = pneg %p74
      $region14: #{pspnet_forward.64} parent=11 // pred_check_branch
        %171 = sbr.rel (%p169) target = $region16
      $region15: #{pspnet_forward.64} parent=11 // pred_region
        %p172 = scmp.lt.s32.totalorder %s20, 0
        %s173 = scalar_select %p172, %s20, 0
        %s174 = smul.addr %s173, 4
        %s175 = scalar_lea.vmem %s1, %s174
      $region16: #{pspnet_forward.64} parent=11 // pred_fallthru
        _
      // Predicated region
      $region17: #{pspnet_forward.64} parent=11 // pred_check
        %p176 = pneg %p100
      $region18: #{pspnet_forward.64} parent=11 // pred_check_branch
        %178 = sbr.rel (%p176) target = $region20
      $region19: #{pspnet_forward.64} parent=11 // pred_region
        %p179 = scmp.lt.s32.totalorder %s20, 0
        %s180 = scalar_select %p179, %s20, 0
        %s181 = scalar_lea.vmem %s2, %s180
      $region20: #{pspnet_forward.64} parent=11 // pred_fallthru
        _
      // Predicated region
      $region21: #{pspnet_forward.64} parent=11 // pred_check
        %p182 = pneg %p126
      $region22: #{pspnet_forward.64} parent=11 // pred_check_branch
        %184 = sbr.rel (%p182) target = $region24
      $region23: #{pspnet_forward.64} parent=11 // pred_region
        %p185 = scmp.lt.s32.totalorder %s20, 0
        %s186 = scalar_select %p185, %s20, 0
        %s187 = scalar_lea.vmem %s3, %s186
      $region24: #{pspnet_forward.64} parent=11 // pred_fallthru
        _
    $region12: #{pspnet_forward.64} parent=5 // pred_fallthru
      _
    %p188 = scmp.lt.s32.totalorder %s10, 4
    // Predicated region
    $region25: #{pspnet_forward.64} parent=5 // pred_check
      %p189 = pneg %p188
    $region26: #{pspnet_forward.64} parent=5 // pred_check_branch
      %191 = sbr.rel (%p189) target = $region28
    $region27: #{pspnet_forward.64} parent=5 // pred_region
      // Predicated region
      $region29: #{pspnet_forward.64} parent=27 // pred_check
        %p192 = pneg %p42
      $region30: #{pspnet_forward.64} parent=27 // pred_check_branch
        %194 = sbr.rel (%p192) target = $region32
      $region31: #{pspnet_forward.64} parent=27 // pred_region
        %s195 = smul.u32 16, %s17
        %p196 = scmp.lt.s32.totalorder %s195, 63
        %s197 = scalar_select %p196, %s195, 63
        %s198 = smul.addr %s197, 4
        %s199 = scalar_lea.vmem %s0, %s198
        %s200 = smul.u32 16, %s17
      $region32: #{pspnet_forward.64} parent=27 // pred_fallthru
        _
    $region28: #{pspnet_forward.64} parent=5 // pred_fallthru
      _
    %p201 = scmp.le.s32.totalorder 1, %s10
    %p202 = scmp.lt.s32.totalorder %s10, 5
    %p203 = pnand %p201, %p202
    %p204 = pneg %p203
    // Predicated region
    $region33: #{pspnet_forward.64} parent=5 // pred_check
      _
    $region34: #{pspnet_forward.64} parent=5 // pred_check_branch
      %206 = sbr.rel (%p203) target = $region36
    $region35: #{pspnet_forward.64} parent=5 // pred_region
      %s207 = ssub.s32 %s10, 1
      %s208 = smul.u32 16, %s19
      %p209 = scmp.lt.s32.totalorder %s208, 63
      %s210 = scalar_select %p209, %s208, 63
      %s211 = smul.addr %s210, 4
      %s212 = scalar_lea.vmem %s0, %s211
      %p213 = pneg %p48
      %p214 = pneg %p45
      %p215 = scmp.lt.s32.totalorder %s20, 0
      %s216 = scalar_select %p215, %s20, 0
      %s217 = smul.addr %s216, 4
      %s218 = scalar_lea.vmem %s1, %s217
      %p219 = pneg %p74
      %p220 = pneg %p71
      %p221 = scmp.lt.s32.totalorder %s20, 0
      %s222 = scalar_select %p221, %s20, 0
      %s223 = scalar_lea.vmem %s2, %s222
      %p224 = pneg %p100
      %p225 = pneg %p97
      %p226 = scmp.lt.s32.totalorder %s20, 0
      %s227 = scalar_select %p226, %s20, 0
      %s228 = scalar_lea.vmem %s3, %s227
      %p229 = pneg %p126
      %p230 = pneg %p123
      %p231 = pneg %p154
      %p232 = pneg %p151
      %s233 = smul.u32 16, %s19
      %p234 = scmp.lt.s32.totalorder %s233, 63
      %s235 = scalar_select %p234, %s233, 63
      %p236 = scmp.lt.s32.totalorder %s20, 0
      %s237 = scalar_select %p236, %s20, 0
      %s238 = sadd.s32 %s237, %s235
      %s239 = smul.addr %s238, 8
      %s240 = scalar_lea.vmem %s4, %s239
      %s241 = smul.u32 16, %s19
      %p242 = scmp.lt.s32.totalorder %s241, 63
      %s243 = scalar_select %p242, %s241, 63
      %s244 = smul.addr %s243, 4
      %s245 = scalar_lea.vmem %s0, %s244
      %s246 = smul.u32 16, %s19
      %p247 = scmp.lt.s32.totalorder %s20, 0
      %s248 = scalar_select %p247, %s20, 0
      %s249 = smul.addr %s248, 4
      %s250 = scalar_lea.vmem %s1, %s249
      %p251 = scmp.lt.s32.totalorder %s20, 0
      %s252 = scalar_select %p251, %s20, 0
      %s253 = scalar_lea.vmem %s2, %s252
      %p254 = scmp.lt.s32.totalorder %s20, 0
      %s255 = scalar_select %p254, %s20, 0
      %s256 = scalar_lea.vmem %s3, %s255
      %s257 = smul.u32 16, %s19
      %p258 = scmp.lt.s32.totalorder %s257, 63
      %s259 = scalar_select %p258, %s257, 63
      %p260 = scmp.lt.s32.totalorder %s20, 0
      %s261 = scalar_select %p260, %s20, 0
      %s262 = sadd.s32 %s261, %s259
      %s263 = smul.addr %s262, 8
      %s264 = scalar_lea.vmem %s4, %s263
      %s265 = smul.u32 16, %s19
      %v267 = vld [vmem:[%s245] sm:$0xf]
      %v268 = vld [vmem:[%s245 + $0x4] sm:$0xf]
      %v269 = vld [vmem:[%s245 + $0x8] sm:$0xf]
      %v270 = vld [vmem:[%s245 + $0xc] sm:$0xf]
      %v271 = vld [vmem:[%s245 + $0x10] sm:$0xf]
      %v272 = vld [vmem:[%s245 + $0x14] sm:$0xf]
      %v273 = vld [vmem:[%s245 + $0x18] sm:$0xf]
      %v274 = vld [vmem:[%s245 + $0x1c] sm:$0xf]
      %v275 = vld [vmem:[%s245 + $0x20] sm:$0xf]
      %v276 = vld [vmem:[%s245 + $0x24] sm:$0xf]
      %v277 = vld [vmem:[%s245 + $0x28] sm:$0xf]
      %v278 = vld [vmem:[%s245 + $0x2c] sm:$0xf]
      %v279 = vld [vmem:[%s245 + $0x30] sm:$0xf]
      %v280 = vld [vmem:[%s245 + $0x34] sm:$0xf]
      %v281 = vld [vmem:[%s245 + $0x38] sm:$0xf]
      %v282 = vld [vmem:[%s245 + $0x3c] sm:$0xf]
      %v283 = vld [vmem:[%s250] sm:$0xf]
      %v284 = vld [vmem:[%s250 + $0x4] sm:$0xf]
      %v285 = vld [vmem:[%s250 + $0x8] sm:$0xf]
      %v286 = vld [vmem:[%s250 + $0xc] sm:$0xf]
      %v287 = vld [vmem:[%s250 + $0x10] sm:$0xf]
      %v288 = vld [vmem:[%s250 + $0x14] sm:$0xf]
      %v305 = vunpack.c.l.b16 %v267
      %v306 = vunpack.c.l.b16 %v268
      %v307 = vunpack.c.l.b16 %v269
      %v308 = vunpack.c.l.b16 %v270
      %v309 = vunpack.c.l.b16 %v271
      %v310 = vunpack.c.l.b16 %v272
      %v311 = vunpack.c.l.b16 %v273
      %v312 = vunpack.c.l.b16 %v274
      %v313 = vunpack.c.l.b16 %v275
      %v314 = vunpack.c.l.b16 %v276
      %v315 = vunpack.c.l.b16 %v277
      %v316 = vunpack.c.l.b16 %v278
      %v317 = vunpack.c.l.b16 %v279
      %v318 = vunpack.c.l.b16 %v280
      %v319 = vunpack.c.l.b16 %v281
      %v320 = vunpack.c.l.b16 %v282
      %v321 = vpack.c.b16 %v306, %v305
      %v322 = vpack.c.b16 %v308, %v307
      %v323 = vpack.c.b16 %v310, %v309
      %v324 = vpack.c.b16 %v312, %v311
      %v325 = vpack.c.b16 %v314, %v313
      %v326 = vpack.c.b16 %v316, %v315
      %v327 = vpack.c.b16 %v318, %v317
      %v328 = vpack.c.b16 %v320, %v319
      %v335 = vunpack.c.l.b16 %v283
      %v336 = vunpack.c.l.b16 %v284
      %v337 = vunpack.c.l.b16 %v285
      %v338 = vunpack.c.l.b16 %v286
      %v339 = vunpack.c.l.b16 %v287
      %v340 = vunpack.c.l.b16 %v288
      %v341 = vpack.c.b16 %v336, %v335
      %v342 = vpack.c.b16 %v338, %v337
      %v343 = vpack.c.b16 %v340, %v339
      %vm347 = vcmask 392192
      %v349 = vsel %vm347, %v321, 0
      %v352 = vsel %vm347, %v322, 0
      %v355 = vsel %vm347, %v323, 0
      %v358 = vsel %vm347, %v324, 0
      %v361 = vsel %vm347, %v325, 0
      %v364 = vsel %vm347, %v326, 0
      %v367 = vsel %vm347, %v327, 0
      %v370 = vsel %vm347, %v328, 0
      %372 = vmatprep.subr.bf16.mxu0 0
      %373 = vmatpush1.bf16.msra.mxu0 %v341
      %374 = vmatprep.subr.bf16.mxu0 0
      %375 = vmatpush1.bf16.msra.mxu0 %v342
      %376 = vmatprep.subr.bf16.mxu0 0
      %377 = vmatpush1.bf16.msra.mxu0 %v343
      %378 = vmatprep.subr.bf16.mxu0 0
      %379 = vmatpush1.bf16.msra.mxu0 0
      %380 = vmatprep.subr.bf16.mxu0 0
      %381 = vmatpush1.bf16.msra.mxu0 0
      %382 = vmatprep.subr.bf16.mxu0 0
      %383 = vmatpush1.bf16.msra.mxu0 0
      %384 = vmatprep.subr.bf16.mxu0 0
      %385 = vmatpush1.bf16.msra.mxu0 0
      %386 = vmatprep.subr.bf16.mxu0 0
      %387 = vmatpush1.bf16.msra.mxu0 0
      %388 = vmatprep.subr.bf16.mxu0 0
      %389 = vmatpush1.bf16.msra.mxu0 0
      %390 = vmatprep.subr.bf16.mxu0 0
      %391 = vmatpush1.bf16.msra.mxu0 0
      %392 = vmatprep.subr.bf16.mxu0 0
      %393 = vmatpush1.bf16.msra.mxu0 0
      %394 = vmatprep.subr.bf16.mxu0 0
      %395 = vmatpush1.bf16.msra.mxu0 0
      %396 = vmatprep.subr.bf16.mxu0 0
      %397 = vmatpush1.bf16.msra.mxu0 0
      %398 = vmatprep.subr.bf16.mxu0 0
      %399 = vmatpush1.bf16.msra.mxu0 0
      %400 = vmatprep.subr.bf16.mxu0 0
      %401 = vmatpush1.bf16.msra.mxu0 0
      %402 = vmatprep.subr.bf16.mxu0 0
      %403 = vmatpush1.bf16.msra.mxu0 0
      %404 = vmatprep.mubr.bf16.mxu0 0
      %405 = vmatmul.mubr.bf16.gmra.mrb[0].mxu0 %v349
      %v406 = vpop.f32.mrb[0].mxu0
      %v407 = vadd.f32 0.0, %v406
      %v408 = vpop.f32.mrb[0].mxu0
      %v409 = vpop.f32.mrb[0].mxu0
      %v410 = vadd.f32 0.0, %v409
      %v411 = vpop.f32.mrb[0].mxu0
      %412 = vmatprep.mubr.bf16.mxu0 0
      %413 = vmatmul.mubr.bf16.gmra.mrb[0].mxu0 %v352
      %v414 = vpop.f32.mrb[0].mxu0
      %v415 = vadd.f32 0.0, %v414
      %v416 = vpop.f32.mrb[0].mxu0
      %v417 = vpop.f32.mrb[0].mxu0
      %v418 = vadd.f32 0.0, %v417
      %v419 = vpop.f32.mrb[0].mxu0
      %420 = vmatprep.mubr.bf16.mxu0 0
      %421 = vmatmul.mubr.bf16.gmra.mrb[0].mxu0 %v355
      %v422 = vpop.f32.mrb[0].mxu0
      %v423 = vadd.f32 0.0, %v422
      %v424 = vpop.f32.mrb[0].mxu0
      %v425 = vpop.f32.mrb[0].mxu0
      %v426 = vadd.f32 0.0, %v425
      %v427 = vpop.f32.mrb[0].mxu0
      %428 = vmatprep.mubr.bf16.mxu0 0
      %429 = vmatmul.mubr.bf16.gmra.mrb[0].mxu0 %v358
      %v430 = vpop.f32.mrb[0].mxu0
      %v431 = vadd.f32 0.0, %v430
      %v432 = vpop.f32.mrb[0].mxu0
      %v433 = vpop.f32.mrb[0].mxu0
      %v434 = vadd.f32 0.0, %v433
      %v435 = vpop.f32.mrb[0].mxu0
      %436 = vmatprep.mubr.bf16.mxu0 0
      %437 = vmatmul.mubr.bf16.gmra.mrb[0].mxu0 %v361
      %v438 = vpop.f32.mrb[0].mxu0
      %v439 = vadd.f32 0.0, %v438
      %v440 = vpop.f32.mrb[0].mxu0
      %v441 = vpop.f32.mrb[0].mxu0
      %v442 = vadd.f32 0.0, %v441
      %v443 = vpop.f32.mrb[0].mxu0
      %444 = vmatprep.mubr.bf16.mxu0 0
      %445 = vmatmul.mubr.bf16.gmra.mrb[0].mxu0 %v364
      %v446 = vpop.f32.mrb[0].mxu0
      %v447 = vadd.f32 0.0, %v446
      %v448 = vpop.f32.mrb[0].mxu0
      %v449 = vpop.f32.mrb[0].mxu0
      %v450 = vadd.f32 0.0, %v449
      %v451 = vpop.f32.mrb[0].mxu0
      %452 = vmatprep.mubr.bf16.mxu0 0
      %453 = vmatmul.mubr.bf16.gmra.mrb[0].mxu0 %v367
      %v454 = vpop.f32.mrb[0].mxu0
      %v455 = vadd.f32 0.0, %v454
      %v456 = vpop.f32.mrb[0].mxu0
      %v457 = vpop.f32.mrb[0].mxu0
      %v458 = vadd.f32 0.0, %v457
      %v459 = vpop.f32.mrb[0].mxu0
      %460 = vmatprep.mubr.bf16.mxu0 0
      %461 = vmatmul.mubr.bf16.gmra.mrb[0].mxu0 %v370
      %v462 = vpop.f32.mrb[0].mxu0
      %v463 = vadd.f32 0.0, %v462
      %v464 = vpop.f32.mrb[0].mxu0
      %v465 = vpop.f32.mrb[0].mxu0
      %v466 = vadd.f32 0.0, %v465
      %v467 = vpop.f32.mrb[0].mxu0
      %468 = vdwg.mxu0
      %v469 = vld [vmem:[%s253] sm:$0x1]
      %v471 = vlaneseq
      %v472 = vshrl.u32 %v471, 7
      %v473 = vsub.s32 0, %v472
      %v474 = vrot.slane %v469, %v473
      %v476 = vmul.f32 %v407, %v474
      %v477 = vmul.f32 %v410, %v474
      %v478 = vmul.f32 %v415, %v474
      %v479 = vmul.f32 %v418, %v474
      %v480 = vmul.f32 %v423, %v474
      %v481 = vmul.f32 %v426, %v474
      %v482 = vmul.f32 %v431, %v474
      %v483 = vmul.f32 %v434, %v474
      %v484 = vmul.f32 %v439, %v474
      %v485 = vmul.f32 %v442, %v474
      %v486 = vmul.f32 %v447, %v474
      %v487 = vmul.f32 %v450, %v474
      %v488 = vmul.f32 %v455, %v474
      %v489 = vmul.f32 %v458, %v474
      %v490 = vmul.f32 %v463, %v474
      %v491 = vmul.f32 %v466, %v474
      %v492 = vld [vmem:[%s256] sm:$0x1]
      %v494 = vlaneseq
      %v495 = vshrl.u32 %v494, 7
      %v496 = vsub.s32 0, %v495
      %v497 = vrot.slane %v492, %v496
      %v499 = vadd.f32 %v476, %v497
      %v500 = vadd.f32 %v477, %v497
      %v501 = vadd.f32 %v478, %v497
      %v502 = vadd.f32 %v479, %v497
      %v503 = vadd.f32 %v480, %v497
      %v504 = vadd.f32 %v481, %v497
      %v505 = vadd.f32 %v482, %v497
      %v506 = vadd.f32 %v483, %v497
      %v507 = vadd.f32 %v484, %v497
      %v508 = vadd.f32 %v485, %v497
      %v509 = vadd.f32 %v486, %v497
      %v510 = vadd.f32 %v487, %v497
      %v511 = vadd.f32 %v488, %v497
      %v512 = vadd.f32 %v489, %v497
      %v513 = vadd.f32 %v490, %v497
      %v514 = vadd.f32 %v491, %v497
      %v515 = vmax.f32 %v499, 0.0
      %v516 = vmax.f32 %v500, 0.0
      %v517 = vmax.f32 %v501, 0.0
      %v518 = vmax.f32 %v502, 0.0
      %v519 = vmax.f32 %v503, 0.0
      %v520 = vmax.f32 %v504, 0.0
      %v521 = vmax.f32 %v505, 0.0
      %v522 = vmax.f32 %v506, 0.0
      %v523 = vmax.f32 %v507, 0.0
      %v524 = vmax.f32 %v508, 0.0
      %v525 = vmax.f32 %v509, 0.0
      %v526 = vmax.f32 %v510, 0.0
      %v527 = vmax.f32 %v511, 0.0
      %v528 = vmax.f32 %v512, 0.0
      %v529 = vmax.f32 %v513, 0.0
      %v530 = vmax.f32 %v514, 0.0
      %vm531 = vcmask 31744
      %532 = vst.msk [vmem:[%s264] sm:$0xff] %vm531, %v515
      %533 = vst.msk [vmem:[%s264 + $0x8] sm:$0xff] %vm531, %v516
      %534 = vst.msk [vmem:[%s264 + $0x10] sm:$0xff] %vm531, %v517
      %535 = vst.msk [vmem:[%s264 + $0x18] sm:$0xff] %vm531, %v518
      %536 = vst.msk [vmem:[%s264 + $0x20] sm:$0xff] %vm531, %v519
      %537 = vst.msk [vmem:[%s264 + $0x28] sm:$0xff] %vm531, %v520
      %538 = vst.msk [vmem:[%s264 + $0x30] sm:$0xff] %vm531, %v521
      %539 = vst.msk [vmem:[%s264 + $0x38] sm:$0xff] %vm531, %v522
      %540 = vst.msk [vmem:[%s264 + $0x40] sm:$0xff] %vm531, %v523
      %541 = vst.msk [vmem:[%s264 + $0x48] sm:$0xff] %vm531, %v524
      %542 = vst.msk [vmem:[%s264 + $0x50] sm:$0xff] %vm531, %v525
      %543 = vst.msk [vmem:[%s264 + $0x58] sm:$0xff] %vm531, %v526
      %544 = vst.msk [vmem:[%s264 + $0x60] sm:$0xff] %vm531, %v527
      %545 = vst.msk [vmem:[%s264 + $0x68] sm:$0xff] %vm531, %v528
      %546 = vst.msk [vmem:[%s264 + $0x70] sm:$0xff] %vm531, %v529
      %547 = vst.msk [vmem:[%s264 + $0x78] sm:$0xff] %vm531, %v530
      %s548 = smul.u32 16, %s19
      %p549 = scmp.lt.s32.totalorder %s548, 63
      %s550 = scalar_select %p549, %s548, 63
      %p551 = scmp.lt.s32.totalorder %s20, 0
      %s552 = scalar_select %p551, %s20, 0
      %s553 = sadd.s32 %s552, %s550
      %s554 = smul.addr %s553, 8
      %s555 = scalar_lea.vmem %s4, %s554
      // Predicated region
      $region37: #{pspnet_forward.64} parent=35 // pred_check
        %p556 = pneg %p151
      $region38: #{pspnet_forward.64} parent=35 // pred_check_branch
        %558 = sbr.rel (%p556) target = $region40
      $region39: #{pspnet_forward.64} parent=35 // pred_region
        %s559 = smul.u32 16, %s19
      $region40: #{pspnet_forward.64} parent=35 // pred_fallthru
        _
    $region36: #{pspnet_forward.64} parent=5 // pred_fallthru
      _
    %p560 = scmp.le.s32.totalorder 2, %s10
    // Predicated region
    $region41: #{pspnet_forward.64} parent=5 // pred_check
      %p561 = pneg %p560
    $region42: #{pspnet_forward.64} parent=5 // pred_check_branch
      %563 = sbr.rel (%p561) target = $region44
    $region43: #{pspnet_forward.64} parent=5 // pred_region
      %s564 = ssub.s32 %s10, 2
      // Predicated region
      $region45: #{pspnet_forward.64} parent=43 // pred_check
        %p565 = pneg %p157
      $region46: #{pspnet_forward.64} parent=43 // pred_check_branch
        %567 = sbr.rel (%p565) target = $region48
      $region47: #{pspnet_forward.64} parent=43 // pred_region
        %s568 = smul.u32 16, %s21
        %p569 = scmp.lt.s32.totalorder %s568, 63
        %s570 = scalar_select %p569, %s568, 63
        %p571 = scmp.lt.s32.totalorder %s22, 0
        %s572 = scalar_select %p571, %s22, 0
        %s573 = sadd.s32 %s572, %s570
        %s574 = smul.addr %s573, 8
        %s575 = scalar_lea.vmem %s4, %s574
      $region48: #{pspnet_forward.64} parent=43 // pred_fallthru
        _
    $region44: #{pspnet_forward.64} parent=5 // pred_fallthru
      _
  $region6: #{pspnet_forward.64} parent=0 // loop_footer
    %s14 = sadd.s32 1, %s10
  $region7: #{pspnet_forward.64} parent=0 // loop_footer_branch
    %9 = sbr.rel target = $region3
  $region8: #{pspnet_forward.64} parent=0 // loop_exit
    _

// kernel: pspnet_forward.66
$region0: #{pspnet_forward.66}
  #allocation0 [shape = 'u32[]', space=smem, size = 0x4, offset = 0x4, fixed_abs, tag = 'smem constant byte address 0x4 - core index']
  #allocation1 [shape = 'u32[144,128]{1,0:T(1,128)}', space=vmem, size = 0x12000, scoped, tag = 'internal scratch']
  %s0 = inlined_call_operand.vmem [shape: bf16[128,16], index: 0, kind: input, shape index: {}]
  %s1 = inlined_call_operand.vmem [shape: bf16[16,4], index: 1, kind: input, shape index: {}]
  %s2 = inlined_call_operand.vmem [shape: f32[1,4], index: 2, kind: input, shape index: {}]
  %s3 = inlined_call_operand.vmem [shape: f32[1,4], index: 3, kind: input, shape index: {}]
  %s4 = inlined_call_operand.vmem [shape: f32[128,4], index: 4, kind: output, shape index: {}]
  %s5 = sld [smem:[#allocation0]]
  $region26: #{pspnet_forward.66} parent=0
    _
  %s7 = ssub.s32 1, %s5
  %s8 = scalar_select 0, %s7, %s5
  // Predicated region
  $region2: #{pspnet_forward.66} parent=0 // pred_check
    _
  $region3: #{pspnet_forward.66} parent=0 // pred_check_branch
    %10 = sbr.rel (0) target = $region5
  $region4: #{pspnet_forward.66} parent=0 // pred_region
    _
  $region5: #{pspnet_forward.66} parent=0 // pred_fallthru
    _
  // Predicated region
  $region6: #{pspnet_forward.66} parent=0 // pred_check
    _
  $region7: #{pspnet_forward.66} parent=0 // pred_check_branch
    %12 = sbr.rel (0) target = $region9
  $region8: #{pspnet_forward.66} parent=0 // pred_region
    _
  $region9: #{pspnet_forward.66} parent=0 // pred_fallthru
    _
  // Predicated region
  $region10: #{pspnet_forward.66} parent=0 // pred_check
    _
  $region11: #{pspnet_forward.66} parent=0 // pred_check_branch
    %14 = sbr.rel (0) target = $region13
  $region12: #{pspnet_forward.66} parent=0 // pred_region
    _
  $region13: #{pspnet_forward.66} parent=0 // pred_fallthru
    _
  // Predicated region
  $region14: #{pspnet_forward.66} parent=0 // pred_check
    _
  $region15: #{pspnet_forward.66} parent=0 // pred_check_branch
    %16 = sbr.rel (0) target = $region17
  $region16: #{pspnet_forward.66} parent=0 // pred_region
    _
  $region17: #{pspnet_forward.66} parent=0 // pred_fallthru
    _
  %v18 = vld [vmem:[%s0] sm:$0xf]
  %v19 = vld [vmem:[%s0 + $0x4] sm:$0xf]
  %v20 = vld [vmem:[%s0 + $0x8] sm:$0xf]
  %v21 = vld [vmem:[%s0 + $0xc] sm:$0xf]
  %v22 = vld [vmem:[%s0 + $0x10] sm:$0xf]
  %v23 = vld [vmem:[%s0 + $0x14] sm:$0xf]
  %v24 = vld [vmem:[%s0 + $0x18] sm:$0xf]
  %v25 = vld [vmem:[%s0 + $0x1c] sm:$0xf]
  %v26 = vld [vmem:[%s0 + $0x20] sm:$0xf]
  %v27 = vld [vmem:[%s0 + $0x24] sm:$0xf]
  %v28 = vld [vmem:[%s0 + $0x28] sm:$0xf]
  %v29 = vld [vmem:[%s0 + $0x2c] sm:$0xf]
  %v30 = vld [vmem:[%s0 + $0x30] sm:$0xf]
  %v31 = vld [vmem:[%s0 + $0x34] sm:$0xf]
  %v32 = vld [vmem:[%s0 + $0x38] sm:$0xf]
  %v33 = vld [vmem:[%s0 + $0x3c] sm:$0xf]
  %v34 = vld [vmem:[%s1] sm:$0xf]
  %v35 = vld [vmem:[%s1 + $0x4] sm:$0xf]
  %v52 = vunpack.c.l.b16 %v18
  %v53 = vunpack.c.l.b16 %v19
  %v54 = vunpack.c.l.b16 %v20
  %v55 = vunpack.c.l.b16 %v21
  %v56 = vunpack.c.l.b16 %v22
  %v57 = vunpack.c.l.b16 %v23
  %v58 = vunpack.c.l.b16 %v24
  %v59 = vunpack.c.l.b16 %v25
  %v60 = vunpack.c.l.b16 %v26
  %v61 = vunpack.c.l.b16 %v27
  %v62 = vunpack.c.l.b16 %v28
  %v63 = vunpack.c.l.b16 %v29
  %v64 = vunpack.c.l.b16 %v30
  %v65 = vunpack.c.l.b16 %v31
  %v66 = vunpack.c.l.b16 %v32
  %v67 = vunpack.c.l.b16 %v33
  %v68 = vpack.c.b16 %v53, %v52
  %v69 = vpack.c.b16 %v55, %v54
  %v70 = vpack.c.b16 %v57, %v56
  %v71 = vpack.c.b16 %v59, %v58
  %v72 = vpack.c.b16 %v61, %v60
  %v73 = vpack.c.b16 %v63, %v62
  %v74 = vpack.c.b16 %v65, %v64
  %v75 = vpack.c.b16 %v67, %v66
  %v78 = vunpack.c.l.b16 %v34
  %v79 = vunpack.c.l.b16 %v35
  %v80 = vpack.c.b16 %v79, %v78
  %vm82 = vcmask 130048
  %v84 = vsel %vm82, %v68, 0
  %v87 = vsel %vm82, %v69, 0
  %v90 = vsel %vm82, %v70, 0
  %v93 = vsel %vm82, %v71, 0
  %v96 = vsel %vm82, %v72, 0
  %v99 = vsel %vm82, %v73, 0
  %v102 = vsel %vm82, %v74, 0
  %v105 = vsel %vm82, %v75, 0
  %107 = vmatprep.subr.bf16.mxu0 0
  %108 = vmatpush1.bf16.msra.mxu0 %v80
  %109 = vmatprep.subr.bf16.mxu0 0
  %110 = vmatpush1.bf16.msra.mxu0 0
  %111 = vmatprep.subr.bf16.mxu0 0
  %112 = vmatpush1.bf16.msra.mxu0 0
  %113 = vmatprep.subr.bf16.mxu0 0
  %114 = vmatpush1.bf16.msra.mxu0 0
  %115 = vmatprep.subr.bf16.mxu0 0
  %116 = vmatpush1.bf16.msra.mxu0 0
  %117 = vmatprep.subr.bf16.mxu0 0
  %118 = vmatpush1.bf16.msra.mxu0 0
  %119 = vmatprep.subr.bf16.mxu0 0
  %120 = vmatpush1.bf16.msra.mxu0 0
  %121 = vmatprep.subr.bf16.mxu0 0
  %122 = vmatpush1.bf16.msra.mxu0 0
  %123 = vmatprep.subr.bf16.mxu0 0
  %124 = vmatpush1.bf16.msra.mxu0 0
  %125 = vmatprep.subr.bf16.mxu0 0
  %126 = vmatpush1.bf16.msra.mxu0 0
  %127 = vmatprep.subr.bf16.mxu0 0
  %128 = vmatpush1.bf16.msra.mxu0 0
  %129 = vmatprep.subr.bf16.mxu0 0
  %130 = vmatpush1.bf16.msra.mxu0 0
  %131 = vmatprep.subr.bf16.mxu0 0
  %132 = vmatpush1.bf16.msra.mxu0 0
  %133 = vmatprep.subr.bf16.mxu0 0
  %134 = vmatpush1.bf16.msra.mxu0 0
  %135 = vmatprep.subr.bf16.mxu0 0
  %136 = vmatpush1.bf16.msra.mxu0 0
  %137 = vmatprep.subr.bf16.mxu0 0
  %138 = vmatpush1.bf16.msra.mxu0 0
  %139 = vmatprep.mubr.bf16.mxu0 0
  %140 = vmatmul.mubr.bf16.gmra.mrb[0].mxu0 %v84
  %v141 = vpop.f32.mrb[0].mxu0
  %v142 = vadd.f32 0.0, %v141
  %v143 = vpop.f32.mrb[0].mxu0
  %v144 = vpop.f32.mrb[0].mxu0
  %v145 = vadd.f32 0.0, %v144
  %v146 = vpop.f32.mrb[0].mxu0
  %147 = vmatprep.mubr.bf16.mxu0 0
  %148 = vmatmul.mubr.bf16.gmra.mrb[0].mxu0 %v87
  %v149 = vpop.f32.mrb[0].mxu0
  %v150 = vadd.f32 0.0, %v149
  %v151 = vpop.f32.mrb[0].mxu0
  %v152 = vpop.f32.mrb[0].mxu0
  %v153 = vadd.f32 0.0, %v152
  %v154 = vpop.f32.mrb[0].mxu0
  %155 = vmatprep.mubr.bf16.mxu0 0
  %156 = vmatmul.mubr.bf16.gmra.mrb[0].mxu0 %v90
  %v157 = vpop.f32.mrb[0].mxu0
  %v158 = vadd.f32 0.0, %v157
  %v159 = vpop.f32.mrb[0].mxu0
  %v160 = vpop.f32.mrb[0].mxu0
  %v161 = vadd.f32 0.0, %v160
  %v162 = vpop.f32.mrb[0].mxu0
  %163 = vmatprep.mubr.bf16.mxu0 0
  %164 = vmatmul.mubr.bf16.gmra.mrb[0].mxu0 %v93
  %v165 = vpop.f32.mrb[0].mxu0
  %v166 = vadd.f32 0.0, %v165
  %v167 = vpop.f32.mrb[0].mxu0
  %v168 = vpop.f32.mrb[0].mxu0
  %v169 = vadd.f32 0.0, %v168
  %v170 = vpop.f32.mrb[0].mxu0
  %171 = vmatprep.mubr.bf16.mxu0 0
  %172 = vmatmul.mubr.bf16.gmra.mrb[0].mxu0 %v96
  %v173 = vpop.f32.mrb[0].mxu0
  %v174 = vadd.f32 0.0, %v173
  %v175 = vpop.f32.mrb[0].mxu0
  %v176 = vpop.f32.mrb[0].mxu0
  %v177 = vadd.f32 0.0, %v176
  %v178 = vpop.f32.mrb[0].mxu0
  %179 = vmatprep.mubr.bf16.mxu0 0
  %180 = vmatmul.mubr.bf16.gmra.mrb[0].mxu0 %v99
  %v181 = vpop.f32.mrb[0].mxu0
  %v182 = vadd.f32 0.0, %v181
  %v183 = vpop.f32.mrb[0].mxu0
  %v184 = vpop.f32.mrb[0].mxu0
  %v185 = vadd.f32 0.0, %v184
  %v186 = vpop.f32.mrb[0].mxu0
  %187 = vmatprep.mubr.bf16.mxu0 0
  %188 = vmatmul.mubr.bf16.gmra.mrb[0].mxu0 %v102
  %v189 = vpop.f32.mrb[0].mxu0
  %v190 = vadd.f32 0.0, %v189
  %v191 = vpop.f32.mrb[0].mxu0
  %v192 = vpop.f32.mrb[0].mxu0
  %v193 = vadd.f32 0.0, %v192
  %v194 = vpop.f32.mrb[0].mxu0
  %195 = vmatprep.mubr.bf16.mxu0 0
  %196 = vmatmul.mubr.bf16.gmra.mrb[0].mxu0 %v105
  %v197 = vpop.f32.mrb[0].mxu0
  %v198 = vadd.f32 0.0, %v197
  %v199 = vpop.f32.mrb[0].mxu0
  %v200 = vpop.f32.mrb[0].mxu0
  %v201 = vadd.f32 0.0, %v200
  %v202 = vpop.f32.mrb[0].mxu0
  %203 = vdwg.mxu0
  %v204 = vld [vmem:[%s2] sm:$0x1]
  %v206 = vlaneseq
  %v207 = vshrl.u32 %v206, 7
  %v208 = vsub.s32 0, %v207
  %v209 = vrot.slane %v204, %v208
  %v211 = vmul.f32 %v142, %v209
  %v212 = vmul.f32 %v145, %v209
  %v213 = vmul.f32 %v150, %v209
  %v214 = vmul.f32 %v153, %v209
  %v215 = vmul.f32 %v158, %v209
  %v216 = vmul.f32 %v161, %v209
  %v217 = vmul.f32 %v166, %v209
  %v218 = vmul.f32 %v169, %v209
  %v219 = vmul.f32 %v174, %v209
  %v220 = vmul.f32 %v177, %v209
  %v221 = vmul.f32 %v182, %v209
  %v222 = vmul.f32 %v185, %v209
  %v223 = vmul.f32 %v190, %v209
  %v224 = vmul.f32 %v193, %v209
  %v225 = vmul.f32 %v198, %v209
  %v226 = vmul.f32 %v201, %v209
  %v227 = vld [vmem:[%s3] sm:$0x1]
  %v229 = vlaneseq
  %v230 = vshrl.u32 %v229, 7
  %v231 = vsub.s32 0, %v230
  %v232 = vrot.slane %v227, %v231
  %v234 = vadd.f32 %v211, %v232
  %v235 = vadd.f32 %v212, %v232
  %v236 = vadd.f32 %v213, %v232
  %v237 = vadd.f32 %v214, %v232
  %v238 = vadd.f32 %v215, %v232
  %v239 = vadd.f32 %v216, %v232
  %v240 = vadd.f32 %v217, %v232
  %v241 = vadd.f32 %v218, %v232
  %v242 = vadd.f32 %v219, %v232
  %v243 = vadd.f32 %v220, %v232
  %v244 = vadd.f32 %v221, %v232
  %v245 = vadd.f32 %v222, %v232
  %v246 = vadd.f32 %v223, %v232
  %v247 = vadd.f32 %v224, %v232
  %v248 = vadd.f32 %v225, %v232
  %v249 = vadd.f32 %v226, %v232
  %v250 = vmax.f32 %v234, 0.0
  %v251 = vmax.f32 %v235, 0.0
  %v252 = vmax.f32 %v236, 0.0
  %v253 = vmax.f32 %v237, 0.0
  %v254 = vmax.f32 %v238, 0.0
  %v255 = vmax.f32 %v239, 0.0
  %v256 = vmax.f32 %v240, 0.0
  %v257 = vmax.f32 %v241, 0.0
  %v258 = vmax.f32 %v242, 0.0
  %v259 = vmax.f32 %v243, 0.0
  %v260 = vmax.f32 %v244, 0.0
  %v261 = vmax.f32 %v245, 0.0
  %v262 = vmax.f32 %v246, 0.0
  %v263 = vmax.f32 %v247, 0.0
  %v264 = vmax.f32 %v248, 0.0
  %v265 = vmax.f32 %v249, 0.0
  %vm266 = vcmask 31744
  %267 = vst.msk [vmem:[%s4] sm:$0xff] %vm266, %v250
  %268 = vst.msk [vmem:[%s4 + $0x8] sm:$0xff] %vm266, %v251
  %269 = vst.msk [vmem:[%s4 + $0x10] sm:$0xff] %vm266, %v252
  %270 = vst.msk [vmem:[%s4 + $0x18] sm:$0xff] %vm266, %v253
  %271 = vst.msk [vmem:[%s4 + $0x20] sm:$0xff] %vm266, %v254
  %272 = vst.msk [vmem:[%s4 + $0x28] sm:$0xff] %vm266, %v255
  %273 = vst.msk [vmem:[%s4 + $0x30] sm:$0xff] %vm266, %v256
  %274 = vst.msk [vmem:[%s4 + $0x38] sm:$0xff] %vm266, %v257
  %275 = vst.msk [vmem:[%s4 + $0x40] sm:$0xff] %vm266, %v258
  %276 = vst.msk [vmem:[%s4 + $0x48] sm:$0xff] %vm266, %v259
  %277 = vst.msk [vmem:[%s4 + $0x50] sm:$0xff] %vm266, %v260
  %278 = vst.msk [vmem:[%s4 + $0x58] sm:$0xff] %vm266, %v261
  %279 = vst.msk [vmem:[%s4 + $0x60] sm:$0xff] %vm266, %v262
  %280 = vst.msk [vmem:[%s4 + $0x68] sm:$0xff] %vm266, %v263
  %281 = vst.msk [vmem:[%s4 + $0x70] sm:$0xff] %vm266, %v264
  %282 = vst.msk [vmem:[%s4 + $0x78] sm:$0xff] %vm266, %v265
  // Predicated region
  $region18: #{pspnet_forward.66} parent=0 // pred_check
    _
  $region19: #{pspnet_forward.66} parent=0 // pred_check_branch
    %284 = sbr.rel (0) target = $region21
  $region20: #{pspnet_forward.66} parent=0 // pred_region
    _
  $region21: #{pspnet_forward.66} parent=0 // pred_fallthru
    _
  // Predicated region
  $region22: #{pspnet_forward.66} parent=0 // pred_check
    _
  $region23: #{pspnet_forward.66} parent=0 // pred_check_branch
    %286 = sbr.rel (0) target = $region25
  $region24: #{pspnet_forward.66} parent=0 // pred_region
    _
  $region25: #{pspnet_forward.66} parent=0 // pred_fallthru
    _

// kernel: pspnet_forward.67
$region0: #{pspnet_forward.67}
  #allocation0 [shape = 'u32[]', space=smem, size = 0x4, offset = 0x4, fixed_abs, tag = 'smem constant byte address 0x4 - core index']
  #allocation1 [shape = 'u32[144,128]{1,0:T(1,128)}', space=vmem, size = 0x12000, scoped, tag = 'internal scratch']
  %s0 = inlined_call_operand.vmem [shape: bf16[128,48], index: 0, kind: input, shape index: {}]
  %s1 = inlined_call_operand.vmem [shape: bf16[48,4], index: 1, kind: input, shape index: {}]
  %s2 = inlined_call_operand.vmem [shape: f32[1,4], index: 2, kind: input, shape index: {}]
  %s3 = inlined_call_operand.vmem [shape: f32[1,4], index: 3, kind: input, shape index: {}]
  %s4 = inlined_call_operand.vmem [shape: f32[128,4], index: 4, kind: output, shape index: {}]
  %s5 = sld [smem:[#allocation0]]
  $region26: #{pspnet_forward.67} parent=0
    _
  %s7 = ssub.s32 1, %s5
  %s8 = scalar_select 0, %s7, %s5
  // Predicated region
  $region2: #{pspnet_forward.67} parent=0 // pred_check
    _
  $region3: #{pspnet_forward.67} parent=0 // pred_check_branch
    %10 = sbr.rel (0) target = $region5
  $region4: #{pspnet_forward.67} parent=0 // pred_region
    _
  $region5: #{pspnet_forward.67} parent=0 // pred_fallthru
    _
  // Predicated region
  $region6: #{pspnet_forward.67} parent=0 // pred_check
    _
  $region7: #{pspnet_forward.67} parent=0 // pred_check_branch
    %12 = sbr.rel (0) target = $region9
  $region8: #{pspnet_forward.67} parent=0 // pred_region
    _
  $region9: #{pspnet_forward.67} parent=0 // pred_fallthru
    _
  // Predicated region
  $region10: #{pspnet_forward.67} parent=0 // pred_check
    _
  $region11: #{pspnet_forward.67} parent=0 // pred_check_branch
    %14 = sbr.rel (0) target = $region13
  $region12: #{pspnet_forward.67} parent=0 // pred_region
    _
  $region13: #{pspnet_forward.67} parent=0 // pred_fallthru
    _
  // Predicated region
  $region14: #{pspnet_forward.67} parent=0 // pred_check
    _
  $region15: #{pspnet_forward.67} parent=0 // pred_check_branch
    %16 = sbr.rel (0) target = $region17
  $region16: #{pspnet_forward.67} parent=0 // pred_region
    _
  $region17: #{pspnet_forward.67} parent=0 // pred_fallthru
    _
  %v18 = vld [vmem:[%s0] sm:$0xf]
  %v19 = vld [vmem:[%s0 + $0x4] sm:$0xf]
  %v20 = vld [vmem:[%s0 + $0x8] sm:$0xf]
  %v21 = vld [vmem:[%s0 + $0xc] sm:$0xf]
  %v22 = vld [vmem:[%s0 + $0x10] sm:$0xf]
  %v23 = vld [vmem:[%s0 + $0x14] sm:$0xf]
  %v24 = vld [vmem:[%s0 + $0x18] sm:$0xf]
  %v25 = vld [vmem:[%s0 + $0x1c] sm:$0xf]
  %v26 = vld [vmem:[%s0 + $0x20] sm:$0xf]
  %v27 = vld [vmem:[%s0 + $0x24] sm:$0xf]
  %v28 = vld [vmem:[%s0 + $0x28] sm:$0xf]
  %v29 = vld [vmem:[%s0 + $0x2c] sm:$0xf]
  %v30 = vld [vmem:[%s0 + $0x30] sm:$0xf]
  %v31 = vld [vmem:[%s0 + $0x34] sm:$0xf]
  %v32 = vld [vmem:[%s0 + $0x38] sm:$0xf]
  %v33 = vld [vmem:[%s0 + $0x3c] sm:$0xf]
  %v34 = vld [vmem:[%s1] sm:$0xf]
  %v35 = vld [vmem:[%s1 + $0x4] sm:$0xf]
  %v36 = vld [vmem:[%s1 + $0x8] sm:$0xf]
  %v37 = vld [vmem:[%s1 + $0xc] sm:$0xf]
  %v38 = vld [vmem:[%s1 + $0x10] sm:$0xf]
  %v39 = vld [vmem:[%s1 + $0x14] sm:$0xf]
  %v56 = vunpack.c.l.b16 %v18
  %v57 = vunpack.c.l.b16 %v19
  %v58 = vunpack.c.l.b16 %v20
  %v59 = vunpack.c.l.b16 %v21
  %v60 = vunpack.c.l.b16 %v22
  %v61 = vunpack.c.l.b16 %v23
  %v62 = vunpack.c.l.b16 %v24
  %v63 = vunpack.c.l.b16 %v25
  %v64 = vunpack.c.l.b16 %v26
  %v65 = vunpack.c.l.b16 %v27
  %v66 = vunpack.c.l.b16 %v28
  %v67 = vunpack.c.l.b16 %v29
  %v68 = vunpack.c.l.b16 %v30
  %v69 = vunpack.c.l.b16 %v31
  %v70 = vunpack.c.l.b16 %v32
  %v71 = vunpack.c.l.b16 %v33
  %v72 = vpack.c.b16 %v57, %v56
  %v73 = vpack.c.b16 %v59, %v58
  %v74 = vpack.c.b16 %v61, %v60
  %v75 = vpack.c.b16 %v63, %v62
  %v76 = vpack.c.b16 %v65, %v64
  %v77 = vpack.c.b16 %v67, %v66
  %v78 = vpack.c.b16 %v69, %v68
  %v79 = vpack.c.b16 %v71, %v70
  %v86 = vunpack.c.l.b16 %v34
  %v87 = vunpack.c.l.b16 %v35
  %v88 = vunpack.c.l.b16 %v36
  %v89 = vunpack.c.l.b16 %v37
  %v90 = vunpack.c.l.b16 %v38
  %v91 = vunpack.c.l.b16 %v39
  %v92 = vpack.c.b16 %v87, %v86
  %v93 = vpack.c.b16 %v89, %v88
  %v94 = vpack.c.b16 %v91, %v90
  %vm98 = vcmask 392192
  %v100 = vsel %vm98, %v72, 0
  %v103 = vsel %vm98, %v73, 0
  %v106 = vsel %vm98, %v74, 0
  %v109 = vsel %vm98, %v75, 0
  %v112 = vsel %vm98, %v76, 0
  %v115 = vsel %vm98, %v77, 0
  %v118 = vsel %vm98, %v78, 0
  %v121 = vsel %vm98, %v79, 0
  %123 = vmatprep.subr.bf16.mxu0 0
  %124 = vmatpush1.bf16.msra.mxu0 %v92
  %125 = vmatprep.subr.bf16.mxu0 0
  %126 = vmatpush1.bf16.msra.mxu0 %v93
  %127 = vmatprep.subr.bf16.mxu0 0
  %128 = vmatpush1.bf16.msra.mxu0 %v94
  %129 = vmatprep.subr.bf16.mxu0 0
  %130 = vmatpush1.bf16.msra.mxu0 0
  %131 = vmatprep.subr.bf16.mxu0 0
  %132 = vmatpush1.bf16.msra.mxu0 0
  %133 = vmatprep.subr.bf16.mxu0 0
  %134 = vmatpush1.bf16.msra.mxu0 0
  %135 = vmatprep.subr.bf16.mxu0 0
  %136 = vmatpush1.bf16.msra.mxu0 0
  %137 = vmatprep.subr.bf16.mxu0 0
  %138 = vmatpush1.bf16.msra.mxu0 0
  %139 = vmatprep.subr.bf16.mxu0 0
  %140 = vmatpush1.bf16.msra.mxu0 0
  %141 = vmatprep.subr.bf16.mxu0 0
  %142 = vmatpush1.bf16.msra.mxu0 0
  %143 = vmatprep.subr.bf16.mxu0 0
  %144 = vmatpush1.bf16.msra.mxu0 0
  %145 = vmatprep.subr.bf16.mxu0 0
  %146 = vmatpush1.bf16.msra.mxu0 0
  %147 = vmatprep.subr.bf16.mxu0 0
  %148 = vmatpush1.bf16.msra.mxu0 0
  %149 = vmatprep.subr.bf16.mxu0 0
  %150 = vmatpush1.bf16.msra.mxu0 0
  %151 = vmatprep.subr.bf16.mxu0 0
  %152 = vmatpush1.bf16.msra.mxu0 0
  %153 = vmatprep.subr.bf16.mxu0 0
  %154 = vmatpush1.bf16.msra.mxu0 0
  %155 = vmatprep.mubr.bf16.mxu0 0
  %156 = vmatmul.mubr.bf16.gmra.mrb[0].mxu0 %v100
  %v157 = vpop.f32.mrb[0].mxu0
  %v158 = vadd.f32 0.0, %v157
  %v159 = vpop.f32.mrb[0].mxu0
  %v160 = vpop.f32.mrb[0].mxu0
  %v161 = vadd.f32 0.0, %v160
  %v162 = vpop.f32.mrb[0].mxu0
  %163 = vmatprep.mubr.bf16.mxu0 0
  %164 = vmatmul.mubr.bf16.gmra.mrb[0].mxu0 %v103
  %v165 = vpop.f32.mrb[0].mxu0
  %v166 = vadd.f32 0.0, %v165
  %v167 = vpop.f32.mrb[0].mxu0
  %v168 = vpop.f32.mrb[0].mxu0
  %v169 = vadd.f32 0.0, %v168
  %v170 = vpop.f32.mrb[0].mxu0
  %171 = vmatprep.mubr.bf16.mxu0 0
  %172 = vmatmul.mubr.bf16.gmra.mrb[0].mxu0 %v106
  %v173 = vpop.f32.mrb[0].mxu0
  %v174 = vadd.f32 0.0, %v173
  %v175 = vpop.f32.mrb[0].mxu0
  %v176 = vpop.f32.mrb[0].mxu0
  %v177 = vadd.f32 0.0, %v176
  %v178 = vpop.f32.mrb[0].mxu0
  %179 = vmatprep.mubr.bf16.mxu0 0
  %180 = vmatmul.mubr.bf16.gmra.mrb[0].mxu0 %v109
  %v181 = vpop.f32.mrb[0].mxu0
  %v182 = vadd.f32 0.0, %v181
  %v183 = vpop.f32.mrb[0].mxu0
  %v184 = vpop.f32.mrb[0].mxu0
  %v185 = vadd.f32 0.0, %v184
  %v186 = vpop.f32.mrb[0].mxu0
  %187 = vmatprep.mubr.bf16.mxu0 0
  %188 = vmatmul.mubr.bf16.gmra.mrb[0].mxu0 %v112
  %v189 = vpop.f32.mrb[0].mxu0
  %v190 = vadd.f32 0.0, %v189
  %v191 = vpop.f32.mrb[0].mxu0
  %v192 = vpop.f32.mrb[0].mxu0
  %v193 = vadd.f32 0.0, %v192
  %v194 = vpop.f32.mrb[0].mxu0
  %195 = vmatprep.mubr.bf16.mxu0 0
  %196 = vmatmul.mubr.bf16.gmra.mrb[0].mxu0 %v115
  %v197 = vpop.f32.mrb[0].mxu0
  %v198 = vadd.f32 0.0, %v197
  %v199 = vpop.f32.mrb[0].mxu0
  %v200 = vpop.f32.mrb[0].mxu0
  %v201 = vadd.f32 0.0, %v200
  %v202 = vpop.f32.mrb[0].mxu0
  %203 = vmatprep.mubr.bf16.mxu0 0
  %204 = vmatmul.mubr.bf16.gmra.mrb[0].mxu0 %v118
  %v205 = vpop.f32.mrb[0].mxu0
  %v206 = vadd.f32 0.0, %v205
  %v207 = vpop.f32.mrb[0].mxu0
  %v208 = vpop.f32.mrb[0].mxu0
  %v209 = vadd.f32 0.0, %v208
  %v210 = vpop.f32.mrb[0].mxu0
  %211 = vmatprep.mubr.bf16.mxu0 0
  %212 = vmatmul.mubr.bf16.gmra.mrb[0].mxu0 %v121
  %v213 = vpop.f32.mrb[0].mxu0
  %v214 = vadd.f32 0.0, %v213
  %v215 = vpop.f32.mrb[0].mxu0
  %v216 = vpop.f32.mrb[0].mxu0
  %v217 = vadd.f32 0.0, %v216
  %v218 = vpop.f32.mrb[0].mxu0
  %219 = vdwg.mxu0
  %v220 = vld [vmem:[%s2] sm:$0x1]
  %v222 = vlaneseq
  %v223 = vshrl.u32 %v222, 7
  %v224 = vsub.s32 0, %v223
  %v225 = vrot.slane %v220, %v224
  %v227 = vmul.f32 %v158, %v225
  %v228 = vmul.f32 %v161, %v225
  %v229 = vmul.f32 %v166, %v225
  %v230 = vmul.f32 %v169, %v225
  %v231 = vmul.f32 %v174, %v225
  %v232 = vmul.f32 %v177, %v225
  %v233 = vmul.f32 %v182, %v225
  %v234 = vmul.f32 %v185, %v225
  %v235 = vmul.f32 %v190, %v225
  %v236 = vmul.f32 %v193, %v225
  %v237 = vmul.f32 %v198, %v225
  %v238 = vmul.f32 %v201, %v225
  %v239 = vmul.f32 %v206, %v225
  %v240 = vmul.f32 %v209, %v225
  %v241 = vmul.f32 %v214, %v225
  %v242 = vmul.f32 %v217, %v225
  %v243 = vld [vmem:[%s3] sm:$0x1]
  %v245 = vlaneseq
  %v246 = vshrl.u32 %v245, 7
  %v247 = vsub.s32 0, %v246
  %v248 = vrot.slane %v243, %v247
  %v250 = vadd.f32 %v227, %v248
  %v251 = vadd.f32 %v228, %v248
  %v252 = vadd.f32 %v229, %v248
  %v253 = vadd.f32 %v230, %v248
  %v254 = vadd.f32 %v231, %v248
  %v255 = vadd.f32 %v232, %v248
  %v256 = vadd.f32 %v233, %v248
  %v257 = vadd.f32 %v234, %v248
  %v258 = vadd.f32 %v235, %v248
  %v259 = vadd.f32 %v236, %v248
  %v260 = vadd.f32 %v237, %v248
  %v261 = vadd.f32 %v238, %v248
  %v262 = vadd.f32 %v239, %v248
  %v263 = vadd.f32 %v240, %v248
  %v264 = vadd.f32 %v241, %v248
  %v265 = vadd.f32 %v242, %v248
  %v266 = vmax.f32 %v250, 0.0
  %v267 = vmax.f32 %v251, 0.0
  %v268 = vmax.f32 %v252, 0.0
  %v269 = vmax.f32 %v253, 0.0
  %v270 = vmax.f32 %v254, 0.0
  %v271 = vmax.f32 %v255, 0.0
  %v272 = vmax.f32 %v256, 0.0
  %v273 = vmax.f32 %v257, 0.0
  %v274 = vmax.f32 %v258, 0.0
  %v275 = vmax.f32 %v259, 0.0
  %v276 = vmax.f32 %v260, 0.0
  %v277 = vmax.f32 %v261, 0.0
  %v278 = vmax.f32 %v262, 0.0
  %v279 = vmax.f32 %v263, 0.0
  %v280 = vmax.f32 %v264, 0.0
  %v281 = vmax.f32 %v265, 0.0
  %vm282 = vcmask 31744
  %283 = vst.msk [vmem:[%s4] sm:$0xff] %vm282, %v266
  %284 = vst.msk [vmem:[%s4 + $0x8] sm:$0xff] %vm282, %v267
  %285 = vst.msk [vmem:[%s4 + $0x10] sm:$0xff] %vm282, %v268
  %286 = vst.msk [vmem:[%s4 + $0x18] sm:$0xff] %vm282, %v269
  %287 = vst.msk [vmem:[%s4 + $0x20] sm:$0xff] %vm282, %v270
  %288 = vst.msk [vmem:[%s4 + $0x28] sm:$0xff] %vm282, %v271
  %289 = vst.msk [vmem:[%s4 + $0x30] sm:$0xff] %vm282, %v272
  %290 = vst.msk [vmem:[%s4 + $0x38] sm:$0xff] %vm282, %v273
  %291 = vst.msk [vmem:[%s4 + $0x40] sm:$0xff] %vm282, %v274
  %292 = vst.msk [vmem:[%s4 + $0x48] sm:$0xff] %vm282, %v275
  %293 = vst.msk [vmem:[%s4 + $0x50] sm:$0xff] %vm282, %v276
  %294 = vst.msk [vmem:[%s4 + $0x58] sm:$0xff] %vm282, %v277
  %295 = vst.msk [vmem:[%s4 + $0x60] sm:$0xff] %vm282, %v278
  %296 = vst.msk [vmem:[%s4 + $0x68] sm:$0xff] %vm282, %v279
  %297 = vst.msk [vmem:[%s4 + $0x70] sm:$0xff] %vm282, %v280
  %298 = vst.msk [vmem:[%s4 + $0x78] sm:$0xff] %vm282, %v281
  // Predicated region
  $region18: #{pspnet_forward.67} parent=0 // pred_check
    _
  $region19: #{pspnet_forward.67} parent=0 // pred_check_branch
    %300 = sbr.rel (0) target = $region21
  $region20: #{pspnet_forward.67} parent=0 // pred_region
    _
  $region21: #{pspnet_forward.67} parent=0 // pred_fallthru
    _
  // Predicated region
  $region22: #{pspnet_forward.67} parent=0 // pred_check
    _
  $region23: #{pspnet_forward.67} parent=0 // pred_check_branch
    %302 = sbr.rel (0) target = $region25
  $region24: #{pspnet_forward.67} parent=0 // pred_region
    _
  $region25: #{pspnet_forward.67} parent=0 // pred_fallthru
    _

// kernel: pspnet_forward.68
$region0: #{pspnet_forward.68}
  #allocation0 [shape = 'u32[]', space=smem, size = 0x4, offset = 0x4, fixed_abs, tag = 'smem constant byte address 0x4 - core index']
  #allocation1 [shape = 'u32[144,128]{1,0:T(1,128)}', space=vmem, size = 0x12000, scoped, tag = 'internal scratch']
  %s0 = inlined_call_operand.vmem [shape: bf16[128,16], index: 0, kind: input, shape index: {}]
  %s1 = inlined_call_operand.vmem [shape: bf16[16,16], index: 1, kind: input, shape index: {}]
  %s2 = inlined_call_operand.vmem [shape: f32[1,16], index: 2, kind: input, shape index: {}]
  %s3 = inlined_call_operand.vmem [shape: f32[1,16], index: 3, kind: input, shape index: {}]
  %s4 = inlined_call_operand.vmem [shape: f32[128,16], index: 4, kind: output, shape index: {}]
  %s5 = sld [smem:[#allocation0]]
  $region26: #{pspnet_forward.68} parent=0
    _
  %s7 = ssub.s32 1, %s5
  %s8 = scalar_select 0, %s7, %s5
  // Predicated region
  $region2: #{pspnet_forward.68} parent=0 // pred_check
    _
  $region3: #{pspnet_forward.68} parent=0 // pred_check_branch
    %10 = sbr.rel (0) target = $region5
  $region4: #{pspnet_forward.68} parent=0 // pred_region
    _
  $region5: #{pspnet_forward.68} parent=0 // pred_fallthru
    _
  // Predicated region
  $region6: #{pspnet_forward.68} parent=0 // pred_check
    _
  $region7: #{pspnet_forward.68} parent=0 // pred_check_branch
    %12 = sbr.rel (0) target = $region9
  $region8: #{pspnet_forward.68} parent=0 // pred_region
    _
  $region9: #{pspnet_forward.68} parent=0 // pred_fallthru
    _
  // Predicated region
  $region10: #{pspnet_forward.68} parent=0 // pred_check
    _
  $region11: #{pspnet_forward.68} parent=0 // pred_check_branch
    %14 = sbr.rel (0) target = $region13
  $region12: #{pspnet_forward.68} parent=0 // pred_region
    _
  $region13: #{pspnet_forward.68} parent=0 // pred_fallthru
    _
  // Predicated region
  $region14: #{pspnet_forward.68} parent=0 // pred_check
    _
  $region15: #{pspnet_forward.68} parent=0 // pred_check_branch
    %16 = sbr.rel (0) target = $region17
  $region16: #{pspnet_forward.68} parent=0 // pred_region
    _
  $region17: #{pspnet_forward.68} parent=0 // pred_fallthru
    _
  %v18 = vld [vmem:[%s0] sm:$0xf]
  %v19 = vld [vmem:[%s0 + $0x4] sm:$0xf]
  %v20 = vld [vmem:[%s0 + $0x8] sm:$0xf]
  %v21 = vld [vmem:[%s0 + $0xc] sm:$0xf]
  %v22 = vld [vmem:[%s0 + $0x10] sm:$0xf]
  %v23 = vld [vmem:[%s0 + $0x14] sm:$0xf]
  %v24 = vld [vmem:[%s0 + $0x18] sm:$0xf]
  %v25 = vld [vmem:[%s0 + $0x1c] sm:$0xf]
  %v26 = vld [vmem:[%s0 + $0x20] sm:$0xf]
  %v27 = vld [vmem:[%s0 + $0x24] sm:$0xf]
  %v28 = vld [vmem:[%s0 + $0x28] sm:$0xf]
  %v29 = vld [vmem:[%s0 + $0x2c] sm:$0xf]
  %v30 = vld [vmem:[%s0 + $0x30] sm:$0xf]
  %v31 = vld [vmem:[%s0 + $0x34] sm:$0xf]
  %v32 = vld [vmem:[%s0 + $0x38] sm:$0xf]
  %v33 = vld [vmem:[%s0 + $0x3c] sm:$0xf]
  %v34 = vld [vmem:[%s1] sm:$0xf]
  %v35 = vld [vmem:[%s1 + $0x4] sm:$0xf]
  %v52 = vunpack.c.l.b16 %v18
  %v53 = vunpack.c.l.b16 %v19
  %v54 = vunpack.c.l.b16 %v20
  %v55 = vunpack.c.l.b16 %v21
  %v56 = vunpack.c.l.b16 %v22
  %v57 = vunpack.c.l.b16 %v23
  %v58 = vunpack.c.l.b16 %v24
  %v59 = vunpack.c.l.b16 %v25
  %v60 = vunpack.c.l.b16 %v26
  %v61 = vunpack.c.l.b16 %v27
  %v62 = vunpack.c.l.b16 %v28
  %v63 = vunpack.c.l.b16 %v29
  %v64 = vunpack.c.l.b16 %v30
  %v65 = vunpack.c.l.b16 %v31
  %v66 = vunpack.c.l.b16 %v32
  %v67 = vunpack.c.l.b16 %v33
  %v68 = vpack.c.b16 %v53, %v52
  %v69 = vpack.c.b16 %v55, %v54
  %v70 = vpack.c.b16 %v57, %v56
  %v71 = vpack.c.b16 %v59, %v58
  %v72 = vpack.c.b16 %v61, %v60
  %v73 = vpack.c.b16 %v63, %v62
  %v74 = vpack.c.b16 %v65, %v64
  %v75 = vpack.c.b16 %v67, %v66
  %v78 = vunpack.c.l.b16 %v34
  %v79 = vunpack.c.l.b16 %v35
  %v80 = vpack.c.b16 %v79, %v78
  %vm82 = vcmask 130048
  %v84 = vsel %vm82, %v68, 0
  %v87 = vsel %vm82, %v69, 0
  %v90 = vsel %vm82, %v70, 0
  %v93 = vsel %vm82, %v71, 0
  %v96 = vsel %vm82, %v72, 0
  %v99 = vsel %vm82, %v73, 0
  %v102 = vsel %vm82, %v74, 0
  %v105 = vsel %vm82, %v75, 0
  %107 = vmatprep.subr.bf16.mxu0 0
  %108 = vmatpush1.bf16.msra.mxu0 %v80
  %109 = vmatprep.subr.bf16.mxu0 0
  %110 = vmatpush1.bf16.msra.mxu0 0
  %111 = vmatprep.subr.bf16.mxu0 0
  %112 = vmatpush1.bf16.msra.mxu0 0
  %113 = vmatprep.subr.bf16.mxu0 0
  %114 = vmatpush1.bf16.msra.mxu0 0
  %115 = vmatprep.subr.bf16.mxu0 0
  %116 = vmatpush1.bf16.msra.mxu0 0
  %117 = vmatprep.subr.bf16.mxu0 0
  %118 = vmatpush1.bf16.msra.mxu0 0
  %119 = vmatprep.subr.bf16.mxu0 0
  %120 = vmatpush1.bf16.msra.mxu0 0
  %121 = vmatprep.subr.bf16.mxu0 0
  %122 = vmatpush1.bf16.msra.mxu0 0
  %123 = vmatprep.subr.bf16.mxu0 0
  %124 = vmatpush1.bf16.msra.mxu0 0
  %125 = vmatprep.subr.bf16.mxu0 0
  %126 = vmatpush1.bf16.msra.mxu0 0
  %127 = vmatprep.subr.bf16.mxu0 0
  %128 = vmatpush1.bf16.msra.mxu0 0
  %129 = vmatprep.subr.bf16.mxu0 0
  %130 = vmatpush1.bf16.msra.mxu0 0
  %131 = vmatprep.subr.bf16.mxu0 0
  %132 = vmatpush1.bf16.msra.mxu0 0
  %133 = vmatprep.subr.bf16.mxu0 0
  %134 = vmatpush1.bf16.msra.mxu0 0
  %135 = vmatprep.subr.bf16.mxu0 0
  %136 = vmatpush1.bf16.msra.mxu0 0
  %137 = vmatprep.subr.bf16.mxu0 0
  %138 = vmatpush1.bf16.msra.mxu0 0
  %139 = vmatprep.mubr.bf16.mxu0 0
  %140 = vmatmul.mubr.bf16.gmra.mrb[0].mxu0 %v84
  %v141 = vpop.f32.mrb[0].mxu0
  %v142 = vadd.f32 0.0, %v141
  %v143 = vpop.f32.mrb[0].mxu0
  %v144 = vpop.f32.mrb[0].mxu0
  %v145 = vadd.f32 0.0, %v144
  %v146 = vpop.f32.mrb[0].mxu0
  %147 = vmatprep.mubr.bf16.mxu0 0
  %148 = vmatmul.mubr.bf16.gmra.mrb[0].mxu0 %v87
  %v149 = vpop.f32.mrb[0].mxu0
  %v150 = vadd.f32 0.0, %v149
  %v151 = vpop.f32.mrb[0].mxu0
  %v152 = vpop.f32.mrb[0].mxu0
  %v153 = vadd.f32 0.0, %v152
  %v154 = vpop.f32.mrb[0].mxu0
  %155 = vmatprep.mubr.bf16.mxu0 0
  %156 = vmatmul.mubr.bf16.gmra.mrb[0].mxu0 %v90
  %v157 = vpop.f32.mrb[0].mxu0
  %v158 = vadd.f32 0.0, %v157
  %v159 = vpop.f32.mrb[0].mxu0
  %v160 = vpop.f32.mrb[0].mxu0
  %v161 = vadd.f32 0.0, %v160
  %v162 = vpop.f32.mrb[0].mxu0
  %163 = vmatprep.mubr.bf16.mxu0 0
  %164 = vmatmul.mubr.bf16.gmra.mrb[0].mxu0 %v93
  %v165 = vpop.f32.mrb[0].mxu0
  %v166 = vadd.f32 0.0, %v165
  %v167 = vpop.f32.mrb[0].mxu0
  %v168 = vpop.f32.mrb[0].mxu0
  %v169 = vadd.f32 0.0, %v168
  %v170 = vpop.f32.mrb[0].mxu0
  %171 = vmatprep.mubr.bf16.mxu0 0
  %172 = vmatmul.mubr.bf16.gmra.mrb[0].mxu0 %v96
  %v173 = vpop.f32.mrb[0].mxu0
  %v174 = vadd.f32 0.0, %v173
  %v175 = vpop.f32.mrb[0].mxu0
  %v176 = vpop.f32.mrb[0].mxu0
  %v177 = vadd.f32 0.0, %v176
  %v178 = vpop.f32.mrb[0].mxu0
  %179 = vmatprep.mubr.bf16.mxu0 0
  %180 = vmatmul.mubr.bf16.gmra.mrb[0].mxu0 %v99
  %v181 = vpop.f32.mrb[0].mxu0
  %v182 = vadd.f32 0.0, %v181
  %v183 = vpop.f32.mrb[0].mxu0
  %v184 = vpop.f32.mrb[0].mxu0
  %v185 = vadd.f32 0.0, %v184
  %v186 = vpop.f32.mrb[0].mxu0
  %187 = vmatprep.mubr.bf16.mxu0 0
  %188 = vmatmul.mubr.bf16.gmra.mrb[0].mxu0 %v102
  %v189 = vpop.f32.mrb[0].mxu0
  %v190 = vadd.f32 0.0, %v189
  %v191 = vpop.f32.mrb[0].mxu0
  %v192 = vpop.f32.mrb[0].mxu0
  %v193 = vadd.f32 0.0, %v192
  %v194 = vpop.f32.mrb[0].mxu0
  %195 = vmatprep.mubr.bf16.mxu0 0
  %196 = vmatmul.mubr.bf16.gmra.mrb[0].mxu0 %v105
  %v197 = vpop.f32.mrb[0].mxu0
  %v198 = vadd.f32 0.0, %v197
  %v199 = vpop.f32.mrb[0].mxu0
  %v200 = vpop.f32.mrb[0].mxu0
  %v201 = vadd.f32 0.0, %v200
  %v202 = vpop.f32.mrb[0].mxu0
  %203 = vdwg.mxu0
  %v204 = vld [vmem:[%s2] sm:$0x1]
  %v206 = vlaneseq
  %v207 = vshrl.u32 %v206, 7
  %v208 = vsub.s32 0, %v207
  %v209 = vrot.slane %v204, %v208
  %v211 = vmul.f32 %v142, %v209
  %v212 = vmul.f32 %v145, %v209
  %v213 = vmul.f32 %v150, %v209
  %v214 = vmul.f32 %v153, %v209
  %v215 = vmul.f32 %v158, %v209
  %v216 = vmul.f32 %v161, %v209
  %v217 = vmul.f32 %v166, %v209
  %v218 = vmul.f32 %v169, %v209
  %v219 = vmul.f32 %v174, %v209
  %v220 = vmul.f32 %v177, %v209
  %v221 = vmul.f32 %v182, %v209
  %v222 = vmul.f32 %v185, %v209
  %v223 = vmul.f32 %v190, %v209
  %v224 = vmul.f32 %v193, %v209
  %v225 = vmul.f32 %v198, %v209
  %v226 = vmul.f32 %v201, %v209
  %v227 = vld [vmem:[%s3] sm:$0x1]
  %v229 = vlaneseq
  %v230 = vshrl.u32 %v229, 7
  %v231 = vsub.s32 0, %v230
  %v232 = vrot.slane %v227, %v231
  %v234 = vadd.f32 %v211, %v232
  %v235 = vadd.f32 %v212, %v232
  %v236 = vadd.f32 %v213, %v232
  %v237 = vadd.f32 %v214, %v232
  %v238 = vadd.f32 %v215, %v232
  %v239 = vadd.f32 %v216, %v232
  %v240 = vadd.f32 %v217, %v232
  %v241 = vadd.f32 %v218, %v232
  %v242 = vadd.f32 %v219, %v232
  %v243 = vadd.f32 %v220, %v232
  %v244 = vadd.f32 %v221, %v232
  %v245 = vadd.f32 %v222, %v232
  %v246 = vadd.f32 %v223, %v232
  %v247 = vadd.f32 %v224, %v232
  %v248 = vadd.f32 %v225, %v232
  %v249 = vadd.f32 %v226, %v232
  %250 = vst.msk [vmem:[%s4] sm:$0xff] %vm82, %v234
  %251 = vst.msk [vmem:[%s4 + $0x8] sm:$0xff] %vm82, %v235
  %252 = vst.msk [vmem:[%s4 + $0x10] sm:$0xff] %vm82, %v236
  %253 = vst.msk [vmem:[%s4 + $0x18] sm:$0xff] %vm82, %v237
  %254 = vst.msk [vmem:[%s4 + $0x20] sm:$0xff] %vm82, %v238
  %255 = vst.msk [vmem:[%s4 + $0x28] sm:$0xff] %vm82, %v239
  %256 = vst.msk [vmem:[%s4 + $0x30] sm:$0xff] %vm82, %v240
  %257 = vst.msk [vmem:[%s4 + $0x38] sm:$0xff] %vm82, %v241
  %258 = vst.msk [vmem:[%s4 + $0x40] sm:$0xff] %vm82, %v242
  %259 = vst.msk [vmem:[%s4 + $0x48] sm:$0xff] %vm82, %v243
  %260 = vst.msk [vmem:[%s4 + $0x50] sm:$0xff] %vm82, %v244
  %261 = vst.msk [vmem:[%s4 + $0x58] sm:$0xff] %vm82, %v245
  %262 = vst.msk [vmem:[%s4 + $0x60] sm:$0xff] %vm82, %v246
  %263 = vst.msk [vmem:[%s4 + $0x68] sm:$0xff] %vm82, %v247
  %264 = vst.msk [vmem:[%s4 + $0x70] sm:$0xff] %vm82, %v248
  %265 = vst.msk [vmem:[%s4 + $0x78] sm:$0xff] %vm82, %v249
  // Predicated region
  $region18: #{pspnet_forward.68} parent=0 // pred_check
    _
  $region19: #{pspnet_forward.68} parent=0 // pred_check_branch
    %267 = sbr.rel (0) target = $region21
  $region20: #{pspnet_forward.68} parent=0 // pred_region
    _
  $region21: #{pspnet_forward.68} parent=0 // pred_fallthru
    _
  // Predicated region
  $region22: #{pspnet_forward.68} parent=0 // pred_check
    _
  $region23: #{pspnet_forward.68} parent=0 // pred_check_branch
    %269 = sbr.rel (0) target = $region25
  $region24: #{pspnet_forward.68} parent=0 // pred_region
    _
  $region25: #{pspnet_forward.68} parent=0 // pred_fallthru
    _

// kernel: pspnet_forward.69
$region0: #{pspnet_forward.69}
  #allocation0 [shape = 'u32[]', space=smem, size = 0x4, offset = 0x4, fixed_abs, tag = 'smem constant byte address 0x4 - core index']
  #allocation1 [shape = 'u32[144,128]{1,0:T(1,128)}', space=vmem, size = 0x12000, scoped, tag = 'internal scratch']
  %s0 = inlined_call_operand.vmem [shape: bf16[128,16], index: 0, kind: input, shape index: {}]
  %s1 = inlined_call_operand.vmem [shape: bf16[16,16], index: 1, kind: input, shape index: {}]
  %s2 = inlined_call_operand.vmem [shape: f32[1,16], index: 2, kind: input, shape index: {}]
  %s3 = inlined_call_operand.vmem [shape: f32[1,16], index: 3, kind: input, shape index: {}]
  %s4 = inlined_call_operand.vmem [shape: f32[128,16], index: 4, kind: input, shape index: {}]
  %s5 = inlined_call_operand.vmem [shape: f32[128,16], index: 5, kind: output, shape index: {}]
  %s6 = sld [smem:[#allocation0]]
  $region30: #{pspnet_forward.69} parent=0
    _
  %s8 = ssub.s32 1, %s6
  %s9 = scalar_select 0, %s8, %s6
  // Predicated region
  $region2: #{pspnet_forward.69} parent=0 // pred_check
    _
  $region3: #{pspnet_forward.69} parent=0 // pred_check_branch
    %11 = sbr.rel (0) target = $region5
  $region4: #{pspnet_forward.69} parent=0 // pred_region
    _
  $region5: #{pspnet_forward.69} parent=0 // pred_fallthru
    _
  // Predicated region
  $region6: #{pspnet_forward.69} parent=0 // pred_check
    _
  $region7: #{pspnet_forward.69} parent=0 // pred_check_branch
    %13 = sbr.rel (0) target = $region9
  $region8: #{pspnet_forward.69} parent=0 // pred_region
    _
  $region9: #{pspnet_forward.69} parent=0 // pred_fallthru
    _
  // Predicated region
  $region10: #{pspnet_forward.69} parent=0 // pred_check
    _
  $region11: #{pspnet_forward.69} parent=0 // pred_check_branch
    %15 = sbr.rel (0) target = $region13
  $region12: #{pspnet_forward.69} parent=0 // pred_region
    _
  $region13: #{pspnet_forward.69} parent=0 // pred_fallthru
    _
  // Predicated region
  $region14: #{pspnet_forward.69} parent=0 // pred_check
    _
  $region15: #{pspnet_forward.69} parent=0 // pred_check_branch
    %17 = sbr.rel (0) target = $region17
  $region16: #{pspnet_forward.69} parent=0 // pred_region
    _
  $region17: #{pspnet_forward.69} parent=0 // pred_fallthru
    _
  // Predicated region
  $region18: #{pspnet_forward.69} parent=0 // pred_check
    _
  $region19: #{pspnet_forward.69} parent=0 // pred_check_branch
    %19 = sbr.rel (0) target = $region21
  $region20: #{pspnet_forward.69} parent=0 // pred_region
    _
  $region21: #{pspnet_forward.69} parent=0 // pred_fallthru
    _
  %v21 = vld [vmem:[%s0] sm:$0xf]
  %v22 = vld [vmem:[%s0 + $0x4] sm:$0xf]
  %v23 = vld [vmem:[%s0 + $0x8] sm:$0xf]
  %v24 = vld [vmem:[%s0 + $0xc] sm:$0xf]
  %v25 = vld [vmem:[%s0 + $0x10] sm:$0xf]
  %v26 = vld [vmem:[%s0 + $0x14] sm:$0xf]
  %v27 = vld [vmem:[%s0 + $0x18] sm:$0xf]
  %v28 = vld [vmem:[%s0 + $0x1c] sm:$0xf]
  %v29 = vld [vmem:[%s0 + $0x20] sm:$0xf]
  %v30 = vld [vmem:[%s0 + $0x24] sm:$0xf]
  %v31 = vld [vmem:[%s0 + $0x28] sm:$0xf]
  %v32 = vld [vmem:[%s0 + $0x2c] sm:$0xf]
  %v33 = vld [vmem:[%s0 + $0x30] sm:$0xf]
  %v34 = vld [vmem:[%s0 + $0x34] sm:$0xf]
  %v35 = vld [vmem:[%s0 + $0x38] sm:$0xf]
  %v36 = vld [vmem:[%s0 + $0x3c] sm:$0xf]
  %v37 = vld [vmem:[%s1] sm:$0xf]
  %v38 = vld [vmem:[%s1 + $0x4] sm:$0xf]
  %v55 = vunpack.c.l.b16 %v21
  %v56 = vunpack.c.l.b16 %v22
  %v57 = vunpack.c.l.b16 %v23
  %v58 = vunpack.c.l.b16 %v24
  %v59 = vunpack.c.l.b16 %v25
  %v60 = vunpack.c.l.b16 %v26
  %v61 = vunpack.c.l.b16 %v27
  %v62 = vunpack.c.l.b16 %v28
  %v63 = vunpack.c.l.b16 %v29
  %v64 = vunpack.c.l.b16 %v30
  %v65 = vunpack.c.l.b16 %v31
  %v66 = vunpack.c.l.b16 %v32
  %v67 = vunpack.c.l.b16 %v33
  %v68 = vunpack.c.l.b16 %v34
  %v69 = vunpack.c.l.b16 %v35
  %v70 = vunpack.c.l.b16 %v36
  %v71 = vpack.c.b16 %v56, %v55
  %v72 = vpack.c.b16 %v58, %v57
  %v73 = vpack.c.b16 %v60, %v59
  %v74 = vpack.c.b16 %v62, %v61
  %v75 = vpack.c.b16 %v64, %v63
  %v76 = vpack.c.b16 %v66, %v65
  %v77 = vpack.c.b16 %v68, %v67
  %v78 = vpack.c.b16 %v70, %v69
  %v81 = vunpack.c.l.b16 %v37
  %v82 = vunpack.c.l.b16 %v38
  %v83 = vpack.c.b16 %v82, %v81
  %vm85 = vcmask 130048
  %v87 = vsel %vm85, %v71, 0
  %v90 = vsel %vm85, %v72, 0
  %v93 = vsel %vm85, %v73, 0
  %v96 = vsel %vm85, %v74, 0
  %v99 = vsel %vm85, %v75, 0
  %v102 = vsel %vm85, %v76, 0
  %v105 = vsel %vm85, %v77, 0
  %v108 = vsel %vm85, %v78, 0
  %110 = vmatprep.subr.bf16.mxu0 0
  %111 = vmatpush1.bf16.msra.mxu0 %v83
  %112 = vmatprep.subr.bf16.mxu0 0
  %113 = vmatpush1.bf16.msra.mxu0 0
  %114 = vmatprep.subr.bf16.mxu0 0
  %115 = vmatpush1.bf16.msra.mxu0 0
  %116 = vmatprep.subr.bf16.mxu0 0
  %117 = vmatpush1.bf16.msra.mxu0 0
  %118 = vmatprep.subr.bf16.mxu0 0
  %119 = vmatpush1.bf16.msra.mxu0 0
  %120 = vmatprep.subr.bf16.mxu0 0
  %121 = vmatpush1.bf16.msra.mxu0 0
  %122 = vmatprep.subr.bf16.mxu0 0
  %123 = vmatpush1.bf16.msra.mxu0 0
  %124 = vmatprep.subr.bf16.mxu0 0
  %125 = vmatpush1.bf16.msra.mxu0 0
  %126 = vmatprep.subr.bf16.mxu0 0
  %127 = vmatpush1.bf16.msra.mxu0 0
  %128 = vmatprep.subr.bf16.mxu0 0
  %129 = vmatpush1.bf16.msra.mxu0 0
  %130 = vmatprep.subr.bf16.mxu0 0
  %131 = vmatpush1.bf16.msra.mxu0 0
  %132 = vmatprep.subr.bf16.mxu0 0
  %133 = vmatpush1.bf16.msra.mxu0 0
  %134 = vmatprep.subr.bf16.mxu0 0
  %135 = vmatpush1.bf16.msra.mxu0 0
  %136 = vmatprep.subr.bf16.mxu0 0
  %137 = vmatpush1.bf16.msra.mxu0 0
  %138 = vmatprep.subr.bf16.mxu0 0
  %139 = vmatpush1.bf16.msra.mxu0 0
  %140 = vmatprep.subr.bf16.mxu0 0
  %141 = vmatpush1.bf16.msra.mxu0 0
  %142 = vmatprep.mubr.bf16.mxu0 0
  %143 = vmatmul.mubr.bf16.gmra.mrb[0].mxu0 %v87
  %v144 = vpop.f32.mrb[0].mxu0
  %v145 = vadd.f32 0.0, %v144
  %v146 = vpop.f32.mrb[0].mxu0
  %v147 = vpop.f32.mrb[0].mxu0
  %v148 = vadd.f32 0.0, %v147
  %v149 = vpop.f32.mrb[0].mxu0
  %150 = vmatprep.mubr.bf16.mxu0 0
  %151 = vmatmul.mubr.bf16.gmra.mrb[0].mxu0 %v90
  %v152 = vpop.f32.mrb[0].mxu0
  %v153 = vadd.f32 0.0, %v152
  %v154 = vpop.f32.mrb[0].mxu0
  %v155 = vpop.f32.mrb[0].mxu0
  %v156 = vadd.f32 0.0, %v155
  %v157 = vpop.f32.mrb[0].mxu0
  %158 = vmatprep.mubr.bf16.mxu0 0
  %159 = vmatmul.mubr.bf16.gmra.mrb[0].mxu0 %v93
  %v160 = vpop.f32.mrb[0].mxu0
  %v161 = vadd.f32 0.0, %v160
  %v162 = vpop.f32.mrb[0].mxu0
  %v163 = vpop.f32.mrb[0].mxu0
  %v164 = vadd.f32 0.0, %v163
  %v165 = vpop.f32.mrb[0].mxu0
  %166 = vmatprep.mubr.bf16.mxu0 0
  %167 = vmatmul.mubr.bf16.gmra.mrb[0].mxu0 %v96
  %v168 = vpop.f32.mrb[0].mxu0
  %v169 = vadd.f32 0.0, %v168
  %v170 = vpop.f32.mrb[0].mxu0
  %v171 = vpop.f32.mrb[0].mxu0
  %v172 = vadd.f32 0.0, %v171
  %v173 = vpop.f32.mrb[0].mxu0
  %174 = vmatprep.mubr.bf16.mxu0 0
  %175 = vmatmul.mubr.bf16.gmra.mrb[0].mxu0 %v99
  %v176 = vpop.f32.mrb[0].mxu0
  %v177 = vadd.f32 0.0, %v176
  %v178 = vpop.f32.mrb[0].mxu0
  %v179 = vpop.f32.mrb[0].mxu0
  %v180 = vadd.f32 0.0, %v179
  %v181 = vpop.f32.mrb[0].mxu0
  %182 = vmatprep.mubr.bf16.mxu0 0
  %183 = vmatmul.mubr.bf16.gmra.mrb[0].mxu0 %v102
  %v184 = vpop.f32.mrb[0].mxu0
  %v185 = vadd.f32 0.0, %v184
  %v186 = vpop.f32.mrb[0].mxu0
  %v187 = vpop.f32.mrb[0].mxu0
  %v188 = vadd.f32 0.0, %v187
  %v189 = vpop.f32.mrb[0].mxu0
  %190 = vmatprep.mubr.bf16.mxu0 0
  %191 = vmatmul.mubr.bf16.gmra.mrb[0].mxu0 %v105
  %v192 = vpop.f32.mrb[0].mxu0
  %v193 = vadd.f32 0.0, %v192
  %v194 = vpop.f32.mrb[0].mxu0
  %v195 = vpop.f32.mrb[0].mxu0
  %v196 = vadd.f32 0.0, %v195
  %v197 = vpop.f32.mrb[0].mxu0
  %198 = vmatprep.mubr.bf16.mxu0 0
  %199 = vmatmul.mubr.bf16.gmra.mrb[0].mxu0 %v108
  %v200 = vpop.f32.mrb[0].mxu0
  %v201 = vadd.f32 0.0, %v200
  %v202 = vpop.f32.mrb[0].mxu0
  %v203 = vpop.f32.mrb[0].mxu0
  %v204 = vadd.f32 0.0, %v203
  %v205 = vpop.f32.mrb[0].mxu0
  %206 = vdwg.mxu0
  %v207 = vld [vmem:[%s2] sm:$0x1]
  %v209 = vlaneseq
  %v210 = vshrl.u32 %v209, 7
  %v211 = vsub.s32 0, %v210
  %v212 = vrot.slane %v207, %v211
  %v214 = vmul.f32 %v145, %v212
  %v215 = vmul.f32 %v148, %v212
  %v216 = vmul.f32 %v153, %v212
  %v217 = vmul.f32 %v156, %v212
  %v218 = vmul.f32 %v161, %v212
  %v219 = vmul.f32 %v164, %v212
  %v220 = vmul.f32 %v169, %v212
  %v221 = vmul.f32 %v172, %v212
  %v222 = vmul.f32 %v177, %v212
  %v223 = vmul.f32 %v180, %v212
  %v224 = vmul.f32 %v185, %v212
  %v225 = vmul.f32 %v188, %v212
  %v226 = vmul.f32 %v193, %v212
  %v227 = vmul.f32 %v196, %v212
  %v228 = vmul.f32 %v201, %v212
  %v229 = vmul.f32 %v204, %v212
  %v230 = vld [vmem:[%s3] sm:$0x1]
  %v232 = vlaneseq
  %v233 = vshrl.u32 %v232, 7
  %v234 = vsub.s32 0, %v233
  %v235 = vrot.slane %v230, %v234
  %v237 = vadd.f32 %v214, %v235
  %v238 = vadd.f32 %v215, %v235
  %v239 = vadd.f32 %v216, %v235
  %v240 = vadd.f32 %v217, %v235
  %v241 = vadd.f32 %v218, %v235
  %v242 = vadd.f32 %v219, %v235
  %v243 = vadd.f32 %v220, %v235
  %v244 = vadd.f32 %v221, %v235
  %v245 = vadd.f32 %v222, %v235
  %v246 = vadd.f32 %v223, %v235
  %v247 = vadd.f32 %v224, %v235
  %v248 = vadd.f32 %v225, %v235
  %v249 = vadd.f32 %v226, %v235
  %v250 = vadd.f32 %v227, %v235
  %v251 = vadd.f32 %v228, %v235
  %v252 = vadd.f32 %v229, %v235
  %v253 = vld [vmem:[%s4] sm:$0xff]
  %v254 = vld [vmem:[%s4 + $0x8] sm:$0xff]
  %v255 = vld [vmem:[%s4 + $0x10] sm:$0xff]
  %v256 = vld [vmem:[%s4 + $0x18] sm:$0xff]
  %v257 = vld [vmem:[%s4 + $0x20] sm:$0xff]
  %v258 = vld [vmem:[%s4 + $0x28] sm:$0xff]
  %v259 = vld [vmem:[%s4 + $0x30] sm:$0xff]
  %v260 = vld [vmem:[%s4 + $0x38] sm:$0xff]
  %v261 = vld [vmem:[%s4 + $0x40] sm:$0xff]
  %v262 = vld [vmem:[%s4 + $0x48] sm:$0xff]
  %v263 = vld [vmem:[%s4 + $0x50] sm:$0xff]
  %v264 = vld [vmem:[%s4 + $0x58] sm:$0xff]
  %v265 = vld [vmem:[%s4 + $0x60] sm:$0xff]
  %v266 = vld [vmem:[%s4 + $0x68] sm:$0xff]
  %v267 = vld [vmem:[%s4 + $0x70] sm:$0xff]
  %v268 = vld [vmem:[%s4 + $0x78] sm:$0xff]
  %v269 = vadd.f32 %v237, %v253
  %v270 = vadd.f32 %v238, %v254
  %v271 = vadd.f32 %v239, %v255
  %v272 = vadd.f32 %v240, %v256
  %v273 = vadd.f32 %v241, %v257
  %v274 = vadd.f32 %v242, %v258
  %v275 = vadd.f32 %v243, %v259
  %v276 = vadd.f32 %v244, %v260
  %v277 = vadd.f32 %v245, %v261
  %v278 = vadd.f32 %v246, %v262
  %v279 = vadd.f32 %v247, %v263
  %v280 = vadd.f32 %v248, %v264
  %v281 = vadd.f32 %v249, %v265
  %v282 = vadd.f32 %v250, %v266
  %v283 = vadd.f32 %v251, %v267
  %v284 = vadd.f32 %v252, %v268
  %v285 = vmax.f32 %v269, 0.0
  %v286 = vmax.f32 %v270, 0.0
  %v287 = vmax.f32 %v271, 0.0
  %v288 = vmax.f32 %v272, 0.0
  %v289 = vmax.f32 %v273, 0.0
  %v290 = vmax.f32 %v274, 0.0
  %v291 = vmax.f32 %v275, 0.0
  %v292 = vmax.f32 %v276, 0.0
  %v293 = vmax.f32 %v277, 0.0
  %v294 = vmax.f32 %v278, 0.0
  %v295 = vmax.f32 %v279, 0.0
  %v296 = vmax.f32 %v280, 0.0
  %v297 = vmax.f32 %v281, 0.0
  %v298 = vmax.f32 %v282, 0.0
  %v299 = vmax.f32 %v283, 0.0
  %v300 = vmax.f32 %v284, 0.0
  %301 = vst.msk [vmem:[%s5] sm:$0xff] %vm85, %v285
  %302 = vst.msk [vmem:[%s5 + $0x8] sm:$0xff] %vm85, %v286
  %303 = vst.msk [vmem:[%s5 + $0x10] sm:$0xff] %vm85, %v287
  %304 = vst.msk [vmem:[%s5 + $0x18] sm:$0xff] %vm85, %v288
  %305 = vst.msk [vmem:[%s5 + $0x20] sm:$0xff] %vm85, %v289
  %306 = vst.msk [vmem:[%s5 + $0x28] sm:$0xff] %vm85, %v290
  %307 = vst.msk [vmem:[%s5 + $0x30] sm:$0xff] %vm85, %v291
  %308 = vst.msk [vmem:[%s5 + $0x38] sm:$0xff] %vm85, %v292
  %309 = vst.msk [vmem:[%s5 + $0x40] sm:$0xff] %vm85, %v293
  %310 = vst.msk [vmem:[%s5 + $0x48] sm:$0xff] %vm85, %v294
  %311 = vst.msk [vmem:[%s5 + $0x50] sm:$0xff] %vm85, %v295
  %312 = vst.msk [vmem:[%s5 + $0x58] sm:$0xff] %vm85, %v296
  %313 = vst.msk [vmem:[%s5 + $0x60] sm:$0xff] %vm85, %v297
  %314 = vst.msk [vmem:[%s5 + $0x68] sm:$0xff] %vm85, %v298
  %315 = vst.msk [vmem:[%s5 + $0x70] sm:$0xff] %vm85, %v299
  %316 = vst.msk [vmem:[%s5 + $0x78] sm:$0xff] %vm85, %v300
  // Predicated region
  $region22: #{pspnet_forward.69} parent=0 // pred_check
    _
  $region23: #{pspnet_forward.69} parent=0 // pred_check_branch
    %318 = sbr.rel (0) target = $region25
  $region24: #{pspnet_forward.69} parent=0 // pred_region
    _
  $region25: #{pspnet_forward.69} parent=0 // pred_fallthru
    _
  // Predicated region
  $region26: #{pspnet_forward.69} parent=0 // pred_check
    _
  $region27: #{pspnet_forward.69} parent=0 // pred_check_branch
    %320 = sbr.rel (0) target = $region29
  $region28: #{pspnet_forward.69} parent=0 // pred_region
    _
  $region29: #{pspnet_forward.69} parent=0 // pred_fallthru
    _

// kernel: pspnet_forward.76
$region0: #{pspnet_forward.76}
  #allocation0 [shape = 'u32[]', space=smem, size = 0x4, offset = 0x4, fixed_abs, tag = 'smem constant byte address 0x4 - core index']
  #allocation1 [shape = 'u32[144,128]{1,0:T(1,128)}', space=vmem, size = 0x12000, scoped, tag = 'internal scratch']
  %s0 = inlined_call_operand.vmem [shape: bf16[128,16], index: 0, kind: input, shape index: {}]
  %s1 = inlined_call_operand.vmem [shape: bf16[16,8], index: 1, kind: input, shape index: {}]
  %s2 = inlined_call_operand.vmem [shape: f32[1,8], index: 2, kind: input, shape index: {}]
  %s3 = inlined_call_operand.vmem [shape: f32[1,8], index: 3, kind: input, shape index: {}]
  %s4 = inlined_call_operand.vmem [shape: f32[128,8], index: 4, kind: output, shape index: {}]
  %s5 = sld [smem:[#allocation0]]
  $region26: #{pspnet_forward.76} parent=0
    _
  %s7 = ssub.s32 1, %s5
  %s8 = scalar_select 0, %s7, %s5
  // Predicated region
  $region2: #{pspnet_forward.76} parent=0 // pred_check
    _
  $region3: #{pspnet_forward.76} parent=0 // pred_check_branch
    %10 = sbr.rel (0) target = $region5
  $region4: #{pspnet_forward.76} parent=0 // pred_region
    _
  $region5: #{pspnet_forward.76} parent=0 // pred_fallthru
    _
  // Predicated region
  $region6: #{pspnet_forward.76} parent=0 // pred_check
    _
  $region7: #{pspnet_forward.76} parent=0 // pred_check_branch
    %12 = sbr.rel (0) target = $region9
  $region8: #{pspnet_forward.76} parent=0 // pred_region
    _
  $region9: #{pspnet_forward.76} parent=0 // pred_fallthru
    _
  // Predicated region
  $region10: #{pspnet_forward.76} parent=0 // pred_check
    _
  $region11: #{pspnet_forward.76} parent=0 // pred_check_branch
    %14 = sbr.rel (0) target = $region13
  $region12: #{pspnet_forward.76} parent=0 // pred_region
    _
  $region13: #{pspnet_forward.76} parent=0 // pred_fallthru
    _
  // Predicated region
  $region14: #{pspnet_forward.76} parent=0 // pred_check
    _
  $region15: #{pspnet_forward.76} parent=0 // pred_check_branch
    %16 = sbr.rel (0) target = $region17
  $region16: #{pspnet_forward.76} parent=0 // pred_region
    _
  $region17: #{pspnet_forward.76} parent=0 // pred_fallthru
    _
  %v18 = vld [vmem:[%s0] sm:$0xf]
  %v19 = vld [vmem:[%s0 + $0x4] sm:$0xf]
  %v20 = vld [vmem:[%s0 + $0x8] sm:$0xf]
  %v21 = vld [vmem:[%s0 + $0xc] sm:$0xf]
  %v22 = vld [vmem:[%s0 + $0x10] sm:$0xf]
  %v23 = vld [vmem:[%s0 + $0x14] sm:$0xf]
  %v24 = vld [vmem:[%s0 + $0x18] sm:$0xf]
  %v25 = vld [vmem:[%s0 + $0x1c] sm:$0xf]
  %v26 = vld [vmem:[%s0 + $0x20] sm:$0xf]
  %v27 = vld [vmem:[%s0 + $0x24] sm:$0xf]
  %v28 = vld [vmem:[%s0 + $0x28] sm:$0xf]
  %v29 = vld [vmem:[%s0 + $0x2c] sm:$0xf]
  %v30 = vld [vmem:[%s0 + $0x30] sm:$0xf]
  %v31 = vld [vmem:[%s0 + $0x34] sm:$0xf]
  %v32 = vld [vmem:[%s0 + $0x38] sm:$0xf]
  %v33 = vld [vmem:[%s0 + $0x3c] sm:$0xf]
  %v34 = vld [vmem:[%s1] sm:$0xf]
  %v35 = vld [vmem:[%s1 + $0x4] sm:$0xf]
  %v52 = vunpack.c.l.b16 %v18
  %v53 = vunpack.c.l.b16 %v19
  %v54 = vunpack.c.l.b16 %v20
  %v55 = vunpack.c.l.b16 %v21
  %v56 = vunpack.c.l.b16 %v22
  %v57 = vunpack.c.l.b16 %v23
  %v58 = vunpack.c.l.b16 %v24
  %v59 = vunpack.c.l.b16 %v25
  %v60 = vunpack.c.l.b16 %v26
  %v61 = vunpack.c.l.b16 %v27
  %v62 = vunpack.c.l.b16 %v28
  %v63 = vunpack.c.l.b16 %v29
  %v64 = vunpack.c.l.b16 %v30
  %v65 = vunpack.c.l.b16 %v31
  %v66 = vunpack.c.l.b16 %v32
  %v67 = vunpack.c.l.b16 %v33
  %v68 = vpack.c.b16 %v53, %v52
  %v69 = vpack.c.b16 %v55, %v54
  %v70 = vpack.c.b16 %v57, %v56
  %v71 = vpack.c.b16 %v59, %v58
  %v72 = vpack.c.b16 %v61, %v60
  %v73 = vpack.c.b16 %v63, %v62
  %v74 = vpack.c.b16 %v65, %v64
  %v75 = vpack.c.b16 %v67, %v66
  %v78 = vunpack.c.l.b16 %v34
  %v79 = vunpack.c.l.b16 %v35
  %v80 = vpack.c.b16 %v79, %v78
  %vm82 = vcmask 130048
  %v84 = vsel %vm82, %v68, 0
  %v87 = vsel %vm82, %v69, 0
  %v90 = vsel %vm82, %v70, 0
  %v93 = vsel %vm82, %v71, 0
  %v96 = vsel %vm82, %v72, 0
  %v99 = vsel %vm82, %v73, 0
  %v102 = vsel %vm82, %v74, 0
  %v105 = vsel %vm82, %v75, 0
  %107 = vmatprep.subr.bf16.mxu0 0
  %108 = vmatpush1.bf16.msra.mxu0 %v80
  %109 = vmatprep.subr.bf16.mxu0 0
  %110 = vmatpush1.bf16.msra.mxu0 0
  %111 = vmatprep.subr.bf16.mxu0 0
  %112 = vmatpush1.bf16.msra.mxu0 0
  %113 = vmatprep.subr.bf16.mxu0 0
  %114 = vmatpush1.bf16.msra.mxu0 0
  %115 = vmatprep.subr.bf16.mxu0 0
  %116 = vmatpush1.bf16.msra.mxu0 0
  %117 = vmatprep.subr.bf16.mxu0 0
  %118 = vmatpush1.bf16.msra.mxu0 0
  %119 = vmatprep.subr.bf16.mxu0 0
  %120 = vmatpush1.bf16.msra.mxu0 0
  %121 = vmatprep.subr.bf16.mxu0 0
  %122 = vmatpush1.bf16.msra.mxu0 0
  %123 = vmatprep.subr.bf16.mxu0 0
  %124 = vmatpush1.bf16.msra.mxu0 0
  %125 = vmatprep.subr.bf16.mxu0 0
  %126 = vmatpush1.bf16.msra.mxu0 0
  %127 = vmatprep.subr.bf16.mxu0 0
  %128 = vmatpush1.bf16.msra.mxu0 0
  %129 = vmatprep.subr.bf16.mxu0 0
  %130 = vmatpush1.bf16.msra.mxu0 0
  %131 = vmatprep.subr.bf16.mxu0 0
  %132 = vmatpush1.bf16.msra.mxu0 0
  %133 = vmatprep.subr.bf16.mxu0 0
  %134 = vmatpush1.bf16.msra.mxu0 0
  %135 = vmatprep.subr.bf16.mxu0 0
  %136 = vmatpush1.bf16.msra.mxu0 0
  %137 = vmatprep.subr.bf16.mxu0 0
  %138 = vmatpush1.bf16.msra.mxu0 0
  %139 = vmatprep.mubr.bf16.mxu0 0
  %140 = vmatmul.mubr.bf16.gmra.mrb[0].mxu0 %v84
  %v141 = vpop.f32.mrb[0].mxu0
  %v142 = vadd.f32 0.0, %v141
  %v143 = vpop.f32.mrb[0].mxu0
  %v144 = vpop.f32.mrb[0].mxu0
  %v145 = vadd.f32 0.0, %v144
  %v146 = vpop.f32.mrb[0].mxu0
  %147 = vmatprep.mubr.bf16.mxu0 0
  %148 = vmatmul.mubr.bf16.gmra.mrb[0].mxu0 %v87
  %v149 = vpop.f32.mrb[0].mxu0
  %v150 = vadd.f32 0.0, %v149
  %v151 = vpop.f32.mrb[0].mxu0
  %v152 = vpop.f32.mrb[0].mxu0
  %v153 = vadd.f32 0.0, %v152
  %v154 = vpop.f32.mrb[0].mxu0
  %155 = vmatprep.mubr.bf16.mxu0 0
  %156 = vmatmul.mubr.bf16.gmra.mrb[0].mxu0 %v90
  %v157 = vpop.f32.mrb[0].mxu0
  %v158 = vadd.f32 0.0, %v157
  %v159 = vpop.f32.mrb[0].mxu0
  %v160 = vpop.f32.mrb[0].mxu0
  %v161 = vadd.f32 0.0, %v160
  %v162 = vpop.f32.mrb[0].mxu0
  %163 = vmatprep.mubr.bf16.mxu0 0
  %164 = vmatmul.mubr.bf16.gmra.mrb[0].mxu0 %v93
  %v165 = vpop.f32.mrb[0].mxu0
  %v166 = vadd.f32 0.0, %v165
  %v167 = vpop.f32.mrb[0].mxu0
  %v168 = vpop.f32.mrb[0].mxu0
  %v169 = vadd.f32 0.0, %v168
  %v170 = vpop.f32.mrb[0].mxu0
  %171 = vmatprep.mubr.bf16.mxu0 0
  %172 = vmatmul.mubr.bf16.gmra.mrb[0].mxu0 %v96
  %v173 = vpop.f32.mrb[0].mxu0
  %v174 = vadd.f32 0.0, %v173
  %v175 = vpop.f32.mrb[0].mxu0
  %v176 = vpop.f32.mrb[0].mxu0
  %v177 = vadd.f32 0.0, %v176
  %v178 = vpop.f32.mrb[0].mxu0
  %179 = vmatprep.mubr.bf16.mxu0 0
  %180 = vmatmul.mubr.bf16.gmra.mrb[0].mxu0 %v99
  %v181 = vpop.f32.mrb[0].mxu0
  %v182 = vadd.f32 0.0, %v181
  %v183 = vpop.f32.mrb[0].mxu0
  %v184 = vpop.f32.mrb[0].mxu0
  %v185 = vadd.f32 0.0, %v184
  %v186 = vpop.f32.mrb[0].mxu0
  %187 = vmatprep.mubr.bf16.mxu0 0
  %188 = vmatmul.mubr.bf16.gmra.mrb[0].mxu0 %v102
  %v189 = vpop.f32.mrb[0].mxu0
  %v190 = vadd.f32 0.0, %v189
  %v191 = vpop.f32.mrb[0].mxu0
  %v192 = vpop.f32.mrb[0].mxu0
  %v193 = vadd.f32 0.0, %v192
  %v194 = vpop.f32.mrb[0].mxu0
  %195 = vmatprep.mubr.bf16.mxu0 0
  %196 = vmatmul.mubr.bf16.gmra.mrb[0].mxu0 %v105
  %v197 = vpop.f32.mrb[0].mxu0
  %v198 = vadd.f32 0.0, %v197
  %v199 = vpop.f32.mrb[0].mxu0
  %v200 = vpop.f32.mrb[0].mxu0
  %v201 = vadd.f32 0.0, %v200
  %v202 = vpop.f32.mrb[0].mxu0
  %203 = vdwg.mxu0
  %v204 = vld [vmem:[%s2] sm:$0x1]
  %v206 = vlaneseq
  %v207 = vshrl.u32 %v206, 7
  %v208 = vsub.s32 0, %v207
  %v209 = vrot.slane %v204, %v208
  %v211 = vmul.f32 %v142, %v209
  %v212 = vmul.f32 %v145, %v209
  %v213 = vmul.f32 %v150, %v209
  %v214 = vmul.f32 %v153, %v209
  %v215 = vmul.f32 %v158, %v209
  %v216 = vmul.f32 %v161, %v209
  %v217 = vmul.f32 %v166, %v209
  %v218 = vmul.f32 %v169, %v209
  %v219 = vmul.f32 %v174, %v209
  %v220 = vmul.f32 %v177, %v209
  %v221 = vmul.f32 %v182, %v209
  %v222 = vmul.f32 %v185, %v209
  %v223 = vmul.f32 %v190, %v209
  %v224 = vmul.f32 %v193, %v209
  %v225 = vmul.f32 %v198, %v209
  %v226 = vmul.f32 %v201, %v209
  %v227 = vld [vmem:[%s3] sm:$0x1]
  %v229 = vlaneseq
  %v230 = vshrl.u32 %v229, 7
  %v231 = vsub.s32 0, %v230
  %v232 = vrot.slane %v227, %v231
  %v234 = vadd.f32 %v211, %v232
  %v235 = vadd.f32 %v212, %v232
  %v236 = vadd.f32 %v213, %v232
  %v237 = vadd.f32 %v214, %v232
  %v238 = vadd.f32 %v215, %v232
  %v239 = vadd.f32 %v216, %v232
  %v240 = vadd.f32 %v217, %v232
  %v241 = vadd.f32 %v218, %v232
  %v242 = vadd.f32 %v219, %v232
  %v243 = vadd.f32 %v220, %v232
  %v244 = vadd.f32 %v221, %v232
  %v245 = vadd.f32 %v222, %v232
  %v246 = vadd.f32 %v223, %v232
  %v247 = vadd.f32 %v224, %v232
  %v248 = vadd.f32 %v225, %v232
  %v249 = vadd.f32 %v226, %v232
  %v250 = vmax.f32 %v234, 0.0
  %v251 = vmax.f32 %v235, 0.0
  %v252 = vmax.f32 %v236, 0.0
  %v253 = vmax.f32 %v237, 0.0
  %v254 = vmax.f32 %v238, 0.0
  %v255 = vmax.f32 %v239, 0.0
  %v256 = vmax.f32 %v240, 0.0
  %v257 = vmax.f32 %v241, 0.0
  %v258 = vmax.f32 %v242, 0.0
  %v259 = vmax.f32 %v243, 0.0
  %v260 = vmax.f32 %v244, 0.0
  %v261 = vmax.f32 %v245, 0.0
  %v262 = vmax.f32 %v246, 0.0
  %v263 = vmax.f32 %v247, 0.0
  %v264 = vmax.f32 %v248, 0.0
  %v265 = vmax.f32 %v249, 0.0
  %vm266 = vcmask 64512
  %267 = vst.msk [vmem:[%s4] sm:$0xff] %vm266, %v250
  %268 = vst.msk [vmem:[%s4 + $0x8] sm:$0xff] %vm266, %v251
  %269 = vst.msk [vmem:[%s4 + $0x10] sm:$0xff] %vm266, %v252
  %270 = vst.msk [vmem:[%s4 + $0x18] sm:$0xff] %vm266, %v253
  %271 = vst.msk [vmem:[%s4 + $0x20] sm:$0xff] %vm266, %v254
  %272 = vst.msk [vmem:[%s4 + $0x28] sm:$0xff] %vm266, %v255
  %273 = vst.msk [vmem:[%s4 + $0x30] sm:$0xff] %vm266, %v256
  %274 = vst.msk [vmem:[%s4 + $0x38] sm:$0xff] %vm266, %v257
  %275 = vst.msk [vmem:[%s4 + $0x40] sm:$0xff] %vm266, %v258
  %276 = vst.msk [vmem:[%s4 + $0x48] sm:$0xff] %vm266, %v259
  %277 = vst.msk [vmem:[%s4 + $0x50] sm:$0xff] %vm266, %v260
  %278 = vst.msk [vmem:[%s4 + $0x58] sm:$0xff] %vm266, %v261
  %279 = vst.msk [vmem:[%s4 + $0x60] sm:$0xff] %vm266, %v262
  %280 = vst.msk [vmem:[%s4 + $0x68] sm:$0xff] %vm266, %v263
  %281 = vst.msk [vmem:[%s4 + $0x70] sm:$0xff] %vm266, %v264
  %282 = vst.msk [vmem:[%s4 + $0x78] sm:$0xff] %vm266, %v265
  // Predicated region
  $region18: #{pspnet_forward.76} parent=0 // pred_check
    _
  $region19: #{pspnet_forward.76} parent=0 // pred_check_branch
    %284 = sbr.rel (0) target = $region21
  $region20: #{pspnet_forward.76} parent=0 // pred_region
    _
  $region21: #{pspnet_forward.76} parent=0 // pred_fallthru
    _
  // Predicated region
  $region22: #{pspnet_forward.76} parent=0 // pred_check
    _
  $region23: #{pspnet_forward.76} parent=0 // pred_check_branch
    %286 = sbr.rel (0) target = $region25
  $region24: #{pspnet_forward.76} parent=0 // pred_region
    _
  $region25: #{pspnet_forward.76} parent=0 // pred_fallthru
    _

// kernel: pspnet_forward.77
$region0: #{pspnet_forward.77}
  #allocation0 [shape = 'u32[]', space=smem, size = 0x4, offset = 0x4, fixed_abs, tag = 'smem constant byte address 0x4 - core index']
  #allocation1 [shape = 'u32[144,128]{1,0:T(1,128)}', space=vmem, size = 0x12000, scoped, tag = 'internal scratch']
  %s0 = inlined_call_operand.vmem [shape: bf16[32,80], index: 0, kind: input, shape index: {}]
  %s1 = inlined_call_operand.vmem [shape: bf16[80,8], index: 1, kind: input, shape index: {}]
  %s2 = inlined_call_operand.vmem [shape: f32[1,8], index: 2, kind: input, shape index: {}]
  %s3 = inlined_call_operand.vmem [shape: f32[1,8], index: 3, kind: input, shape index: {}]
  %s4 = inlined_call_operand.vmem [shape: f32[32,8], index: 4, kind: output, shape index: {}]
  %s5 = sld [smem:[#allocation0]]
  $region26: #{pspnet_forward.77} parent=0
    _
  %s7 = ssub.s32 1, %s5
  %s8 = scalar_select 0, %s7, %s5
  // Predicated region
  $region2: #{pspnet_forward.77} parent=0 // pred_check
    _
  $region3: #{pspnet_forward.77} parent=0 // pred_check_branch
    %10 = sbr.rel (0) target = $region5
  $region4: #{pspnet_forward.77} parent=0 // pred_region
    _
  $region5: #{pspnet_forward.77} parent=0 // pred_fallthru
    _
  // Predicated region
  $region6: #{pspnet_forward.77} parent=0 // pred_check
    _
  $region7: #{pspnet_forward.77} parent=0 // pred_check_branch
    %12 = sbr.rel (0) target = $region9
  $region8: #{pspnet_forward.77} parent=0 // pred_region
    _
  $region9: #{pspnet_forward.77} parent=0 // pred_fallthru
    _
  // Predicated region
  $region10: #{pspnet_forward.77} parent=0 // pred_check
    _
  $region11: #{pspnet_forward.77} parent=0 // pred_check_branch
    %14 = sbr.rel (0) target = $region13
  $region12: #{pspnet_forward.77} parent=0 // pred_region
    _
  $region13: #{pspnet_forward.77} parent=0 // pred_fallthru
    _
  // Predicated region
  $region14: #{pspnet_forward.77} parent=0 // pred_check
    _
  $region15: #{pspnet_forward.77} parent=0 // pred_check_branch
    %16 = sbr.rel (0) target = $region17
  $region16: #{pspnet_forward.77} parent=0 // pred_region
    _
  $region17: #{pspnet_forward.77} parent=0 // pred_fallthru
    _
  %v18 = vld [vmem:[%s0] sm:$0xf]
  %v19 = vld [vmem:[%s0 + $0x4] sm:$0xf]
  %v20 = vld [vmem:[%s0 + $0x8] sm:$0xf]
  %v21 = vld [vmem:[%s0 + $0xc] sm:$0xf]
  %v22 = vld [vmem:[%s1] sm:$0xf]
  %v23 = vld [vmem:[%s1 + $0x4] sm:$0xf]
  %v24 = vld [vmem:[%s1 + $0x8] sm:$0xf]
  %v25 = vld [vmem:[%s1 + $0xc] sm:$0xf]
  %v26 = vld [vmem:[%s1 + $0x10] sm:$0xf]
  %v27 = vld [vmem:[%s1 + $0x14] sm:$0xf]
  %v28 = vld [vmem:[%s1 + $0x18] sm:$0xf]
  %v29 = vld [vmem:[%s1 + $0x1c] sm:$0xf]
  %v30 = vld [vmem:[%s1 + $0x20] sm:$0xf]
  %v31 = vld [vmem:[%s1 + $0x24] sm:$0xf]
  %v36 = vunpack.c.l.b16 %v18
  %v37 = vunpack.c.l.b16 %v19
  %v38 = vunpack.c.l.b16 %v20
  %v39 = vunpack.c.l.b16 %v21
  %v40 = vpack.c.b16 %v37, %v36
  %v41 = vpack.c.b16 %v39, %v38
  %v52 = vunpack.c.l.b16 %v22
  %v53 = vunpack.c.l.b16 %v23
  %v54 = vunpack.c.l.b16 %v24
  %v55 = vunpack.c.l.b16 %v25
  %v56 = vunpack.c.l.b16 %v26
  %v57 = vunpack.c.l.b16 %v27
  %v58 = vunpack.c.l.b16 %v28
  %v59 = vunpack.c.l.b16 %v29
  %v60 = vunpack.c.l.b16 %v30
  %v61 = vunpack.c.l.b16 %v31
  %v62 = vpack.c.b16 %v53, %v52
  %v63 = vpack.c.b16 %v55, %v54
  %v64 = vpack.c.b16 %v57, %v56
  %v65 = vpack.c.b16 %v59, %v58
  %v66 = vpack.c.b16 %v61, %v60
  %vm72 = vcmask 654336
  %v74 = vsel %vm72, %v40, 0
  %v77 = vsel %vm72, %v41, 0
  %79 = vmatprep.subr.bf16.mxu0 0
  %80 = vmatpush1.bf16.msra.mxu0 %v62
  %81 = vmatprep.subr.bf16.mxu0 0
  %82 = vmatpush1.bf16.msra.mxu0 %v63
  %83 = vmatprep.subr.bf16.mxu0 0
  %84 = vmatpush1.bf16.msra.mxu0 %v64
  %85 = vmatprep.subr.bf16.mxu0 0
  %86 = vmatpush1.bf16.msra.mxu0 %v65
  %87 = vmatprep.subr.bf16.mxu0 0
  %88 = vmatpush1.bf16.msra.mxu0 %v66
  %89 = vmatprep.subr.bf16.mxu0 0
  %90 = vmatpush1.bf16.msra.mxu0 0
  %91 = vmatprep.subr.bf16.mxu0 0
  %92 = vmatpush1.bf16.msra.mxu0 0
  %93 = vmatprep.subr.bf16.mxu0 0
  %94 = vmatpush1.bf16.msra.mxu0 0
  %95 = vmatprep.subr.bf16.mxu0 0
  %96 = vmatpush1.bf16.msra.mxu0 0
  %97 = vmatprep.subr.bf16.mxu0 0
  %98 = vmatpush1.bf16.msra.mxu0 0
  %99 = vmatprep.subr.bf16.mxu0 0
  %100 = vmatpush1.bf16.msra.mxu0 0
  %101 = vmatprep.subr.bf16.mxu0 0
  %102 = vmatpush1.bf16.msra.mxu0 0
  %103 = vmatprep.subr.bf16.mxu0 0
  %104 = vmatpush1.bf16.msra.mxu0 0
  %105 = vmatprep.subr.bf16.mxu0 0
  %106 = vmatpush1.bf16.msra.mxu0 0
  %107 = vmatprep.subr.bf16.mxu0 0
  %108 = vmatpush1.bf16.msra.mxu0 0
  %109 = vmatprep.subr.bf16.mxu0 0
  %110 = vmatpush1.bf16.msra.mxu0 0
  %111 = vmatprep.mubr.bf16.mxu0 0
  %112 = vmatmul.mubr.bf16.gmra.mrb[0].mxu0 %v74
  %v113 = vpop.f32.mrb[0].mxu0
  %v114 = vadd.f32 0.0, %v113
  %v115 = vpop.f32.mrb[0].mxu0
  %v116 = vpop.f32.mrb[0].mxu0
  %v117 = vadd.f32 0.0, %v116
  %v118 = vpop.f32.mrb[0].mxu0
  %119 = vmatprep.mubr.bf16.mxu0 0
  %120 = vmatmul.mubr.bf16.gmra.mrb[0].mxu0 %v77
  %v121 = vpop.f32.mrb[0].mxu0
  %v122 = vadd.f32 0.0, %v121
  %v123 = vpop.f32.mrb[0].mxu0
  %v124 = vpop.f32.mrb[0].mxu0
  %v125 = vadd.f32 0.0, %v124
  %v126 = vpop.f32.mrb[0].mxu0
  %127 = vdwg.mxu0
  %v128 = vld [vmem:[%s2] sm:$0x1]
  %v130 = vlaneseq
  %v131 = vshrl.u32 %v130, 7
  %v132 = vsub.s32 0, %v131
  %v133 = vrot.slane %v128, %v132
  %v135 = vmul.f32 %v114, %v133
  %v136 = vmul.f32 %v117, %v133
  %v137 = vmul.f32 %v122, %v133
  %v138 = vmul.f32 %v125, %v133
  %v139 = vld [vmem:[%s3] sm:$0x1]
  %v141 = vlaneseq
  %v142 = vshrl.u32 %v141, 7
  %v143 = vsub.s32 0, %v142
  %v144 = vrot.slane %v139, %v143
  %v146 = vadd.f32 %v135, %v144
  %v147 = vadd.f32 %v136, %v144
  %v148 = vadd.f32 %v137, %v144
  %v149 = vadd.f32 %v138, %v144
  %v150 = vmax.f32 %v146, 0.0
  %v151 = vmax.f32 %v147, 0.0
  %v152 = vmax.f32 %v148, 0.0
  %v153 = vmax.f32 %v149, 0.0
  %vm154 = vcmask 64512
  %155 = vst.msk [vmem:[%s4] sm:$0xff] %vm154, %v150
  %156 = vst.msk [vmem:[%s4 + $0x8] sm:$0xff] %vm154, %v151
  %157 = vst.msk [vmem:[%s4 + $0x10] sm:$0xff] %vm154, %v152
  %158 = vst.msk [vmem:[%s4 + $0x18] sm:$0xff] %vm154, %v153
  // Predicated region
  $region18: #{pspnet_forward.77} parent=0 // pred_check
    _
  $region19: #{pspnet_forward.77} parent=0 // pred_check_branch
    %160 = sbr.rel (0) target = $region21
  $region20: #{pspnet_forward.77} parent=0 // pred_region
    _
  $region21: #{pspnet_forward.77} parent=0 // pred_fallthru
    _
  // Predicated region
  $region22: #{pspnet_forward.77} parent=0 // pred_check
    _
  $region23: #{pspnet_forward.77} parent=0 // pred_check_branch
    %162 = sbr.rel (0) target = $region25
  $region24: #{pspnet_forward.77} parent=0 // pred_region
    _
  $region25: #{pspnet_forward.77} parent=0 // pred_fallthru
    _

// kernel: pspnet_forward.79
$region0: #{pspnet_forward.79}
  #allocation0 [shape = 'u32[]', space=smem, size = 0x4, offset = 0x4, fixed_abs, tag = 'smem constant byte address 0x4 - core index']
  #allocation1 [shape = 'u32[144,128]{1,0:T(1,128)}', space=vmem, size = 0x12000, scoped, tag = 'internal scratch']
  %s0 = inlined_call_operand.vmem [shape: bf16[32,16], index: 0, kind: input, shape index: {}]
  %s1 = inlined_call_operand.vmem [shape: bf16[16,32], index: 1, kind: input, shape index: {}]
  %s2 = inlined_call_operand.vmem [shape: f32[1,32], index: 2, kind: input, shape index: {}]
  %s3 = inlined_call_operand.vmem [shape: f32[1,32], index: 3, kind: input, shape index: {}]
  %s4 = inlined_call_operand.vmem [shape: f32[32,32], index: 4, kind: input, shape index: {}]
  %s5 = inlined_call_operand.vmem [shape: f32[32,32], index: 5, kind: output, shape index: {}]
  %s6 = sld [smem:[#allocation0]]
  $region30: #{pspnet_forward.79} parent=0
    _
  %s8 = ssub.s32 1, %s6
  %s9 = scalar_select 0, %s8, %s6
  // Predicated region
  $region2: #{pspnet_forward.79} parent=0 // pred_check
    _
  $region3: #{pspnet_forward.79} parent=0 // pred_check_branch
    %11 = sbr.rel (0) target = $region5
  $region4: #{pspnet_forward.79} parent=0 // pred_region
    _
  $region5: #{pspnet_forward.79} parent=0 // pred_fallthru
    _
  // Predicated region
  $region6: #{pspnet_forward.79} parent=0 // pred_check
    _
  $region7: #{pspnet_forward.79} parent=0 // pred_check_branch
    %13 = sbr.rel (0) target = $region9
  $region8: #{pspnet_forward.79} parent=0 // pred_region
    _
  $region9: #{pspnet_forward.79} parent=0 // pred_fallthru
    _
  // Predicated region
  $region10: #{pspnet_forward.79} parent=0 // pred_check
    _
  $region11: #{pspnet_forward.79} parent=0 // pred_check_branch
    %15 = sbr.rel (0) target = $region13
  $region12: #{pspnet_forward.79} parent=0 // pred_region
    _
  $region13: #{pspnet_forward.79} parent=0 // pred_fallthru
    _
  // Predicated region
  $region14: #{pspnet_forward.79} parent=0 // pred_check
    _
  $region15: #{pspnet_forward.79} parent=0 // pred_check_branch
    %17 = sbr.rel (0) target = $region17
  $region16: #{pspnet_forward.79} parent=0 // pred_region
    _
  $region17: #{pspnet_forward.79} parent=0 // pred_fallthru
    _
  // Predicated region
  $region18: #{pspnet_forward.79} parent=0 // pred_check
    _
  $region19: #{pspnet_forward.79} parent=0 // pred_check_branch
    %19 = sbr.rel (0) target = $region21
  $region20: #{pspnet_forward.79} parent=0 // pred_region
    _
  $region21: #{pspnet_forward.79} parent=0 // pred_fallthru
    _
  %v21 = vld [vmem:[%s0] sm:$0xf]
  %v22 = vld [vmem:[%s0 + $0x4] sm:$0xf]
  %v23 = vld [vmem:[%s0 + $0x8] sm:$0xf]
  %v24 = vld [vmem:[%s0 + $0xc] sm:$0xf]
  %v25 = vld [vmem:[%s1] sm:$0xf]
  %v26 = vld [vmem:[%s1 + $0x4] sm:$0xf]
  %v31 = vunpack.c.l.b16 %v21
  %v32 = vunpack.c.l.b16 %v22
  %v33 = vunpack.c.l.b16 %v23
  %v34 = vunpack.c.l.b16 %v24
  %v35 = vpack.c.b16 %v32, %v31
  %v36 = vpack.c.b16 %v34, %v33
  %v39 = vunpack.c.l.b16 %v25
  %v40 = vunpack.c.l.b16 %v26
  %v41 = vpack.c.b16 %v40, %v39
  %vm43 = vcmask 130048
  %v45 = vsel %vm43, %v35, 0
  %v48 = vsel %vm43, %v36, 0
  %50 = vmatprep.subr.bf16.mxu0 0
  %51 = vmatpush1.bf16.msra.mxu0 %v41
  %52 = vmatprep.subr.bf16.mxu0 0
  %53 = vmatpush1.bf16.msra.mxu0 0
  %54 = vmatprep.subr.bf16.mxu0 0
  %55 = vmatpush1.bf16.msra.mxu0 0
  %56 = vmatprep.subr.bf16.mxu0 0
  %57 = vmatpush1.bf16.msra.mxu0 0
  %58 = vmatprep.subr.bf16.mxu0 0
  %59 = vmatpush1.bf16.msra.mxu0 0
  %60 = vmatprep.subr.bf16.mxu0 0
  %61 = vmatpush1.bf16.msra.mxu0 0
  %62 = vmatprep.subr.bf16.mxu0 0
  %63 = vmatpush1.bf16.msra.mxu0 0
  %64 = vmatprep.subr.bf16.mxu0 0
  %65 = vmatpush1.bf16.msra.mxu0 0
  %66 = vmatprep.subr.bf16.mxu0 0
  %67 = vmatpush1.bf16.msra.mxu0 0
  %68 = vmatprep.subr.bf16.mxu0 0
  %69 = vmatpush1.bf16.msra.mxu0 0
  %70 = vmatprep.subr.bf16.mxu0 0
  %71 = vmatpush1.bf16.msra.mxu0 0
  %72 = vmatprep.subr.bf16.mxu0 0
  %73 = vmatpush1.bf16.msra.mxu0 0
  %74 = vmatprep.subr.bf16.mxu0 0
  %75 = vmatpush1.bf16.msra.mxu0 0
  %76 = vmatprep.subr.bf16.mxu0 0
  %77 = vmatpush1.bf16.msra.mxu0 0
  %78 = vmatprep.subr.bf16.mxu0 0
  %79 = vmatpush1.bf16.msra.mxu0 0
  %80 = vmatprep.subr.bf16.mxu0 0
  %81 = vmatpush1.bf16.msra.mxu0 0
  %82 = vmatprep.mubr.bf16.mxu0 0
  %83 = vmatmul.mubr.bf16.gmra.mrb[0].mxu0 %v45
  %v84 = vpop.f32.mrb[0].mxu0
  %v85 = vadd.f32 0.0, %v84
  %v86 = vpop.f32.mrb[0].mxu0
  %v87 = vpop.f32.mrb[0].mxu0
  %v88 = vadd.f32 0.0, %v87
  %v89 = vpop.f32.mrb[0].mxu0
  %90 = vmatprep.mubr.bf16.mxu0 0
  %91 = vmatmul.mubr.bf16.gmra.mrb[0].mxu0 %v48
  %v92 = vpop.f32.mrb[0].mxu0
  %v93 = vadd.f32 0.0, %v92
  %v94 = vpop.f32.mrb[0].mxu0
  %v95 = vpop.f32.mrb[0].mxu0
  %v96 = vadd.f32 0.0, %v95
  %v97 = vpop.f32.mrb[0].mxu0
  %98 = vdwg.mxu0
  %v99 = vld [vmem:[%s2] sm:$0x1]
  %v101 = vlaneseq
  %v102 = vshrl.u32 %v101, 7
  %v103 = vsub.s32 0, %v102
  %v104 = vrot.slane %v99, %v103
  %v106 = vmul.f32 %v85, %v104
  %v107 = vmul.f32 %v88, %v104
  %v108 = vmul.f32 %v93, %v104
  %v109 = vmul.f32 %v96, %v104
  %v110 = vld [vmem:[%s3] sm:$0x1]
  %v112 = vlaneseq
  %v113 = vshrl.u32 %v112, 7
  %v114 = vsub.s32 0, %v113
  %v115 = vrot.slane %v110, %v114
  %v117 = vadd.f32 %v106, %v115
  %v118 = vadd.f32 %v107, %v115
  %v119 = vadd.f32 %v108, %v115
  %v120 = vadd.f32 %v109, %v115
  %v121 = vld [vmem:[%s4] sm:$0xff]
  %v122 = vld [vmem:[%s4 + $0x8] sm:$0xff]
  %v123 = vld [vmem:[%s4 + $0x10] sm:$0xff]
  %v124 = vld [vmem:[%s4 + $0x18] sm:$0xff]
  %v125 = vadd.f32 %v117, %v121
  %v126 = vadd.f32 %v118, %v122
  %v127 = vadd.f32 %v119, %v123
  %v128 = vadd.f32 %v120, %v124
  %v129 = vmax.f32 %v125, 0.0
  %v130 = vmax.f32 %v126, 0.0
  %v131 = vmax.f32 %v127, 0.0
  %v132 = vmax.f32 %v128, 0.0
  %vm133 = vcmask 261120
  %134 = vst.msk [vmem:[%s5] sm:$0xff] %vm133, %v129
  %135 = vst.msk [vmem:[%s5 + $0x8] sm:$0xff] %vm133, %v130
  %136 = vst.msk [vmem:[%s5 + $0x10] sm:$0xff] %vm133, %v131
  %137 = vst.msk [vmem:[%s5 + $0x18] sm:$0xff] %vm133, %v132
  // Predicated region
  $region22: #{pspnet_forward.79} parent=0 // pred_check
    _
  $region23: #{pspnet_forward.79} parent=0 // pred_check_branch
    %139 = sbr.rel (0) target = $region25
  $region24: #{pspnet_forward.79} parent=0 // pred_region
    _
  $region25: #{pspnet_forward.79} parent=0 // pred_fallthru
    _
  // Predicated region
  $region26: #{pspnet_forward.79} parent=0 // pred_check
    _
  $region27: #{pspnet_forward.79} parent=0 // pred_check_branch
    %141 = sbr.rel (0) target = $region29
  $region28: #{pspnet_forward.79} parent=0 // pred_region
    _
  $region29: #{pspnet_forward.79} parent=0 // pred_fallthru
    _

// kernel: pspnet_forward.78
$region0: #{pspnet_forward.78}
  #allocation0 [shape = 'u32[]', space=smem, size = 0x4, offset = 0x4, fixed_abs, tag = 'smem constant byte address 0x4 - core index']
  #allocation1 [shape = 'u32[144,128]{1,0:T(1,128)}', space=vmem, size = 0x12000, scoped, tag = 'internal scratch']
  %s0 = inlined_call_operand.vmem [shape: bf16[32,16], index: 0, kind: input, shape index: {}]
  %s1 = inlined_call_operand.vmem [shape: bf16[16,32], index: 1, kind: input, shape index: {}]
  %s2 = inlined_call_operand.vmem [shape: f32[1,32], index: 2, kind: input, shape index: {}]
  %s3 = inlined_call_operand.vmem [shape: f32[1,32], index: 3, kind: input, shape index: {}]
  %s4 = inlined_call_operand.vmem [shape: f32[32,32], index: 4, kind: output, shape index: {}]
  %s5 = sld [smem:[#allocation0]]
  $region26: #{pspnet_forward.78} parent=0
    _
  %s7 = ssub.s32 1, %s5
  %s8 = scalar_select 0, %s7, %s5
  // Predicated region
  $region2: #{pspnet_forward.78} parent=0 // pred_check
    _
  $region3: #{pspnet_forward.78} parent=0 // pred_check_branch
    %10 = sbr.rel (0) target = $region5
  $region4: #{pspnet_forward.78} parent=0 // pred_region
    _
  $region5: #{pspnet_forward.78} parent=0 // pred_fallthru
    _
  // Predicated region
  $region6: #{pspnet_forward.78} parent=0 // pred_check
    _
  $region7: #{pspnet_forward.78} parent=0 // pred_check_branch
    %12 = sbr.rel (0) target = $region9
  $region8: #{pspnet_forward.78} parent=0 // pred_region
    _
  $region9: #{pspnet_forward.78} parent=0 // pred_fallthru
    _
  // Predicated region
  $region10: #{pspnet_forward.78} parent=0 // pred_check
    _
  $region11: #{pspnet_forward.78} parent=0 // pred_check_branch
    %14 = sbr.rel (0) target = $region13
  $region12: #{pspnet_forward.78} parent=0 // pred_region
    _
  $region13: #{pspnet_forward.78} parent=0 // pred_fallthru
    _
  // Predicated region
  $region14: #{pspnet_forward.78} parent=0 // pred_check
    _
  $region15: #{pspnet_forward.78} parent=0 // pred_check_branch
    %16 = sbr.rel (0) target = $region17
  $region16: #{pspnet_forward.78} parent=0 // pred_region
    _
  $region17: #{pspnet_forward.78} parent=0 // pred_fallthru
    _
  %v18 = vld [vmem:[%s0] sm:$0xf]
  %v19 = vld [vmem:[%s0 + $0x4] sm:$0xf]
  %v20 = vld [vmem:[%s0 + $0x8] sm:$0xf]
  %v21 = vld [vmem:[%s0 + $0xc] sm:$0xf]
  %v22 = vld [vmem:[%s1] sm:$0xf]
  %v23 = vld [vmem:[%s1 + $0x4] sm:$0xf]
  %v28 = vunpack.c.l.b16 %v18
  %v29 = vunpack.c.l.b16 %v19
  %v30 = vunpack.c.l.b16 %v20
  %v31 = vunpack.c.l.b16 %v21
  %v32 = vpack.c.b16 %v29, %v28
  %v33 = vpack.c.b16 %v31, %v30
  %v36 = vunpack.c.l.b16 %v22
  %v37 = vunpack.c.l.b16 %v23
  %v38 = vpack.c.b16 %v37, %v36
  %vm40 = vcmask 130048
  %v42 = vsel %vm40, %v32, 0
  %v45 = vsel %vm40, %v33, 0
  %47 = vmatprep.subr.bf16.mxu0 0
  %48 = vmatpush1.bf16.msra.mxu0 %v38
  %49 = vmatprep.subr.bf16.mxu0 0
  %50 = vmatpush1.bf16.msra.mxu0 0
  %51 = vmatprep.subr.bf16.mxu0 0
  %52 = vmatpush1.bf16.msra.mxu0 0
  %53 = vmatprep.subr.bf16.mxu0 0
  %54 = vmatpush1.bf16.msra.mxu0 0
  %55 = vmatprep.subr.bf16.mxu0 0
  %56 = vmatpush1.bf16.msra.mxu0 0
  %57 = vmatprep.subr.bf16.mxu0 0
  %58 = vmatpush1.bf16.msra.mxu0 0
  %59 = vmatprep.subr.bf16.mxu0 0
  %60 = vmatpush1.bf16.msra.mxu0 0
  %61 = vmatprep.subr.bf16.mxu0 0
  %62 = vmatpush1.bf16.msra.mxu0 0
  %63 = vmatprep.subr.bf16.mxu0 0
  %64 = vmatpush1.bf16.msra.mxu0 0
  %65 = vmatprep.subr.bf16.mxu0 0
  %66 = vmatpush1.bf16.msra.mxu0 0
  %67 = vmatprep.subr.bf16.mxu0 0
  %68 = vmatpush1.bf16.msra.mxu0 0
  %69 = vmatprep.subr.bf16.mxu0 0
  %70 = vmatpush1.bf16.msra.mxu0 0
  %71 = vmatprep.subr.bf16.mxu0 0
  %72 = vmatpush1.bf16.msra.mxu0 0
  %73 = vmatprep.subr.bf16.mxu0 0
  %74 = vmatpush1.bf16.msra.mxu0 0
  %75 = vmatprep.subr.bf16.mxu0 0
  %76 = vmatpush1.bf16.msra.mxu0 0
  %77 = vmatprep.subr.bf16.mxu0 0
  %78 = vmatpush1.bf16.msra.mxu0 0
  %79 = vmatprep.mubr.bf16.mxu0 0
  %80 = vmatmul.mubr.bf16.gmra.mrb[0].mxu0 %v42
  %v81 = vpop.f32.mrb[0].mxu0
  %v82 = vadd.f32 0.0, %v81
  %v83 = vpop.f32.mrb[0].mxu0
  %v84 = vpop.f32.mrb[0].mxu0
  %v85 = vadd.f32 0.0, %v84
  %v86 = vpop.f32.mrb[0].mxu0
  %87 = vmatprep.mubr.bf16.mxu0 0
  %88 = vmatmul.mubr.bf16.gmra.mrb[0].mxu0 %v45
  %v89 = vpop.f32.mrb[0].mxu0
  %v90 = vadd.f32 0.0, %v89
  %v91 = vpop.f32.mrb[0].mxu0
  %v92 = vpop.f32.mrb[0].mxu0
  %v93 = vadd.f32 0.0, %v92
  %v94 = vpop.f32.mrb[0].mxu0
  %95 = vdwg.mxu0
  %v96 = vld [vmem:[%s2] sm:$0x1]
  %v98 = vlaneseq
  %v99 = vshrl.u32 %v98, 7
  %v100 = vsub.s32 0, %v99
  %v101 = vrot.slane %v96, %v100
  %v103 = vmul.f32 %v82, %v101
  %v104 = vmul.f32 %v85, %v101
  %v105 = vmul.f32 %v90, %v101
  %v106 = vmul.f32 %v93, %v101
  %v107 = vld [vmem:[%s3] sm:$0x1]
  %v109 = vlaneseq
  %v110 = vshrl.u32 %v109, 7
  %v111 = vsub.s32 0, %v110
  %v112 = vrot.slane %v107, %v111
  %v114 = vadd.f32 %v103, %v112
  %v115 = vadd.f32 %v104, %v112
  %v116 = vadd.f32 %v105, %v112
  %v117 = vadd.f32 %v106, %v112
  %vm118 = vcmask 261120
  %119 = vst.msk [vmem:[%s4] sm:$0xff] %vm118, %v114
  %120 = vst.msk [vmem:[%s4 + $0x8] sm:$0xff] %vm118, %v115
  %121 = vst.msk [vmem:[%s4 + $0x10] sm:$0xff] %vm118, %v116
  %122 = vst.msk [vmem:[%s4 + $0x18] sm:$0xff] %vm118, %v117
  // Predicated region
  $region18: #{pspnet_forward.78} parent=0 // pred_check
    _
  $region19: #{pspnet_forward.78} parent=0 // pred_check_branch
    %124 = sbr.rel (0) target = $region21
  $region20: #{pspnet_forward.78} parent=0 // pred_region
    _
  $region21: #{pspnet_forward.78} parent=0 // pred_fallthru
    _
  // Predicated region
  $region22: #{pspnet_forward.78} parent=0 // pred_check
    _
  $region23: #{pspnet_forward.78} parent=0 // pred_check_branch
    %126 = sbr.rel (0) target = $region25
  $region24: #{pspnet_forward.78} parent=0 // pred_region
    _
  $region25: #{pspnet_forward.78} parent=0 // pred_fallthru
    _

// kernel: pspnet_forward.80
$region0: #{pspnet_forward.80}
  #allocation0 [shape = 'u32[]', space=smem, size = 0x4, offset = 0x4, fixed_abs, tag = 'smem constant byte address 0x4 - core index']
  #allocation1 [shape = 'u32[144,128]{1,0:T(1,128)}', space=vmem, size = 0x12000, scoped, tag = 'internal scratch']
  %s0 = inlined_call_operand.vmem [shape: bf16[32,32], index: 0, kind: input, shape index: {}]
  %s1 = inlined_call_operand.vmem [shape: bf16[32,8], index: 1, kind: input, shape index: {}]
  %s2 = inlined_call_operand.vmem [shape: f32[1,8], index: 2, kind: input, shape index: {}]
  %s3 = inlined_call_operand.vmem [shape: f32[1,8], index: 3, kind: input, shape index: {}]
  %s4 = inlined_call_operand.vmem [shape: f32[32,8], index: 4, kind: output, shape index: {}]
  %s5 = sld [smem:[#allocation0]]
  $region26: #{pspnet_forward.80} parent=0
    _
  %s7 = ssub.s32 1, %s5
  %s8 = scalar_select 0, %s7, %s5
  // Predicated region
  $region2: #{pspnet_forward.80} parent=0 // pred_check
    _
  $region3: #{pspnet_forward.80} parent=0 // pred_check_branch
    %10 = sbr.rel (0) target = $region5
  $region4: #{pspnet_forward.80} parent=0 // pred_region
    _
  $region5: #{pspnet_forward.80} parent=0 // pred_fallthru
    _
  // Predicated region
  $region6: #{pspnet_forward.80} parent=0 // pred_check
    _
  $region7: #{pspnet_forward.80} parent=0 // pred_check_branch
    %12 = sbr.rel (0) target = $region9
  $region8: #{pspnet_forward.80} parent=0 // pred_region
    _
  $region9: #{pspnet_forward.80} parent=0 // pred_fallthru
    _
  // Predicated region
  $region10: #{pspnet_forward.80} parent=0 // pred_check
    _
  $region11: #{pspnet_forward.80} parent=0 // pred_check_branch
    %14 = sbr.rel (0) target = $region13
  $region12: #{pspnet_forward.80} parent=0 // pred_region
    _
  $region13: #{pspnet_forward.80} parent=0 // pred_fallthru
    _
  // Predicated region
  $region14: #{pspnet_forward.80} parent=0 // pred_check
    _
  $region15: #{pspnet_forward.80} parent=0 // pred_check_branch
    %16 = sbr.rel (0) target = $region17
  $region16: #{pspnet_forward.80} parent=0 // pred_region
    _
  $region17: #{pspnet_forward.80} parent=0 // pred_fallthru
    _
  %v18 = vld [vmem:[%s0] sm:$0xf]
  %v19 = vld [vmem:[%s0 + $0x4] sm:$0xf]
  %v20 = vld [vmem:[%s0 + $0x8] sm:$0xf]
  %v21 = vld [vmem:[%s0 + $0xc] sm:$0xf]
  %v22 = vld [vmem:[%s1] sm:$0xf]
  %v23 = vld [vmem:[%s1 + $0x4] sm:$0xf]
  %v24 = vld [vmem:[%s1 + $0x8] sm:$0xf]
  %v25 = vld [vmem:[%s1 + $0xc] sm:$0xf]
  %v30 = vunpack.c.l.b16 %v18
  %v31 = vunpack.c.l.b16 %v19
  %v32 = vunpack.c.l.b16 %v20
  %v33 = vunpack.c.l.b16 %v21
  %v34 = vpack.c.b16 %v31, %v30
  %v35 = vpack.c.b16 %v33, %v32
  %v40 = vunpack.c.l.b16 %v22
  %v41 = vunpack.c.l.b16 %v23
  %v42 = vunpack.c.l.b16 %v24
  %v43 = vunpack.c.l.b16 %v25
  %v44 = vpack.c.b16 %v41, %v40
  %v45 = vpack.c.b16 %v43, %v42
  %vm48 = vcmask 261120
  %v50 = vsel %vm48, %v34, 0
  %v53 = vsel %vm48, %v35, 0
  %55 = vmatprep.subr.bf16.mxu0 0
  %56 = vmatpush1.bf16.msra.mxu0 %v44
  %57 = vmatprep.subr.bf16.mxu0 0
  %58 = vmatpush1.bf16.msra.mxu0 %v45
  %59 = vmatprep.subr.bf16.mxu0 0
  %60 = vmatpush1.bf16.msra.mxu0 0
  %61 = vmatprep.subr.bf16.mxu0 0
  %62 = vmatpush1.bf16.msra.mxu0 0
  %63 = vmatprep.subr.bf16.mxu0 0
  %64 = vmatpush1.bf16.msra.mxu0 0
  %65 = vmatprep.subr.bf16.mxu0 0
  %66 = vmatpush1.bf16.msra.mxu0 0
  %67 = vmatprep.subr.bf16.mxu0 0
  %68 = vmatpush1.bf16.msra.mxu0 0
  %69 = vmatprep.subr.bf16.mxu0 0
  %70 = vmatpush1.bf16.msra.mxu0 0
  %71 = vmatprep.subr.bf16.mxu0 0
  %72 = vmatpush1.bf16.msra.mxu0 0
  %73 = vmatprep.subr.bf16.mxu0 0
  %74 = vmatpush1.bf16.msra.mxu0 0
  %75 = vmatprep.subr.bf16.mxu0 0
  %76 = vmatpush1.bf16.msra.mxu0 0
  %77 = vmatprep.subr.bf16.mxu0 0
  %78 = vmatpush1.bf16.msra.mxu0 0
  %79 = vmatprep.subr.bf16.mxu0 0
  %80 = vmatpush1.bf16.msra.mxu0 0
  %81 = vmatprep.subr.bf16.mxu0 0
  %82 = vmatpush1.bf16.msra.mxu0 0
  %83 = vmatprep.subr.bf16.mxu0 0
  %84 = vmatpush1.bf16.msra.mxu0 0
  %85 = vmatprep.subr.bf16.mxu0 0
  %86 = vmatpush1.bf16.msra.mxu0 0
  %87 = vmatprep.mubr.bf16.mxu0 0
  %88 = vmatmul.mubr.bf16.gmra.mrb[0].mxu0 %v50
  %v89 = vpop.f32.mrb[0].mxu0
  %v90 = vadd.f32 0.0, %v89
  %v91 = vpop.f32.mrb[0].mxu0
  %v92 = vpop.f32.mrb[0].mxu0
  %v93 = vadd.f32 0.0, %v92
  %v94 = vpop.f32.mrb[0].mxu0
  %95 = vmatprep.mubr.bf16.mxu0 0
  %96 = vmatmul.mubr.bf16.gmra.mrb[0].mxu0 %v53
  %v97 = vpop.f32.mrb[0].mxu0
  %v98 = vadd.f32 0.0, %v97
  %v99 = vpop.f32.mrb[0].mxu0
  %v100 = vpop.f32.mrb[0].mxu0
  %v101 = vadd.f32 0.0, %v100
  %v102 = vpop.f32.mrb[0].mxu0
  %103 = vdwg.mxu0
  %v104 = vld [vmem:[%s2] sm:$0x1]
  %v106 = vlaneseq
  %v107 = vshrl.u32 %v106, 7
  %v108 = vsub.s32 0, %v107
  %v109 = vrot.slane %v104, %v108
  %v111 = vmul.f32 %v90, %v109
  %v112 = vmul.f32 %v93, %v109
  %v113 = vmul.f32 %v98, %v109
  %v114 = vmul.f32 %v101, %v109
  %v115 = vld [vmem:[%s3] sm:$0x1]
  %v117 = vlaneseq
  %v118 = vshrl.u32 %v117, 7
  %v119 = vsub.s32 0, %v118
  %v120 = vrot.slane %v115, %v119
  %v122 = vadd.f32 %v111, %v120
  %v123 = vadd.f32 %v112, %v120
  %v124 = vadd.f32 %v113, %v120
  %v125 = vadd.f32 %v114, %v120
  %v126 = vmax.f32 %v122, 0.0
  %v127 = vmax.f32 %v123, 0.0
  %v128 = vmax.f32 %v124, 0.0
  %v129 = vmax.f32 %v125, 0.0
  %vm130 = vcmask 64512
  %131 = vst.msk [vmem:[%s4] sm:$0xff] %vm130, %v126
  %132 = vst.msk [vmem:[%s4 + $0x8] sm:$0xff] %vm130, %v127
  %133 = vst.msk [vmem:[%s4 + $0x10] sm:$0xff] %vm130, %v128
  %134 = vst.msk [vmem:[%s4 + $0x18] sm:$0xff] %vm130, %v129
  // Predicated region
  $region18: #{pspnet_forward.80} parent=0 // pred_check
    _
  $region19: #{pspnet_forward.80} parent=0 // pred_check_branch
    %136 = sbr.rel (0) target = $region21
  $region20: #{pspnet_forward.80} parent=0 // pred_region
    _
  $region21: #{pspnet_forward.80} parent=0 // pred_fallthru
    _
  // Predicated region
  $region22: #{pspnet_forward.80} parent=0 // pred_check
    _
  $region23: #{pspnet_forward.80} parent=0 // pred_check_branch
    %138 = sbr.rel (0) target = $region25
  $region24: #{pspnet_forward.80} parent=0 // pred_region
    _
  $region25: #{pspnet_forward.80} parent=0 // pred_fallthru
    _

// kernel: pspnet_forward.89
$region0: #{pspnet_forward.89}
  #allocation0 [shape = 'u32[]', space=smem, size = 0x4, offset = 0x4, fixed_abs, tag = 'smem constant byte address 0x4 - core index']
  #allocation1 [shape = 'u32[144,128]{1,0:T(1,128)}', space=vmem, size = 0x12000, scoped, tag = 'internal scratch']
  %s0 = inlined_call_operand.vmem [shape: bf16[32,32], index: 0, kind: input, shape index: {}]
  %s1 = inlined_call_operand.vmem [shape: bf16[32,16], index: 1, kind: input, shape index: {}]
  %s2 = inlined_call_operand.vmem [shape: f32[1,16], index: 2, kind: input, shape index: {}]
  %s3 = inlined_call_operand.vmem [shape: f32[1,16], index: 3, kind: input, shape index: {}]
  %s4 = inlined_call_operand.vmem [shape: f32[32,16], index: 4, kind: output, shape index: {}]
  %s5 = sld [smem:[#allocation0]]
  $region26: #{pspnet_forward.89} parent=0
    _
  %s7 = ssub.s32 1, %s5
  %s8 = scalar_select 0, %s7, %s5
  // Predicated region
  $region2: #{pspnet_forward.89} parent=0 // pred_check
    _
  $region3: #{pspnet_forward.89} parent=0 // pred_check_branch
    %10 = sbr.rel (0) target = $region5
  $region4: #{pspnet_forward.89} parent=0 // pred_region
    _
  $region5: #{pspnet_forward.89} parent=0 // pred_fallthru
    _
  // Predicated region
  $region6: #{pspnet_forward.89} parent=0 // pred_check
    _
  $region7: #{pspnet_forward.89} parent=0 // pred_check_branch
    %12 = sbr.rel (0) target = $region9
  $region8: #{pspnet_forward.89} parent=0 // pred_region
    _
  $region9: #{pspnet_forward.89} parent=0 // pred_fallthru
    _
  // Predicated region
  $region10: #{pspnet_forward.89} parent=0 // pred_check
    _
  $region11: #{pspnet_forward.89} parent=0 // pred_check_branch
    %14 = sbr.rel (0) target = $region13
  $region12: #{pspnet_forward.89} parent=0 // pred_region
    _
  $region13: #{pspnet_forward.89} parent=0 // pred_fallthru
    _
  // Predicated region
  $region14: #{pspnet_forward.89} parent=0 // pred_check
    _
  $region15: #{pspnet_forward.89} parent=0 // pred_check_branch
    %16 = sbr.rel (0) target = $region17
  $region16: #{pspnet_forward.89} parent=0 // pred_region
    _
  $region17: #{pspnet_forward.89} parent=0 // pred_fallthru
    _
  %v18 = vld [vmem:[%s0] sm:$0xf]
  %v19 = vld [vmem:[%s0 + $0x4] sm:$0xf]
  %v20 = vld [vmem:[%s0 + $0x8] sm:$0xf]
  %v21 = vld [vmem:[%s0 + $0xc] sm:$0xf]
  %v22 = vld [vmem:[%s1] sm:$0xf]
  %v23 = vld [vmem:[%s1 + $0x4] sm:$0xf]
  %v24 = vld [vmem:[%s1 + $0x8] sm:$0xf]
  %v25 = vld [vmem:[%s1 + $0xc] sm:$0xf]
  %v30 = vunpack.c.l.b16 %v18
  %v31 = vunpack.c.l.b16 %v19
  %v32 = vunpack.c.l.b16 %v20
  %v33 = vunpack.c.l.b16 %v21
  %v34 = vpack.c.b16 %v31, %v30
  %v35 = vpack.c.b16 %v33, %v32
  %v40 = vunpack.c.l.b16 %v22
  %v41 = vunpack.c.l.b16 %v23
  %v42 = vunpack.c.l.b16 %v24
  %v43 = vunpack.c.l.b16 %v25
  %v44 = vpack.c.b16 %v41, %v40
  %v45 = vpack.c.b16 %v43, %v42
  %vm48 = vcmask 261120
  %v50 = vsel %vm48, %v34, 0
  %v53 = vsel %vm48, %v35, 0
  %55 = vmatprep.subr.bf16.mxu0 0
  %56 = vmatpush1.bf16.msra.mxu0 %v44
  %57 = vmatprep.subr.bf16.mxu0 0
  %58 = vmatpush1.bf16.msra.mxu0 %v45
  %59 = vmatprep.subr.bf16.mxu0 0
  %60 = vmatpush1.bf16.msra.mxu0 0
  %61 = vmatprep.subr.bf16.mxu0 0
  %62 = vmatpush1.bf16.msra.mxu0 0
  %63 = vmatprep.subr.bf16.mxu0 0
  %64 = vmatpush1.bf16.msra.mxu0 0
  %65 = vmatprep.subr.bf16.mxu0 0
  %66 = vmatpush1.bf16.msra.mxu0 0
  %67 = vmatprep.subr.bf16.mxu0 0
  %68 = vmatpush1.bf16.msra.mxu0 0
  %69 = vmatprep.subr.bf16.mxu0 0
  %70 = vmatpush1.bf16.msra.mxu0 0
  %71 = vmatprep.subr.bf16.mxu0 0
  %72 = vmatpush1.bf16.msra.mxu0 0
  %73 = vmatprep.subr.bf16.mxu0 0
  %74 = vmatpush1.bf16.msra.mxu0 0
  %75 = vmatprep.subr.bf16.mxu0 0
  %76 = vmatpush1.bf16.msra.mxu0 0
  %77 = vmatprep.subr.bf16.mxu0 0
  %78 = vmatpush1.bf16.msra.mxu0 0
  %79 = vmatprep.subr.bf16.mxu0 0
  %80 = vmatpush1.bf16.msra.mxu0 0
  %81 = vmatprep.subr.bf16.mxu0 0
  %82 = vmatpush1.bf16.msra.mxu0 0
  %83 = vmatprep.subr.bf16.mxu0 0
  %84 = vmatpush1.bf16.msra.mxu0 0
  %85 = vmatprep.subr.bf16.mxu0 0
  %86 = vmatpush1.bf16.msra.mxu0 0
  %87 = vmatprep.mubr.bf16.mxu0 0
  %88 = vmatmul.mubr.bf16.gmra.mrb[0].mxu0 %v50
  %v89 = vpop.f32.mrb[0].mxu0
  %v90 = vadd.f32 0.0, %v89
  %v91 = vpop.f32.mrb[0].mxu0
  %v92 = vpop.f32.mrb[0].mxu0
  %v93 = vadd.f32 0.0, %v92
  %v94 = vpop.f32.mrb[0].mxu0
  %95 = vmatprep.mubr.bf16.mxu0 0
  %96 = vmatmul.mubr.bf16.gmra.mrb[0].mxu0 %v53
  %v97 = vpop.f32.mrb[0].mxu0
  %v98 = vadd.f32 0.0, %v97
  %v99 = vpop.f32.mrb[0].mxu0
  %v100 = vpop.f32.mrb[0].mxu0
  %v101 = vadd.f32 0.0, %v100
  %v102 = vpop.f32.mrb[0].mxu0
  %103 = vdwg.mxu0
  %v104 = vld [vmem:[%s2] sm:$0x1]
  %v106 = vlaneseq
  %v107 = vshrl.u32 %v106, 7
  %v108 = vsub.s32 0, %v107
  %v109 = vrot.slane %v104, %v108
  %v111 = vmul.f32 %v90, %v109
  %v112 = vmul.f32 %v93, %v109
  %v113 = vmul.f32 %v98, %v109
  %v114 = vmul.f32 %v101, %v109
  %v115 = vld [vmem:[%s3] sm:$0x1]
  %v117 = vlaneseq
  %v118 = vshrl.u32 %v117, 7
  %v119 = vsub.s32 0, %v118
  %v120 = vrot.slane %v115, %v119
  %v122 = vadd.f32 %v111, %v120
  %v123 = vadd.f32 %v112, %v120
  %v124 = vadd.f32 %v113, %v120
  %v125 = vadd.f32 %v114, %v120
  %v126 = vmax.f32 %v122, 0.0
  %v127 = vmax.f32 %v123, 0.0
  %v128 = vmax.f32 %v124, 0.0
  %v129 = vmax.f32 %v125, 0.0
  %vm130 = vcmask 130048
  %131 = vst.msk [vmem:[%s4] sm:$0xff] %vm130, %v126
  %132 = vst.msk [vmem:[%s4 + $0x8] sm:$0xff] %vm130, %v127
  %133 = vst.msk [vmem:[%s4 + $0x10] sm:$0xff] %vm130, %v128
  %134 = vst.msk [vmem:[%s4 + $0x18] sm:$0xff] %vm130, %v129
  // Predicated region
  $region18: #{pspnet_forward.89} parent=0 // pred_check
    _
  $region19: #{pspnet_forward.89} parent=0 // pred_check_branch
    %136 = sbr.rel (0) target = $region21
  $region20: #{pspnet_forward.89} parent=0 // pred_region
    _
  $region21: #{pspnet_forward.89} parent=0 // pred_fallthru
    _
  // Predicated region
  $region22: #{pspnet_forward.89} parent=0 // pred_check
    _
  $region23: #{pspnet_forward.89} parent=0 // pred_check_branch
    %138 = sbr.rel (0) target = $region25
  $region24: #{pspnet_forward.89} parent=0 // pred_region
    _
  $region25: #{pspnet_forward.89} parent=0 // pred_fallthru
    _

// kernel: pspnet_forward.92
$region0: #{pspnet_forward.92}
  #allocation0 [shape = 'u32[]', space=smem, size = 0x4, offset = 0x4, fixed_abs, tag = 'smem constant byte address 0x4 - core index']
  #allocation1 [shape = 'u32[144,128]{1,0:T(1,128)}', space=vmem, size = 0x12000, scoped, tag = 'internal scratch']
  %s0 = inlined_call_operand.vmem [shape: bf16[32,16], index: 0, kind: input, shape index: {}]
  %s1 = inlined_call_operand.vmem [shape: bf16[16,64], index: 1, kind: input, shape index: {}]
  %s2 = inlined_call_operand.vmem [shape: f32[1,64], index: 2, kind: input, shape index: {}]
  %s3 = inlined_call_operand.vmem [shape: f32[1,64], index: 3, kind: input, shape index: {}]
  %s4 = inlined_call_operand.vmem [shape: f32[32,64], index: 4, kind: input, shape index: {}]
  %s5 = inlined_call_operand.vmem [shape: f32[32,64], index: 5, kind: output, shape index: {}]
  %s6 = sld [smem:[#allocation0]]
  $region30: #{pspnet_forward.92} parent=0
    _
  %s8 = ssub.s32 1, %s6
  %s9 = scalar_select 0, %s8, %s6
  // Predicated region
  $region2: #{pspnet_forward.92} parent=0 // pred_check
    _
  $region3: #{pspnet_forward.92} parent=0 // pred_check_branch
    %11 = sbr.rel (0) target = $region5
  $region4: #{pspnet_forward.92} parent=0 // pred_region
    _
  $region5: #{pspnet_forward.92} parent=0 // pred_fallthru
    _
  // Predicated region
  $region6: #{pspnet_forward.92} parent=0 // pred_check
    _
  $region7: #{pspnet_forward.92} parent=0 // pred_check_branch
    %13 = sbr.rel (0) target = $region9
  $region8: #{pspnet_forward.92} parent=0 // pred_region
    _
  $region9: #{pspnet_forward.92} parent=0 // pred_fallthru
    _
  // Predicated region
  $region10: #{pspnet_forward.92} parent=0 // pred_check
    _
  $region11: #{pspnet_forward.92} parent=0 // pred_check_branch
    %15 = sbr.rel (0) target = $region13
  $region12: #{pspnet_forward.92} parent=0 // pred_region
    _
  $region13: #{pspnet_forward.92} parent=0 // pred_fallthru
    _
  // Predicated region
  $region14: #{pspnet_forward.92} parent=0 // pred_check
    _
  $region15: #{pspnet_forward.92} parent=0 // pred_check_branch
    %17 = sbr.rel (0) target = $region17
  $region16: #{pspnet_forward.92} parent=0 // pred_region
    _
  $region17: #{pspnet_forward.92} parent=0 // pred_fallthru
    _
  // Predicated region
  $region18: #{pspnet_forward.92} parent=0 // pred_check
    _
  $region19: #{pspnet_forward.92} parent=0 // pred_check_branch
    %19 = sbr.rel (0) target = $region21
  $region20: #{pspnet_forward.92} parent=0 // pred_region
    _
  $region21: #{pspnet_forward.92} parent=0 // pred_fallthru
    _
  %v21 = vld [vmem:[%s0] sm:$0xf]
  %v22 = vld [vmem:[%s0 + $0x4] sm:$0xf]
  %v23 = vld [vmem:[%s0 + $0x8] sm:$0xf]
  %v24 = vld [vmem:[%s0 + $0xc] sm:$0xf]
  %v25 = vld [vmem:[%s1] sm:$0xf]
  %v26 = vld [vmem:[%s1 + $0x4] sm:$0xf]
  %v31 = vunpack.c.l.b16 %v21
  %v32 = vunpack.c.l.b16 %v22
  %v33 = vunpack.c.l.b16 %v23
  %v34 = vunpack.c.l.b16 %v24
  %v35 = vpack.c.b16 %v32, %v31
  %v36 = vpack.c.b16 %v34, %v33
  %v39 = vunpack.c.l.b16 %v25
  %v40 = vunpack.c.l.b16 %v26
  %v41 = vpack.c.b16 %v40, %v39
  %vm43 = vcmask 130048
  %v45 = vsel %vm43, %v35, 0
  %v48 = vsel %vm43, %v36, 0
  %50 = vmatprep.subr.bf16.mxu0 0
  %51 = vmatpush1.bf16.msra.mxu0 %v41
  %52 = vmatprep.subr.bf16.mxu0 0
  %53 = vmatpush1.bf16.msra.mxu0 0
  %54 = vmatprep.subr.bf16.mxu0 0
  %55 = vmatpush1.bf16.msra.mxu0 0
  %56 = vmatprep.subr.bf16.mxu0 0
  %57 = vmatpush1.bf16.msra.mxu0 0
  %58 = vmatprep.subr.bf16.mxu0 0
  %59 = vmatpush1.bf16.msra.mxu0 0
  %60 = vmatprep.subr.bf16.mxu0 0
  %61 = vmatpush1.bf16.msra.mxu0 0
  %62 = vmatprep.subr.bf16.mxu0 0
  %63 = vmatpush1.bf16.msra.mxu0 0
  %64 = vmatprep.subr.bf16.mxu0 0
  %65 = vmatpush1.bf16.msra.mxu0 0
  %66 = vmatprep.subr.bf16.mxu0 0
  %67 = vmatpush1.bf16.msra.mxu0 0
  %68 = vmatprep.subr.bf16.mxu0 0
  %69 = vmatpush1.bf16.msra.mxu0 0
  %70 = vmatprep.subr.bf16.mxu0 0
  %71 = vmatpush1.bf16.msra.mxu0 0
  %72 = vmatprep.subr.bf16.mxu0 0
  %73 = vmatpush1.bf16.msra.mxu0 0
  %74 = vmatprep.subr.bf16.mxu0 0
  %75 = vmatpush1.bf16.msra.mxu0 0
  %76 = vmatprep.subr.bf16.mxu0 0
  %77 = vmatpush1.bf16.msra.mxu0 0
  %78 = vmatprep.subr.bf16.mxu0 0
  %79 = vmatpush1.bf16.msra.mxu0 0
  %80 = vmatprep.subr.bf16.mxu0 0
  %81 = vmatpush1.bf16.msra.mxu0 0
  %82 = vmatprep.mubr.bf16.mxu0 0
  %83 = vmatmul.mubr.bf16.gmra.mrb[0].mxu0 %v45
  %v84 = vpop.f32.mrb[0].mxu0
  %v85 = vadd.f32 0.0, %v84
  %v86 = vpop.f32.mrb[0].mxu0
  %v87 = vpop.f32.mrb[0].mxu0
  %v88 = vadd.f32 0.0, %v87
  %v89 = vpop.f32.mrb[0].mxu0
  %90 = vmatprep.mubr.bf16.mxu0 0
  %91 = vmatmul.mubr.bf16.gmra.mrb[0].mxu0 %v48
  %v92 = vpop.f32.mrb[0].mxu0
  %v93 = vadd.f32 0.0, %v92
  %v94 = vpop.f32.mrb[0].mxu0
  %v95 = vpop.f32.mrb[0].mxu0
  %v96 = vadd.f32 0.0, %v95
  %v97 = vpop.f32.mrb[0].mxu0
  %98 = vdwg.mxu0
  %v99 = vld [vmem:[%s2] sm:$0x1]
  %v101 = vlaneseq
  %v102 = vshrl.u32 %v101, 7
  %v103 = vsub.s32 0, %v102
  %v104 = vrot.slane %v99, %v103
  %v106 = vmul.f32 %v85, %v104
  %v107 = vmul.f32 %v88, %v104
  %v108 = vmul.f32 %v93, %v104
  %v109 = vmul.f32 %v96, %v104
  %v110 = vld [vmem:[%s3] sm:$0x1]
  %v112 = vlaneseq
  %v113 = vshrl.u32 %v112, 7
  %v114 = vsub.s32 0, %v113
  %v115 = vrot.slane %v110, %v114
  %v117 = vadd.f32 %v106, %v115
  %v118 = vadd.f32 %v107, %v115
  %v119 = vadd.f32 %v108, %v115
  %v120 = vadd.f32 %v109, %v115
  %v121 = vld [vmem:[%s4] sm:$0xff]
  %v122 = vld [vmem:[%s4 + $0x8] sm:$0xff]
  %v123 = vld [vmem:[%s4 + $0x10] sm:$0xff]
  %v124 = vld [vmem:[%s4 + $0x18] sm:$0xff]
  %v125 = vadd.f32 %v117, %v121
  %v126 = vadd.f32 %v118, %v122
  %v127 = vadd.f32 %v119, %v123
  %v128 = vadd.f32 %v120, %v124
  %v129 = vmax.f32 %v125, 0.0
  %v130 = vmax.f32 %v126, 0.0
  %v131 = vmax.f32 %v127, 0.0
  %v132 = vmax.f32 %v128, 0.0
  %vm133 = vcmask 523264
  %134 = vst.msk [vmem:[%s5] sm:$0xff] %vm133, %v129
  %135 = vst.msk [vmem:[%s5 + $0x8] sm:$0xff] %vm133, %v130
  %136 = vst.msk [vmem:[%s5 + $0x10] sm:$0xff] %vm133, %v131
  %137 = vst.msk [vmem:[%s5 + $0x18] sm:$0xff] %vm133, %v132
  // Predicated region
  $region22: #{pspnet_forward.92} parent=0 // pred_check
    _
  $region23: #{pspnet_forward.92} parent=0 // pred_check_branch
    %139 = sbr.rel (0) target = $region25
  $region24: #{pspnet_forward.92} parent=0 // pred_region
    _
  $region25: #{pspnet_forward.92} parent=0 // pred_fallthru
    _
  // Predicated region
  $region26: #{pspnet_forward.92} parent=0 // pred_check
    _
  $region27: #{pspnet_forward.92} parent=0 // pred_check_branch
    %141 = sbr.rel (0) target = $region29
  $region28: #{pspnet_forward.92} parent=0 // pred_region
    _
  $region29: #{pspnet_forward.92} parent=0 // pred_fallthru
    _

// kernel: pspnet_forward.90
$region0: #{pspnet_forward.90}
  #allocation0 [shape = 'u32[]', space=smem, size = 0x4, offset = 0x4, fixed_abs, tag = 'smem constant byte address 0x4 - core index']
  #allocation1 [shape = 'u32[144,128]{1,0:T(1,128)}', space=vmem, size = 0x12000, scoped, tag = 'internal scratch']
  %s0 = inlined_call_operand.vmem [shape: bf16[32,144], index: 0, kind: input, shape index: {}]
  %s1 = inlined_call_operand.vmem [shape: bf16[144,16], index: 1, kind: input, shape index: {}]
  %s2 = inlined_call_operand.vmem [shape: f32[1,16], index: 2, kind: input, shape index: {}]
  %s3 = inlined_call_operand.vmem [shape: f32[1,16], index: 3, kind: input, shape index: {}]
  %s4 = inlined_call_operand.vmem [shape: f32[32,16], index: 4, kind: output, shape index: {}]
  %s5 = sld [smem:[#allocation0]]
  $region26: #{pspnet_forward.90} parent=0
    _
  %s7 = ssub.s32 1, %s5
  %s8 = scalar_select 0, %s7, %s5
  // Predicated region
  $region2: #{pspnet_forward.90} parent=0 // pred_check
    _
  $region3: #{pspnet_forward.90} parent=0 // pred_check_branch
    %10 = sbr.rel (0) target = $region5
  $region4: #{pspnet_forward.90} parent=0 // pred_region
    _
  $region5: #{pspnet_forward.90} parent=0 // pred_fallthru
    _
  // Predicated region
  $region6: #{pspnet_forward.90} parent=0 // pred_check
    _
  $region7: #{pspnet_forward.90} parent=0 // pred_check_branch
    %12 = sbr.rel (0) target = $region9
  $region8: #{pspnet_forward.90} parent=0 // pred_region
    _
  $region9: #{pspnet_forward.90} parent=0 // pred_fallthru
    _
  // Predicated region
  $region10: #{pspnet_forward.90} parent=0 // pred_check
    _
  $region11: #{pspnet_forward.90} parent=0 // pred_check_branch
    %14 = sbr.rel (0) target = $region13
  $region12: #{pspnet_forward.90} parent=0 // pred_region
    _
  $region13: #{pspnet_forward.90} parent=0 // pred_fallthru
    _
  // Predicated region
  $region14: #{pspnet_forward.90} parent=0 // pred_check
    _
  $region15: #{pspnet_forward.90} parent=0 // pred_check_branch
    %16 = sbr.rel (0) target = $region17
  $region16: #{pspnet_forward.90} parent=0 // pred_region
    _
  $region17: #{pspnet_forward.90} parent=0 // pred_fallthru
    _
  %v18 = vld [vmem:[%s0] sm:$0xff]
  %v19 = vld [vmem:[%s0 + $0x8] sm:$0xff]
  %v20 = vld [vmem:[%s0 + $0x10] sm:$0xff]
  %v21 = vld [vmem:[%s0 + $0x18] sm:$0xff]
  %v22 = vld [vmem:[%s1] sm:$0xf]
  %v23 = vld [vmem:[%s1 + $0x4] sm:$0xf]
  %v24 = vld [vmem:[%s1 + $0x8] sm:$0xf]
  %v25 = vld [vmem:[%s1 + $0xc] sm:$0xf]
  %v26 = vld [vmem:[%s1 + $0x10] sm:$0xf]
  %v27 = vld [vmem:[%s1 + $0x14] sm:$0xf]
  %v28 = vld [vmem:[%s1 + $0x18] sm:$0xf]
  %v29 = vld [vmem:[%s1 + $0x1c] sm:$0xf]
  %v30 = vld [vmem:[%s1 + $0x20] sm:$0xf]
  %v31 = vld [vmem:[%s1 + $0x24] sm:$0xf]
  %v32 = vld [vmem:[%s1 + $0x28] sm:$0xf]
  %v33 = vld [vmem:[%s1 + $0x2c] sm:$0xf]
  %v34 = vld [vmem:[%s1 + $0x30] sm:$0xf]
  %v35 = vld [vmem:[%s1 + $0x34] sm:$0xf]
  %v36 = vld [vmem:[%s1 + $0x38] sm:$0xf]
  %v37 = vld [vmem:[%s1 + $0x3c] sm:$0xf]
  %v38 = vld [vmem:[%s1 + $0x40] sm:$0xf]
  %v39 = vld [vmem:[%s1 + $0x44] sm:$0xf]
  %v44 = vunpack.c.l.b16 %v18
  %v45 = vunpack.c.h.b16 %v18
  %v46 = vunpack.c.l.b16 %v19
  %v47 = vunpack.c.h.b16 %v19
  %v48 = vunpack.c.l.b16 %v20
  %v49 = vunpack.c.h.b16 %v20
  %v50 = vunpack.c.l.b16 %v21
  %v51 = vunpack.c.h.b16 %v21
  %v52 = vpack.c.b16 %v46, %v44
  %v53 = vpack.c.b16 %v47, %v45
  %v54 = vpack.c.b16 %v50, %v48
  %v55 = vpack.c.b16 %v51, %v49
  %v76 = vunpack.c.l.b16 %v22
  %v77 = vunpack.c.l.b16 %v23
  %v78 = vunpack.c.l.b16 %v24
  %v79 = vunpack.c.l.b16 %v25
  %v80 = vunpack.c.l.b16 %v26
  %v81 = vunpack.c.l.b16 %v27
  %v82 = vunpack.c.l.b16 %v28
  %v83 = vunpack.c.l.b16 %v29
  %v84 = vunpack.c.l.b16 %v30
  %v85 = vunpack.c.l.b16 %v31
  %v86 = vunpack.c.l.b16 %v32
  %v87 = vunpack.c.l.b16 %v33
  %v88 = vunpack.c.l.b16 %v34
  %v89 = vunpack.c.l.b16 %v35
  %v90 = vunpack.c.l.b16 %v36
  %v91 = vunpack.c.l.b16 %v37
  %v92 = vunpack.c.l.b16 %v38
  %v93 = vunpack.c.l.b16 %v39
  %v94 = vpack.c.b16 %v77, %v76
  %v95 = vpack.c.b16 %v79, %v78
  %v96 = vpack.c.b16 %v81, %v80
  %v97 = vpack.c.b16 %v83, %v82
  %v98 = vpack.c.b16 %v85, %v84
  %v99 = vpack.c.b16 %v87, %v86
  %v100 = vpack.c.b16 %v89, %v88
  %v101 = vpack.c.b16 %v91, %v90
  %v102 = vpack.c.b16 %v93, %v92
  %vm112 = vcmask 130048
  %v114 = vsel %vm112, %v53, 0
  %v117 = vsel %vm112, %v55, 0
  %119 = vmatprep.subr.bf16.mxu0 0
  %120 = vmatpush1.bf16.msra.mxu0 %v94
  %121 = vmatprep.subr.bf16.mxu0 0
  %122 = vmatpush1.bf16.msra.mxu0 %v95
  %123 = vmatprep.subr.bf16.mxu0 0
  %124 = vmatpush1.bf16.msra.mxu0 %v96
  %125 = vmatprep.subr.bf16.mxu0 0
  %126 = vmatpush1.bf16.msra.mxu0 %v97
  %127 = vmatprep.subr.bf16.mxu0 0
  %128 = vmatpush1.bf16.msra.mxu0 %v98
  %129 = vmatprep.subr.bf16.mxu0 0
  %130 = vmatpush1.bf16.msra.mxu0 %v99
  %131 = vmatprep.subr.bf16.mxu0 0
  %132 = vmatpush1.bf16.msra.mxu0 %v100
  %133 = vmatprep.subr.bf16.mxu0 0
  %134 = vmatpush1.bf16.msra.mxu0 %v101
  %135 = vmatprep.subr.bf16.mxu0 0
  %136 = vmatpush1.bf16.msra.mxu0 %v102
  %137 = vmatprep.subr.bf16.mxu0 0
  %138 = vmatpush1.bf16.msra.mxu0 0
  %139 = vmatprep.subr.bf16.mxu0 0
  %140 = vmatpush1.bf16.msra.mxu0 0
  %141 = vmatprep.subr.bf16.mxu0 0
  %142 = vmatpush1.bf16.msra.mxu0 0
  %143 = vmatprep.subr.bf16.mxu0 0
  %144 = vmatpush1.bf16.msra.mxu0 0
  %145 = vmatprep.subr.bf16.mxu0 0
  %146 = vmatpush1.bf16.msra.mxu0 0
  %147 = vmatprep.subr.bf16.mxu0 0
  %148 = vmatpush1.bf16.msra.mxu0 0
  %149 = vmatprep.subr.bf16.mxu0 0
  %150 = vmatpush1.bf16.msra.mxu0 0
  %151 = vmatprep.mubr.bf16.mxu0 %v114
  %152 = vmatmul.mubr.bf16.gmra.mrb[0].mxu0 %v52
  %v153 = vpop.f32.mrb[0].mxu0
  %v154 = vadd.f32 0.0, %v153
  %v155 = vpop.f32.mrb[0].mxu0
  %v156 = vpop.f32.mrb[0].mxu0
  %v157 = vadd.f32 0.0, %v156
  %v158 = vpop.f32.mrb[0].mxu0
  %159 = vmatprep.mubr.bf16.mxu0 %v117
  %160 = vmatmul.mubr.bf16.gmra.mrb[0].mxu0 %v54
  %v161 = vpop.f32.mrb[0].mxu0
  %v162 = vadd.f32 0.0, %v161
  %v163 = vpop.f32.mrb[0].mxu0
  %v164 = vpop.f32.mrb[0].mxu0
  %v165 = vadd.f32 0.0, %v164
  %v166 = vpop.f32.mrb[0].mxu0
  %167 = vdwg.mxu0
  %v168 = vld [vmem:[%s2] sm:$0x1]
  %v170 = vlaneseq
  %v171 = vshrl.u32 %v170, 7
  %v172 = vsub.s32 0, %v171
  %v173 = vrot.slane %v168, %v172
  %v175 = vmul.f32 %v154, %v173
  %v176 = vmul.f32 %v157, %v173
  %v177 = vmul.f32 %v162, %v173
  %v178 = vmul.f32 %v165, %v173
  %v179 = vld [vmem:[%s3] sm:$0x1]
  %v181 = vlaneseq
  %v182 = vshrl.u32 %v181, 7
  %v183 = vsub.s32 0, %v182
  %v184 = vrot.slane %v179, %v183
  %v186 = vadd.f32 %v175, %v184
  %v187 = vadd.f32 %v176, %v184
  %v188 = vadd.f32 %v177, %v184
  %v189 = vadd.f32 %v178, %v184
  %v190 = vmax.f32 %v186, 0.0
  %v191 = vmax.f32 %v187, 0.0
  %v192 = vmax.f32 %v188, 0.0
  %v193 = vmax.f32 %v189, 0.0
  %194 = vst.msk [vmem:[%s4] sm:$0xff] %vm112, %v190
  %195 = vst.msk [vmem:[%s4 + $0x8] sm:$0xff] %vm112, %v191
  %196 = vst.msk [vmem:[%s4 + $0x10] sm:$0xff] %vm112, %v192
  %197 = vst.msk [vmem:[%s4 + $0x18] sm:$0xff] %vm112, %v193
  // Predicated region
  $region18: #{pspnet_forward.90} parent=0 // pred_check
    _
  $region19: #{pspnet_forward.90} parent=0 // pred_check_branch
    %199 = sbr.rel (0) target = $region21
  $region20: #{pspnet_forward.90} parent=0 // pred_region
    _
  $region21: #{pspnet_forward.90} parent=0 // pred_fallthru
    _
  // Predicated region
  $region22: #{pspnet_forward.90} parent=0 // pred_check
    _
  $region23: #{pspnet_forward.90} parent=0 // pred_check_branch
    %201 = sbr.rel (0) target = $region25
  $region24: #{pspnet_forward.90} parent=0 // pred_region
    _
  $region25: #{pspnet_forward.90} parent=0 // pred_fallthru
    _

// kernel: pspnet_forward.91
$region0: #{pspnet_forward.91}
  #allocation0 [shape = 'u32[]', space=smem, size = 0x4, offset = 0x4, fixed_abs, tag = 'smem constant byte address 0x4 - core index']
  #allocation1 [shape = 'u32[144,128]{1,0:T(1,128)}', space=vmem, size = 0x12000, scoped, tag = 'internal scratch']
  %s0 = inlined_call_operand.vmem [shape: bf16[32,32], index: 0, kind: input, shape index: {}]
  %s1 = inlined_call_operand.vmem [shape: bf16[32,64], index: 1, kind: input, shape index: {}]
  %s2 = inlined_call_operand.vmem [shape: f32[1,64], index: 2, kind: input, shape index: {}]
  %s3 = inlined_call_operand.vmem [shape: f32[1,64], index: 3, kind: input, shape index: {}]
  %s4 = inlined_call_operand.vmem [shape: f32[32,64], index: 4, kind: output, shape index: {}]
  %s5 = sld [smem:[#allocation0]]
  $region26: #{pspnet_forward.91} parent=0
    _
  %s7 = ssub.s32 1, %s5
  %s8 = scalar_select 0, %s7, %s5
  // Predicated region
  $region2: #{pspnet_forward.91} parent=0 // pred_check
    _
  $region3: #{pspnet_forward.91} parent=0 // pred_check_branch
    %10 = sbr.rel (0) target = $region5
  $region4: #{pspnet_forward.91} parent=0 // pred_region
    _
  $region5: #{pspnet_forward.91} parent=0 // pred_fallthru
    _
  // Predicated region
  $region6: #{pspnet_forward.91} parent=0 // pred_check
    _
  $region7: #{pspnet_forward.91} parent=0 // pred_check_branch
    %12 = sbr.rel (0) target = $region9
  $region8: #{pspnet_forward.91} parent=0 // pred_region
    _
  $region9: #{pspnet_forward.91} parent=0 // pred_fallthru
    _
  // Predicated region
  $region10: #{pspnet_forward.91} parent=0 // pred_check
    _
  $region11: #{pspnet_forward.91} parent=0 // pred_check_branch
    %14 = sbr.rel (0) target = $region13
  $region12: #{pspnet_forward.91} parent=0 // pred_region
    _
  $region13: #{pspnet_forward.91} parent=0 // pred_fallthru
    _
  // Predicated region
  $region14: #{pspnet_forward.91} parent=0 // pred_check
    _
  $region15: #{pspnet_forward.91} parent=0 // pred_check_branch
    %16 = sbr.rel (0) target = $region17
  $region16: #{pspnet_forward.91} parent=0 // pred_region
    _
  $region17: #{pspnet_forward.91} parent=0 // pred_fallthru
    _
  %v18 = vld [vmem:[%s0] sm:$0xf]
  %v19 = vld [vmem:[%s0 + $0x4] sm:$0xf]
  %v20 = vld [vmem:[%s0 + $0x8] sm:$0xf]
  %v21 = vld [vmem:[%s0 + $0xc] sm:$0xf]
  %v22 = vld [vmem:[%s1] sm:$0xf]
  %v23 = vld [vmem:[%s1 + $0x4] sm:$0xf]
  %v24 = vld [vmem:[%s1 + $0x8] sm:$0xf]
  %v25 = vld [vmem:[%s1 + $0xc] sm:$0xf]
  %v30 = vunpack.c.l.b16 %v18
  %v31 = vunpack.c.l.b16 %v19
  %v32 = vunpack.c.l.b16 %v20
  %v33 = vunpack.c.l.b16 %v21
  %v34 = vpack.c.b16 %v31, %v30
  %v35 = vpack.c.b16 %v33, %v32
  %v40 = vunpack.c.l.b16 %v22
  %v41 = vunpack.c.l.b16 %v23
  %v42 = vunpack.c.l.b16 %v24
  %v43 = vunpack.c.l.b16 %v25
  %v44 = vpack.c.b16 %v41, %v40
  %v45 = vpack.c.b16 %v43, %v42
  %vm48 = vcmask 261120
  %v50 = vsel %vm48, %v34, 0
  %v53 = vsel %vm48, %v35, 0
  %55 = vmatprep.subr.bf16.mxu0 0
  %56 = vmatpush1.bf16.msra.mxu0 %v44
  %57 = vmatprep.subr.bf16.mxu0 0
  %58 = vmatpush1.bf16.msra.mxu0 %v45
  %59 = vmatprep.subr.bf16.mxu0 0
  %60 = vmatpush1.bf16.msra.mxu0 0
  %61 = vmatprep.subr.bf16.mxu0 0
  %62 = vmatpush1.bf16.msra.mxu0 0
  %63 = vmatprep.subr.bf16.mxu0 0
  %64 = vmatpush1.bf16.msra.mxu0 0
  %65 = vmatprep.subr.bf16.mxu0 0
  %66 = vmatpush1.bf16.msra.mxu0 0
  %67 = vmatprep.subr.bf16.mxu0 0
  %68 = vmatpush1.bf16.msra.mxu0 0
  %69 = vmatprep.subr.bf16.mxu0 0
  %70 = vmatpush1.bf16.msra.mxu0 0
  %71 = vmatprep.subr.bf16.mxu0 0
  %72 = vmatpush1.bf16.msra.mxu0 0
  %73 = vmatprep.subr.bf16.mxu0 0
  %74 = vmatpush1.bf16.msra.mxu0 0
  %75 = vmatprep.subr.bf16.mxu0 0
  %76 = vmatpush1.bf16.msra.mxu0 0
  %77 = vmatprep.subr.bf16.mxu0 0
  %78 = vmatpush1.bf16.msra.mxu0 0
  %79 = vmatprep.subr.bf16.mxu0 0
  %80 = vmatpush1.bf16.msra.mxu0 0
  %81 = vmatprep.subr.bf16.mxu0 0
  %82 = vmatpush1.bf16.msra.mxu0 0
  %83 = vmatprep.subr.bf16.mxu0 0
  %84 = vmatpush1.bf16.msra.mxu0 0
  %85 = vmatprep.subr.bf16.mxu0 0
  %86 = vmatpush1.bf16.msra.mxu0 0
  %87 = vmatprep.mubr.bf16.mxu0 0
  %88 = vmatmul.mubr.bf16.gmra.mrb[0].mxu0 %v50
  %v89 = vpop.f32.mrb[0].mxu0
  %v90 = vadd.f32 0.0, %v89
  %v91 = vpop.f32.mrb[0].mxu0
  %v92 = vpop.f32.mrb[0].mxu0
  %v93 = vadd.f32 0.0, %v92
  %v94 = vpop.f32.mrb[0].mxu0
  %95 = vmatprep.mubr.bf16.mxu0 0
  %96 = vmatmul.mubr.bf16.gmra.mrb[0].mxu0 %v53
  %v97 = vpop.f32.mrb[0].mxu0
  %v98 = vadd.f32 0.0, %v97
  %v99 = vpop.f32.mrb[0].mxu0
  %v100 = vpop.f32.mrb[0].mxu0
  %v101 = vadd.f32 0.0, %v100
  %v102 = vpop.f32.mrb[0].mxu0
  %103 = vdwg.mxu0
  %v104 = vld [vmem:[%s2] sm:$0x1]
  %v106 = vlaneseq
  %v107 = vshrl.u32 %v106, 7
  %v108 = vsub.s32 0, %v107
  %v109 = vrot.slane %v104, %v108
  %v111 = vmul.f32 %v90, %v109
  %v112 = vmul.f32 %v93, %v109
  %v113 = vmul.f32 %v98, %v109
  %v114 = vmul.f32 %v101, %v109
  %v115 = vld [vmem:[%s3] sm:$0x1]
  %v117 = vlaneseq
  %v118 = vshrl.u32 %v117, 7
  %v119 = vsub.s32 0, %v118
  %v120 = vrot.slane %v115, %v119
  %v122 = vadd.f32 %v111, %v120
  %v123 = vadd.f32 %v112, %v120
  %v124 = vadd.f32 %v113, %v120
  %v125 = vadd.f32 %v114, %v120
  %vm126 = vcmask 523264
  %127 = vst.msk [vmem:[%s4] sm:$0xff] %vm126, %v122
  %128 = vst.msk [vmem:[%s4 + $0x8] sm:$0xff] %vm126, %v123
  %129 = vst.msk [vmem:[%s4 + $0x10] sm:$0xff] %vm126, %v124
  %130 = vst.msk [vmem:[%s4 + $0x18] sm:$0xff] %vm126, %v125
  // Predicated region
  $region18: #{pspnet_forward.91} parent=0 // pred_check
    _
  $region19: #{pspnet_forward.91} parent=0 // pred_check_branch
    %132 = sbr.rel (0) target = $region21
  $region20: #{pspnet_forward.91} parent=0 // pred_region
    _
  $region21: #{pspnet_forward.91} parent=0 // pred_fallthru
    _
  // Predicated region
  $region22: #{pspnet_forward.91} parent=0 // pred_check
    _
  $region23: #{pspnet_forward.91} parent=0 // pred_check_branch
    %134 = sbr.rel (0) target = $region25
  $region24: #{pspnet_forward.91} parent=0 // pred_region
    _
  $region25: #{pspnet_forward.91} parent=0 // pred_fallthru
    _

// kernel: pspnet_forward.93
$region0: #{pspnet_forward.93}
  #allocation0 [shape = 'u32[]', space=smem, size = 0x4, offset = 0x4, fixed_abs, tag = 'smem constant byte address 0x4 - core index']
  #allocation1 [shape = 'u32[144,128]{1,0:T(1,128)}', space=vmem, size = 0x12000, scoped, tag = 'internal scratch']
  %s0 = inlined_call_operand.vmem [shape: bf16[32,64], index: 0, kind: input, shape index: {}]
  %s1 = inlined_call_operand.vmem [shape: bf16[64,16], index: 1, kind: input, shape index: {}]
  %s2 = inlined_call_operand.vmem [shape: f32[1,16], index: 2, kind: input, shape index: {}]
  %s3 = inlined_call_operand.vmem [shape: f32[1,16], index: 3, kind: input, shape index: {}]
  %s4 = inlined_call_operand.vmem [shape: f32[32,16], index: 4, kind: output, shape index: {}]
  %s5 = sld [smem:[#allocation0]]
  $region26: #{pspnet_forward.93} parent=0
    _
  %s7 = ssub.s32 1, %s5
  %s8 = scalar_select 0, %s7, %s5
  // Predicated region
  $region2: #{pspnet_forward.93} parent=0 // pred_check
    _
  $region3: #{pspnet_forward.93} parent=0 // pred_check_branch
    %10 = sbr.rel (0) target = $region5
  $region4: #{pspnet_forward.93} parent=0 // pred_region
    _
  $region5: #{pspnet_forward.93} parent=0 // pred_fallthru
    _
  // Predicated region
  $region6: #{pspnet_forward.93} parent=0 // pred_check
    _
  $region7: #{pspnet_forward.93} parent=0 // pred_check_branch
    %12 = sbr.rel (0) target = $region9
  $region8: #{pspnet_forward.93} parent=0 // pred_region
    _
  $region9: #{pspnet_forward.93} parent=0 // pred_fallthru
    _
  // Predicated region
  $region10: #{pspnet_forward.93} parent=0 // pred_check
    _
  $region11: #{pspnet_forward.93} parent=0 // pred_check_branch
    %14 = sbr.rel (0) target = $region13
  $region12: #{pspnet_forward.93} parent=0 // pred_region
    _
  $region13: #{pspnet_forward.93} parent=0 // pred_fallthru
    _
  // Predicated region
  $region14: #{pspnet_forward.93} parent=0 // pred_check
    _
  $region15: #{pspnet_forward.93} parent=0 // pred_check_branch
    %16 = sbr.rel (0) target = $region17
  $region16: #{pspnet_forward.93} parent=0 // pred_region
    _
  $region17: #{pspnet_forward.93} parent=0 // pred_fallthru
    _
  %v18 = vld [vmem:[%s0] sm:$0xf]
  %v19 = vld [vmem:[%s0 + $0x4] sm:$0xf]
  %v20 = vld [vmem:[%s0 + $0x8] sm:$0xf]
  %v21 = vld [vmem:[%s0 + $0xc] sm:$0xf]
  %v22 = vld [vmem:[%s1] sm:$0xf]
  %v23 = vld [vmem:[%s1 + $0x4] sm:$0xf]
  %v24 = vld [vmem:[%s1 + $0x8] sm:$0xf]
  %v25 = vld [vmem:[%s1 + $0xc] sm:$0xf]
  %v26 = vld [vmem:[%s1 + $0x10] sm:$0xf]
  %v27 = vld [vmem:[%s1 + $0x14] sm:$0xf]
  %v28 = vld [vmem:[%s1 + $0x18] sm:$0xf]
  %v29 = vld [vmem:[%s1 + $0x1c] sm:$0xf]
  %v34 = vunpack.c.l.b16 %v18
  %v35 = vunpack.c.l.b16 %v19
  %v36 = vunpack.c.l.b16 %v20
  %v37 = vunpack.c.l.b16 %v21
  %v38 = vpack.c.b16 %v35, %v34
  %v39 = vpack.c.b16 %v37, %v36
  %v48 = vunpack.c.l.b16 %v22
  %v49 = vunpack.c.l.b16 %v23
  %v50 = vunpack.c.l.b16 %v24
  %v51 = vunpack.c.l.b16 %v25
  %v52 = vunpack.c.l.b16 %v26
  %v53 = vunpack.c.l.b16 %v27
  %v54 = vunpack.c.l.b16 %v28
  %v55 = vunpack.c.l.b16 %v29
  %v56 = vpack.c.b16 %v49, %v48
  %v57 = vpack.c.b16 %v51, %v50
  %v58 = vpack.c.b16 %v53, %v52
  %v59 = vpack.c.b16 %v55, %v54
  %vm64 = vcmask 523264
  %v66 = vsel %vm64, %v38, 0
  %v69 = vsel %vm64, %v39, 0
  %71 = vmatprep.subr.bf16.mxu0 0
  %72 = vmatpush1.bf16.msra.mxu0 %v56
  %73 = vmatprep.subr.bf16.mxu0 0
  %74 = vmatpush1.bf16.msra.mxu0 %v57
  %75 = vmatprep.subr.bf16.mxu0 0
  %76 = vmatpush1.bf16.msra.mxu0 %v58
  %77 = vmatprep.subr.bf16.mxu0 0
  %78 = vmatpush1.bf16.msra.mxu0 %v59
  %79 = vmatprep.subr.bf16.mxu0 0
  %80 = vmatpush1.bf16.msra.mxu0 0
  %81 = vmatprep.subr.bf16.mxu0 0
  %82 = vmatpush1.bf16.msra.mxu0 0
  %83 = vmatprep.subr.bf16.mxu0 0
  %84 = vmatpush1.bf16.msra.mxu0 0
  %85 = vmatprep.subr.bf16.mxu0 0
  %86 = vmatpush1.bf16.msra.mxu0 0
  %87 = vmatprep.subr.bf16.mxu0 0
  %88 = vmatpush1.bf16.msra.mxu0 0
  %89 = vmatprep.subr.bf16.mxu0 0
  %90 = vmatpush1.bf16.msra.mxu0 0
  %91 = vmatprep.subr.bf16.mxu0 0
  %92 = vmatpush1.bf16.msra.mxu0 0
  %93 = vmatprep.subr.bf16.mxu0 0
  %94 = vmatpush1.bf16.msra.mxu0 0
  %95 = vmatprep.subr.bf16.mxu0 0
  %96 = vmatpush1.bf16.msra.mxu0 0
  %97 = vmatprep.subr.bf16.mxu0 0
  %98 = vmatpush1.bf16.msra.mxu0 0
  %99 = vmatprep.subr.bf16.mxu0 0
  %100 = vmatpush1.bf16.msra.mxu0 0
  %101 = vmatprep.subr.bf16.mxu0 0
  %102 = vmatpush1.bf16.msra.mxu0 0
  %103 = vmatprep.mubr.bf16.mxu0 0
  %104 = vmatmul.mubr.bf16.gmra.mrb[0].mxu0 %v66
  %v105 = vpop.f32.mrb[0].mxu0
  %v106 = vadd.f32 0.0, %v105
  %v107 = vpop.f32.mrb[0].mxu0
  %v108 = vpop.f32.mrb[0].mxu0
  %v109 = vadd.f32 0.0, %v108
  %v110 = vpop.f32.mrb[0].mxu0
  %111 = vmatprep.mubr.bf16.mxu0 0
  %112 = vmatmul.mubr.bf16.gmra.mrb[0].mxu0 %v69
  %v113 = vpop.f32.mrb[0].mxu0
  %v114 = vadd.f32 0.0, %v113
  %v115 = vpop.f32.mrb[0].mxu0
  %v116 = vpop.f32.mrb[0].mxu0
  %v117 = vadd.f32 0.0, %v116
  %v118 = vpop.f32.mrb[0].mxu0
  %119 = vdwg.mxu0
  %v120 = vld [vmem:[%s2] sm:$0x1]
  %v122 = vlaneseq
  %v123 = vshrl.u32 %v122, 7
  %v124 = vsub.s32 0, %v123
  %v125 = vrot.slane %v120, %v124
  %v127 = vmul.f32 %v106, %v125
  %v128 = vmul.f32 %v109, %v125
  %v129 = vmul.f32 %v114, %v125
  %v130 = vmul.f32 %v117, %v125
  %v131 = vld [vmem:[%s3] sm:$0x1]
  %v133 = vlaneseq
  %v134 = vshrl.u32 %v133, 7
  %v135 = vsub.s32 0, %v134
  %v136 = vrot.slane %v131, %v135
  %v138 = vadd.f32 %v127, %v136
  %v139 = vadd.f32 %v128, %v136
  %v140 = vadd.f32 %v129, %v136
  %v141 = vadd.f32 %v130, %v136
  %v142 = vmax.f32 %v138, 0.0
  %v143 = vmax.f32 %v139, 0.0
  %v144 = vmax.f32 %v140, 0.0
  %v145 = vmax.f32 %v141, 0.0
  %vm146 = vcmask 130048
  %147 = vst.msk [vmem:[%s4] sm:$0xff] %vm146, %v142
  %148 = vst.msk [vmem:[%s4 + $0x8] sm:$0xff] %vm146, %v143
  %149 = vst.msk [vmem:[%s4 + $0x10] sm:$0xff] %vm146, %v144
  %150 = vst.msk [vmem:[%s4 + $0x18] sm:$0xff] %vm146, %v145
  // Predicated region
  $region18: #{pspnet_forward.93} parent=0 // pred_check
    _
  $region19: #{pspnet_forward.93} parent=0 // pred_check_branch
    %152 = sbr.rel (0) target = $region21
  $region20: #{pspnet_forward.93} parent=0 // pred_region
    _
  $region21: #{pspnet_forward.93} parent=0 // pred_fallthru
    _
  // Predicated region
  $region22: #{pspnet_forward.93} parent=0 // pred_check
    _
  $region23: #{pspnet_forward.93} parent=0 // pred_check_branch
    %154 = sbr.rel (0) target = $region25
  $region24: #{pspnet_forward.93} parent=0 // pred_region
    _
  $region25: #{pspnet_forward.93} parent=0 // pred_fallthru
    _

// kernel: pspnet_forward.124
$region0: #{pspnet_forward.124}
  #allocation0 [shape = 'u32[]', space=smem, size = 0x4, offset = 0x4, fixed_abs, tag = 'smem constant byte address 0x4 - core index']
  #allocation1 [shape = 'u32[144,128]{1,0:T(1,128)}', space=vmem, size = 0x12000, scoped, tag = 'internal scratch']
  %s0 = inlined_call_operand.vmem [shape: bf16[32,576], index: 0, kind: input, shape index: {}]
  %s1 = inlined_call_operand.vmem [shape: bf16[576,16], index: 1, kind: input, shape index: {}]
  %s2 = inlined_call_operand.vmem [shape: f32[1,16], index: 2, kind: input, shape index: {}]
  %s3 = inlined_call_operand.vmem [shape: f32[1,16], index: 3, kind: input, shape index: {}]
  %s4 = inlined_call_operand.vmem [shape: f32[32,16], index: 4, kind: output, shape index: {}]
  %s5 = sld [smem:[#allocation0]]
  $region26: #{pspnet_forward.124} parent=0
    _
  %s7 = ssub.s32 1, %s5
  %s8 = scalar_select 0, %s7, %s5
  // Predicated region
  $region2: #{pspnet_forward.124} parent=0 // pred_check
    _
  $region3: #{pspnet_forward.124} parent=0 // pred_check_branch
    %10 = sbr.rel (0) target = $region5
  $region4: #{pspnet_forward.124} parent=0 // pred_region
    _
  $region5: #{pspnet_forward.124} parent=0 // pred_fallthru
    _
  // Predicated region
  $region6: #{pspnet_forward.124} parent=0 // pred_check
    _
  $region7: #{pspnet_forward.124} parent=0 // pred_check_branch
    %12 = sbr.rel (0) target = $region9
  $region8: #{pspnet_forward.124} parent=0 // pred_region
    _
  $region9: #{pspnet_forward.124} parent=0 // pred_fallthru
    _
  // Predicated region
  $region10: #{pspnet_forward.124} parent=0 // pred_check
    _
  $region11: #{pspnet_forward.124} parent=0 // pred_check_branch
    %14 = sbr.rel (0) target = $region13
  $region12: #{pspnet_forward.124} parent=0 // pred_region
    _
  $region13: #{pspnet_forward.124} parent=0 // pred_fallthru
    _
  // Predicated region
  $region14: #{pspnet_forward.124} parent=0 // pred_check
    _
  $region15: #{pspnet_forward.124} parent=0 // pred_check_branch
    %16 = sbr.rel (0) target = $region17
  $region16: #{pspnet_forward.124} parent=0 // pred_region
    _
  $region17: #{pspnet_forward.124} parent=0 // pred_fallthru
    _
  %v18 = vld [vmem:[%s0] sm:$0xff]
  %v19 = vld [vmem:[%s0 + $0x8] sm:$0xff]
  %v20 = vld [vmem:[%s0 + $0x10] sm:$0xf]
  %v21 = vld [vmem:[%s0 + $0x14] sm:$0xff]
  %v22 = vld [vmem:[%s0 + $0x1c] sm:$0xff]
  %v23 = vld [vmem:[%s0 + $0x24] sm:$0xf]
  %v24 = vld [vmem:[%s0 + $0x28] sm:$0xff]
  %v25 = vld [vmem:[%s0 + $0x30] sm:$0xff]
  %v26 = vld [vmem:[%s0 + $0x38] sm:$0xf]
  %v27 = vld [vmem:[%s0 + $0x3c] sm:$0xff]
  %v28 = vld [vmem:[%s0 + $0x44] sm:$0xff]
  %v29 = vld [vmem:[%s0 + $0x4c] sm:$0xf]
  %v30 = vld [vmem:[%s1] sm:$0xf]
  %v31 = vld [vmem:[%s1 + $0x4] sm:$0xf]
  %v32 = vld [vmem:[%s1 + $0x8] sm:$0xf]
  %v33 = vld [vmem:[%s1 + $0xc] sm:$0xf]
  %v34 = vld [vmem:[%s1 + $0x10] sm:$0xf]
  %v35 = vld [vmem:[%s1 + $0x14] sm:$0xf]
  %v36 = vld [vmem:[%s1 + $0x18] sm:$0xf]
  %v37 = vld [vmem:[%s1 + $0x1c] sm:$0xf]
  %v38 = vld [vmem:[%s1 + $0x20] sm:$0xf]
  %v39 = vld [vmem:[%s1 + $0x24] sm:$0xf]
  %v40 = vld [vmem:[%s1 + $0x28] sm:$0xf]
  %v41 = vld [vmem:[%s1 + $0x2c] sm:$0xf]
  %v42 = vld [vmem:[%s1 + $0x30] sm:$0xf]
  %v43 = vld [vmem:[%s1 + $0x34] sm:$0xf]
  %v44 = vld [vmem:[%s1 + $0x38] sm:$0xf]
  %v45 = vld [vmem:[%s1 + $0x3c] sm:$0xf]
  %v46 = vld [vmem:[%s1 + $0x40] sm:$0xf]
  %v47 = vld [vmem:[%s1 + $0x44] sm:$0xf]
  %v48 = vld [vmem:[%s1 + $0x48] sm:$0xf]
  %v49 = vld [vmem:[%s1 + $0x4c] sm:$0xf]
  %v50 = vld [vmem:[%s1 + $0x50] sm:$0xf]
  %v51 = vld [vmem:[%s1 + $0x54] sm:$0xf]
  %v52 = vld [vmem:[%s1 + $0x58] sm:$0xf]
  %v53 = vld [vmem:[%s1 + $0x5c] sm:$0xf]
  %v54 = vld [vmem:[%s1 + $0x60] sm:$0xf]
  %v55 = vld [vmem:[%s1 + $0x64] sm:$0xf]
  %v56 = vld [vmem:[%s1 + $0x68] sm:$0xf]
  %v57 = vld [vmem:[%s1 + $0x6c] sm:$0xf]
  %v58 = vld [vmem:[%s1 + $0x70] sm:$0xf]
  %v59 = vld [vmem:[%s1 + $0x74] sm:$0xf]
  %v60 = vld [vmem:[%s1 + $0x78] sm:$0xf]
  %v61 = vld [vmem:[%s1 + $0x7c] sm:$0xf]
  %v62 = vld [vmem:[%s1 + $0x80] sm:$0xf]
  %v63 = vld [vmem:[%s1 + $0x84] sm:$0xf]
  %v64 = vld [vmem:[%s1 + $0x88] sm:$0xf]
  %v65 = vld [vmem:[%s1 + $0x8c] sm:$0xf]
  %v66 = vld [vmem:[%s1 + $0x90] sm:$0xf]
  %v67 = vld [vmem:[%s1 + $0x94] sm:$0xf]
  %v68 = vld [vmem:[%s1 + $0x98] sm:$0xf]
  %v69 = vld [vmem:[%s1 + $0x9c] sm:$0xf]
  %v70 = vld [vmem:[%s1 + $0xa0] sm:$0xf]
  %v71 = vld [vmem:[%s1 + $0xa4] sm:$0xf]
  %v72 = vld [vmem:[%s1 + $0xa8] sm:$0xf]
  %v73 = vld [vmem:[%s1 + $0xac] sm:$0xf]
  %v74 = vld [vmem:[%s1 + $0xb0] sm:$0xf]
  %v75 = vld [vmem:[%s1 + $0xb4] sm:$0xf]
  %v76 = vld [vmem:[%s1 + $0xb8] sm:$0xf]
  %v77 = vld [vmem:[%s1 + $0xbc] sm:$0xf]
  %v78 = vld [vmem:[%s1 + $0xc0] sm:$0xf]
  %v79 = vld [vmem:[%s1 + $0xc4] sm:$0xf]
  %v80 = vld [vmem:[%s1 + $0xc8] sm:$0xf]
  %v81 = vld [vmem:[%s1 + $0xcc] sm:$0xf]
  %v82 = vld [vmem:[%s1 + $0xd0] sm:$0xf]
  %v83 = vld [vmem:[%s1 + $0xd4] sm:$0xf]
  %v84 = vld [vmem:[%s1 + $0xd8] sm:$0xf]
  %v85 = vld [vmem:[%s1 + $0xdc] sm:$0xf]
  %v86 = vld [vmem:[%s1 + $0xe0] sm:$0xf]
  %v87 = vld [vmem:[%s1 + $0xe4] sm:$0xf]
  %v88 = vld [vmem:[%s1 + $0xe8] sm:$0xf]
  %v89 = vld [vmem:[%s1 + $0xec] sm:$0xf]
  %v90 = vld [vmem:[%s1 + $0xf0] sm:$0xf]
  %v91 = vld [vmem:[%s1 + $0xf4] sm:$0xf]
  %v92 = vld [vmem:[%s1 + $0xf8] sm:$0xf]
  %v93 = vld [vmem:[%s1 + $0xfc] sm:$0xf]
  %v94 = vld [vmem:[%s1 + $0x100] sm:$0xf]
  %v95 = vld [vmem:[%s1 + $0x104] sm:$0xf]
  %v96 = vld [vmem:[%s1 + $0x108] sm:$0xf]
  %v97 = vld [vmem:[%s1 + $0x10c] sm:$0xf]
  %v98 = vld [vmem:[%s1 + $0x110] sm:$0xf]
  %v99 = vld [vmem:[%s1 + $0x114] sm:$0xf]
  %v100 = vld [vmem:[%s1 + $0x118] sm:$0xf]
  %v101 = vld [vmem:[%s1 + $0x11c] sm:$0xf]
  %v114 = vunpack.c.l.b16 %v18
  %v115 = vunpack.c.h.b16 %v18
  %v116 = vunpack.c.l.b16 %v19
  %v117 = vunpack.c.h.b16 %v19
  %v118 = vunpack.c.l.b16 %v20
  %v119 = vunpack.c.l.b16 %v21
  %v120 = vunpack.c.h.b16 %v21
  %v121 = vunpack.c.l.b16 %v22
  %v122 = vunpack.c.h.b16 %v22
  %v123 = vunpack.c.l.b16 %v23
  %v124 = vunpack.c.l.b16 %v24
  %v125 = vunpack.c.h.b16 %v24
  %v126 = vunpack.c.l.b16 %v25
  %v127 = vunpack.c.h.b16 %v25
  %v128 = vunpack.c.l.b16 %v26
  %v129 = vunpack.c.l.b16 %v27
  %v130 = vunpack.c.h.b16 %v27
  %v131 = vunpack.c.l.b16 %v28
  %v132 = vunpack.c.h.b16 %v28
  %v133 = vunpack.c.l.b16 %v29
  %v134 = vpack.c.b16 %v119, %v114
  %v135 = vpack.c.b16 %v120, %v115
  %v136 = vpack.c.b16 %v121, %v116
  %v137 = vpack.c.b16 %v122, %v117
  %v138 = vpack.c.b16 %v123, %v118
  %v139 = vpack.c.b16 %v129, %v124
  %v140 = vpack.c.b16 %v130, %v125
  %v141 = vpack.c.b16 %v131, %v126
  %v142 = vpack.c.b16 %v132, %v127
  %v143 = vpack.c.b16 %v133, %v128
  %v224 = vunpack.c.l.b16 %v30
  %v225 = vunpack.c.l.b16 %v31
  %v226 = vunpack.c.l.b16 %v32
  %v227 = vunpack.c.l.b16 %v33
  %v228 = vunpack.c.l.b16 %v34
  %v229 = vunpack.c.l.b16 %v35
  %v230 = vunpack.c.l.b16 %v36
  %v231 = vunpack.c.l.b16 %v37
  %v232 = vunpack.c.l.b16 %v38
  %v233 = vunpack.c.l.b16 %v39
  %v234 = vunpack.c.l.b16 %v40
  %v235 = vunpack.c.l.b16 %v41
  %v236 = vunpack.c.l.b16 %v42
  %v237 = vunpack.c.l.b16 %v43
  %v238 = vunpack.c.l.b16 %v44
  %v239 = vunpack.c.l.b16 %v45
  %v240 = vunpack.c.l.b16 %v46
  %v241 = vunpack.c.l.b16 %v47
  %v242 = vunpack.c.l.b16 %v48
  %v243 = vunpack.c.l.b16 %v49
  %v244 = vunpack.c.l.b16 %v50
  %v245 = vunpack.c.l.b16 %v51
  %v246 = vunpack.c.l.b16 %v52
  %v247 = vunpack.c.l.b16 %v53
  %v248 = vunpack.c.l.b16 %v54
  %v249 = vunpack.c.l.b16 %v55
  %v250 = vunpack.c.l.b16 %v56
  %v251 = vunpack.c.l.b16 %v57
  %v252 = vunpack.c.l.b16 %v58
  %v253 = vunpack.c.l.b16 %v59
  %v254 = vunpack.c.l.b16 %v60
  %v255 = vunpack.c.l.b16 %v61
  %v256 = vunpack.c.l.b16 %v62
  %v257 = vunpack.c.l.b16 %v63
  %v258 = vunpack.c.l.b16 %v64
  %v259 = vunpack.c.l.b16 %v65
  %v260 = vunpack.c.l.b16 %v66
  %v261 = vunpack.c.l.b16 %v67
  %v262 = vunpack.c.l.b16 %v68
  %v263 = vunpack.c.l.b16 %v69
  %v264 = vunpack.c.l.b16 %v70
  %v265 = vunpack.c.l.b16 %v71
  %v266 = vunpack.c.l.b16 %v72
  %v267 = vunpack.c.l.b16 %v73
  %v268 = vunpack.c.l.b16 %v74
  %v269 = vunpack.c.l.b16 %v75
  %v270 = vunpack.c.l.b16 %v76
  %v271 = vunpack.c.l.b16 %v77
  %v272 = vunpack.c.l.b16 %v78
  %v273 = vunpack.c.l.b16 %v79
  %v274 = vunpack.c.l.b16 %v80
  %v275 = vunpack.c.l.b16 %v81
  %v276 = vunpack.c.l.b16 %v82
  %v277 = vunpack.c.l.b16 %v83
  %v278 = vunpack.c.l.b16 %v84
  %v279 = vunpack.c.l.b16 %v85
  %v280 = vunpack.c.l.b16 %v86
  %v281 = vunpack.c.l.b16 %v87
  %v282 = vunpack.c.l.b16 %v88
  %v283 = vunpack.c.l.b16 %v89
  %v284 = vunpack.c.l.b16 %v90
  %v285 = vunpack.c.l.b16 %v91
  %v286 = vunpack.c.l.b16 %v92
  %v287 = vunpack.c.l.b16 %v93
  %v288 = vunpack.c.l.b16 %v94
  %v289 = vunpack.c.l.b16 %v95
  %v290 = vunpack.c.l.b16 %v96
  %v291 = vunpack.c.l.b16 %v97
  %v292 = vunpack.c.l.b16 %v98
  %v293 = vunpack.c.l.b16 %v99
  %v294 = vunpack.c.l.b16 %v100
  %v295 = vunpack.c.l.b16 %v101
  %v296 = vpack.c.b16 %v225, %v224
  %v297 = vpack.c.b16 %v227, %v226
  %v298 = vpack.c.b16 %v229, %v228
  %v299 = vpack.c.b16 %v231, %v230
  %v300 = vpack.c.b16 %v233, %v232
  %v301 = vpack.c.b16 %v235, %v234
  %v302 = vpack.c.b16 %v237, %v236
  %v303 = vpack.c.b16 %v239, %v238
  %v304 = vpack.c.b16 %v241, %v240
  %v305 = vpack.c.b16 %v243, %v242
  %v306 = vpack.c.b16 %v245, %v244
  %v307 = vpack.c.b16 %v247, %v246
  %v308 = vpack.c.b16 %v249, %v248
  %v309 = vpack.c.b16 %v251, %v250
  %v310 = vpack.c.b16 %v253, %v252
  %v311 = vpack.c.b16 %v255, %v254
  %v312 = vpack.c.b16 %v257, %v256
  %v313 = vpack.c.b16 %v259, %v258
  %v314 = vpack.c.b16 %v261, %v260
  %v315 = vpack.c.b16 %v263, %v262
  %v316 = vpack.c.b16 %v265, %v264
  %v317 = vpack.c.b16 %v267, %v266
  %v318 = vpack.c.b16 %v269, %v268
  %v319 = vpack.c.b16 %v271, %v270
  %v320 = vpack.c.b16 %v273, %v272
  %v321 = vpack.c.b16 %v275, %v274
  %v322 = vpack.c.b16 %v277, %v276
  %v323 = vpack.c.b16 %v279, %v278
  %v324 = vpack.c.b16 %v281, %v280
  %v325 = vpack.c.b16 %v283, %v282
  %v326 = vpack.c.b16 %v285, %v284
  %v327 = vpack.c.b16 %v287, %v286
  %v328 = vpack.c.b16 %v289, %v288
  %v329 = vpack.c.b16 %v291, %v290
  %v330 = vpack.c.b16 %v293, %v292
  %v331 = vpack.c.b16 %v295, %v294
  %vm368 = vcmask 523264
  %v370 = vsel %vm368, %v138, 0
  %v373 = vsel %vm368, %v143, 0
  %375 = vmatprep.subr.bf16.mxu0 0
  %376 = vmatpush1.bf16.msra.mxu0 %v296
  %377 = vmatprep.subr.bf16.mxu0 0
  %378 = vmatpush1.bf16.msra.mxu0 %v297
  %379 = vmatprep.subr.bf16.mxu0 0
  %380 = vmatpush1.bf16.msra.mxu0 %v298
  %381 = vmatprep.subr.bf16.mxu0 0
  %382 = vmatpush1.bf16.msra.mxu0 %v299
  %383 = vmatprep.subr.bf16.mxu0 0
  %384 = vmatpush1.bf16.msra.mxu0 %v300
  %385 = vmatprep.subr.bf16.mxu0 0
  %386 = vmatpush1.bf16.msra.mxu0 %v301
  %387 = vmatprep.subr.bf16.mxu0 0
  %388 = vmatpush1.bf16.msra.mxu0 %v302
  %389 = vmatprep.subr.bf16.mxu0 0
  %390 = vmatpush1.bf16.msra.mxu0 %v303
  %391 = vmatprep.subr.bf16.mxu0 0
  %392 = vmatpush1.bf16.msra.mxu0 %v304
  %393 = vmatprep.subr.bf16.mxu0 0
  %394 = vmatpush1.bf16.msra.mxu0 %v305
  %395 = vmatprep.subr.bf16.mxu0 0
  %396 = vmatpush1.bf16.msra.mxu0 %v306
  %397 = vmatprep.subr.bf16.mxu0 0
  %398 = vmatpush1.bf16.msra.mxu0 %v307
  %399 = vmatprep.subr.bf16.mxu0 0
  %400 = vmatpush1.bf16.msra.mxu0 %v308
  %401 = vmatprep.subr.bf16.mxu0 0
  %402 = vmatpush1.bf16.msra.mxu0 %v309
  %403 = vmatprep.subr.bf16.mxu0 0
  %404 = vmatpush1.bf16.msra.mxu0 %v310
  %405 = vmatprep.subr.bf16.mxu0 0
  %406 = vmatpush1.bf16.msra.mxu0 %v311
  %407 = vmatprep.mubr.bf16.mxu0 %v135
  %408 = vmatmul.mubr.bf16.gmra.mrb[0].mxu0 %v134
  %v409 = vpop.f32.mrb[0].mxu0
  %v410 = vadd.f32 0.0, %v409
  %v411 = vpop.f32.mrb[0].mxu0
  %v412 = vpop.f32.mrb[0].mxu0
  %v413 = vadd.f32 0.0, %v412
  %v414 = vpop.f32.mrb[0].mxu0
  %415 = vmatprep.mubr.bf16.mxu0 %v140
  %416 = vmatmul.mubr.bf16.gmra.mrb[0].mxu0 %v139
  %v417 = vpop.f32.mrb[0].mxu0
  %v418 = vadd.f32 0.0, %v417
  %v419 = vpop.f32.mrb[0].mxu0
  %v420 = vpop.f32.mrb[0].mxu0
  %v421 = vadd.f32 0.0, %v420
  %v422 = vpop.f32.mrb[0].mxu0
  %423 = vdwg.mxu0
  %424 = vmatprep.subr.bf16.mxu0 0
  %425 = vmatpush1.bf16.msra.mxu0 %v312
  %426 = vmatprep.subr.bf16.mxu0 0
  %427 = vmatpush1.bf16.msra.mxu0 %v313
  %428 = vmatprep.subr.bf16.mxu0 0
  %429 = vmatpush1.bf16.msra.mxu0 %v314
  %430 = vmatprep.subr.bf16.mxu0 0
  %431 = vmatpush1.bf16.msra.mxu0 %v315
  %432 = vmatprep.subr.bf16.mxu0 0
  %433 = vmatpush1.bf16.msra.mxu0 %v316
  %434 = vmatprep.subr.bf16.mxu0 0
  %435 = vmatpush1.bf16.msra.mxu0 %v317
  %436 = vmatprep.subr.bf16.mxu0 0
  %437 = vmatpush1.bf16.msra.mxu0 %v318
  %438 = vmatprep.subr.bf16.mxu0 0
  %439 = vmatpush1.bf16.msra.mxu0 %v319
  %440 = vmatprep.subr.bf16.mxu0 0
  %441 = vmatpush1.bf16.msra.mxu0 %v320
  %442 = vmatprep.subr.bf16.mxu0 0
  %443 = vmatpush1.bf16.msra.mxu0 %v321
  %444 = vmatprep.subr.bf16.mxu0 0
  %445 = vmatpush1.bf16.msra.mxu0 %v322
  %446 = vmatprep.subr.bf16.mxu0 0
  %447 = vmatpush1.bf16.msra.mxu0 %v323
  %448 = vmatprep.subr.bf16.mxu0 0
  %449 = vmatpush1.bf16.msra.mxu0 %v324
  %450 = vmatprep.subr.bf16.mxu0 0
  %451 = vmatpush1.bf16.msra.mxu0 %v325
  %452 = vmatprep.subr.bf16.mxu0 0
  %453 = vmatpush1.bf16.msra.mxu0 %v326
  %454 = vmatprep.subr.bf16.mxu0 0
  %455 = vmatpush1.bf16.msra.mxu0 %v327
  %456 = vmatprep.mubr.bf16.mxu0 %v137
  %457 = vmatmul.mubr.bf16.gmra.mrb[0].mxu0 %v136
  %v458 = vpop.f32.mrb[0].mxu0
  %v459 = vadd.f32 %v410, %v458
  %v460 = vpop.f32.mrb[0].mxu0
  %v461 = vpop.f32.mrb[0].mxu0
  %v462 = vadd.f32 %v413, %v461
  %v463 = vpop.f32.mrb[0].mxu0
  %464 = vmatprep.mubr.bf16.mxu0 %v142
  %465 = vmatmul.mubr.bf16.gmra.mrb[0].mxu0 %v141
  %v466 = vpop.f32.mrb[0].mxu0
  %v467 = vadd.f32 %v418, %v466
  %v468 = vpop.f32.mrb[0].mxu0
  %v469 = vpop.f32.mrb[0].mxu0
  %v470 = vadd.f32 %v421, %v469
  %v471 = vpop.f32.mrb[0].mxu0
  %472 = vdwg.mxu0
  %473 = vmatprep.subr.bf16.mxu0 0
  %474 = vmatpush1.bf16.msra.mxu0 %v328
  %475 = vmatprep.subr.bf16.mxu0 0
  %476 = vmatpush1.bf16.msra.mxu0 %v329
  %477 = vmatprep.subr.bf16.mxu0 0
  %478 = vmatpush1.bf16.msra.mxu0 %v330
  %479 = vmatprep.subr.bf16.mxu0 0
  %480 = vmatpush1.bf16.msra.mxu0 %v331
  %481 = vmatprep.subr.bf16.mxu0 0
  %482 = vmatpush1.bf16.msra.mxu0 0
  %483 = vmatprep.subr.bf16.mxu0 0
  %484 = vmatpush1.bf16.msra.mxu0 0
  %485 = vmatprep.subr.bf16.mxu0 0
  %486 = vmatpush1.bf16.msra.mxu0 0
  %487 = vmatprep.subr.bf16.mxu0 0
  %488 = vmatpush1.bf16.msra.mxu0 0
  %489 = vmatprep.subr.bf16.mxu0 0
  %490 = vmatpush1.bf16.msra.mxu0 0
  %491 = vmatprep.subr.bf16.mxu0 0
  %492 = vmatpush1.bf16.msra.mxu0 0
  %493 = vmatprep.subr.bf16.mxu0 0
  %494 = vmatpush1.bf16.msra.mxu0 0
  %495 = vmatprep.subr.bf16.mxu0 0
  %496 = vmatpush1.bf16.msra.mxu0 0
  %497 = vmatprep.subr.bf16.mxu0 0
  %498 = vmatpush1.bf16.msra.mxu0 0
  %499 = vmatprep.subr.bf16.mxu0 0
  %500 = vmatpush1.bf16.msra.mxu0 0
  %501 = vmatprep.subr.bf16.mxu0 0
  %502 = vmatpush1.bf16.msra.mxu0 0
  %503 = vmatprep.subr.bf16.mxu0 0
  %504 = vmatpush1.bf16.msra.mxu0 0
  %505 = vmatprep.mubr.bf16.mxu0 0
  %506 = vmatmul.mubr.bf16.gmra.mrb[0].mxu0 %v370
  %v507 = vpop.f32.mrb[0].mxu0
  %v508 = vadd.f32 %v459, %v507
  %v509 = vpop.f32.mrb[0].mxu0
  %v510 = vpop.f32.mrb[0].mxu0
  %v511 = vadd.f32 %v462, %v510
  %v512 = vpop.f32.mrb[0].mxu0
  %513 = vmatprep.mubr.bf16.mxu0 0
  %514 = vmatmul.mubr.bf16.gmra.mrb[0].mxu0 %v373
  %v515 = vpop.f32.mrb[0].mxu0
  %v516 = vadd.f32 %v467, %v515
  %v517 = vpop.f32.mrb[0].mxu0
  %v518 = vpop.f32.mrb[0].mxu0
  %v519 = vadd.f32 %v470, %v518
  %v520 = vpop.f32.mrb[0].mxu0
  %521 = vdwg.mxu0
  %v522 = vld [vmem:[%s2] sm:$0x1]
  %v524 = vlaneseq
  %v525 = vshrl.u32 %v524, 7
  %v526 = vsub.s32 0, %v525
  %v527 = vrot.slane %v522, %v526
  %v529 = vmul.f32 %v508, %v527
  %v530 = vmul.f32 %v511, %v527
  %v531 = vmul.f32 %v516, %v527
  %v532 = vmul.f32 %v519, %v527
  %v533 = vld [vmem:[%s3] sm:$0x1]
  %v535 = vlaneseq
  %v536 = vshrl.u32 %v535, 7
  %v537 = vsub.s32 0, %v536
  %v538 = vrot.slane %v533, %v537
  %v540 = vadd.f32 %v529, %v538
  %v541 = vadd.f32 %v530, %v538
  %v542 = vadd.f32 %v531, %v538
  %v543 = vadd.f32 %v532, %v538
  %v544 = vmax.f32 %v540, 0.0
  %v545 = vmax.f32 %v541, 0.0
  %v546 = vmax.f32 %v542, 0.0
  %v547 = vmax.f32 %v543, 0.0
  %vm548 = vcmask 130048
  %549 = vst.msk [vmem:[%s4] sm:$0xff] %vm548, %v544
  %550 = vst.msk [vmem:[%s4 + $0x8] sm:$0xff] %vm548, %v545
  %551 = vst.msk [vmem:[%s4 + $0x10] sm:$0xff] %vm548, %v546
  %552 = vst.msk [vmem:[%s4 + $0x18] sm:$0xff] %vm548, %v547
  // Predicated region
  $region18: #{pspnet_forward.124} parent=0 // pred_check
    _
  $region19: #{pspnet_forward.124} parent=0 // pred_check_branch
    %554 = sbr.rel (0) target = $region21
  $region20: #{pspnet_forward.124} parent=0 // pred_region
    _
  $region21: #{pspnet_forward.124} parent=0 // pred_fallthru
    _
  // Predicated region
  $region22: #{pspnet_forward.124} parent=0 // pred_check
    _
  $region23: #{pspnet_forward.124} parent=0 // pred_check_branch
    %556 = sbr.rel (0) target = $region25
  $region24: #{pspnet_forward.124} parent=0 // pred_region
    _
  $region25: #{pspnet_forward.124} parent=0 // pred_fallthru
    _

// kernel: pspnet_forward.125
$region0: #{pspnet_forward.125}
  #allocation0 [shape = 'u32[]', space=smem, size = 0x4, offset = 0x4, fixed_abs, tag = 'smem constant byte address 0x4 - core index']
  #allocation1 [shape = 'u32[144,128]{1,0:T(1,128)}', space=vmem, size = 0x12000, scoped, tag = 'internal scratch']
  %s0 = inlined_call_operand.vmem [shape: bf16[32,16], index: 0, kind: input, shape index: {}]
  %s1 = inlined_call_operand.vmem [shape: bf16[16,2], index: 1, kind: input, shape index: {}]
  %s2 = inlined_call_operand.vmem [shape: f32[1,2], index: 2, kind: input, shape index: {}]
  %s3 = inlined_call_operand.vmem [shape: f32[1,2], index: 3, kind: input, shape index: {}]
  %s4 = inlined_call_operand.vmem [shape: f32[32,2], index: 4, kind: output, shape index: {}]
  %s5 = sld [smem:[#allocation0]]
  $region26: #{pspnet_forward.125} parent=0
    _
  %s7 = ssub.s32 1, %s5
  %s8 = scalar_select 0, %s7, %s5
  // Predicated region
  $region2: #{pspnet_forward.125} parent=0 // pred_check
    _
  $region3: #{pspnet_forward.125} parent=0 // pred_check_branch
    %10 = sbr.rel (0) target = $region5
  $region4: #{pspnet_forward.125} parent=0 // pred_region
    _
  $region5: #{pspnet_forward.125} parent=0 // pred_fallthru
    _
  // Predicated region
  $region6: #{pspnet_forward.125} parent=0 // pred_check
    _
  $region7: #{pspnet_forward.125} parent=0 // pred_check_branch
    %12 = sbr.rel (0) target = $region9
  $region8: #{pspnet_forward.125} parent=0 // pred_region
    _
  $region9: #{pspnet_forward.125} parent=0 // pred_fallthru
    _
  // Predicated region
  $region10: #{pspnet_forward.125} parent=0 // pred_check
    _
  $region11: #{pspnet_forward.125} parent=0 // pred_check_branch
    %14 = sbr.rel (0) target = $region13
  $region12: #{pspnet_forward.125} parent=0 // pred_region
    _
  $region13: #{pspnet_forward.125} parent=0 // pred_fallthru
    _
  // Predicated region
  $region14: #{pspnet_forward.125} parent=0 // pred_check
    _
  $region15: #{pspnet_forward.125} parent=0 // pred_check_branch
    %16 = sbr.rel (0) target = $region17
  $region16: #{pspnet_forward.125} parent=0 // pred_region
    _
  $region17: #{pspnet_forward.125} parent=0 // pred_fallthru
    _
  %v18 = vld [vmem:[%s0] sm:$0xf]
  %v19 = vld [vmem:[%s0 + $0x4] sm:$0xf]
  %v20 = vld [vmem:[%s0 + $0x8] sm:$0xf]
  %v21 = vld [vmem:[%s0 + $0xc] sm:$0xf]
  %v22 = vld [vmem:[%s1] sm:$0xf]
  %v23 = vld [vmem:[%s1 + $0x4] sm:$0xf]
  %v28 = vunpack.c.l.b16 %v18
  %v29 = vunpack.c.l.b16 %v19
  %v30 = vunpack.c.l.b16 %v20
  %v31 = vunpack.c.l.b16 %v21
  %v32 = vpack.c.b16 %v29, %v28
  %v33 = vpack.c.b16 %v31, %v30
  %v36 = vunpack.c.l.b16 %v22
  %v37 = vunpack.c.l.b16 %v23
  %v38 = vpack.c.b16 %v37, %v36
  %vm40 = vcmask 130048
  %v42 = vsel %vm40, %v32, 0
  %v45 = vsel %vm40, %v33, 0
  %47 = vmatprep.subr.bf16.mxu0 0
  %48 = vmatpush1.bf16.msra.mxu0 %v38
  %49 = vmatprep.subr.bf16.mxu0 0
  %50 = vmatpush1.bf16.msra.mxu0 0
  %51 = vmatprep.subr.bf16.mxu0 0
  %52 = vmatpush1.bf16.msra.mxu0 0
  %53 = vmatprep.subr.bf16.mxu0 0
  %54 = vmatpush1.bf16.msra.mxu0 0
  %55 = vmatprep.subr.bf16.mxu0 0
  %56 = vmatpush1.bf16.msra.mxu0 0
  %57 = vmatprep.subr.bf16.mxu0 0
  %58 = vmatpush1.bf16.msra.mxu0 0
  %59 = vmatprep.subr.bf16.mxu0 0
  %60 = vmatpush1.bf16.msra.mxu0 0
  %61 = vmatprep.subr.bf16.mxu0 0
  %62 = vmatpush1.bf16.msra.mxu0 0
  %63 = vmatprep.subr.bf16.mxu0 0
  %64 = vmatpush1.bf16.msra.mxu0 0
  %65 = vmatprep.subr.bf16.mxu0 0
  %66 = vmatpush1.bf16.msra.mxu0 0
  %67 = vmatprep.subr.bf16.mxu0 0
  %68 = vmatpush1.bf16.msra.mxu0 0
  %69 = vmatprep.subr.bf16.mxu0 0
  %70 = vmatpush1.bf16.msra.mxu0 0
  %71 = vmatprep.subr.bf16.mxu0 0
  %72 = vmatpush1.bf16.msra.mxu0 0
  %73 = vmatprep.subr.bf16.mxu0 0
  %74 = vmatpush1.bf16.msra.mxu0 0
  %75 = vmatprep.subr.bf16.mxu0 0
  %76 = vmatpush1.bf16.msra.mxu0 0
  %77 = vmatprep.subr.bf16.mxu0 0
  %78 = vmatpush1.bf16.msra.mxu0 0
  %79 = vmatprep.mubr.bf16.mxu0 0
  %80 = vmatmul.mubr.bf16.gmra.mrb[0].mxu0 %v42
  %v81 = vpop.f32.mrb[0].mxu0
  %v82 = vadd.f32 0.0, %v81
  %v83 = vpop.f32.mrb[0].mxu0
  %v84 = vpop.f32.mrb[0].mxu0
  %v85 = vadd.f32 0.0, %v84
  %v86 = vpop.f32.mrb[0].mxu0
  %87 = vmatprep.mubr.bf16.mxu0 0
  %88 = vmatmul.mubr.bf16.gmra.mrb[0].mxu0 %v45
  %v89 = vpop.f32.mrb[0].mxu0
  %v90 = vadd.f32 0.0, %v89
  %v91 = vpop.f32.mrb[0].mxu0
  %v92 = vpop.f32.mrb[0].mxu0
  %v93 = vadd.f32 0.0, %v92
  %v94 = vpop.f32.mrb[0].mxu0
  %95 = vdwg.mxu0
  %v96 = vld [vmem:[%s2] sm:$0x1]
  %v98 = vlaneseq
  %v99 = vshrl.u32 %v98, 7
  %v100 = vsub.s32 0, %v99
  %v101 = vrot.slane %v96, %v100
  %v103 = vmul.f32 %v82, %v101
  %v104 = vmul.f32 %v85, %v101
  %v105 = vmul.f32 %v90, %v101
  %v106 = vmul.f32 %v93, %v101
  %v107 = vld [vmem:[%s3] sm:$0x1]
  %v109 = vlaneseq
  %v110 = vshrl.u32 %v109, 7
  %v111 = vsub.s32 0, %v110
  %v112 = vrot.slane %v107, %v111
  %v114 = vadd.f32 %v103, %v112
  %v115 = vadd.f32 %v104, %v112
  %v116 = vadd.f32 %v105, %v112
  %v117 = vadd.f32 %v106, %v112
  %vm118 = vcmask 15360
  %119 = vst.msk [vmem:[%s4] sm:$0xff] %vm118, %v114
  %120 = vst.msk [vmem:[%s4 + $0x8] sm:$0xff] %vm118, %v115
  %121 = vst.msk [vmem:[%s4 + $0x10] sm:$0xff] %vm118, %v116
  %122 = vst.msk [vmem:[%s4 + $0x18] sm:$0xff] %vm118, %v117
  // Predicated region
  $region18: #{pspnet_forward.125} parent=0 // pred_check
    _
  $region19: #{pspnet_forward.125} parent=0 // pred_check_branch
    %124 = sbr.rel (0) target = $region21
  $region20: #{pspnet_forward.125} parent=0 // pred_region
    _
  $region21: #{pspnet_forward.125} parent=0 // pred_fallthru
    _
  // Predicated region
  $region22: #{pspnet_forward.125} parent=0 // pred_check
    _
  $region23: #{pspnet_forward.125} parent=0 // pred_check_branch
    %126 = sbr.rel (0) target = $region25
  $region24: #{pspnet_forward.125} parent=0 // pred_region
    _
  $region25: #{pspnet_forward.125} parent=0 // pred_fallthru
    _

// kernel: pspnet_forward.108
$region0: #{pspnet_forward.108}
  #allocation0 [shape = 'u32[]', space=smem, size = 0x4, offset = 0x4, fixed_abs, tag = 'smem constant byte address 0x4 - core index']
  #allocation1 [shape = 'u32[144,128]{1,0:T(1,128)}', space=vmem, size = 0x12000, scoped, tag = 'internal scratch']
  %s0 = inlined_call_operand.vmem [shape: bf16[32,64], index: 0, kind: input, shape index: {}]
  %s1 = inlined_call_operand.vmem [shape: bf16[64,32], index: 1, kind: input, shape index: {}]
  %s2 = inlined_call_operand.vmem [shape: f32[1,32], index: 2, kind: input, shape index: {}]
  %s3 = inlined_call_operand.vmem [shape: f32[1,32], index: 3, kind: input, shape index: {}]
  %s4 = inlined_call_operand.vmem [shape: f32[32,32], index: 4, kind: output, shape index: {}]
  %s5 = sld [smem:[#allocation0]]
  $region26: #{pspnet_forward.108} parent=0
    _
  %s7 = ssub.s32 1, %s5
  %s8 = scalar_select 0, %s7, %s5
  // Predicated region
  $region2: #{pspnet_forward.108} parent=0 // pred_check
    _
  $region3: #{pspnet_forward.108} parent=0 // pred_check_branch
    %10 = sbr.rel (0) target = $region5
  $region4: #{pspnet_forward.108} parent=0 // pred_region
    _
  $region5: #{pspnet_forward.108} parent=0 // pred_fallthru
    _
  // Predicated region
  $region6: #{pspnet_forward.108} parent=0 // pred_check
    _
  $region7: #{pspnet_forward.108} parent=0 // pred_check_branch
    %12 = sbr.rel (0) target = $region9
  $region8: #{pspnet_forward.108} parent=0 // pred_region
    _
  $region9: #{pspnet_forward.108} parent=0 // pred_fallthru
    _
  // Predicated region
  $region10: #{pspnet_forward.108} parent=0 // pred_check
    _
  $region11: #{pspnet_forward.108} parent=0 // pred_check_branch
    %14 = sbr.rel (0) target = $region13
  $region12: #{pspnet_forward.108} parent=0 // pred_region
    _
  $region13: #{pspnet_forward.108} parent=0 // pred_fallthru
    _
  // Predicated region
  $region14: #{pspnet_forward.108} parent=0 // pred_check
    _
  $region15: #{pspnet_forward.108} parent=0 // pred_check_branch
    %16 = sbr.rel (0) target = $region17
  $region16: #{pspnet_forward.108} parent=0 // pred_region
    _
  $region17: #{pspnet_forward.108} parent=0 // pred_fallthru
    _
  %v18 = vld [vmem:[%s0] sm:$0xf]
  %v19 = vld [vmem:[%s0 + $0x4] sm:$0xf]
  %v20 = vld [vmem:[%s0 + $0x8] sm:$0xf]
  %v21 = vld [vmem:[%s0 + $0xc] sm:$0xf]
  %v22 = vld [vmem:[%s1] sm:$0xf]
  %v23 = vld [vmem:[%s1 + $0x4] sm:$0xf]
  %v24 = vld [vmem:[%s1 + $0x8] sm:$0xf]
  %v25 = vld [vmem:[%s1 + $0xc] sm:$0xf]
  %v26 = vld [vmem:[%s1 + $0x10] sm:$0xf]
  %v27 = vld [vmem:[%s1 + $0x14] sm:$0xf]
  %v28 = vld [vmem:[%s1 + $0x18] sm:$0xf]
  %v29 = vld [vmem:[%s1 + $0x1c] sm:$0xf]
  %v34 = vunpack.c.l.b16 %v18
  %v35 = vunpack.c.l.b16 %v19
  %v36 = vunpack.c.l.b16 %v20
  %v37 = vunpack.c.l.b16 %v21
  %v38 = vpack.c.b16 %v35, %v34
  %v39 = vpack.c.b16 %v37, %v36
  %v48 = vunpack.c.l.b16 %v22
  %v49 = vunpack.c.l.b16 %v23
  %v50 = vunpack.c.l.b16 %v24
  %v51 = vunpack.c.l.b16 %v25
  %v52 = vunpack.c.l.b16 %v26
  %v53 = vunpack.c.l.b16 %v27
  %v54 = vunpack.c.l.b16 %v28
  %v55 = vunpack.c.l.b16 %v29
  %v56 = vpack.c.b16 %v49, %v48
  %v57 = vpack.c.b16 %v51, %v50
  %v58 = vpack.c.b16 %v53, %v52
  %v59 = vpack.c.b16 %v55, %v54
  %vm64 = vcmask 523264
  %v66 = vsel %vm64, %v38, 0
  %v69 = vsel %vm64, %v39, 0
  %71 = vmatprep.subr.bf16.mxu0 0
  %72 = vmatpush1.bf16.msra.mxu0 %v56
  %73 = vmatprep.subr.bf16.mxu0 0
  %74 = vmatpush1.bf16.msra.mxu0 %v57
  %75 = vmatprep.subr.bf16.mxu0 0
  %76 = vmatpush1.bf16.msra.mxu0 %v58
  %77 = vmatprep.subr.bf16.mxu0 0
  %78 = vmatpush1.bf16.msra.mxu0 %v59
  %79 = vmatprep.subr.bf16.mxu0 0
  %80 = vmatpush1.bf16.msra.mxu0 0
  %81 = vmatprep.subr.bf16.mxu0 0
  %82 = vmatpush1.bf16.msra.mxu0 0
  %83 = vmatprep.subr.bf16.mxu0 0
  %84 = vmatpush1.bf16.msra.mxu0 0
  %85 = vmatprep.subr.bf16.mxu0 0
  %86 = vmatpush1.bf16.msra.mxu0 0
  %87 = vmatprep.subr.bf16.mxu0 0
  %88 = vmatpush1.bf16.msra.mxu0 0
  %89 = vmatprep.subr.bf16.mxu0 0
  %90 = vmatpush1.bf16.msra.mxu0 0
  %91 = vmatprep.subr.bf16.mxu0 0
  %92 = vmatpush1.bf16.msra.mxu0 0
  %93 = vmatprep.subr.bf16.mxu0 0
  %94 = vmatpush1.bf16.msra.mxu0 0
  %95 = vmatprep.subr.bf16.mxu0 0
  %96 = vmatpush1.bf16.msra.mxu0 0
  %97 = vmatprep.subr.bf16.mxu0 0
  %98 = vmatpush1.bf16.msra.mxu0 0
  %99 = vmatprep.subr.bf16.mxu0 0
  %100 = vmatpush1.bf16.msra.mxu0 0
  %101 = vmatprep.subr.bf16.mxu0 0
  %102 = vmatpush1.bf16.msra.mxu0 0
  %103 = vmatprep.mubr.bf16.mxu0 0
  %104 = vmatmul.mubr.bf16.gmra.mrb[0].mxu0 %v66
  %v105 = vpop.f32.mrb[0].mxu0
  %v106 = vadd.f32 0.0, %v105
  %v107 = vpop.f32.mrb[0].mxu0
  %v108 = vpop.f32.mrb[0].mxu0
  %v109 = vadd.f32 0.0, %v108
  %v110 = vpop.f32.mrb[0].mxu0
  %111 = vmatprep.mubr.bf16.mxu0 0
  %112 = vmatmul.mubr.bf16.gmra.mrb[0].mxu0 %v69
  %v113 = vpop.f32.mrb[0].mxu0
  %v114 = vadd.f32 0.0, %v113
  %v115 = vpop.f32.mrb[0].mxu0
  %v116 = vpop.f32.mrb[0].mxu0
  %v117 = vadd.f32 0.0, %v116
  %v118 = vpop.f32.mrb[0].mxu0
  %119 = vdwg.mxu0
  %v120 = vld [vmem:[%s2] sm:$0x1]
  %v122 = vlaneseq
  %v123 = vshrl.u32 %v122, 7
  %v124 = vsub.s32 0, %v123
  %v125 = vrot.slane %v120, %v124
  %v127 = vmul.f32 %v106, %v125
  %v128 = vmul.f32 %v109, %v125
  %v129 = vmul.f32 %v114, %v125
  %v130 = vmul.f32 %v117, %v125
  %v131 = vld [vmem:[%s3] sm:$0x1]
  %v133 = vlaneseq
  %v134 = vshrl.u32 %v133, 7
  %v135 = vsub.s32 0, %v134
  %v136 = vrot.slane %v131, %v135
  %v138 = vadd.f32 %v127, %v136
  %v139 = vadd.f32 %v128, %v136
  %v140 = vadd.f32 %v129, %v136
  %v141 = vadd.f32 %v130, %v136
  %v142 = vmax.f32 %v138, 0.0
  %v143 = vmax.f32 %v139, 0.0
  %v144 = vmax.f32 %v140, 0.0
  %v145 = vmax.f32 %v141, 0.0
  %vm146 = vcmask 261120
  %147 = vst.msk [vmem:[%s4] sm:$0xff] %vm146, %v142
  %148 = vst.msk [vmem:[%s4 + $0x8] sm:$0xff] %vm146, %v143
  %149 = vst.msk [vmem:[%s4 + $0x10] sm:$0xff] %vm146, %v144
  %150 = vst.msk [vmem:[%s4 + $0x18] sm:$0xff] %vm146, %v145
  // Predicated region
  $region18: #{pspnet_forward.108} parent=0 // pred_check
    _
  $region19: #{pspnet_forward.108} parent=0 // pred_check_branch
    %152 = sbr.rel (0) target = $region21
  $region20: #{pspnet_forward.108} parent=0 // pred_region
    _
  $region21: #{pspnet_forward.108} parent=0 // pred_fallthru
    _
  // Predicated region
  $region22: #{pspnet_forward.108} parent=0 // pred_check
    _
  $region23: #{pspnet_forward.108} parent=0 // pred_check_branch
    %154 = sbr.rel (0) target = $region25
  $region24: #{pspnet_forward.108} parent=0 // pred_region
    _
  $region25: #{pspnet_forward.108} parent=0 // pred_fallthru
    _

// kernel: pspnet_forward.109
$region0: #{pspnet_forward.109}
  #allocation0 [shape = 'u32[]', space=smem, size = 0x4, offset = 0x4, fixed_abs, tag = 'smem constant byte address 0x4 - core index']
  #allocation1 [shape = 'u32[144,128]{1,0:T(1,128)}', space=vmem, size = 0x12000, scoped, tag = 'internal scratch']
  %s0 = inlined_call_operand.vmem [shape: bf16[32,288], index: 0, kind: input, shape index: {}]
  %s1 = inlined_call_operand.vmem [shape: bf16[288,32], index: 1, kind: input, shape index: {}]
  %s2 = inlined_call_operand.vmem [shape: f32[1,32], index: 2, kind: input, shape index: {}]
  %s3 = inlined_call_operand.vmem [shape: f32[1,32], index: 3, kind: input, shape index: {}]
  %s4 = inlined_call_operand.vmem [shape: f32[32,32], index: 4, kind: output, shape index: {}]
  %s5 = sld [smem:[#allocation0]]
  $region26: #{pspnet_forward.109} parent=0
    _
  %s7 = ssub.s32 1, %s5
  %s8 = scalar_select 0, %s7, %s5
  // Predicated region
  $region2: #{pspnet_forward.109} parent=0 // pred_check
    _
  $region3: #{pspnet_forward.109} parent=0 // pred_check_branch
    %10 = sbr.rel (0) target = $region5
  $region4: #{pspnet_forward.109} parent=0 // pred_region
    _
  $region5: #{pspnet_forward.109} parent=0 // pred_fallthru
    _
  // Predicated region
  $region6: #{pspnet_forward.109} parent=0 // pred_check
    _
  $region7: #{pspnet_forward.109} parent=0 // pred_check_branch
    %12 = sbr.rel (0) target = $region9
  $region8: #{pspnet_forward.109} parent=0 // pred_region
    _
  $region9: #{pspnet_forward.109} parent=0 // pred_fallthru
    _
  // Predicated region
  $region10: #{pspnet_forward.109} parent=0 // pred_check
    _
  $region11: #{pspnet_forward.109} parent=0 // pred_check_branch
    %14 = sbr.rel (0) target = $region13
  $region12: #{pspnet_forward.109} parent=0 // pred_region
    _
  $region13: #{pspnet_forward.109} parent=0 // pred_fallthru
    _
  // Predicated region
  $region14: #{pspnet_forward.109} parent=0 // pred_check
    _
  $region15: #{pspnet_forward.109} parent=0 // pred_check_branch
    %16 = sbr.rel (0) target = $region17
  $region16: #{pspnet_forward.109} parent=0 // pred_region
    _
  $region17: #{pspnet_forward.109} parent=0 // pred_fallthru
    _
  %v18 = vld [vmem:[%s0] sm:$0xff]
  %v19 = vld [vmem:[%s0 + $0x8] sm:$0xf]
  %v20 = vld [vmem:[%s0 + $0xc] sm:$0xff]
  %v21 = vld [vmem:[%s0 + $0x14] sm:$0xf]
  %v22 = vld [vmem:[%s0 + $0x18] sm:$0xff]
  %v23 = vld [vmem:[%s0 + $0x20] sm:$0xf]
  %v24 = vld [vmem:[%s0 + $0x24] sm:$0xff]
  %v25 = vld [vmem:[%s0 + $0x2c] sm:$0xf]
  %v26 = vld [vmem:[%s1] sm:$0xf]
  %v27 = vld [vmem:[%s1 + $0x4] sm:$0xf]
  %v28 = vld [vmem:[%s1 + $0x8] sm:$0xf]
  %v29 = vld [vmem:[%s1 + $0xc] sm:$0xf]
  %v30 = vld [vmem:[%s1 + $0x10] sm:$0xf]
  %v31 = vld [vmem:[%s1 + $0x14] sm:$0xf]
  %v32 = vld [vmem:[%s1 + $0x18] sm:$0xf]
  %v33 = vld [vmem:[%s1 + $0x1c] sm:$0xf]
  %v34 = vld [vmem:[%s1 + $0x20] sm:$0xf]
  %v35 = vld [vmem:[%s1 + $0x24] sm:$0xf]
  %v36 = vld [vmem:[%s1 + $0x28] sm:$0xf]
  %v37 = vld [vmem:[%s1 + $0x2c] sm:$0xf]
  %v38 = vld [vmem:[%s1 + $0x30] sm:$0xf]
  %v39 = vld [vmem:[%s1 + $0x34] sm:$0xf]
  %v40 = vld [vmem:[%s1 + $0x38] sm:$0xf]
  %v41 = vld [vmem:[%s1 + $0x3c] sm:$0xf]
  %v42 = vld [vmem:[%s1 + $0x40] sm:$0xf]
  %v43 = vld [vmem:[%s1 + $0x44] sm:$0xf]
  %v44 = vld [vmem:[%s1 + $0x48] sm:$0xf]
  %v45 = vld [vmem:[%s1 + $0x4c] sm:$0xf]
  %v46 = vld [vmem:[%s1 + $0x50] sm:$0xf]
  %v47 = vld [vmem:[%s1 + $0x54] sm:$0xf]
  %v48 = vld [vmem:[%s1 + $0x58] sm:$0xf]
  %v49 = vld [vmem:[%s1 + $0x5c] sm:$0xf]
  %v50 = vld [vmem:[%s1 + $0x60] sm:$0xf]
  %v51 = vld [vmem:[%s1 + $0x64] sm:$0xf]
  %v52 = vld [vmem:[%s1 + $0x68] sm:$0xf]
  %v53 = vld [vmem:[%s1 + $0x6c] sm:$0xf]
  %v54 = vld [vmem:[%s1 + $0x70] sm:$0xf]
  %v55 = vld [vmem:[%s1 + $0x74] sm:$0xf]
  %v56 = vld [vmem:[%s1 + $0x78] sm:$0xf]
  %v57 = vld [vmem:[%s1 + $0x7c] sm:$0xf]
  %v58 = vld [vmem:[%s1 + $0x80] sm:$0xf]
  %v59 = vld [vmem:[%s1 + $0x84] sm:$0xf]
  %v60 = vld [vmem:[%s1 + $0x88] sm:$0xf]
  %v61 = vld [vmem:[%s1 + $0x8c] sm:$0xf]
  %v70 = vunpack.c.l.b16 %v18
  %v71 = vunpack.c.h.b16 %v18
  %v72 = vunpack.c.l.b16 %v19
  %v73 = vunpack.c.l.b16 %v20
  %v74 = vunpack.c.h.b16 %v20
  %v75 = vunpack.c.l.b16 %v21
  %v76 = vunpack.c.l.b16 %v22
  %v77 = vunpack.c.h.b16 %v22
  %v78 = vunpack.c.l.b16 %v23
  %v79 = vunpack.c.l.b16 %v24
  %v80 = vunpack.c.h.b16 %v24
  %v81 = vunpack.c.l.b16 %v25
  %v82 = vpack.c.b16 %v73, %v70
  %v83 = vpack.c.b16 %v74, %v71
  %v84 = vpack.c.b16 %v75, %v72
  %v85 = vpack.c.b16 %v79, %v76
  %v86 = vpack.c.b16 %v80, %v77
  %v87 = vpack.c.b16 %v81, %v78
  %v128 = vunpack.c.l.b16 %v26
  %v129 = vunpack.c.l.b16 %v27
  %v130 = vunpack.c.l.b16 %v28
  %v131 = vunpack.c.l.b16 %v29
  %v132 = vunpack.c.l.b16 %v30
  %v133 = vunpack.c.l.b16 %v31
  %v134 = vunpack.c.l.b16 %v32
  %v135 = vunpack.c.l.b16 %v33
  %v136 = vunpack.c.l.b16 %v34
  %v137 = vunpack.c.l.b16 %v35
  %v138 = vunpack.c.l.b16 %v36
  %v139 = vunpack.c.l.b16 %v37
  %v140 = vunpack.c.l.b16 %v38
  %v141 = vunpack.c.l.b16 %v39
  %v142 = vunpack.c.l.b16 %v40
  %v143 = vunpack.c.l.b16 %v41
  %v144 = vunpack.c.l.b16 %v42
  %v145 = vunpack.c.l.b16 %v43
  %v146 = vunpack.c.l.b16 %v44
  %v147 = vunpack.c.l.b16 %v45
  %v148 = vunpack.c.l.b16 %v46
  %v149 = vunpack.c.l.b16 %v47
  %v150 = vunpack.c.l.b16 %v48
  %v151 = vunpack.c.l.b16 %v49
  %v152 = vunpack.c.l.b16 %v50
  %v153 = vunpack.c.l.b16 %v51
  %v154 = vunpack.c.l.b16 %v52
  %v155 = vunpack.c.l.b16 %v53
  %v156 = vunpack.c.l.b16 %v54
  %v157 = vunpack.c.l.b16 %v55
  %v158 = vunpack.c.l.b16 %v56
  %v159 = vunpack.c.l.b16 %v57
  %v160 = vunpack.c.l.b16 %v58
  %v161 = vunpack.c.l.b16 %v59
  %v162 = vunpack.c.l.b16 %v60
  %v163 = vunpack.c.l.b16 %v61
  %v164 = vpack.c.b16 %v129, %v128
  %v165 = vpack.c.b16 %v131, %v130
  %v166 = vpack.c.b16 %v133, %v132
  %v167 = vpack.c.b16 %v135, %v134
  %v168 = vpack.c.b16 %v137, %v136
  %v169 = vpack.c.b16 %v139, %v138
  %v170 = vpack.c.b16 %v141, %v140
  %v171 = vpack.c.b16 %v143, %v142
  %v172 = vpack.c.b16 %v145, %v144
  %v173 = vpack.c.b16 %v147, %v146
  %v174 = vpack.c.b16 %v149, %v148
  %v175 = vpack.c.b16 %v151, %v150
  %v176 = vpack.c.b16 %v153, %v152
  %v177 = vpack.c.b16 %v155, %v154
  %v178 = vpack.c.b16 %v157, %v156
  %v179 = vpack.c.b16 %v159, %v158
  %v180 = vpack.c.b16 %v161, %v160
  %v181 = vpack.c.b16 %v163, %v162
  %vm200 = vcmask 261120
  %v202 = vsel %vm200, %v84, 0
  %v205 = vsel %vm200, %v87, 0
  %207 = vmatprep.subr.bf16.mxu0 0
  %208 = vmatpush1.bf16.msra.mxu0 %v164
  %209 = vmatprep.subr.bf16.mxu0 0
  %210 = vmatpush1.bf16.msra.mxu0 %v165
  %211 = vmatprep.subr.bf16.mxu0 0
  %212 = vmatpush1.bf16.msra.mxu0 %v166
  %213 = vmatprep.subr.bf16.mxu0 0
  %214 = vmatpush1.bf16.msra.mxu0 %v167
  %215 = vmatprep.subr.bf16.mxu0 0
  %216 = vmatpush1.bf16.msra.mxu0 %v168
  %217 = vmatprep.subr.bf16.mxu0 0
  %218 = vmatpush1.bf16.msra.mxu0 %v169
  %219 = vmatprep.subr.bf16.mxu0 0
  %220 = vmatpush1.bf16.msra.mxu0 %v170
  %221 = vmatprep.subr.bf16.mxu0 0
  %222 = vmatpush1.bf16.msra.mxu0 %v171
  %223 = vmatprep.subr.bf16.mxu0 0
  %224 = vmatpush1.bf16.msra.mxu0 %v172
  %225 = vmatprep.subr.bf16.mxu0 0
  %226 = vmatpush1.bf16.msra.mxu0 %v173
  %227 = vmatprep.subr.bf16.mxu0 0
  %228 = vmatpush1.bf16.msra.mxu0 %v174
  %229 = vmatprep.subr.bf16.mxu0 0
  %230 = vmatpush1.bf16.msra.mxu0 %v175
  %231 = vmatprep.subr.bf16.mxu0 0
  %232 = vmatpush1.bf16.msra.mxu0 %v176
  %233 = vmatprep.subr.bf16.mxu0 0
  %234 = vmatpush1.bf16.msra.mxu0 %v177
  %235 = vmatprep.subr.bf16.mxu0 0
  %236 = vmatpush1.bf16.msra.mxu0 %v178
  %237 = vmatprep.subr.bf16.mxu0 0
  %238 = vmatpush1.bf16.msra.mxu0 %v179
  %239 = vmatprep.mubr.bf16.mxu0 %v83
  %240 = vmatmul.mubr.bf16.gmra.mrb[0].mxu0 %v82
  %v241 = vpop.f32.mrb[0].mxu0
  %v242 = vadd.f32 0.0, %v241
  %v243 = vpop.f32.mrb[0].mxu0
  %v244 = vpop.f32.mrb[0].mxu0
  %v245 = vadd.f32 0.0, %v244
  %v246 = vpop.f32.mrb[0].mxu0
  %247 = vmatprep.mubr.bf16.mxu0 %v86
  %248 = vmatmul.mubr.bf16.gmra.mrb[0].mxu0 %v85
  %v249 = vpop.f32.mrb[0].mxu0
  %v250 = vadd.f32 0.0, %v249
  %v251 = vpop.f32.mrb[0].mxu0
  %v252 = vpop.f32.mrb[0].mxu0
  %v253 = vadd.f32 0.0, %v252
  %v254 = vpop.f32.mrb[0].mxu0
  %255 = vdwg.mxu0
  %256 = vmatprep.subr.bf16.mxu0 0
  %257 = vmatpush1.bf16.msra.mxu0 %v180
  %258 = vmatprep.subr.bf16.mxu0 0
  %259 = vmatpush1.bf16.msra.mxu0 %v181
  %260 = vmatprep.subr.bf16.mxu0 0
  %261 = vmatpush1.bf16.msra.mxu0 0
  %262 = vmatprep.subr.bf16.mxu0 0
  %263 = vmatpush1.bf16.msra.mxu0 0
  %264 = vmatprep.subr.bf16.mxu0 0
  %265 = vmatpush1.bf16.msra.mxu0 0
  %266 = vmatprep.subr.bf16.mxu0 0
  %267 = vmatpush1.bf16.msra.mxu0 0
  %268 = vmatprep.subr.bf16.mxu0 0
  %269 = vmatpush1.bf16.msra.mxu0 0
  %270 = vmatprep.subr.bf16.mxu0 0
  %271 = vmatpush1.bf16.msra.mxu0 0
  %272 = vmatprep.subr.bf16.mxu0 0
  %273 = vmatpush1.bf16.msra.mxu0 0
  %274 = vmatprep.subr.bf16.mxu0 0
  %275 = vmatpush1.bf16.msra.mxu0 0
  %276 = vmatprep.subr.bf16.mxu0 0
  %277 = vmatpush1.bf16.msra.mxu0 0
  %278 = vmatprep.subr.bf16.mxu0 0
  %279 = vmatpush1.bf16.msra.mxu0 0
  %280 = vmatprep.subr.bf16.mxu0 0
  %281 = vmatpush1.bf16.msra.mxu0 0
  %282 = vmatprep.subr.bf16.mxu0 0
  %283 = vmatpush1.bf16.msra.mxu0 0
  %284 = vmatprep.subr.bf16.mxu0 0
  %285 = vmatpush1.bf16.msra.mxu0 0
  %286 = vmatprep.subr.bf16.mxu0 0
  %287 = vmatpush1.bf16.msra.mxu0 0
  %288 = vmatprep.mubr.bf16.mxu0 0
  %289 = vmatmul.mubr.bf16.gmra.mrb[0].mxu0 %v202
  %v290 = vpop.f32.mrb[0].mxu0
  %v291 = vadd.f32 %v242, %v290
  %v292 = vpop.f32.mrb[0].mxu0
  %v293 = vpop.f32.mrb[0].mxu0
  %v294 = vadd.f32 %v245, %v293
  %v295 = vpop.f32.mrb[0].mxu0
  %296 = vmatprep.mubr.bf16.mxu0 0
  %297 = vmatmul.mubr.bf16.gmra.mrb[0].mxu0 %v205
  %v298 = vpop.f32.mrb[0].mxu0
  %v299 = vadd.f32 %v250, %v298
  %v300 = vpop.f32.mrb[0].mxu0
  %v301 = vpop.f32.mrb[0].mxu0
  %v302 = vadd.f32 %v253, %v301
  %v303 = vpop.f32.mrb[0].mxu0
  %304 = vdwg.mxu0
  %v305 = vld [vmem:[%s2] sm:$0x1]
  %v307 = vlaneseq
  %v308 = vshrl.u32 %v307, 7
  %v309 = vsub.s32 0, %v308
  %v310 = vrot.slane %v305, %v309
  %v312 = vmul.f32 %v291, %v310
  %v313 = vmul.f32 %v294, %v310
  %v314 = vmul.f32 %v299, %v310
  %v315 = vmul.f32 %v302, %v310
  %v316 = vld [vmem:[%s3] sm:$0x1]
  %v318 = vlaneseq
  %v319 = vshrl.u32 %v318, 7
  %v320 = vsub.s32 0, %v319
  %v321 = vrot.slane %v316, %v320
  %v323 = vadd.f32 %v312, %v321
  %v324 = vadd.f32 %v313, %v321
  %v325 = vadd.f32 %v314, %v321
  %v326 = vadd.f32 %v315, %v321
  %v327 = vmax.f32 %v323, 0.0
  %v328 = vmax.f32 %v324, 0.0
  %v329 = vmax.f32 %v325, 0.0
  %v330 = vmax.f32 %v326, 0.0
  %331 = vst.msk [vmem:[%s4] sm:$0xff] %vm200, %v327
  %332 = vst.msk [vmem:[%s4 + $0x8] sm:$0xff] %vm200, %v328
  %333 = vst.msk [vmem:[%s4 + $0x10] sm:$0xff] %vm200, %v329
  %334 = vst.msk [vmem:[%s4 + $0x18] sm:$0xff] %vm200, %v330
  // Predicated region
  $region18: #{pspnet_forward.109} parent=0 // pred_check
    _
  $region19: #{pspnet_forward.109} parent=0 // pred_check_branch
    %336 = sbr.rel (0) target = $region21
  $region20: #{pspnet_forward.109} parent=0 // pred_region
    _
  $region21: #{pspnet_forward.109} parent=0 // pred_fallthru
    _
  // Predicated region
  $region22: #{pspnet_forward.109} parent=0 // pred_check
    _
  $region23: #{pspnet_forward.109} parent=0 // pred_check_branch
    %338 = sbr.rel (0) target = $region25
  $region24: #{pspnet_forward.109} parent=0 // pred_region
    _
  $region25: #{pspnet_forward.109} parent=0 // pred_fallthru
    _

// kernel: pspnet_forward.110
$region0: #{pspnet_forward.110}
  #allocation0 [shape = 'u32[]', space=smem, size = 0x4, offset = 0x4, fixed_abs, tag = 'smem constant byte address 0x4 - core index']
  #allocation1 [shape = 'u32[144,128]{1,0:T(1,128)}', space=vmem, size = 0x12000, scoped, tag = 'internal scratch']
  %s0 = inlined_call_operand.vmem [shape: bf16[32,64], index: 0, kind: input, shape index: {}]
  %s1 = inlined_call_operand.vmem [shape: bf16[64,128], index: 1, kind: input, shape index: {}]
  %s2 = inlined_call_operand.vmem [shape: f32[1,128], index: 2, kind: input, shape index: {}]
  %s3 = inlined_call_operand.vmem [shape: f32[1,128], index: 3, kind: input, shape index: {}]
  %s4 = inlined_call_operand.vmem [shape: f32[32,128], index: 4, kind: output, shape index: {}]
  %s5 = sld [smem:[#allocation0]]
  $region26: #{pspnet_forward.110} parent=0
    _
  %s7 = ssub.s32 1, %s5
  %s8 = scalar_select 0, %s7, %s5
  // Predicated region
  $region2: #{pspnet_forward.110} parent=0 // pred_check
    _
  $region3: #{pspnet_forward.110} parent=0 // pred_check_branch
    %10 = sbr.rel (0) target = $region5
  $region4: #{pspnet_forward.110} parent=0 // pred_region
    _
  $region5: #{pspnet_forward.110} parent=0 // pred_fallthru
    _
  // Predicated region
  $region6: #{pspnet_forward.110} parent=0 // pred_check
    _
  $region7: #{pspnet_forward.110} parent=0 // pred_check_branch
    %12 = sbr.rel (0) target = $region9
  $region8: #{pspnet_forward.110} parent=0 // pred_region
    _
  $region9: #{pspnet_forward.110} parent=0 // pred_fallthru
    _
  // Predicated region
  $region10: #{pspnet_forward.110} parent=0 // pred_check
    _
  $region11: #{pspnet_forward.110} parent=0 // pred_check_branch
    %14 = sbr.rel (0) target = $region13
  $region12: #{pspnet_forward.110} parent=0 // pred_region
    _
  $region13: #{pspnet_forward.110} parent=0 // pred_fallthru
    _
  // Predicated region
  $region14: #{pspnet_forward.110} parent=0 // pred_check
    _
  $region15: #{pspnet_forward.110} parent=0 // pred_check_branch
    %16 = sbr.rel (0) target = $region17
  $region16: #{pspnet_forward.110} parent=0 // pred_region
    _
  $region17: #{pspnet_forward.110} parent=0 // pred_fallthru
    _
  %v18 = vld [vmem:[%s0] sm:$0xf]
  %v19 = vld [vmem:[%s0 + $0x4] sm:$0xf]
  %v20 = vld [vmem:[%s0 + $0x8] sm:$0xf]
  %v21 = vld [vmem:[%s0 + $0xc] sm:$0xf]
  %v22 = vld [vmem:[%s1] sm:$0xf]
  %v23 = vld [vmem:[%s1 + $0x4] sm:$0xf]
  %v24 = vld [vmem:[%s1 + $0x8] sm:$0xf]
  %v25 = vld [vmem:[%s1 + $0xc] sm:$0xf]
  %v26 = vld [vmem:[%s1 + $0x10] sm:$0xf]
  %v27 = vld [vmem:[%s1 + $0x14] sm:$0xf]
  %v28 = vld [vmem:[%s1 + $0x18] sm:$0xf]
  %v29 = vld [vmem:[%s1 + $0x1c] sm:$0xf]
  %v34 = vunpack.c.l.b16 %v18
  %v35 = vunpack.c.l.b16 %v19
  %v36 = vunpack.c.l.b16 %v20
  %v37 = vunpack.c.l.b16 %v21
  %v38 = vpack.c.b16 %v35, %v34
  %v39 = vpack.c.b16 %v37, %v36
  %v48 = vunpack.c.l.b16 %v22
  %v49 = vunpack.c.l.b16 %v23
  %v50 = vunpack.c.l.b16 %v24
  %v51 = vunpack.c.l.b16 %v25
  %v52 = vunpack.c.l.b16 %v26
  %v53 = vunpack.c.l.b16 %v27
  %v54 = vunpack.c.l.b16 %v28
  %v55 = vunpack.c.l.b16 %v29
  %v56 = vpack.c.b16 %v49, %v48
  %v57 = vpack.c.b16 %v51, %v50
  %v58 = vpack.c.b16 %v53, %v52
  %v59 = vpack.c.b16 %v55, %v54
  %vm64 = vcmask 523264
  %v66 = vsel %vm64, %v38, 0
  %v69 = vsel %vm64, %v39, 0
  %71 = vmatprep.subr.bf16.mxu0 0
  %72 = vmatpush1.bf16.msra.mxu0 %v56
  %73 = vmatprep.subr.bf16.mxu0 0
  %74 = vmatpush1.bf16.msra.mxu0 %v57
  %75 = vmatprep.subr.bf16.mxu0 0
  %76 = vmatpush1.bf16.msra.mxu0 %v58
  %77 = vmatprep.subr.bf16.mxu0 0
  %78 = vmatpush1.bf16.msra.mxu0 %v59
  %79 = vmatprep.subr.bf16.mxu0 0
  %80 = vmatpush1.bf16.msra.mxu0 0
  %81 = vmatprep.subr.bf16.mxu0 0
  %82 = vmatpush1.bf16.msra.mxu0 0
  %83 = vmatprep.subr.bf16.mxu0 0
  %84 = vmatpush1.bf16.msra.mxu0 0
  %85 = vmatprep.subr.bf16.mxu0 0
  %86 = vmatpush1.bf16.msra.mxu0 0
  %87 = vmatprep.subr.bf16.mxu0 0
  %88 = vmatpush1.bf16.msra.mxu0 0
  %89 = vmatprep.subr.bf16.mxu0 0
  %90 = vmatpush1.bf16.msra.mxu0 0
  %91 = vmatprep.subr.bf16.mxu0 0
  %92 = vmatpush1.bf16.msra.mxu0 0
  %93 = vmatprep.subr.bf16.mxu0 0
  %94 = vmatpush1.bf16.msra.mxu0 0
  %95 = vmatprep.subr.bf16.mxu0 0
  %96 = vmatpush1.bf16.msra.mxu0 0
  %97 = vmatprep.subr.bf16.mxu0 0
  %98 = vmatpush1.bf16.msra.mxu0 0
  %99 = vmatprep.subr.bf16.mxu0 0
  %100 = vmatpush1.bf16.msra.mxu0 0
  %101 = vmatprep.subr.bf16.mxu0 0
  %102 = vmatpush1.bf16.msra.mxu0 0
  %103 = vmatprep.mubr.bf16.mxu0 0
  %104 = vmatmul.mubr.bf16.gmra.mrb[0].mxu0 %v66
  %v105 = vpop.f32.mrb[0].mxu0
  %v106 = vadd.f32 0.0, %v105
  %v107 = vpop.f32.mrb[0].mxu0
  %v108 = vpop.f32.mrb[0].mxu0
  %v109 = vadd.f32 0.0, %v108
  %v110 = vpop.f32.mrb[0].mxu0
  %111 = vmatprep.mubr.bf16.mxu0 0
  %112 = vmatmul.mubr.bf16.gmra.mrb[0].mxu0 %v69
  %v113 = vpop.f32.mrb[0].mxu0
  %v114 = vadd.f32 0.0, %v113
  %v115 = vpop.f32.mrb[0].mxu0
  %v116 = vpop.f32.mrb[0].mxu0
  %v117 = vadd.f32 0.0, %v116
  %v118 = vpop.f32.mrb[0].mxu0
  %119 = vdwg.mxu0
  %v120 = vld [vmem:[%s2] sm:$0x1]
  %v122 = vlaneseq
  %v123 = vshrl.u32 %v122, 7
  %v124 = vsub.s32 0, %v123
  %v125 = vrot.slane %v120, %v124
  %v127 = vmul.f32 %v106, %v125
  %v128 = vmul.f32 %v109, %v125
  %v129 = vmul.f32 %v114, %v125
  %v130 = vmul.f32 %v117, %v125
  %v131 = vld [vmem:[%s3] sm:$0x1]
  %v133 = vlaneseq
  %v134 = vshrl.u32 %v133, 7
  %v135 = vsub.s32 0, %v134
  %v136 = vrot.slane %v131, %v135
  %v138 = vadd.f32 %v127, %v136
  %v139 = vadd.f32 %v128, %v136
  %v140 = vadd.f32 %v129, %v136
  %v141 = vadd.f32 %v130, %v136
  %142 = vst [vmem:[%s4] sm:$0xff] %v138
  %143 = vst [vmem:[%s4 + $0x8] sm:$0xff] %v139
  %144 = vst [vmem:[%s4 + $0x10] sm:$0xff] %v140
  %145 = vst [vmem:[%s4 + $0x18] sm:$0xff] %v141
  // Predicated region
  $region18: #{pspnet_forward.110} parent=0 // pred_check
    _
  $region19: #{pspnet_forward.110} parent=0 // pred_check_branch
    %147 = sbr.rel (0) target = $region21
  $region20: #{pspnet_forward.110} parent=0 // pred_region
    _
  $region21: #{pspnet_forward.110} parent=0 // pred_fallthru
    _
  // Predicated region
  $region22: #{pspnet_forward.110} parent=0 // pred_check
    _
  $region23: #{pspnet_forward.110} parent=0 // pred_check_branch
    %149 = sbr.rel (0) target = $region25
  $region24: #{pspnet_forward.110} parent=0 // pred_region
    _
  $region25: #{pspnet_forward.110} parent=0 // pred_fallthru
    _

// kernel: pspnet_forward.111
$region0: #{pspnet_forward.111}
  #allocation0 [shape = 'u32[]', space=smem, size = 0x4, offset = 0x4, fixed_abs, tag = 'smem constant byte address 0x4 - core index']
  #allocation1 [shape = 'u32[144,128]{1,0:T(1,128)}', space=vmem, size = 0x12000, scoped, tag = 'internal scratch']
  %s0 = inlined_call_operand.vmem [shape: bf16[32,32], index: 0, kind: input, shape index: {}]
  %s1 = inlined_call_operand.vmem [shape: bf16[32,128], index: 1, kind: input, shape index: {}]
  %s2 = inlined_call_operand.vmem [shape: f32[1,128], index: 2, kind: input, shape index: {}]
  %s3 = inlined_call_operand.vmem [shape: f32[1,128], index: 3, kind: input, shape index: {}]
  %s4 = inlined_call_operand.vmem [shape: f32[32,128], index: 4, kind: input, shape index: {}]
  %s5 = inlined_call_operand.vmem [shape: f32[32,128], index: 5, kind: output, shape index: {}]
  %s6 = sld [smem:[#allocation0]]
  $region30: #{pspnet_forward.111} parent=0
    _
  %s8 = ssub.s32 1, %s6
  %s9 = scalar_select 0, %s8, %s6
  // Predicated region
  $region2: #{pspnet_forward.111} parent=0 // pred_check
    _
  $region3: #{pspnet_forward.111} parent=0 // pred_check_branch
    %11 = sbr.rel (0) target = $region5
  $region4: #{pspnet_forward.111} parent=0 // pred_region
    _
  $region5: #{pspnet_forward.111} parent=0 // pred_fallthru
    _
  // Predicated region
  $region6: #{pspnet_forward.111} parent=0 // pred_check
    _
  $region7: #{pspnet_forward.111} parent=0 // pred_check_branch
    %13 = sbr.rel (0) target = $region9
  $region8: #{pspnet_forward.111} parent=0 // pred_region
    _
  $region9: #{pspnet_forward.111} parent=0 // pred_fallthru
    _
  // Predicated region
  $region10: #{pspnet_forward.111} parent=0 // pred_check
    _
  $region11: #{pspnet_forward.111} parent=0 // pred_check_branch
    %15 = sbr.rel (0) target = $region13
  $region12: #{pspnet_forward.111} parent=0 // pred_region
    _
  $region13: #{pspnet_forward.111} parent=0 // pred_fallthru
    _
  // Predicated region
  $region14: #{pspnet_forward.111} parent=0 // pred_check
    _
  $region15: #{pspnet_forward.111} parent=0 // pred_check_branch
    %17 = sbr.rel (0) target = $region17
  $region16: #{pspnet_forward.111} parent=0 // pred_region
    _
  $region17: #{pspnet_forward.111} parent=0 // pred_fallthru
    _
  // Predicated region
  $region18: #{pspnet_forward.111} parent=0 // pred_check
    _
  $region19: #{pspnet_forward.111} parent=0 // pred_check_branch
    %19 = sbr.rel (0) target = $region21
  $region20: #{pspnet_forward.111} parent=0 // pred_region
    _
  $region21: #{pspnet_forward.111} parent=0 // pred_fallthru
    _
  %v21 = vld [vmem:[%s0] sm:$0xf]
  %v22 = vld [vmem:[%s0 + $0x4] sm:$0xf]
  %v23 = vld [vmem:[%s0 + $0x8] sm:$0xf]
  %v24 = vld [vmem:[%s0 + $0xc] sm:$0xf]
  %v25 = vld [vmem:[%s1] sm:$0xf]
  %v26 = vld [vmem:[%s1 + $0x4] sm:$0xf]
  %v27 = vld [vmem:[%s1 + $0x8] sm:$0xf]
  %v28 = vld [vmem:[%s1 + $0xc] sm:$0xf]
  %v33 = vunpack.c.l.b16 %v21
  %v34 = vunpack.c.l.b16 %v22
  %v35 = vunpack.c.l.b16 %v23
  %v36 = vunpack.c.l.b16 %v24
  %v37 = vpack.c.b16 %v34, %v33
  %v38 = vpack.c.b16 %v36, %v35
  %v43 = vunpack.c.l.b16 %v25
  %v44 = vunpack.c.l.b16 %v26
  %v45 = vunpack.c.l.b16 %v27
  %v46 = vunpack.c.l.b16 %v28
  %v47 = vpack.c.b16 %v44, %v43
  %v48 = vpack.c.b16 %v46, %v45
  %vm51 = vcmask 261120
  %v53 = vsel %vm51, %v37, 0
  %v56 = vsel %vm51, %v38, 0
  %58 = vmatprep.subr.bf16.mxu0 0
  %59 = vmatpush1.bf16.msra.mxu0 %v47
  %60 = vmatprep.subr.bf16.mxu0 0
  %61 = vmatpush1.bf16.msra.mxu0 %v48
  %62 = vmatprep.subr.bf16.mxu0 0
  %63 = vmatpush1.bf16.msra.mxu0 0
  %64 = vmatprep.subr.bf16.mxu0 0
  %65 = vmatpush1.bf16.msra.mxu0 0
  %66 = vmatprep.subr.bf16.mxu0 0
  %67 = vmatpush1.bf16.msra.mxu0 0
  %68 = vmatprep.subr.bf16.mxu0 0
  %69 = vmatpush1.bf16.msra.mxu0 0
  %70 = vmatprep.subr.bf16.mxu0 0
  %71 = vmatpush1.bf16.msra.mxu0 0
  %72 = vmatprep.subr.bf16.mxu0 0
  %73 = vmatpush1.bf16.msra.mxu0 0
  %74 = vmatprep.subr.bf16.mxu0 0
  %75 = vmatpush1.bf16.msra.mxu0 0
  %76 = vmatprep.subr.bf16.mxu0 0
  %77 = vmatpush1.bf16.msra.mxu0 0
  %78 = vmatprep.subr.bf16.mxu0 0
  %79 = vmatpush1.bf16.msra.mxu0 0
  %80 = vmatprep.subr.bf16.mxu0 0
  %81 = vmatpush1.bf16.msra.mxu0 0
  %82 = vmatprep.subr.bf16.mxu0 0
  %83 = vmatpush1.bf16.msra.mxu0 0
  %84 = vmatprep.subr.bf16.mxu0 0
  %85 = vmatpush1.bf16.msra.mxu0 0
  %86 = vmatprep.subr.bf16.mxu0 0
  %87 = vmatpush1.bf16.msra.mxu0 0
  %88 = vmatprep.subr.bf16.mxu0 0
  %89 = vmatpush1.bf16.msra.mxu0 0
  %90 = vmatprep.mubr.bf16.mxu0 0
  %91 = vmatmul.mubr.bf16.gmra.mrb[0].mxu0 %v53
  %v92 = vpop.f32.mrb[0].mxu0
  %v93 = vadd.f32 0.0, %v92
  %v94 = vpop.f32.mrb[0].mxu0
  %v95 = vpop.f32.mrb[0].mxu0
  %v96 = vadd.f32 0.0, %v95
  %v97 = vpop.f32.mrb[0].mxu0
  %98 = vmatprep.mubr.bf16.mxu0 0
  %99 = vmatmul.mubr.bf16.gmra.mrb[0].mxu0 %v56
  %v100 = vpop.f32.mrb[0].mxu0
  %v101 = vadd.f32 0.0, %v100
  %v102 = vpop.f32.mrb[0].mxu0
  %v103 = vpop.f32.mrb[0].mxu0
  %v104 = vadd.f32 0.0, %v103
  %v105 = vpop.f32.mrb[0].mxu0
  %106 = vdwg.mxu0
  %v107 = vld [vmem:[%s2] sm:$0x1]
  %v109 = vlaneseq
  %v110 = vshrl.u32 %v109, 7
  %v111 = vsub.s32 0, %v110
  %v112 = vrot.slane %v107, %v111
  %v114 = vmul.f32 %v93, %v112
  %v115 = vmul.f32 %v96, %v112
  %v116 = vmul.f32 %v101, %v112
  %v117 = vmul.f32 %v104, %v112
  %v118 = vld [vmem:[%s3] sm:$0x1]
  %v120 = vlaneseq
  %v121 = vshrl.u32 %v120, 7
  %v122 = vsub.s32 0, %v121
  %v123 = vrot.slane %v118, %v122
  %v125 = vadd.f32 %v114, %v123
  %v126 = vadd.f32 %v115, %v123
  %v127 = vadd.f32 %v116, %v123
  %v128 = vadd.f32 %v117, %v123
  %v129 = vld [vmem:[%s4] sm:$0xff]
  %v130 = vld [vmem:[%s4 + $0x8] sm:$0xff]
  %v131 = vld [vmem:[%s4 + $0x10] sm:$0xff]
  %v132 = vld [vmem:[%s4 + $0x18] sm:$0xff]
  %v133 = vadd.f32 %v125, %v129
  %v134 = vadd.f32 %v126, %v130
  %v135 = vadd.f32 %v127, %v131
  %v136 = vadd.f32 %v128, %v132
  %v137 = vmax.f32 %v133, 0.0
  %v138 = vmax.f32 %v134, 0.0
  %v139 = vmax.f32 %v135, 0.0
  %v140 = vmax.f32 %v136, 0.0
  %141 = vst [vmem:[%s5] sm:$0xff] %v137
  %142 = vst [vmem:[%s5 + $0x8] sm:$0xff] %v138
  %143 = vst [vmem:[%s5 + $0x10] sm:$0xff] %v139
  %144 = vst [vmem:[%s5 + $0x18] sm:$0xff] %v140
  // Predicated region
  $region22: #{pspnet_forward.111} parent=0 // pred_check
    _
  $region23: #{pspnet_forward.111} parent=0 // pred_check_branch
    %146 = sbr.rel (0) target = $region25
  $region24: #{pspnet_forward.111} parent=0 // pred_region
    _
  $region25: #{pspnet_forward.111} parent=0 // pred_fallthru
    _
  // Predicated region
  $region26: #{pspnet_forward.111} parent=0 // pred_check
    _
  $region27: #{pspnet_forward.111} parent=0 // pred_check_branch
    %148 = sbr.rel (0) target = $region29
  $region28: #{pspnet_forward.111} parent=0 // pred_region
    _
  $region29: #{pspnet_forward.111} parent=0 // pred_fallthru
    _

// kernel: pspnet_forward.112
$region0: #{pspnet_forward.112}
  #allocation0 [shape = 'u32[]', space=smem, size = 0x4, offset = 0x4, fixed_abs, tag = 'smem constant byte address 0x4 - core index']
  #allocation1 [shape = 'u32[144,128]{1,0:T(1,128)}', space=vmem, size = 0x12000, scoped, tag = 'internal scratch']
  %s0 = inlined_call_operand.vmem [shape: bf16[32,128], index: 0, kind: input, shape index: {}]
  %s1 = inlined_call_operand.vmem [shape: bf16[128,32], index: 1, kind: input, shape index: {}]
  %s2 = inlined_call_operand.vmem [shape: f32[1,32], index: 2, kind: input, shape index: {}]
  %s3 = inlined_call_operand.vmem [shape: f32[1,32], index: 3, kind: input, shape index: {}]
  %s4 = inlined_call_operand.vmem [shape: f32[32,32], index: 4, kind: output, shape index: {}]
  %s5 = sld [smem:[#allocation0]]
  $region26: #{pspnet_forward.112} parent=0
    _
  %s7 = ssub.s32 1, %s5
  %s8 = scalar_select 0, %s7, %s5
  // Predicated region
  $region2: #{pspnet_forward.112} parent=0 // pred_check
    _
  $region3: #{pspnet_forward.112} parent=0 // pred_check_branch
    %10 = sbr.rel (0) target = $region5
  $region4: #{pspnet_forward.112} parent=0 // pred_region
    _
  $region5: #{pspnet_forward.112} parent=0 // pred_fallthru
    _
  // Predicated region
  $region6: #{pspnet_forward.112} parent=0 // pred_check
    _
  $region7: #{pspnet_forward.112} parent=0 // pred_check_branch
    %12 = sbr.rel (0) target = $region9
  $region8: #{pspnet_forward.112} parent=0 // pred_region
    _
  $region9: #{pspnet_forward.112} parent=0 // pred_fallthru
    _
  // Predicated region
  $region10: #{pspnet_forward.112} parent=0 // pred_check
    _
  $region11: #{pspnet_forward.112} parent=0 // pred_check_branch
    %14 = sbr.rel (0) target = $region13
  $region12: #{pspnet_forward.112} parent=0 // pred_region
    _
  $region13: #{pspnet_forward.112} parent=0 // pred_fallthru
    _
  // Predicated region
  $region14: #{pspnet_forward.112} parent=0 // pred_check
    _
  $region15: #{pspnet_forward.112} parent=0 // pred_check_branch
    %16 = sbr.rel (0) target = $region17
  $region16: #{pspnet_forward.112} parent=0 // pred_region
    _
  $region17: #{pspnet_forward.112} parent=0 // pred_fallthru
    _
  %v18 = vld [vmem:[%s0] sm:$0xf]
  %v19 = vld [vmem:[%s0 + $0x4] sm:$0xf]
  %v20 = vld [vmem:[%s0 + $0x8] sm:$0xf]
  %v21 = vld [vmem:[%s0 + $0xc] sm:$0xf]
  %v22 = vld [vmem:[%s1] sm:$0xf]
  %v23 = vld [vmem:[%s1 + $0x4] sm:$0xf]
  %v24 = vld [vmem:[%s1 + $0x8] sm:$0xf]
  %v25 = vld [vmem:[%s1 + $0xc] sm:$0xf]
  %v26 = vld [vmem:[%s1 + $0x10] sm:$0xf]
  %v27 = vld [vmem:[%s1 + $0x14] sm:$0xf]
  %v28 = vld [vmem:[%s1 + $0x18] sm:$0xf]
  %v29 = vld [vmem:[%s1 + $0x1c] sm:$0xf]
  %v30 = vld [vmem:[%s1 + $0x20] sm:$0xf]
  %v31 = vld [vmem:[%s1 + $0x24] sm:$0xf]
  %v32 = vld [vmem:[%s1 + $0x28] sm:$0xf]
  %v33 = vld [vmem:[%s1 + $0x2c] sm:$0xf]
  %v34 = vld [vmem:[%s1 + $0x30] sm:$0xf]
  %v35 = vld [vmem:[%s1 + $0x34] sm:$0xf]
  %v36 = vld [vmem:[%s1 + $0x38] sm:$0xf]
  %v37 = vld [vmem:[%s1 + $0x3c] sm:$0xf]
  %v42 = vunpack.c.l.b16 %v18
  %v43 = vunpack.c.l.b16 %v19
  %v44 = vunpack.c.l.b16 %v20
  %v45 = vunpack.c.l.b16 %v21
  %v46 = vpack.c.b16 %v43, %v42
  %v47 = vpack.c.b16 %v45, %v44
  %v66 = vunpack.c.l.b16 %v22
  %v67 = vunpack.c.l.b16 %v23
  %v68 = vunpack.c.l.b16 %v24
  %v69 = vunpack.c.l.b16 %v25
  %v70 = vunpack.c.l.b16 %v26
  %v71 = vunpack.c.l.b16 %v27
  %v72 = vunpack.c.l.b16 %v28
  %v73 = vunpack.c.l.b16 %v29
  %v74 = vunpack.c.l.b16 %v30
  %v75 = vunpack.c.l.b16 %v31
  %v76 = vunpack.c.l.b16 %v32
  %v77 = vunpack.c.l.b16 %v33
  %v78 = vunpack.c.l.b16 %v34
  %v79 = vunpack.c.l.b16 %v35
  %v80 = vunpack.c.l.b16 %v36
  %v81 = vunpack.c.l.b16 %v37
  %v82 = vpack.c.b16 %v67, %v66
  %v83 = vpack.c.b16 %v69, %v68
  %v84 = vpack.c.b16 %v71, %v70
  %v85 = vpack.c.b16 %v73, %v72
  %v86 = vpack.c.b16 %v75, %v74
  %v87 = vpack.c.b16 %v77, %v76
  %v88 = vpack.c.b16 %v79, %v78
  %v89 = vpack.c.b16 %v81, %v80
  %98 = vmatprep.subr.bf16.mxu0 0
  %99 = vmatpush1.bf16.msra.mxu0 %v82
  %100 = vmatprep.subr.bf16.mxu0 0
  %101 = vmatpush1.bf16.msra.mxu0 %v83
  %102 = vmatprep.subr.bf16.mxu0 0
  %103 = vmatpush1.bf16.msra.mxu0 %v84
  %104 = vmatprep.subr.bf16.mxu0 0
  %105 = vmatpush1.bf16.msra.mxu0 %v85
  %106 = vmatprep.subr.bf16.mxu0 0
  %107 = vmatpush1.bf16.msra.mxu0 %v86
  %108 = vmatprep.subr.bf16.mxu0 0
  %109 = vmatpush1.bf16.msra.mxu0 %v87
  %110 = vmatprep.subr.bf16.mxu0 0
  %111 = vmatpush1.bf16.msra.mxu0 %v88
  %112 = vmatprep.subr.bf16.mxu0 0
  %113 = vmatpush1.bf16.msra.mxu0 %v89
  %114 = vmatprep.subr.bf16.mxu0 0
  %115 = vmatpush1.bf16.msra.mxu0 0
  %116 = vmatprep.subr.bf16.mxu0 0
  %117 = vmatpush1.bf16.msra.mxu0 0
  %118 = vmatprep.subr.bf16.mxu0 0
  %119 = vmatpush1.bf16.msra.mxu0 0
  %120 = vmatprep.subr.bf16.mxu0 0
  %121 = vmatpush1.bf16.msra.mxu0 0
  %122 = vmatprep.subr.bf16.mxu0 0
  %123 = vmatpush1.bf16.msra.mxu0 0
  %124 = vmatprep.subr.bf16.mxu0 0
  %125 = vmatpush1.bf16.msra.mxu0 0
  %126 = vmatprep.subr.bf16.mxu0 0
  %127 = vmatpush1.bf16.msra.mxu0 0
  %128 = vmatprep.subr.bf16.mxu0 0
  %129 = vmatpush1.bf16.msra.mxu0 0
  %130 = vmatprep.mubr.bf16.mxu0 0
  %131 = vmatmul.mubr.bf16.gmra.mrb[0].mxu0 %v46
  %v132 = vpop.f32.mrb[0].mxu0
  %v133 = vadd.f32 0.0, %v132
  %v134 = vpop.f32.mrb[0].mxu0
  %v135 = vpop.f32.mrb[0].mxu0
  %v136 = vadd.f32 0.0, %v135
  %v137 = vpop.f32.mrb[0].mxu0
  %138 = vmatprep.mubr.bf16.mxu0 0
  %139 = vmatmul.mubr.bf16.gmra.mrb[0].mxu0 %v47
  %v140 = vpop.f32.mrb[0].mxu0
  %v141 = vadd.f32 0.0, %v140
  %v142 = vpop.f32.mrb[0].mxu0
  %v143 = vpop.f32.mrb[0].mxu0
  %v144 = vadd.f32 0.0, %v143
  %v145 = vpop.f32.mrb[0].mxu0
  %146 = vdwg.mxu0
  %v147 = vld [vmem:[%s2] sm:$0x1]
  %v149 = vlaneseq
  %v150 = vshrl.u32 %v149, 7
  %v151 = vsub.s32 0, %v150
  %v152 = vrot.slane %v147, %v151
  %v154 = vmul.f32 %v133, %v152
  %v155 = vmul.f32 %v136, %v152
  %v156 = vmul.f32 %v141, %v152
  %v157 = vmul.f32 %v144, %v152
  %v158 = vld [vmem:[%s3] sm:$0x1]
  %v160 = vlaneseq
  %v161 = vshrl.u32 %v160, 7
  %v162 = vsub.s32 0, %v161
  %v163 = vrot.slane %v158, %v162
  %v165 = vadd.f32 %v154, %v163
  %v166 = vadd.f32 %v155, %v163
  %v167 = vadd.f32 %v156, %v163
  %v168 = vadd.f32 %v157, %v163
  %v169 = vmax.f32 %v165, 0.0
  %v170 = vmax.f32 %v166, 0.0
  %v171 = vmax.f32 %v167, 0.0
  %v172 = vmax.f32 %v168, 0.0
  %vm173 = vcmask 261120
  %174 = vst.msk [vmem:[%s4] sm:$0xff] %vm173, %v169
  %175 = vst.msk [vmem:[%s4 + $0x8] sm:$0xff] %vm173, %v170
  %176 = vst.msk [vmem:[%s4 + $0x10] sm:$0xff] %vm173, %v171
  %177 = vst.msk [vmem:[%s4 + $0x18] sm:$0xff] %vm173, %v172
  // Predicated region
  $region18: #{pspnet_forward.112} parent=0 // pred_check
    _
  $region19: #{pspnet_forward.112} parent=0 // pred_check_branch
    %179 = sbr.rel (0) target = $region21
  $region20: #{pspnet_forward.112} parent=0 // pred_region
    _
  $region21: #{pspnet_forward.112} parent=0 // pred_fallthru
    _
  // Predicated region
  $region22: #{pspnet_forward.112} parent=0 // pred_check
    _
  $region23: #{pspnet_forward.112} parent=0 // pred_check_branch
    %181 = sbr.rel (0) target = $region25
  $region24: #{pspnet_forward.112} parent=0 // pred_region
    _
  $region25: #{pspnet_forward.112} parent=0 // pred_fallthru
    _

// kernel: pspnet_forward.121
$region0: #{pspnet_forward.121}
  #allocation0 [shape = 'u32[]', space=smem, size = 0x4, offset = 0x4, fixed_abs, tag = 'smem constant byte address 0x4 - core index']
  #allocation1 [shape = 'u32[144,128]{1,0:T(1,128)}', space=vmem, size = 0x12000, scoped, tag = 'internal scratch']
  %s0 = inlined_call_operand.vmem [shape: bf16[80,128], index: 0, kind: input, shape index: {}]
  %s1 = inlined_call_operand.vmem [shape: bf16[128,32], index: 1, kind: input, shape index: {}]
  %s2 = inlined_call_operand.vmem [shape: f32[1,32], index: 2, kind: input, shape index: {}]
  %s3 = inlined_call_operand.vmem [shape: f32[1,32], index: 3, kind: input, shape index: {}]
  %s4 = inlined_call_operand.vmem [shape: f32[80,32], index: 4, kind: output, shape index: {}]
  %s5 = sld [smem:[#allocation0]]
  $region26: #{pspnet_forward.121} parent=0
    _
  %s7 = ssub.s32 1, %s5
  %s8 = scalar_select 0, %s7, %s5
  // Predicated region
  $region2: #{pspnet_forward.121} parent=0 // pred_check
    _
  $region3: #{pspnet_forward.121} parent=0 // pred_check_branch
    %10 = sbr.rel (0) target = $region5
  $region4: #{pspnet_forward.121} parent=0 // pred_region
    _
  $region5: #{pspnet_forward.121} parent=0 // pred_fallthru
    _
  // Predicated region
  $region6: #{pspnet_forward.121} parent=0 // pred_check
    _
  $region7: #{pspnet_forward.121} parent=0 // pred_check_branch
    %12 = sbr.rel (0) target = $region9
  $region8: #{pspnet_forward.121} parent=0 // pred_region
    _
  $region9: #{pspnet_forward.121} parent=0 // pred_fallthru
    _
  // Predicated region
  $region10: #{pspnet_forward.121} parent=0 // pred_check
    _
  $region11: #{pspnet_forward.121} parent=0 // pred_check_branch
    %14 = sbr.rel (0) target = $region13
  $region12: #{pspnet_forward.121} parent=0 // pred_region
    _
  $region13: #{pspnet_forward.121} parent=0 // pred_fallthru
    _
  // Predicated region
  $region14: #{pspnet_forward.121} parent=0 // pred_check
    _
  $region15: #{pspnet_forward.121} parent=0 // pred_check_branch
    %16 = sbr.rel (0) target = $region17
  $region16: #{pspnet_forward.121} parent=0 // pred_region
    _
  $region17: #{pspnet_forward.121} parent=0 // pred_fallthru
    _
  %v18 = vld [vmem:[%s0] sm:$0xf]
  %v19 = vld [vmem:[%s0 + $0x4] sm:$0xf]
  %v20 = vld [vmem:[%s0 + $0x8] sm:$0xf]
  %v21 = vld [vmem:[%s0 + $0xc] sm:$0xf]
  %v22 = vld [vmem:[%s0 + $0x10] sm:$0xf]
  %v23 = vld [vmem:[%s0 + $0x14] sm:$0xf]
  %v24 = vld [vmem:[%s0 + $0x18] sm:$0xf]
  %v25 = vld [vmem:[%s0 + $0x1c] sm:$0xf]
  %v26 = vld [vmem:[%s0 + $0x20] sm:$0xf]
  %v27 = vld [vmem:[%s0 + $0x24] sm:$0xf]
  %v28 = vld [vmem:[%s1] sm:$0xf]
  %v29 = vld [vmem:[%s1 + $0x4] sm:$0xf]
  %v30 = vld [vmem:[%s1 + $0x8] sm:$0xf]
  %v31 = vld [vmem:[%s1 + $0xc] sm:$0xf]
  %v32 = vld [vmem:[%s1 + $0x10] sm:$0xf]
  %v33 = vld [vmem:[%s1 + $0x14] sm:$0xf]
  %v34 = vld [vmem:[%s1 + $0x18] sm:$0xf]
  %v35 = vld [vmem:[%s1 + $0x1c] sm:$0xf]
  %v36 = vld [vmem:[%s1 + $0x20] sm:$0xf]
  %v37 = vld [vmem:[%s1 + $0x24] sm:$0xf]
  %v38 = vld [vmem:[%s1 + $0x28] sm:$0xf]
  %v39 = vld [vmem:[%s1 + $0x2c] sm:$0xf]
  %v40 = vld [vmem:[%s1 + $0x30] sm:$0xf]
  %v41 = vld [vmem:[%s1 + $0x34] sm:$0xf]
  %v42 = vld [vmem:[%s1 + $0x38] sm:$0xf]
  %v43 = vld [vmem:[%s1 + $0x3c] sm:$0xf]
  %v54 = vunpack.c.l.b16 %v18
  %v55 = vunpack.c.l.b16 %v19
  %v56 = vunpack.c.l.b16 %v20
  %v57 = vunpack.c.l.b16 %v21
  %v58 = vunpack.c.l.b16 %v22
  %v59 = vunpack.c.l.b16 %v23
  %v60 = vunpack.c.l.b16 %v24
  %v61 = vunpack.c.l.b16 %v25
  %v62 = vunpack.c.l.b16 %v26
  %v63 = vunpack.c.l.b16 %v27
  %v64 = vpack.c.b16 %v55, %v54
  %v65 = vpack.c.b16 %v57, %v56
  %v66 = vpack.c.b16 %v59, %v58
  %v67 = vpack.c.b16 %v61, %v60
  %v68 = vpack.c.b16 %v63, %v62
  %v90 = vunpack.c.l.b16 %v28
  %v91 = vunpack.c.l.b16 %v29
  %v92 = vunpack.c.l.b16 %v30
  %v93 = vunpack.c.l.b16 %v31
  %v94 = vunpack.c.l.b16 %v32
  %v95 = vunpack.c.l.b16 %v33
  %v96 = vunpack.c.l.b16 %v34
  %v97 = vunpack.c.l.b16 %v35
  %v98 = vunpack.c.l.b16 %v36
  %v99 = vunpack.c.l.b16 %v37
  %v100 = vunpack.c.l.b16 %v38
  %v101 = vunpack.c.l.b16 %v39
  %v102 = vunpack.c.l.b16 %v40
  %v103 = vunpack.c.l.b16 %v41
  %v104 = vunpack.c.l.b16 %v42
  %v105 = vunpack.c.l.b16 %v43
  %v106 = vpack.c.b16 %v91, %v90
  %v107 = vpack.c.b16 %v93, %v92
  %v108 = vpack.c.b16 %v95, %v94
  %v109 = vpack.c.b16 %v97, %v96
  %v110 = vpack.c.b16 %v99, %v98
  %v111 = vpack.c.b16 %v101, %v100
  %v112 = vpack.c.b16 %v103, %v102
  %v113 = vpack.c.b16 %v105, %v104
  %122 = vmatprep.subr.bf16.mxu0 0
  %123 = vmatpush1.bf16.msra.mxu0 %v106
  %124 = vmatprep.subr.bf16.mxu0 0
  %125 = vmatpush1.bf16.msra.mxu0 %v107
  %126 = vmatprep.subr.bf16.mxu0 0
  %127 = vmatpush1.bf16.msra.mxu0 %v108
  %128 = vmatprep.subr.bf16.mxu0 0
  %129 = vmatpush1.bf16.msra.mxu0 %v109
  %130 = vmatprep.subr.bf16.mxu0 0
  %131 = vmatpush1.bf16.msra.mxu0 %v110
  %132 = vmatprep.subr.bf16.mxu0 0
  %133 = vmatpush1.bf16.msra.mxu0 %v111
  %134 = vmatprep.subr.bf16.mxu0 0
  %135 = vmatpush1.bf16.msra.mxu0 %v112
  %136 = vmatprep.subr.bf16.mxu0 0
  %137 = vmatpush1.bf16.msra.mxu0 %v113
  %138 = vmatprep.subr.bf16.mxu0 0
  %139 = vmatpush1.bf16.msra.mxu0 0
  %140 = vmatprep.subr.bf16.mxu0 0
  %141 = vmatpush1.bf16.msra.mxu0 0
  %142 = vmatprep.subr.bf16.mxu0 0
  %143 = vmatpush1.bf16.msra.mxu0 0
  %144 = vmatprep.subr.bf16.mxu0 0
  %145 = vmatpush1.bf16.msra.mxu0 0
  %146 = vmatprep.subr.bf16.mxu0 0
  %147 = vmatpush1.bf16.msra.mxu0 0
  %148 = vmatprep.subr.bf16.mxu0 0
  %149 = vmatpush1.bf16.msra.mxu0 0
  %150 = vmatprep.subr.bf16.mxu0 0
  %151 = vmatpush1.bf16.msra.mxu0 0
  %152 = vmatprep.subr.bf16.mxu0 0
  %153 = vmatpush1.bf16.msra.mxu0 0
  %154 = vmatprep.mubr.bf16.mxu0 0
  %155 = vmatmul.mubr.bf16.gmra.mrb[0].mxu0 %v64
  %v156 = vpop.f32.mrb[0].mxu0
  %v157 = vadd.f32 0.0, %v156
  %v158 = vpop.f32.mrb[0].mxu0
  %v159 = vpop.f32.mrb[0].mxu0
  %v160 = vadd.f32 0.0, %v159
  %v161 = vpop.f32.mrb[0].mxu0
  %162 = vmatprep.mubr.bf16.mxu0 0
  %163 = vmatmul.mubr.bf16.gmra.mrb[0].mxu0 %v65
  %v164 = vpop.f32.mrb[0].mxu0
  %v165 = vadd.f32 0.0, %v164
  %v166 = vpop.f32.mrb[0].mxu0
  %v167 = vpop.f32.mrb[0].mxu0
  %v168 = vadd.f32 0.0, %v167
  %v169 = vpop.f32.mrb[0].mxu0
  %170 = vmatprep.mubr.bf16.mxu0 0
  %171 = vmatmul.mubr.bf16.gmra.mrb[0].mxu0 %v66
  %v172 = vpop.f32.mrb[0].mxu0
  %v173 = vadd.f32 0.0, %v172
  %v174 = vpop.f32.mrb[0].mxu0
  %v175 = vpop.f32.mrb[0].mxu0
  %v176 = vadd.f32 0.0, %v175
  %v177 = vpop.f32.mrb[0].mxu0
  %178 = vmatprep.mubr.bf16.mxu0 0
  %179 = vmatmul.mubr.bf16.gmra.mrb[0].mxu0 %v67
  %v180 = vpop.f32.mrb[0].mxu0
  %v181 = vadd.f32 0.0, %v180
  %v182 = vpop.f32.mrb[0].mxu0
  %v183 = vpop.f32.mrb[0].mxu0
  %v184 = vadd.f32 0.0, %v183
  %v185 = vpop.f32.mrb[0].mxu0
  %186 = vmatprep.mubr.bf16.mxu0 0
  %187 = vmatmul.mubr.bf16.gmra.mrb[0].mxu0 %v68
  %v188 = vpop.f32.mrb[0].mxu0
  %v189 = vadd.f32 0.0, %v188
  %v190 = vpop.f32.mrb[0].mxu0
  %v191 = vpop.f32.mrb[0].mxu0
  %v192 = vadd.f32 0.0, %v191
  %v193 = vpop.f32.mrb[0].mxu0
  %194 = vdwg.mxu0
  %v195 = vld [vmem:[%s2] sm:$0x1]
  %v197 = vlaneseq
  %v198 = vshrl.u32 %v197, 7
  %v199 = vsub.s32 0, %v198
  %v200 = vrot.slane %v195, %v199
  %v202 = vmul.f32 %v157, %v200
  %v203 = vmul.f32 %v160, %v200
  %v204 = vmul.f32 %v165, %v200
  %v205 = vmul.f32 %v168, %v200
  %v206 = vmul.f32 %v173, %v200
  %v207 = vmul.f32 %v176, %v200
  %v208 = vmul.f32 %v181, %v200
  %v209 = vmul.f32 %v184, %v200
  %v210 = vmul.f32 %v189, %v200
  %v211 = vmul.f32 %v192, %v200
  %v212 = vld [vmem:[%s3] sm:$0x1]
  %v214 = vlaneseq
  %v215 = vshrl.u32 %v214, 7
  %v216 = vsub.s32 0, %v215
  %v217 = vrot.slane %v212, %v216
  %v219 = vadd.f32 %v202, %v217
  %v220 = vadd.f32 %v203, %v217
  %v221 = vadd.f32 %v204, %v217
  %v222 = vadd.f32 %v205, %v217
  %v223 = vadd.f32 %v206, %v217
  %v224 = vadd.f32 %v207, %v217
  %v225 = vadd.f32 %v208, %v217
  %v226 = vadd.f32 %v209, %v217
  %v227 = vadd.f32 %v210, %v217
  %v228 = vadd.f32 %v211, %v217
  %v229 = vmax.f32 %v219, 0.0
  %v230 = vmax.f32 %v220, 0.0
  %v231 = vmax.f32 %v221, 0.0
  %v232 = vmax.f32 %v222, 0.0
  %v233 = vmax.f32 %v223, 0.0
  %v234 = vmax.f32 %v224, 0.0
  %v235 = vmax.f32 %v225, 0.0
  %v236 = vmax.f32 %v226, 0.0
  %v237 = vmax.f32 %v227, 0.0
  %v238 = vmax.f32 %v228, 0.0
  %vm239 = vcmask 261120
  %240 = vst.msk [vmem:[%s4] sm:$0xff] %vm239, %v229
  %241 = vst.msk [vmem:[%s4 + $0x8] sm:$0xff] %vm239, %v230
  %242 = vst.msk [vmem:[%s4 + $0x10] sm:$0xff] %vm239, %v231
  %243 = vst.msk [vmem:[%s4 + $0x18] sm:$0xff] %vm239, %v232
  %244 = vst.msk [vmem:[%s4 + $0x20] sm:$0xff] %vm239, %v233
  %245 = vst.msk [vmem:[%s4 + $0x28] sm:$0xff] %vm239, %v234
  %246 = vst.msk [vmem:[%s4 + $0x30] sm:$0xff] %vm239, %v235
  %247 = vst.msk [vmem:[%s4 + $0x38] sm:$0xff] %vm239, %v236
  %248 = vst.msk [vmem:[%s4 + $0x40] sm:$0xff] %vm239, %v237
  %249 = vst.msk [vmem:[%s4 + $0x48] sm:$0xff] %vm239, %v238
  // Predicated region
  $region18: #{pspnet_forward.121} parent=0 // pred_check
    _
  $region19: #{pspnet_forward.121} parent=0 // pred_check_branch
    %251 = sbr.rel (0) target = $region21
  $region20: #{pspnet_forward.121} parent=0 // pred_region
    _
  $region21: #{pspnet_forward.121} parent=0 // pred_fallthru
    _
  // Predicated region
  $region22: #{pspnet_forward.121} parent=0 // pred_check
    _
  $region23: #{pspnet_forward.121} parent=0 // pred_check_branch
    %253 = sbr.rel (0) target = $region25
  $region24: #{pspnet_forward.121} parent=0 // pred_region
    _
  $region25: #{pspnet_forward.121} parent=0 // pred_fallthru
    _

// kernel: pspnet_forward.119
$region0: #{pspnet_forward.119}
  #allocation0 [shape = 'u32[]', space=smem, size = 0x4, offset = 0x4, fixed_abs, tag = 'smem constant byte address 0x4 - core index']
  #allocation1 [shape = 'u32[144,128]{1,0:T(1,128)}', space=vmem, size = 0x12000, scoped, tag = 'internal scratch']
  %s0 = inlined_call_operand.vmem [shape: bf16[16,128], index: 0, kind: input, shape index: {}]
  %s1 = inlined_call_operand.vmem [shape: bf16[128,32], index: 1, kind: input, shape index: {}]
  %s2 = inlined_call_operand.vmem [shape: f32[1,32], index: 2, kind: input, shape index: {}]
  %s3 = inlined_call_operand.vmem [shape: f32[1,32], index: 3, kind: input, shape index: {}]
  %s4 = inlined_call_operand.vmem [shape: f32[16,32], index: 4, kind: output, shape index: {}]
  %s5 = sld [smem:[#allocation0]]
  $region26: #{pspnet_forward.119} parent=0
    _
  %s7 = ssub.s32 1, %s5
  %s8 = scalar_select 0, %s7, %s5
  // Predicated region
  $region2: #{pspnet_forward.119} parent=0 // pred_check
    _
  $region3: #{pspnet_forward.119} parent=0 // pred_check_branch
    %10 = sbr.rel (0) target = $region5
  $region4: #{pspnet_forward.119} parent=0 // pred_region
    _
  $region5: #{pspnet_forward.119} parent=0 // pred_fallthru
    _
  // Predicated region
  $region6: #{pspnet_forward.119} parent=0 // pred_check
    _
  $region7: #{pspnet_forward.119} parent=0 // pred_check_branch
    %12 = sbr.rel (0) target = $region9
  $region8: #{pspnet_forward.119} parent=0 // pred_region
    _
  $region9: #{pspnet_forward.119} parent=0 // pred_fallthru
    _
  // Predicated region
  $region10: #{pspnet_forward.119} parent=0 // pred_check
    _
  $region11: #{pspnet_forward.119} parent=0 // pred_check_branch
    %14 = sbr.rel (0) target = $region13
  $region12: #{pspnet_forward.119} parent=0 // pred_region
    _
  $region13: #{pspnet_forward.119} parent=0 // pred_fallthru
    _
  // Predicated region
  $region14: #{pspnet_forward.119} parent=0 // pred_check
    _
  $region15: #{pspnet_forward.119} parent=0 // pred_check_branch
    %16 = sbr.rel (0) target = $region17
  $region16: #{pspnet_forward.119} parent=0 // pred_region
    _
  $region17: #{pspnet_forward.119} parent=0 // pred_fallthru
    _
  %v18 = vld [vmem:[%s0] sm:$0xf]
  %v19 = vld [vmem:[%s0 + $0x4] sm:$0xf]
  %v20 = vld [vmem:[%s1] sm:$0xf]
  %v21 = vld [vmem:[%s1 + $0x4] sm:$0xf]
  %v22 = vld [vmem:[%s1 + $0x8] sm:$0xf]
  %v23 = vld [vmem:[%s1 + $0xc] sm:$0xf]
  %v24 = vld [vmem:[%s1 + $0x10] sm:$0xf]
  %v25 = vld [vmem:[%s1 + $0x14] sm:$0xf]
  %v26 = vld [vmem:[%s1 + $0x18] sm:$0xf]
  %v27 = vld [vmem:[%s1 + $0x1c] sm:$0xf]
  %v28 = vld [vmem:[%s1 + $0x20] sm:$0xf]
  %v29 = vld [vmem:[%s1 + $0x24] sm:$0xf]
  %v30 = vld [vmem:[%s1 + $0x28] sm:$0xf]
  %v31 = vld [vmem:[%s1 + $0x2c] sm:$0xf]
  %v32 = vld [vmem:[%s1 + $0x30] sm:$0xf]
  %v33 = vld [vmem:[%s1 + $0x34] sm:$0xf]
  %v34 = vld [vmem:[%s1 + $0x38] sm:$0xf]
  %v35 = vld [vmem:[%s1 + $0x3c] sm:$0xf]
  %v38 = vunpack.c.l.b16 %v18
  %v39 = vunpack.c.l.b16 %v19
  %v40 = vpack.c.b16 %v39, %v38
  %v58 = vunpack.c.l.b16 %v20
  %v59 = vunpack.c.l.b16 %v21
  %v60 = vunpack.c.l.b16 %v22
  %v61 = vunpack.c.l.b16 %v23
  %v62 = vunpack.c.l.b16 %v24
  %v63 = vunpack.c.l.b16 %v25
  %v64 = vunpack.c.l.b16 %v26
  %v65 = vunpack.c.l.b16 %v27
  %v66 = vunpack.c.l.b16 %v28
  %v67 = vunpack.c.l.b16 %v29
  %v68 = vunpack.c.l.b16 %v30
  %v69 = vunpack.c.l.b16 %v31
  %v70 = vunpack.c.l.b16 %v32
  %v71 = vunpack.c.l.b16 %v33
  %v72 = vunpack.c.l.b16 %v34
  %v73 = vunpack.c.l.b16 %v35
  %v74 = vpack.c.b16 %v59, %v58
  %v75 = vpack.c.b16 %v61, %v60
  %v76 = vpack.c.b16 %v63, %v62
  %v77 = vpack.c.b16 %v65, %v64
  %v78 = vpack.c.b16 %v67, %v66
  %v79 = vpack.c.b16 %v69, %v68
  %v80 = vpack.c.b16 %v71, %v70
  %v81 = vpack.c.b16 %v73, %v72
  %90 = vmatprep.subr.bf16.mxu0 0
  %91 = vmatpush1.bf16.msra.mxu0 %v74
  %92 = vmatprep.subr.bf16.mxu0 0
  %93 = vmatpush1.bf16.msra.mxu0 %v75
  %94 = vmatprep.subr.bf16.mxu0 0
  %95 = vmatpush1.bf16.msra.mxu0 %v76
  %96 = vmatprep.subr.bf16.mxu0 0
  %97 = vmatpush1.bf16.msra.mxu0 %v77
  %98 = vmatprep.subr.bf16.mxu0 0
  %99 = vmatpush1.bf16.msra.mxu0 %v78
  %100 = vmatprep.subr.bf16.mxu0 0
  %101 = vmatpush1.bf16.msra.mxu0 %v79
  %102 = vmatprep.subr.bf16.mxu0 0
  %103 = vmatpush1.bf16.msra.mxu0 %v80
  %104 = vmatprep.subr.bf16.mxu0 0
  %105 = vmatpush1.bf16.msra.mxu0 %v81
  %106 = vmatprep.subr.bf16.mxu0 0
  %107 = vmatpush1.bf16.msra.mxu0 0
  %108 = vmatprep.subr.bf16.mxu0 0
  %109 = vmatpush1.bf16.msra.mxu0 0
  %110 = vmatprep.subr.bf16.mxu0 0
  %111 = vmatpush1.bf16.msra.mxu0 0
  %112 = vmatprep.subr.bf16.mxu0 0
  %113 = vmatpush1.bf16.msra.mxu0 0
  %114 = vmatprep.subr.bf16.mxu0 0
  %115 = vmatpush1.bf16.msra.mxu0 0
  %116 = vmatprep.subr.bf16.mxu0 0
  %117 = vmatpush1.bf16.msra.mxu0 0
  %118 = vmatprep.subr.bf16.mxu0 0
  %119 = vmatpush1.bf16.msra.mxu0 0
  %120 = vmatprep.subr.bf16.mxu0 0
  %121 = vmatpush1.bf16.msra.mxu0 0
  %122 = vmatprep.mubr.bf16.mxu0 0
  %123 = vmatmul.mubr.bf16.gmra.mrb[0].mxu0 %v40
  %v124 = vpop.f32.mrb[0].mxu0
  %v125 = vadd.f32 0.0, %v124
  %v126 = vpop.f32.mrb[0].mxu0
  %v127 = vpop.f32.mrb[0].mxu0
  %v128 = vadd.f32 0.0, %v127
  %v129 = vpop.f32.mrb[0].mxu0
  %130 = vdwg.mxu0
  %v131 = vld [vmem:[%s2] sm:$0x1]
  %v133 = vlaneseq
  %v134 = vshrl.u32 %v133, 7
  %v135 = vsub.s32 0, %v134
  %v136 = vrot.slane %v131, %v135
  %v138 = vmul.f32 %v125, %v136
  %v139 = vmul.f32 %v128, %v136
  %v140 = vld [vmem:[%s3] sm:$0x1]
  %v142 = vlaneseq
  %v143 = vshrl.u32 %v142, 7
  %v144 = vsub.s32 0, %v143
  %v145 = vrot.slane %v140, %v144
  %v147 = vadd.f32 %v138, %v145
  %v148 = vadd.f32 %v139, %v145
  %v149 = vmax.f32 %v147, 0.0
  %v150 = vmax.f32 %v148, 0.0
  %vm151 = vcmask 261120
  %152 = vst.msk [vmem:[%s4] sm:$0xff] %vm151, %v149
  %153 = vst.msk [vmem:[%s4 + $0x8] sm:$0xff] %vm151, %v150
  // Predicated region
  $region18: #{pspnet_forward.119} parent=0 // pred_check
    _
  $region19: #{pspnet_forward.119} parent=0 // pred_check_branch
    %155 = sbr.rel (0) target = $region21
  $region20: #{pspnet_forward.119} parent=0 // pred_region
    _
  $region21: #{pspnet_forward.119} parent=0 // pred_fallthru
    _
  // Predicated region
  $region22: #{pspnet_forward.119} parent=0 // pred_check
    _
  $region23: #{pspnet_forward.119} parent=0 // pred_check_branch
    %157 = sbr.rel (0) target = $region25
  $region24: #{pspnet_forward.119} parent=0 // pred_region
    _
  $region25: #{pspnet_forward.119} parent=0 // pred_fallthru
    _

// kernel: pspnet_forward.123
$region0: #{pspnet_forward.123}
  #allocation0 [shape = 'u32[]', space=smem, size = 0x4, offset = 0x4, fixed_abs, tag = 'smem constant byte address 0x4 - core index']
  #allocation1 [shape = 'u32[144,128]{1,0:T(1,128)}', space=vmem, size = 0x12000, scoped, tag = 'internal scratch']
  %s0 = inlined_call_operand.vmem [shape: bf16[32,32], index: 0, kind: input, shape index: {}]
  %s1 = inlined_call_operand.vmem [shape: bf16[32,2], index: 1, kind: input, shape index: {}]
  %s2 = inlined_call_operand.vmem [shape: f32[1,2], index: 2, kind: input, shape index: {}]
  %s3 = inlined_call_operand.vmem [shape: f32[1,2], index: 3, kind: input, shape index: {}]
  %s4 = inlined_call_operand.vmem [shape: f32[32,2], index: 4, kind: output, shape index: {}]
  %s5 = sld [smem:[#allocation0]]
  $region26: #{pspnet_forward.123} parent=0
    _
  %s7 = ssub.s32 1, %s5
  %s8 = scalar_select 0, %s7, %s5
  // Predicated region
  $region2: #{pspnet_forward.123} parent=0 // pred_check
    _
  $region3: #{pspnet_forward.123} parent=0 // pred_check_branch
    %10 = sbr.rel (0) target = $region5
  $region4: #{pspnet_forward.123} parent=0 // pred_region
    _
  $region5: #{pspnet_forward.123} parent=0 // pred_fallthru
    _
  // Predicated region
  $region6: #{pspnet_forward.123} parent=0 // pred_check
    _
  $region7: #{pspnet_forward.123} parent=0 // pred_check_branch
    %12 = sbr.rel (0) target = $region9
  $region8: #{pspnet_forward.123} parent=0 // pred_region
    _
  $region9: #{pspnet_forward.123} parent=0 // pred_fallthru
    _
  // Predicated region
  $region10: #{pspnet_forward.123} parent=0 // pred_check
    _
  $region11: #{pspnet_forward.123} parent=0 // pred_check_branch
    %14 = sbr.rel (0) target = $region13
  $region12: #{pspnet_forward.123} parent=0 // pred_region
    _
  $region13: #{pspnet_forward.123} parent=0 // pred_fallthru
    _
  // Predicated region
  $region14: #{pspnet_forward.123} parent=0 // pred_check
    _
  $region15: #{pspnet_forward.123} parent=0 // pred_check_branch
    %16 = sbr.rel (0) target = $region17
  $region16: #{pspnet_forward.123} parent=0 // pred_region
    _
  $region17: #{pspnet_forward.123} parent=0 // pred_fallthru
    _
  %v18 = vld [vmem:[%s0] sm:$0xf]
  %v19 = vld [vmem:[%s0 + $0x4] sm:$0xf]
  %v20 = vld [vmem:[%s0 + $0x8] sm:$0xf]
  %v21 = vld [vmem:[%s0 + $0xc] sm:$0xf]
  %v22 = vld [vmem:[%s1] sm:$0xf]
  %v23 = vld [vmem:[%s1 + $0x4] sm:$0xf]
  %v24 = vld [vmem:[%s1 + $0x8] sm:$0xf]
  %v25 = vld [vmem:[%s1 + $0xc] sm:$0xf]
  %v30 = vunpack.c.l.b16 %v18
  %v31 = vunpack.c.l.b16 %v19
  %v32 = vunpack.c.l.b16 %v20
  %v33 = vunpack.c.l.b16 %v21
  %v34 = vpack.c.b16 %v31, %v30
  %v35 = vpack.c.b16 %v33, %v32
  %v40 = vunpack.c.l.b16 %v22
  %v41 = vunpack.c.l.b16 %v23
  %v42 = vunpack.c.l.b16 %v24
  %v43 = vunpack.c.l.b16 %v25
  %v44 = vpack.c.b16 %v41, %v40
  %v45 = vpack.c.b16 %v43, %v42
  %vm48 = vcmask 261120
  %v50 = vsel %vm48, %v34, 0
  %v53 = vsel %vm48, %v35, 0
  %55 = vmatprep.subr.bf16.mxu0 0
  %56 = vmatpush1.bf16.msra.mxu0 %v44
  %57 = vmatprep.subr.bf16.mxu0 0
  %58 = vmatpush1.bf16.msra.mxu0 %v45
  %59 = vmatprep.subr.bf16.mxu0 0
  %60 = vmatpush1.bf16.msra.mxu0 0
  %61 = vmatprep.subr.bf16.mxu0 0
  %62 = vmatpush1.bf16.msra.mxu0 0
  %63 = vmatprep.subr.bf16.mxu0 0
  %64 = vmatpush1.bf16.msra.mxu0 0
  %65 = vmatprep.subr.bf16.mxu0 0
  %66 = vmatpush1.bf16.msra.mxu0 0
  %67 = vmatprep.subr.bf16.mxu0 0
  %68 = vmatpush1.bf16.msra.mxu0 0
  %69 = vmatprep.subr.bf16.mxu0 0
  %70 = vmatpush1.bf16.msra.mxu0 0
  %71 = vmatprep.subr.bf16.mxu0 0
  %72 = vmatpush1.bf16.msra.mxu0 0
  %73 = vmatprep.subr.bf16.mxu0 0
  %74 = vmatpush1.bf16.msra.mxu0 0
  %75 = vmatprep.subr.bf16.mxu0 0
  %76 = vmatpush1.bf16.msra.mxu0 0
  %77 = vmatprep.subr.bf16.mxu0 0
  %78 = vmatpush1.bf16.msra.mxu0 0
  %79 = vmatprep.subr.bf16.mxu0 0
  %80 = vmatpush1.bf16.msra.mxu0 0
  %81 = vmatprep.subr.bf16.mxu0 0
  %82 = vmatpush1.bf16.msra.mxu0 0
  %83 = vmatprep.subr.bf16.mxu0 0
  %84 = vmatpush1.bf16.msra.mxu0 0
  %85 = vmatprep.subr.bf16.mxu0 0
  %86 = vmatpush1.bf16.msra.mxu0 0
  %87 = vmatprep.mubr.bf16.mxu0 0
  %88 = vmatmul.mubr.bf16.gmra.mrb[0].mxu0 %v50
  %v89 = vpop.f32.mrb[0].mxu0
  %v90 = vadd.f32 0.0, %v89
  %v91 = vpop.f32.mrb[0].mxu0
  %v92 = vpop.f32.mrb[0].mxu0
  %v93 = vadd.f32 0.0, %v92
  %v94 = vpop.f32.mrb[0].mxu0
  %95 = vmatprep.mubr.bf16.mxu0 0
  %96 = vmatmul.mubr.bf16.gmra.mrb[0].mxu0 %v53
  %v97 = vpop.f32.mrb[0].mxu0
  %v98 = vadd.f32 0.0, %v97
  %v99 = vpop.f32.mrb[0].mxu0
  %v100 = vpop.f32.mrb[0].mxu0
  %v101 = vadd.f32 0.0, %v100
  %v102 = vpop.f32.mrb[0].mxu0
  %103 = vdwg.mxu0
  %v104 = vld [vmem:[%s2] sm:$0x1]
  %v106 = vlaneseq
  %v107 = vshrl.u32 %v106, 7
  %v108 = vsub.s32 0, %v107
  %v109 = vrot.slane %v104, %v108
  %v111 = vmul.f32 %v90, %v109
  %v112 = vmul.f32 %v93, %v109
  %v113 = vmul.f32 %v98, %v109
  %v114 = vmul.f32 %v101, %v109
  %v115 = vld [vmem:[%s3] sm:$0x1]
  %v117 = vlaneseq
  %v118 = vshrl.u32 %v117, 7
  %v119 = vsub.s32 0, %v118
  %v120 = vrot.slane %v115, %v119
  %v122 = vadd.f32 %v111, %v120
  %v123 = vadd.f32 %v112, %v120
  %v124 = vadd.f32 %v113, %v120
  %v125 = vadd.f32 %v114, %v120
  %vm126 = vcmask 15360
  %127 = vst.msk [vmem:[%s4] sm:$0xff] %vm126, %v122
  %128 = vst.msk [vmem:[%s4 + $0x8] sm:$0xff] %vm126, %v123
  %129 = vst.msk [vmem:[%s4 + $0x10] sm:$0xff] %vm126, %v124
  %130 = vst.msk [vmem:[%s4 + $0x18] sm:$0xff] %vm126, %v125
  // Predicated region
  $region18: #{pspnet_forward.123} parent=0 // pred_check
    _
  $region19: #{pspnet_forward.123} parent=0 // pred_check_branch
    %132 = sbr.rel (0) target = $region21
  $region20: #{pspnet_forward.123} parent=0 // pred_region
    _
  $region21: #{pspnet_forward.123} parent=0 // pred_fallthru
    _
  // Predicated region
  $region22: #{pspnet_forward.123} parent=0 // pred_check
    _
  $region23: #{pspnet_forward.123} parent=0 // pred_check_branch
    %134 = sbr.rel (0) target = $region25
  $region24: #{pspnet_forward.123} parent=0 // pred_region
    _
  $region25: #{pspnet_forward.123} parent=0 // pred_fallthru
    _

// kernel: pspnet_forward.122
$region0: #{pspnet_forward.122}
  #allocation0 [shape = 'u32[]', space=smem, size = 0x4, offset = 0x4, fixed_abs, tag = 'smem constant byte address 0x4 - core index']
  #allocation1 [shape = 'u32[144,128]{1,0:T(1,128)}', space=vmem, size = 0x12000, scoped, tag = 'internal scratch']
  %s0 = inlined_call_operand.vmem [shape: bf16[32,2304], index: 0, kind: input, shape index: {}]
  %s1 = inlined_call_operand.vmem [shape: bf16[2304,32], index: 1, kind: input, shape index: {}]
  %s2 = inlined_call_operand.vmem [shape: f32[1,32], index: 2, kind: input, shape index: {}]
  %s3 = inlined_call_operand.vmem [shape: f32[1,32], index: 3, kind: input, shape index: {}]
  %s4 = inlined_call_operand.vmem [shape: f32[32,32], index: 4, kind: output, shape index: {}]
  %s5 = sld [smem:[#allocation0]]
  $region26: #{pspnet_forward.122} parent=0
    _
  %s7 = ssub.s32 1, %s5
  %s8 = scalar_select 0, %s7, %s5
  // Predicated region
  $region2: #{pspnet_forward.122} parent=0 // pred_check
    _
  $region3: #{pspnet_forward.122} parent=0 // pred_check_branch
    %10 = sbr.rel (0) target = $region5
  $region4: #{pspnet_forward.122} parent=0 // pred_region
    _
  $region5: #{pspnet_forward.122} parent=0 // pred_fallthru
    _
  // Predicated region
  $region6: #{pspnet_forward.122} parent=0 // pred_check
    _
  $region7: #{pspnet_forward.122} parent=0 // pred_check_branch
    %12 = sbr.rel (0) target = $region9
  $region8: #{pspnet_forward.122} parent=0 // pred_region
    _
  $region9: #{pspnet_forward.122} parent=0 // pred_fallthru
    _
  // Predicated region
  $region10: #{pspnet_forward.122} parent=0 // pred_check
    _
  $region11: #{pspnet_forward.122} parent=0 // pred_check_branch
    %14 = sbr.rel (0) target = $region13
  $region12: #{pspnet_forward.122} parent=0 // pred_region
    _
  $region13: #{pspnet_forward.122} parent=0 // pred_fallthru
    _
  // Predicated region
  $region14: #{pspnet_forward.122} parent=0 // pred_check
    _
  $region15: #{pspnet_forward.122} parent=0 // pred_check_branch
    %16 = sbr.rel (0) target = $region17
  $region16: #{pspnet_forward.122} parent=0 // pred_region
    _
  $region17: #{pspnet_forward.122} parent=0 // pred_fallthru
    _
  %v18 = vld [vmem:[%s0] sm:$0xff]
  %v19 = vld [vmem:[%s0 + $0x8] sm:$0xff]
  %v20 = vld [vmem:[%s0 + $0x10] sm:$0xff]
  %v21 = vld [vmem:[%s0 + $0x18] sm:$0xff]
  %v22 = vld [vmem:[%s0 + $0x20] sm:$0xff]
  %v23 = vld [vmem:[%s0 + $0x28] sm:$0xff]
  %v24 = vld [vmem:[%s0 + $0x30] sm:$0xff]
  %v25 = vld [vmem:[%s0 + $0x38] sm:$0xff]
  %v26 = vld [vmem:[%s0 + $0x40] sm:$0xff]
  %v27 = vld [vmem:[%s0 + $0x48] sm:$0xff]
  %v28 = vld [vmem:[%s0 + $0x50] sm:$0xff]
  %v29 = vld [vmem:[%s0 + $0x58] sm:$0xff]
  %v30 = vld [vmem:[%s0 + $0x60] sm:$0xff]
  %v31 = vld [vmem:[%s0 + $0x68] sm:$0xff]
  %v32 = vld [vmem:[%s0 + $0x70] sm:$0xff]
  %v33 = vld [vmem:[%s0 + $0x78] sm:$0xff]
  %v34 = vld [vmem:[%s0 + $0x80] sm:$0xff]
  %v35 = vld [vmem:[%s0 + $0x88] sm:$0xff]
  %v36 = vld [vmem:[%s0 + $0x90] sm:$0xff]
  %v37 = vld [vmem:[%s0 + $0x98] sm:$0xff]
  %v38 = vld [vmem:[%s0 + $0xa0] sm:$0xff]
  %v39 = vld [vmem:[%s0 + $0xa8] sm:$0xff]
  %v40 = vld [vmem:[%s0 + $0xb0] sm:$0xff]
  %v41 = vld [vmem:[%s0 + $0xb8] sm:$0xff]
  %v42 = vld [vmem:[%s0 + $0xc0] sm:$0xff]
  %v43 = vld [vmem:[%s0 + $0xc8] sm:$0xff]
  %v44 = vld [vmem:[%s0 + $0xd0] sm:$0xff]
  %v45 = vld [vmem:[%s0 + $0xd8] sm:$0xff]
  %v46 = vld [vmem:[%s0 + $0xe0] sm:$0xff]
  %v47 = vld [vmem:[%s0 + $0xe8] sm:$0xff]
  %v48 = vld [vmem:[%s0 + $0xf0] sm:$0xff]
  %v49 = vld [vmem:[%s0 + $0xf8] sm:$0xff]
  %v50 = vld [vmem:[%s0 + $0x100] sm:$0xff]
  %v51 = vld [vmem:[%s0 + $0x108] sm:$0xff]
  %v52 = vld [vmem:[%s0 + $0x110] sm:$0xff]
  %v53 = vld [vmem:[%s0 + $0x118] sm:$0xff]
  %v54 = vld [vmem:[%s1] sm:$0xf]
  %v55 = vld [vmem:[%s1 + $0x4] sm:$0xf]
  %v56 = vld [vmem:[%s1 + $0x8] sm:$0xf]
  %v57 = vld [vmem:[%s1 + $0xc] sm:$0xf]
  %v58 = vld [vmem:[%s1 + $0x10] sm:$0xf]
  %v59 = vld [vmem:[%s1 + $0x14] sm:$0xf]
  %v60 = vld [vmem:[%s1 + $0x18] sm:$0xf]
  %v61 = vld [vmem:[%s1 + $0x1c] sm:$0xf]
  %v62 = vld [vmem:[%s1 + $0x20] sm:$0xf]
  %v63 = vld [vmem:[%s1 + $0x24] sm:$0xf]
  %v64 = vld [vmem:[%s1 + $0x28] sm:$0xf]
  %v65 = vld [vmem:[%s1 + $0x2c] sm:$0xf]
  %v66 = vld [vmem:[%s1 + $0x30] sm:$0xf]
  %v67 = vld [vmem:[%s1 + $0x34] sm:$0xf]
  %v68 = vld [vmem:[%s1 + $0x38] sm:$0xf]
  %v69 = vld [vmem:[%s1 + $0x3c] sm:$0xf]
  %v70 = vld [vmem:[%s1 + $0x40] sm:$0xf]
  %v71 = vld [vmem:[%s1 + $0x44] sm:$0xf]
  %v72 = vld [vmem:[%s1 + $0x48] sm:$0xf]
  %v73 = vld [vmem:[%s1 + $0x4c] sm:$0xf]
  %v74 = vld [vmem:[%s1 + $0x50] sm:$0xf]
  %v75 = vld [vmem:[%s1 + $0x54] sm:$0xf]
  %v76 = vld [vmem:[%s1 + $0x58] sm:$0xf]
  %v77 = vld [vmem:[%s1 + $0x5c] sm:$0xf]
  %v78 = vld [vmem:[%s1 + $0x60] sm:$0xf]
  %v79 = vld [vmem:[%s1 + $0x64] sm:$0xf]
  %v80 = vld [vmem:[%s1 + $0x68] sm:$0xf]
  %v81 = vld [vmem:[%s1 + $0x6c] sm:$0xf]
  %v82 = vld [vmem:[%s1 + $0x70] sm:$0xf]
  %v83 = vld [vmem:[%s1 + $0x74] sm:$0xf]
  %v84 = vld [vmem:[%s1 + $0x78] sm:$0xf]
  %v85 = vld [vmem:[%s1 + $0x7c] sm:$0xf]
  %v86 = vld [vmem:[%s1 + $0x80] sm:$0xf]
  %v87 = vld [vmem:[%s1 + $0x84] sm:$0xf]
  %v88 = vld [vmem:[%s1 + $0x88] sm:$0xf]
  %v89 = vld [vmem:[%s1 + $0x8c] sm:$0xf]
  %v90 = vld [vmem:[%s1 + $0x90] sm:$0xf]
  %v91 = vld [vmem:[%s1 + $0x94] sm:$0xf]
  %v92 = vld [vmem:[%s1 + $0x98] sm:$0xf]
  %v93 = vld [vmem:[%s1 + $0x9c] sm:$0xf]
  %v94 = vld [vmem:[%s1 + $0xa0] sm:$0xf]
  %v95 = vld [vmem:[%s1 + $0xa4] sm:$0xf]
  %v96 = vld [vmem:[%s1 + $0xa8] sm:$0xf]
  %v97 = vld [vmem:[%s1 + $0xac] sm:$0xf]
  %v98 = vld [vmem:[%s1 + $0xb0] sm:$0xf]
  %v99 = vld [vmem:[%s1 + $0xb4] sm:$0xf]
  %v100 = vld [vmem:[%s1 + $0xb8] sm:$0xf]
  %v101 = vld [vmem:[%s1 + $0xbc] sm:$0xf]
  %v102 = vld [vmem:[%s1 + $0xc0] sm:$0xf]
  %v103 = vld [vmem:[%s1 + $0xc4] sm:$0xf]
  %v104 = vld [vmem:[%s1 + $0xc8] sm:$0xf]
  %v105 = vld [vmem:[%s1 + $0xcc] sm:$0xf]
  %v106 = vld [vmem:[%s1 + $0xd0] sm:$0xf]
  %v107 = vld [vmem:[%s1 + $0xd4] sm:$0xf]
  %v108 = vld [vmem:[%s1 + $0xd8] sm:$0xf]
  %v109 = vld [vmem:[%s1 + $0xdc] sm:$0xf]
  %v110 = vld [vmem:[%s1 + $0xe0] sm:$0xf]
  %v111 = vld [vmem:[%s1 + $0xe4] sm:$0xf]
  %v112 = vld [vmem:[%s1 + $0xe8] sm:$0xf]
  %v113 = vld [vmem:[%s1 + $0xec] sm:$0xf]
  %v114 = vld [vmem:[%s1 + $0xf0] sm:$0xf]
  %v115 = vld [vmem:[%s1 + $0xf4] sm:$0xf]
  %v116 = vld [vmem:[%s1 + $0xf8] sm:$0xf]
  %v117 = vld [vmem:[%s1 + $0xfc] sm:$0xf]
  %v118 = vld [vmem:[%s1 + $0x100] sm:$0xf]
  %v119 = vld [vmem:[%s1 + $0x104] sm:$0xf]
  %v120 = vld [vmem:[%s1 + $0x108] sm:$0xf]
  %v121 = vld [vmem:[%s1 + $0x10c] sm:$0xf]
  %v122 = vld [vmem:[%s1 + $0x110] sm:$0xf]
  %v123 = vld [vmem:[%s1 + $0x114] sm:$0xf]
  %v124 = vld [vmem:[%s1 + $0x118] sm:$0xf]
  %v125 = vld [vmem:[%s1 + $0x11c] sm:$0xf]
  %v126 = vld [vmem:[%s1 + $0x120] sm:$0xf]
  %v127 = vld [vmem:[%s1 + $0x124] sm:$0xf]
  %v128 = vld [vmem:[%s1 + $0x128] sm:$0xf]
  %v129 = vld [vmem:[%s1 + $0x12c] sm:$0xf]
  %v130 = vld [vmem:[%s1 + $0x130] sm:$0xf]
  %v131 = vld [vmem:[%s1 + $0x134] sm:$0xf]
  %v132 = vld [vmem:[%s1 + $0x138] sm:$0xf]
  %v133 = vld [vmem:[%s1 + $0x13c] sm:$0xf]
  %v134 = vld [vmem:[%s1 + $0x140] sm:$0xf]
  %v135 = vld [vmem:[%s1 + $0x144] sm:$0xf]
  %v136 = vld [vmem:[%s1 + $0x148] sm:$0xf]
  %v137 = vld [vmem:[%s1 + $0x14c] sm:$0xf]
  %v138 = vld [vmem:[%s1 + $0x150] sm:$0xf]
  %v139 = vld [vmem:[%s1 + $0x154] sm:$0xf]
  %v140 = vld [vmem:[%s1 + $0x158] sm:$0xf]
  %v141 = vld [vmem:[%s1 + $0x15c] sm:$0xf]
  %v142 = vld [vmem:[%s1 + $0x160] sm:$0xf]
  %v143 = vld [vmem:[%s1 + $0x164] sm:$0xf]
  %v144 = vld [vmem:[%s1 + $0x168] sm:$0xf]
  %v145 = vld [vmem:[%s1 + $0x16c] sm:$0xf]
  %v146 = vld [vmem:[%s1 + $0x170] sm:$0xf]
  %v147 = vld [vmem:[%s1 + $0x174] sm:$0xf]
  %v148 = vld [vmem:[%s1 + $0x178] sm:$0xf]
  %v149 = vld [vmem:[%s1 + $0x17c] sm:$0xf]
  %v150 = vld [vmem:[%s1 + $0x180] sm:$0xf]
  %v151 = vld [vmem:[%s1 + $0x184] sm:$0xf]
  %v152 = vld [vmem:[%s1 + $0x188] sm:$0xf]
  %v153 = vld [vmem:[%s1 + $0x18c] sm:$0xf]
  %v154 = vld [vmem:[%s1 + $0x190] sm:$0xf]
  %v155 = vld [vmem:[%s1 + $0x194] sm:$0xf]
  %v156 = vld [vmem:[%s1 + $0x198] sm:$0xf]
  %v157 = vld [vmem:[%s1 + $0x19c] sm:$0xf]
  %v158 = vld [vmem:[%s1 + $0x1a0] sm:$0xf]
  %v159 = vld [vmem:[%s1 + $0x1a4] sm:$0xf]
  %v160 = vld [vmem:[%s1 + $0x1a8] sm:$0xf]
  %v161 = vld [vmem:[%s1 + $0x1ac] sm:$0xf]
  %v162 = vld [vmem:[%s1 + $0x1b0] sm:$0xf]
  %v163 = vld [vmem:[%s1 + $0x1b4] sm:$0xf]
  %v164 = vld [vmem:[%s1 + $0x1b8] sm:$0xf]
  %v165 = vld [vmem:[%s1 + $0x1bc] sm:$0xf]
  %v166 = vld [vmem:[%s1 + $0x1c0] sm:$0xf]
  %v167 = vld [vmem:[%s1 + $0x1c4] sm:$0xf]
  %v168 = vld [vmem:[%s1 + $0x1c8] sm:$0xf]
  %v169 = vld [vmem:[%s1 + $0x1cc] sm:$0xf]
  %v170 = vld [vmem:[%s1 + $0x1d0] sm:$0xf]
  %v171 = vld [vmem:[%s1 + $0x1d4] sm:$0xf]
  %v172 = vld [vmem:[%s1 + $0x1d8] sm:$0xf]
  %v173 = vld [vmem:[%s1 + $0x1dc] sm:$0xf]
  %v174 = vld [vmem:[%s1 + $0x1e0] sm:$0xf]
  %v175 = vld [vmem:[%s1 + $0x1e4] sm:$0xf]
  %v176 = vld [vmem:[%s1 + $0x1e8] sm:$0xf]
  %v177 = vld [vmem:[%s1 + $0x1ec] sm:$0xf]
  %v178 = vld [vmem:[%s1 + $0x1f0] sm:$0xf]
  %v179 = vld [vmem:[%s1 + $0x1f4] sm:$0xf]
  %v180 = vld [vmem:[%s1 + $0x1f8] sm:$0xf]
  %v181 = vld [vmem:[%s1 + $0x1fc] sm:$0xf]
  %v182 = vld [vmem:[%s1 + $0x200] sm:$0xf]
  %v183 = vld [vmem:[%s1 + $0x204] sm:$0xf]
  %v184 = vld [vmem:[%s1 + $0x208] sm:$0xf]
  %v185 = vld [vmem:[%s1 + $0x20c] sm:$0xf]
  %v186 = vld [vmem:[%s1 + $0x210] sm:$0xf]
  %v187 = vld [vmem:[%s1 + $0x214] sm:$0xf]
  %v188 = vld [vmem:[%s1 + $0x218] sm:$0xf]
  %v189 = vld [vmem:[%s1 + $0x21c] sm:$0xf]
  %v190 = vld [vmem:[%s1 + $0x220] sm:$0xf]
  %v191 = vld [vmem:[%s1 + $0x224] sm:$0xf]
  %v192 = vld [vmem:[%s1 + $0x228] sm:$0xf]
  %v193 = vld [vmem:[%s1 + $0x22c] sm:$0xf]
  %v194 = vld [vmem:[%s1 + $0x230] sm:$0xf]
  %v195 = vld [vmem:[%s1 + $0x234] sm:$0xf]
  %v196 = vld [vmem:[%s1 + $0x238] sm:$0xf]
  %v197 = vld [vmem:[%s1 + $0x23c] sm:$0xf]
  %v198 = vld [vmem:[%s1 + $0x240] sm:$0xf]
  %v199 = vld [vmem:[%s1 + $0x244] sm:$0xf]
  %v200 = vld [vmem:[%s1 + $0x248] sm:$0xf]
  %v201 = vld [vmem:[%s1 + $0x24c] sm:$0xf]
  %v202 = vld [vmem:[%s1 + $0x250] sm:$0xf]
  %v203 = vld [vmem:[%s1 + $0x254] sm:$0xf]
  %v204 = vld [vmem:[%s1 + $0x258] sm:$0xf]
  %v205 = vld [vmem:[%s1 + $0x25c] sm:$0xf]
  %v206 = vld [vmem:[%s1 + $0x260] sm:$0xf]
  %v207 = vld [vmem:[%s1 + $0x264] sm:$0xf]
  %v208 = vld [vmem:[%s1 + $0x268] sm:$0xf]
  %v209 = vld [vmem:[%s1 + $0x26c] sm:$0xf]
  %v210 = vld [vmem:[%s1 + $0x270] sm:$0xf]
  %v211 = vld [vmem:[%s1 + $0x274] sm:$0xf]
  %v212 = vld [vmem:[%s1 + $0x278] sm:$0xf]
  %v213 = vld [vmem:[%s1 + $0x27c] sm:$0xf]
  %v214 = vld [vmem:[%s1 + $0x280] sm:$0xf]
  %v215 = vld [vmem:[%s1 + $0x284] sm:$0xf]
  %v216 = vld [vmem:[%s1 + $0x288] sm:$0xf]
  %v217 = vld [vmem:[%s1 + $0x28c] sm:$0xf]
  %v218 = vld [vmem:[%s1 + $0x290] sm:$0xf]
  %v219 = vld [vmem:[%s1 + $0x294] sm:$0xf]
  %v220 = vld [vmem:[%s1 + $0x298] sm:$0xf]
  %v221 = vld [vmem:[%s1 + $0x29c] sm:$0xf]
  %v222 = vld [vmem:[%s1 + $0x2a0] sm:$0xf]
  %v223 = vld [vmem:[%s1 + $0x2a4] sm:$0xf]
  %v224 = vld [vmem:[%s1 + $0x2a8] sm:$0xf]
  %v225 = vld [vmem:[%s1 + $0x2ac] sm:$0xf]
  %v226 = vld [vmem:[%s1 + $0x2b0] sm:$0xf]
  %v227 = vld [vmem:[%s1 + $0x2b4] sm:$0xf]
  %v228 = vld [vmem:[%s1 + $0x2b8] sm:$0xf]
  %v229 = vld [vmem:[%s1 + $0x2bc] sm:$0xf]
  %v230 = vld [vmem:[%s1 + $0x2c0] sm:$0xf]
  %v231 = vld [vmem:[%s1 + $0x2c4] sm:$0xf]
  %v232 = vld [vmem:[%s1 + $0x2c8] sm:$0xf]
  %v233 = vld [vmem:[%s1 + $0x2cc] sm:$0xf]
  %v234 = vld [vmem:[%s1 + $0x2d0] sm:$0xf]
  %v235 = vld [vmem:[%s1 + $0x2d4] sm:$0xf]
  %v236 = vld [vmem:[%s1 + $0x2d8] sm:$0xf]
  %v237 = vld [vmem:[%s1 + $0x2dc] sm:$0xf]
  %v238 = vld [vmem:[%s1 + $0x2e0] sm:$0xf]
  %v239 = vld [vmem:[%s1 + $0x2e4] sm:$0xf]
  %v240 = vld [vmem:[%s1 + $0x2e8] sm:$0xf]
  %v241 = vld [vmem:[%s1 + $0x2ec] sm:$0xf]
  %v242 = vld [vmem:[%s1 + $0x2f0] sm:$0xf]
  %v243 = vld [vmem:[%s1 + $0x2f4] sm:$0xf]
  %v244 = vld [vmem:[%s1 + $0x2f8] sm:$0xf]
  %v245 = vld [vmem:[%s1 + $0x2fc] sm:$0xf]
  %v246 = vld [vmem:[%s1 + $0x300] sm:$0xf]
  %v247 = vld [vmem:[%s1 + $0x304] sm:$0xf]
  %v248 = vld [vmem:[%s1 + $0x308] sm:$0xf]
  %v249 = vld [vmem:[%s1 + $0x30c] sm:$0xf]
  %v250 = vld [vmem:[%s1 + $0x310] sm:$0xf]
  %v251 = vld [vmem:[%s1 + $0x314] sm:$0xf]
  %v252 = vld [vmem:[%s1 + $0x318] sm:$0xf]
  %v253 = vld [vmem:[%s1 + $0x31c] sm:$0xf]
  %v254 = vld [vmem:[%s1 + $0x320] sm:$0xf]
  %v255 = vld [vmem:[%s1 + $0x324] sm:$0xf]
  %v256 = vld [vmem:[%s1 + $0x328] sm:$0xf]
  %v257 = vld [vmem:[%s1 + $0x32c] sm:$0xf]
  %v258 = vld [vmem:[%s1 + $0x330] sm:$0xf]
  %v259 = vld [vmem:[%s1 + $0x334] sm:$0xf]
  %v260 = vld [vmem:[%s1 + $0x338] sm:$0xf]
  %v261 = vld [vmem:[%s1 + $0x33c] sm:$0xf]
  %v262 = vld [vmem:[%s1 + $0x340] sm:$0xf]
  %v263 = vld [vmem:[%s1 + $0x344] sm:$0xf]
  %v264 = vld [vmem:[%s1 + $0x348] sm:$0xf]
  %v265 = vld [vmem:[%s1 + $0x34c] sm:$0xf]
  %v266 = vld [vmem:[%s1 + $0x350] sm:$0xf]
  %v267 = vld [vmem:[%s1 + $0x354] sm:$0xf]
  %v268 = vld [vmem:[%s1 + $0x358] sm:$0xf]
  %v269 = vld [vmem:[%s1 + $0x35c] sm:$0xf]
  %v270 = vld [vmem:[%s1 + $0x360] sm:$0xf]
  %v271 = vld [vmem:[%s1 + $0x364] sm:$0xf]
  %v272 = vld [vmem:[%s1 + $0x368] sm:$0xf]
  %v273 = vld [vmem:[%s1 + $0x36c] sm:$0xf]
  %v274 = vld [vmem:[%s1 + $0x370] sm:$0xf]
  %v275 = vld [vmem:[%s1 + $0x374] sm:$0xf]
  %v276 = vld [vmem:[%s1 + $0x378] sm:$0xf]
  %v277 = vld [vmem:[%s1 + $0x37c] sm:$0xf]
  %v278 = vld [vmem:[%s1 + $0x380] sm:$0xf]
  %v279 = vld [vmem:[%s1 + $0x384] sm:$0xf]
  %v280 = vld [vmem:[%s1 + $0x388] sm:$0xf]
  %v281 = vld [vmem:[%s1 + $0x38c] sm:$0xf]
  %v282 = vld [vmem:[%s1 + $0x390] sm:$0xf]
  %v283 = vld [vmem:[%s1 + $0x394] sm:$0xf]
  %v284 = vld [vmem:[%s1 + $0x398] sm:$0xf]
  %v285 = vld [vmem:[%s1 + $0x39c] sm:$0xf]
  %v286 = vld [vmem:[%s1 + $0x3a0] sm:$0xf]
  %v287 = vld [vmem:[%s1 + $0x3a4] sm:$0xf]
  %v288 = vld [vmem:[%s1 + $0x3a8] sm:$0xf]
  %v289 = vld [vmem:[%s1 + $0x3ac] sm:$0xf]
  %v290 = vld [vmem:[%s1 + $0x3b0] sm:$0xf]
  %v291 = vld [vmem:[%s1 + $0x3b4] sm:$0xf]
  %v292 = vld [vmem:[%s1 + $0x3b8] sm:$0xf]
  %v293 = vld [vmem:[%s1 + $0x3bc] sm:$0xf]
  %v294 = vld [vmem:[%s1 + $0x3c0] sm:$0xf]
  %v295 = vld [vmem:[%s1 + $0x3c4] sm:$0xf]
  %v296 = vld [vmem:[%s1 + $0x3c8] sm:$0xf]
  %v297 = vld [vmem:[%s1 + $0x3cc] sm:$0xf]
  %v298 = vld [vmem:[%s1 + $0x3d0] sm:$0xf]
  %v299 = vld [vmem:[%s1 + $0x3d4] sm:$0xf]
  %v300 = vld [vmem:[%s1 + $0x3d8] sm:$0xf]
  %v301 = vld [vmem:[%s1 + $0x3dc] sm:$0xf]
  %v302 = vld [vmem:[%s1 + $0x3e0] sm:$0xf]
  %v303 = vld [vmem:[%s1 + $0x3e4] sm:$0xf]
  %v304 = vld [vmem:[%s1 + $0x3e8] sm:$0xf]
  %v305 = vld [vmem:[%s1 + $0x3ec] sm:$0xf]
  %v306 = vld [vmem:[%s1 + $0x3f0] sm:$0xf]
  %v307 = vld [vmem:[%s1 + $0x3f4] sm:$0xf]
  %v308 = vld [vmem:[%s1 + $0x3f8] sm:$0xf]
  %v309 = vld [vmem:[%s1 + $0x3fc] sm:$0xf]
  %v310 = vld [vmem:[%s1 + $0x400] sm:$0xf]
  %v311 = vld [vmem:[%s1 + $0x404] sm:$0xf]
  %v312 = vld [vmem:[%s1 + $0x408] sm:$0xf]
  %v313 = vld [vmem:[%s1 + $0x40c] sm:$0xf]
  %v314 = vld [vmem:[%s1 + $0x410] sm:$0xf]
  %v315 = vld [vmem:[%s1 + $0x414] sm:$0xf]
  %v316 = vld [vmem:[%s1 + $0x418] sm:$0xf]
  %v317 = vld [vmem:[%s1 + $0x41c] sm:$0xf]
  %v318 = vld [vmem:[%s1 + $0x420] sm:$0xf]
  %v319 = vld [vmem:[%s1 + $0x424] sm:$0xf]
  %v320 = vld [vmem:[%s1 + $0x428] sm:$0xf]
  %v321 = vld [vmem:[%s1 + $0x42c] sm:$0xf]
  %v322 = vld [vmem:[%s1 + $0x430] sm:$0xf]
  %v323 = vld [vmem:[%s1 + $0x434] sm:$0xf]
  %v324 = vld [vmem:[%s1 + $0x438] sm:$0xf]
  %v325 = vld [vmem:[%s1 + $0x43c] sm:$0xf]
  %v326 = vld [vmem:[%s1 + $0x440] sm:$0xf]
  %v327 = vld [vmem:[%s1 + $0x444] sm:$0xf]
  %v328 = vld [vmem:[%s1 + $0x448] sm:$0xf]
  %v329 = vld [vmem:[%s1 + $0x44c] sm:$0xf]
  %v330 = vld [vmem:[%s1 + $0x450] sm:$0xf]
  %v331 = vld [vmem:[%s1 + $0x454] sm:$0xf]
  %v332 = vld [vmem:[%s1 + $0x458] sm:$0xf]
  %v333 = vld [vmem:[%s1 + $0x45c] sm:$0xf]
  %v334 = vld [vmem:[%s1 + $0x460] sm:$0xf]
  %v335 = vld [vmem:[%s1 + $0x464] sm:$0xf]
  %v336 = vld [vmem:[%s1 + $0x468] sm:$0xf]
  %v337 = vld [vmem:[%s1 + $0x46c] sm:$0xf]
  %v338 = vld [vmem:[%s1 + $0x470] sm:$0xf]
  %v339 = vld [vmem:[%s1 + $0x474] sm:$0xf]
  %v340 = vld [vmem:[%s1 + $0x478] sm:$0xf]
  %v341 = vld [vmem:[%s1 + $0x47c] sm:$0xf]
  %v378 = vunpack.c.l.b16 %v18
  %v379 = vunpack.c.h.b16 %v18
  %v380 = vunpack.c.l.b16 %v19
  %v381 = vunpack.c.h.b16 %v19
  %v382 = vunpack.c.l.b16 %v20
  %v383 = vunpack.c.h.b16 %v20
  %v384 = vunpack.c.l.b16 %v21
  %v385 = vunpack.c.h.b16 %v21
  %v386 = vunpack.c.l.b16 %v22
  %v387 = vunpack.c.h.b16 %v22
  %v388 = vunpack.c.l.b16 %v23
  %v389 = vunpack.c.h.b16 %v23
  %v390 = vunpack.c.l.b16 %v24
  %v391 = vunpack.c.h.b16 %v24
  %v392 = vunpack.c.l.b16 %v25
  %v393 = vunpack.c.h.b16 %v25
  %v394 = vunpack.c.l.b16 %v26
  %v395 = vunpack.c.h.b16 %v26
  %v396 = vunpack.c.l.b16 %v27
  %v397 = vunpack.c.h.b16 %v27
  %v398 = vunpack.c.l.b16 %v28
  %v399 = vunpack.c.h.b16 %v28
  %v400 = vunpack.c.l.b16 %v29
  %v401 = vunpack.c.h.b16 %v29
  %v402 = vunpack.c.l.b16 %v30
  %v403 = vunpack.c.h.b16 %v30
  %v404 = vunpack.c.l.b16 %v31
  %v405 = vunpack.c.h.b16 %v31
  %v406 = vunpack.c.l.b16 %v32
  %v407 = vunpack.c.h.b16 %v32
  %v408 = vunpack.c.l.b16 %v33
  %v409 = vunpack.c.h.b16 %v33
  %v410 = vunpack.c.l.b16 %v34
  %v411 = vunpack.c.h.b16 %v34
  %v412 = vunpack.c.l.b16 %v35
  %v413 = vunpack.c.h.b16 %v35
  %v414 = vunpack.c.l.b16 %v36
  %v415 = vunpack.c.h.b16 %v36
  %v416 = vunpack.c.l.b16 %v37
  %v417 = vunpack.c.h.b16 %v37
  %v418 = vunpack.c.l.b16 %v38
  %v419 = vunpack.c.h.b16 %v38
  %v420 = vunpack.c.l.b16 %v39
  %v421 = vunpack.c.h.b16 %v39
  %v422 = vunpack.c.l.b16 %v40
  %v423 = vunpack.c.h.b16 %v40
  %v424 = vunpack.c.l.b16 %v41
  %v425 = vunpack.c.h.b16 %v41
  %v426 = vunpack.c.l.b16 %v42
  %v427 = vunpack.c.h.b16 %v42
  %v428 = vunpack.c.l.b16 %v43
  %v429 = vunpack.c.h.b16 %v43
  %v430 = vunpack.c.l.b16 %v44
  %v431 = vunpack.c.h.b16 %v44
  %v432 = vunpack.c.l.b16 %v45
  %v433 = vunpack.c.h.b16 %v45
  %v434 = vunpack.c.l.b16 %v46
  %v435 = vunpack.c.h.b16 %v46
  %v436 = vunpack.c.l.b16 %v47
  %v437 = vunpack.c.h.b16 %v47
  %v438 = vunpack.c.l.b16 %v48
  %v439 = vunpack.c.h.b16 %v48
  %v440 = vunpack.c.l.b16 %v49
  %v441 = vunpack.c.h.b16 %v49
  %v442 = vunpack.c.l.b16 %v50
  %v443 = vunpack.c.h.b16 %v50
  %v444 = vunpack.c.l.b16 %v51
  %v445 = vunpack.c.h.b16 %v51
  %v446 = vunpack.c.l.b16 %v52
  %v447 = vunpack.c.h.b16 %v52
  %v448 = vunpack.c.l.b16 %v53
  %v449 = vunpack.c.h.b16 %v53
  %v450 = vpack.c.b16 %v396, %v378
  %v451 = vpack.c.b16 %v397, %v379
  %v452 = vpack.c.b16 %v398, %v380
  %v453 = vpack.c.b16 %v399, %v381
  %v454 = vpack.c.b16 %v400, %v382
  %v455 = vpack.c.b16 %v401, %v383
  %v456 = vpack.c.b16 %v402, %v384
  %v457 = vpack.c.b16 %v403, %v385
  %v458 = vpack.c.b16 %v404, %v386
  %v459 = vpack.c.b16 %v405, %v387
  %v460 = vpack.c.b16 %v406, %v388
  %v461 = vpack.c.b16 %v407, %v389
  %v462 = vpack.c.b16 %v408, %v390
  %v463 = vpack.c.b16 %v409, %v391
  %v464 = vpack.c.b16 %v410, %v392
  %v465 = vpack.c.b16 %v411, %v393
  %v466 = vpack.c.b16 %v412, %v394
  %v467 = vpack.c.b16 %v413, %v395
  %v468 = vpack.c.b16 %v432, %v414
  %v469 = vpack.c.b16 %v433, %v415
  %v470 = vpack.c.b16 %v434, %v416
  %v471 = vpack.c.b16 %v435, %v417
  %v472 = vpack.c.b16 %v436, %v418
  %v473 = vpack.c.b16 %v437, %v419
  %v474 = vpack.c.b16 %v438, %v420
  %v475 = vpack.c.b16 %v439, %v421
  %v476 = vpack.c.b16 %v440, %v422
  %v477 = vpack.c.b16 %v441, %v423
  %v478 = vpack.c.b16 %v442, %v424
  %v479 = vpack.c.b16 %v443, %v425
  %v480 = vpack.c.b16 %v444, %v426
  %v481 = vpack.c.b16 %v445, %v427
  %v482 = vpack.c.b16 %v446, %v428
  %v483 = vpack.c.b16 %v447, %v429
  %v484 = vpack.c.b16 %v448, %v430
  %v485 = vpack.c.b16 %v449, %v431
  %v810 = vunpack.c.l.b16 %v54
  %v811 = vunpack.c.l.b16 %v55
  %v812 = vunpack.c.l.b16 %v56
  %v813 = vunpack.c.l.b16 %v57
  %v814 = vunpack.c.l.b16 %v58
  %v815 = vunpack.c.l.b16 %v59
  %v816 = vunpack.c.l.b16 %v60
  %v817 = vunpack.c.l.b16 %v61
  %v818 = vunpack.c.l.b16 %v62
  %v819 = vunpack.c.l.b16 %v63
  %v820 = vunpack.c.l.b16 %v64
  %v821 = vunpack.c.l.b16 %v65
  %v822 = vunpack.c.l.b16 %v66
  %v823 = vunpack.c.l.b16 %v67
  %v824 = vunpack.c.l.b16 %v68
  %v825 = vunpack.c.l.b16 %v69
  %v826 = vunpack.c.l.b16 %v70
  %v827 = vunpack.c.l.b16 %v71
  %v828 = vunpack.c.l.b16 %v72
  %v829 = vunpack.c.l.b16 %v73
  %v830 = vunpack.c.l.b16 %v74
  %v831 = vunpack.c.l.b16 %v75
  %v832 = vunpack.c.l.b16 %v76
  %v833 = vunpack.c.l.b16 %v77
  %v834 = vunpack.c.l.b16 %v78
  %v835 = vunpack.c.l.b16 %v79
  %v836 = vunpack.c.l.b16 %v80
  %v837 = vunpack.c.l.b16 %v81
  %v838 = vunpack.c.l.b16 %v82
  %v839 = vunpack.c.l.b16 %v83
  %v840 = vunpack.c.l.b16 %v84
  %v841 = vunpack.c.l.b16 %v85
  %v842 = vunpack.c.l.b16 %v86
  %v843 = vunpack.c.l.b16 %v87
  %v844 = vunpack.c.l.b16 %v88
  %v845 = vunpack.c.l.b16 %v89
  %v846 = vunpack.c.l.b16 %v90
  %v847 = vunpack.c.l.b16 %v91
  %v848 = vunpack.c.l.b16 %v92
  %v849 = vunpack.c.l.b16 %v93
  %v850 = vunpack.c.l.b16 %v94
  %v851 = vunpack.c.l.b16 %v95
  %v852 = vunpack.c.l.b16 %v96
  %v853 = vunpack.c.l.b16 %v97
  %v854 = vunpack.c.l.b16 %v98
  %v855 = vunpack.c.l.b16 %v99
  %v856 = vunpack.c.l.b16 %v100
  %v857 = vunpack.c.l.b16 %v101
  %v858 = vunpack.c.l.b16 %v102
  %v859 = vunpack.c.l.b16 %v103
  %v860 = vunpack.c.l.b16 %v104
  %v861 = vunpack.c.l.b16 %v105
  %v862 = vunpack.c.l.b16 %v106
  %v863 = vunpack.c.l.b16 %v107
  %v864 = vunpack.c.l.b16 %v108
  %v865 = vunpack.c.l.b16 %v109
  %v866 = vunpack.c.l.b16 %v110
  %v867 = vunpack.c.l.b16 %v111
  %v868 = vunpack.c.l.b16 %v112
  %v869 = vunpack.c.l.b16 %v113
  %v870 = vunpack.c.l.b16 %v114
  %v871 = vunpack.c.l.b16 %v115
  %v872 = vunpack.c.l.b16 %v116
  %v873 = vunpack.c.l.b16 %v117
  %v874 = vunpack.c.l.b16 %v118
  %v875 = vunpack.c.l.b16 %v119
  %v876 = vunpack.c.l.b16 %v120
  %v877 = vunpack.c.l.b16 %v121
  %v878 = vunpack.c.l.b16 %v122
  %v879 = vunpack.c.l.b16 %v123
  %v880 = vunpack.c.l.b16 %v124
  %v881 = vunpack.c.l.b16 %v125
  %v882 = vunpack.c.l.b16 %v126
  %v883 = vunpack.c.l.b16 %v127
  %v884 = vunpack.c.l.b16 %v128
  %v885 = vunpack.c.l.b16 %v129
  %v886 = vunpack.c.l.b16 %v130
  %v887 = vunpack.c.l.b16 %v131
  %v888 = vunpack.c.l.b16 %v132
  %v889 = vunpack.c.l.b16 %v133
  %v890 = vunpack.c.l.b16 %v134
  %v891 = vunpack.c.l.b16 %v135
  %v892 = vunpack.c.l.b16 %v136
  %v893 = vunpack.c.l.b16 %v137
  %v894 = vunpack.c.l.b16 %v138
  %v895 = vunpack.c.l.b16 %v139
  %v896 = vunpack.c.l.b16 %v140
  %v897 = vunpack.c.l.b16 %v141
  %v898 = vunpack.c.l.b16 %v142
  %v899 = vunpack.c.l.b16 %v143
  %v900 = vunpack.c.l.b16 %v144
  %v901 = vunpack.c.l.b16 %v145
  %v902 = vunpack.c.l.b16 %v146
  %v903 = vunpack.c.l.b16 %v147
  %v904 = vunpack.c.l.b16 %v148
  %v905 = vunpack.c.l.b16 %v149
  %v906 = vunpack.c.l.b16 %v150
  %v907 = vunpack.c.l.b16 %v151
  %v908 = vunpack.c.l.b16 %v152
  %v909 = vunpack.c.l.b16 %v153
  %v910 = vunpack.c.l.b16 %v154
  %v911 = vunpack.c.l.b16 %v155
  %v912 = vunpack.c.l.b16 %v156
  %v913 = vunpack.c.l.b16 %v157
  %v914 = vunpack.c.l.b16 %v158
  %v915 = vunpack.c.l.b16 %v159
  %v916 = vunpack.c.l.b16 %v160
  %v917 = vunpack.c.l.b16 %v161
  %v918 = vunpack.c.l.b16 %v162
  %v919 = vunpack.c.l.b16 %v163
  %v920 = vunpack.c.l.b16 %v164
  %v921 = vunpack.c.l.b16 %v165
  %v922 = vunpack.c.l.b16 %v166
  %v923 = vunpack.c.l.b16 %v167
  %v924 = vunpack.c.l.b16 %v168
  %v925 = vunpack.c.l.b16 %v169
  %v926 = vunpack.c.l.b16 %v170
  %v927 = vunpack.c.l.b16 %v171
  %v928 = vunpack.c.l.b16 %v172
  %v929 = vunpack.c.l.b16 %v173
  %v930 = vunpack.c.l.b16 %v174
  %v931 = vunpack.c.l.b16 %v175
  %v932 = vunpack.c.l.b16 %v176
  %v933 = vunpack.c.l.b16 %v177
  %v934 = vunpack.c.l.b16 %v178
  %v935 = vunpack.c.l.b16 %v179
  %v936 = vunpack.c.l.b16 %v180
  %v937 = vunpack.c.l.b16 %v181
  %v938 = vunpack.c.l.b16 %v182
  %v939 = vunpack.c.l.b16 %v183
  %v940 = vunpack.c.l.b16 %v184
  %v941 = vunpack.c.l.b16 %v185
  %v942 = vunpack.c.l.b16 %v186
  %v943 = vunpack.c.l.b16 %v187
  %v944 = vunpack.c.l.b16 %v188
  %v945 = vunpack.c.l.b16 %v189
  %v946 = vunpack.c.l.b16 %v190
  %v947 = vunpack.c.l.b16 %v191
  %v948 = vunpack.c.l.b16 %v192
  %v949 = vunpack.c.l.b16 %v193
  %v950 = vunpack.c.l.b16 %v194
  %v951 = vunpack.c.l.b16 %v195
  %v952 = vunpack.c.l.b16 %v196
  %v953 = vunpack.c.l.b16 %v197
  %v954 = vunpack.c.l.b16 %v198
  %v955 = vunpack.c.l.b16 %v199
  %v956 = vunpack.c.l.b16 %v200
  %v957 = vunpack.c.l.b16 %v201
  %v958 = vunpack.c.l.b16 %v202
  %v959 = vunpack.c.l.b16 %v203
  %v960 = vunpack.c.l.b16 %v204
  %v961 = vunpack.c.l.b16 %v205
  %v962 = vunpack.c.l.b16 %v206
  %v963 = vunpack.c.l.b16 %v207
  %v964 = vunpack.c.l.b16 %v208
  %v965 = vunpack.c.l.b16 %v209
  %v966 = vunpack.c.l.b16 %v210
  %v967 = vunpack.c.l.b16 %v211
  %v968 = vunpack.c.l.b16 %v212
  %v969 = vunpack.c.l.b16 %v213
  %v970 = vunpack.c.l.b16 %v214
  %v971 = vunpack.c.l.b16 %v215
  %v972 = vunpack.c.l.b16 %v216
  %v973 = vunpack.c.l.b16 %v217
  %v974 = vunpack.c.l.b16 %v218
  %v975 = vunpack.c.l.b16 %v219
  %v976 = vunpack.c.l.b16 %v220
  %v977 = vunpack.c.l.b16 %v221
  %v978 = vunpack.c.l.b16 %v222
  %v979 = vunpack.c.l.b16 %v223
  %v980 = vunpack.c.l.b16 %v224
  %v981 = vunpack.c.l.b16 %v225
  %v982 = vunpack.c.l.b16 %v226
  %v983 = vunpack.c.l.b16 %v227
  %v984 = vunpack.c.l.b16 %v228
  %v985 = vunpack.c.l.b16 %v229
  %v986 = vunpack.c.l.b16 %v230
  %v987 = vunpack.c.l.b16 %v231
  %v988 = vunpack.c.l.b16 %v232
  %v989 = vunpack.c.l.b16 %v233
  %v990 = vunpack.c.l.b16 %v234
  %v991 = vunpack.c.l.b16 %v235
  %v992 = vunpack.c.l.b16 %v236
  %v993 = vunpack.c.l.b16 %v237
  %v994 = vunpack.c.l.b16 %v238
  %v995 = vunpack.c.l.b16 %v239
  %v996 = vunpack.c.l.b16 %v240
  %v997 = vunpack.c.l.b16 %v241
  %v998 = vunpack.c.l.b16 %v242
  %v999 = vunpack.c.l.b16 %v243
  %v1000 = vunpack.c.l.b16 %v244
  %v1001 = vunpack.c.l.b16 %v245
  %v1002 = vunpack.c.l.b16 %v246
  %v1003 = vunpack.c.l.b16 %v247
  %v1004 = vunpack.c.l.b16 %v248
  %v1005 = vunpack.c.l.b16 %v249
  %v1006 = vunpack.c.l.b16 %v250
  %v1007 = vunpack.c.l.b16 %v251
  %v1008 = vunpack.c.l.b16 %v252
  %v1009 = vunpack.c.l.b16 %v253
  %v1010 = vunpack.c.l.b16 %v254
  %v1011 = vunpack.c.l.b16 %v255
  %v1012 = vunpack.c.l.b16 %v256
  %v1013 = vunpack.c.l.b16 %v257
  %v1014 = vunpack.c.l.b16 %v258
  %v1015 = vunpack.c.l.b16 %v259
  %v1016 = vunpack.c.l.b16 %v260
  %v1017 = vunpack.c.l.b16 %v261
  %v1018 = vunpack.c.l.b16 %v262
  %v1019 = vunpack.c.l.b16 %v263
  %v1020 = vunpack.c.l.b16 %v264
  %v1021 = vunpack.c.l.b16 %v265
  %v1022 = vunpack.c.l.b16 %v266
  %v1023 = vunpack.c.l.b16 %v267
  %v1024 = vunpack.c.l.b16 %v268
  %v1025 = vunpack.c.l.b16 %v269
  %v1026 = vunpack.c.l.b16 %v270
  %v1027 = vunpack.c.l.b16 %v271
  %v1028 = vunpack.c.l.b16 %v272
  %v1029 = vunpack.c.l.b16 %v273
  %v1030 = vunpack.c.l.b16 %v274
  %v1031 = vunpack.c.l.b16 %v275
  %v1032 = vunpack.c.l.b16 %v276
  %v1033 = vunpack.c.l.b16 %v277
  %v1034 = vunpack.c.l.b16 %v278
  %v1035 = vunpack.c.l.b16 %v279
  %v1036 = vunpack.c.l.b16 %v280
  %v1037 = vunpack.c.l.b16 %v281
  %v1038 = vunpack.c.l.b16 %v282
  %v1039 = vunpack.c.l.b16 %v283
  %v1040 = vunpack.c.l.b16 %v284
  %v1041 = vunpack.c.l.b16 %v285
  %v1042 = vunpack.c.l.b16 %v286
  %v1043 = vunpack.c.l.b16 %v287
  %v1044 = vunpack.c.l.b16 %v288
  %v1045 = vunpack.c.l.b16 %v289
  %v1046 = vunpack.c.l.b16 %v290
  %v1047 = vunpack.c.l.b16 %v291
  %v1048 = vunpack.c.l.b16 %v292
  %v1049 = vunpack.c.l.b16 %v293
  %v1050 = vunpack.c.l.b16 %v294
  %v1051 = vunpack.c.l.b16 %v295
  %v1052 = vunpack.c.l.b16 %v296
  %v1053 = vunpack.c.l.b16 %v297
  %v1054 = vunpack.c.l.b16 %v298
  %v1055 = vunpack.c.l.b16 %v299
  %v1056 = vunpack.c.l.b16 %v300
  %v1057 = vunpack.c.l.b16 %v301
  %v1058 = vunpack.c.l.b16 %v302
  %v1059 = vunpack.c.l.b16 %v303
  %v1060 = vunpack.c.l.b16 %v304
  %v1061 = vunpack.c.l.b16 %v305
  %v1062 = vunpack.c.l.b16 %v306
  %v1063 = vunpack.c.l.b16 %v307
  %v1064 = vunpack.c.l.b16 %v308
  %v1065 = vunpack.c.l.b16 %v309
  %v1066 = vunpack.c.l.b16 %v310
  %v1067 = vunpack.c.l.b16 %v311
  %v1068 = vunpack.c.l.b16 %v312
  %v1069 = vunpack.c.l.b16 %v313
  %v1070 = vunpack.c.l.b16 %v314
  %v1071 = vunpack.c.l.b16 %v315
  %v1072 = vunpack.c.l.b16 %v316
  %v1073 = vunpack.c.l.b16 %v317
  %v1074 = vunpack.c.l.b16 %v318
  %v1075 = vunpack.c.l.b16 %v319
  %v1076 = vunpack.c.l.b16 %v320
  %v1077 = vunpack.c.l.b16 %v321
  %v1078 = vunpack.c.l.b16 %v322
  %v1079 = vunpack.c.l.b16 %v323
  %v1080 = vunpack.c.l.b16 %v324
  %v1081 = vunpack.c.l.b16 %v325
  %v1082 = vunpack.c.l.b16 %v326
  %v1083 = vunpack.c.l.b16 %v327
  %v1084 = vunpack.c.l.b16 %v328
  %v1085 = vunpack.c.l.b16 %v329
  %v1086 = vunpack.c.l.b16 %v330
  %v1087 = vunpack.c.l.b16 %v331
  %v1088 = vunpack.c.l.b16 %v332
  %v1089 = vunpack.c.l.b16 %v333
  %v1090 = vunpack.c.l.b16 %v334
  %v1091 = vunpack.c.l.b16 %v335
  %v1092 = vunpack.c.l.b16 %v336
  %v1093 = vunpack.c.l.b16 %v337
  %v1094 = vunpack.c.l.b16 %v338
  %v1095 = vunpack.c.l.b16 %v339
  %v1096 = vunpack.c.l.b16 %v340
  %v1097 = vunpack.c.l.b16 %v341
  %v1098 = vpack.c.b16 %v811, %v810
  %v1099 = vpack.c.b16 %v813, %v812
  %v1100 = vpack.c.b16 %v815, %v814
  %v1101 = vpack.c.b16 %v817, %v816
  %v1102 = vpack.c.b16 %v819, %v818
  %v1103 = vpack.c.b16 %v821, %v820
  %v1104 = vpack.c.b16 %v823, %v822
  %v1105 = vpack.c.b16 %v825, %v824
  %v1106 = vpack.c.b16 %v827, %v826
  %v1107 = vpack.c.b16 %v829, %v828
  %v1108 = vpack.c.b16 %v831, %v830
  %v1109 = vpack.c.b16 %v833, %v832
  %v1110 = vpack.c.b16 %v835, %v834
  %v1111 = vpack.c.b16 %v837, %v836
  %v1112 = vpack.c.b16 %v839, %v838
  %v1113 = vpack.c.b16 %v841, %v840
  %v1114 = vpack.c.b16 %v843, %v842
  %v1115 = vpack.c.b16 %v845, %v844
  %v1116 = vpack.c.b16 %v847, %v846
  %v1117 = vpack.c.b16 %v849, %v848
  %v1118 = vpack.c.b16 %v851, %v850
  %v1119 = vpack.c.b16 %v853, %v852
  %v1120 = vpack.c.b16 %v855, %v854
  %v1121 = vpack.c.b16 %v857, %v856
  %v1122 = vpack.c.b16 %v859, %v858
  %v1123 = vpack.c.b16 %v861, %v860
  %v1124 = vpack.c.b16 %v863, %v862
  %v1125 = vpack.c.b16 %v865, %v864
  %v1126 = vpack.c.b16 %v867, %v866
  %v1127 = vpack.c.b16 %v869, %v868
  %v1128 = vpack.c.b16 %v871, %v870
  %v1129 = vpack.c.b16 %v873, %v872
  %v1130 = vpack.c.b16 %v875, %v874
  %v1131 = vpack.c.b16 %v877, %v876
  %v1132 = vpack.c.b16 %v879, %v878
  %v1133 = vpack.c.b16 %v881, %v880
  %v1134 = vpack.c.b16 %v883, %v882
  %v1135 = vpack.c.b16 %v885, %v884
  %v1136 = vpack.c.b16 %v887, %v886
  %v1137 = vpack.c.b16 %v889, %v888
  %v1138 = vpack.c.b16 %v891, %v890
  %v1139 = vpack.c.b16 %v893, %v892
  %v1140 = vpack.c.b16 %v895, %v894
  %v1141 = vpack.c.b16 %v897, %v896
  %v1142 = vpack.c.b16 %v899, %v898
  %v1143 = vpack.c.b16 %v901, %v900
  %v1144 = vpack.c.b16 %v903, %v902
  %v1145 = vpack.c.b16 %v905, %v904
  %v1146 = vpack.c.b16 %v907, %v906
  %v1147 = vpack.c.b16 %v909, %v908
  %v1148 = vpack.c.b16 %v911, %v910
  %v1149 = vpack.c.b16 %v913, %v912
  %v1150 = vpack.c.b16 %v915, %v914
  %v1151 = vpack.c.b16 %v917, %v916
  %v1152 = vpack.c.b16 %v919, %v918
  %v1153 = vpack.c.b16 %v921, %v920
  %v1154 = vpack.c.b16 %v923, %v922
  %v1155 = vpack.c.b16 %v925, %v924
  %v1156 = vpack.c.b16 %v927, %v926
  %v1157 = vpack.c.b16 %v929, %v928
  %v1158 = vpack.c.b16 %v931, %v930
  %v1159 = vpack.c.b16 %v933, %v932
  %v1160 = vpack.c.b16 %v935, %v934
  %v1161 = vpack.c.b16 %v937, %v936
  %v1162 = vpack.c.b16 %v939, %v938
  %v1163 = vpack.c.b16 %v941, %v940
  %v1164 = vpack.c.b16 %v943, %v942
  %v1165 = vpack.c.b16 %v945, %v944
  %v1166 = vpack.c.b16 %v947, %v946
  %v1167 = vpack.c.b16 %v949, %v948
  %v1168 = vpack.c.b16 %v951, %v950
  %v1169 = vpack.c.b16 %v953, %v952
  %v1170 = vpack.c.b16 %v955, %v954
  %v1171 = vpack.c.b16 %v957, %v956
  %v1172 = vpack.c.b16 %v959, %v958
  %v1173 = vpack.c.b16 %v961, %v960
  %v1174 = vpack.c.b16 %v963, %v962
  %v1175 = vpack.c.b16 %v965, %v964
  %v1176 = vpack.c.b16 %v967, %v966
  %v1177 = vpack.c.b16 %v969, %v968
  %v1178 = vpack.c.b16 %v971, %v970
  %v1179 = vpack.c.b16 %v973, %v972
  %v1180 = vpack.c.b16 %v975, %v974
  %v1181 = vpack.c.b16 %v977, %v976
  %v1182 = vpack.c.b16 %v979, %v978
  %v1183 = vpack.c.b16 %v981, %v980
  %v1184 = vpack.c.b16 %v983, %v982
  %v1185 = vpack.c.b16 %v985, %v984
  %v1186 = vpack.c.b16 %v987, %v986
  %v1187 = vpack.c.b16 %v989, %v988
  %v1188 = vpack.c.b16 %v991, %v990
  %v1189 = vpack.c.b16 %v993, %v992
  %v1190 = vpack.c.b16 %v995, %v994
  %v1191 = vpack.c.b16 %v997, %v996
  %v1192 = vpack.c.b16 %v999, %v998
  %v1193 = vpack.c.b16 %v1001, %v1000
  %v1194 = vpack.c.b16 %v1003, %v1002
  %v1195 = vpack.c.b16 %v1005, %v1004
  %v1196 = vpack.c.b16 %v1007, %v1006
  %v1197 = vpack.c.b16 %v1009, %v1008
  %v1198 = vpack.c.b16 %v1011, %v1010
  %v1199 = vpack.c.b16 %v1013, %v1012
  %v1200 = vpack.c.b16 %v1015, %v1014
  %v1201 = vpack.c.b16 %v1017, %v1016
  %v1202 = vpack.c.b16 %v1019, %v1018
  %v1203 = vpack.c.b16 %v1021, %v1020
  %v1204 = vpack.c.b16 %v1023, %v1022
  %v1205 = vpack.c.b16 %v1025, %v1024
  %v1206 = vpack.c.b16 %v1027, %v1026
  %v1207 = vpack.c.b16 %v1029, %v1028
  %v1208 = vpack.c.b16 %v1031, %v1030
  %v1209 = vpack.c.b16 %v1033, %v1032
  %v1210 = vpack.c.b16 %v1035, %v1034
  %v1211 = vpack.c.b16 %v1037, %v1036
  %v1212 = vpack.c.b16 %v1039, %v1038
  %v1213 = vpack.c.b16 %v1041, %v1040
  %v1214 = vpack.c.b16 %v1043, %v1042
  %v1215 = vpack.c.b16 %v1045, %v1044
  %v1216 = vpack.c.b16 %v1047, %v1046
  %v1217 = vpack.c.b16 %v1049, %v1048
  %v1218 = vpack.c.b16 %v1051, %v1050
  %v1219 = vpack.c.b16 %v1053, %v1052
  %v1220 = vpack.c.b16 %v1055, %v1054
  %v1221 = vpack.c.b16 %v1057, %v1056
  %v1222 = vpack.c.b16 %v1059, %v1058
  %v1223 = vpack.c.b16 %v1061, %v1060
  %v1224 = vpack.c.b16 %v1063, %v1062
  %v1225 = vpack.c.b16 %v1065, %v1064
  %v1226 = vpack.c.b16 %v1067, %v1066
  %v1227 = vpack.c.b16 %v1069, %v1068
  %v1228 = vpack.c.b16 %v1071, %v1070
  %v1229 = vpack.c.b16 %v1073, %v1072
  %v1230 = vpack.c.b16 %v1075, %v1074
  %v1231 = vpack.c.b16 %v1077, %v1076
  %v1232 = vpack.c.b16 %v1079, %v1078
  %v1233 = vpack.c.b16 %v1081, %v1080
  %v1234 = vpack.c.b16 %v1083, %v1082
  %v1235 = vpack.c.b16 %v1085, %v1084
  %v1236 = vpack.c.b16 %v1087, %v1086
  %v1237 = vpack.c.b16 %v1089, %v1088
  %v1238 = vpack.c.b16 %v1091, %v1090
  %v1239 = vpack.c.b16 %v1093, %v1092
  %v1240 = vpack.c.b16 %v1095, %v1094
  %v1241 = vpack.c.b16 %v1097, %v1096
  %1386 = vmatprep.subr.bf16.mxu0 0
  %1387 = vmatpush1.bf16.msra.mxu0 %v1098
  %1388 = vmatprep.subr.bf16.mxu0 0
  %1389 = vmatpush1.bf16.msra.mxu0 %v1099
  %1390 = vmatprep.subr.bf16.mxu0 0
  %1391 = vmatpush1.bf16.msra.mxu0 %v1100
  %1392 = vmatprep.subr.bf16.mxu0 0
  %1393 = vmatpush1.bf16.msra.mxu0 %v1101
  %1394 = vmatprep.subr.bf16.mxu0 0
  %1395 = vmatpush1.bf16.msra.mxu0 %v1102
  %1396 = vmatprep.subr.bf16.mxu0 0
  %1397 = vmatpush1.bf16.msra.mxu0 %v1103
  %1398 = vmatprep.subr.bf16.mxu0 0
  %1399 = vmatpush1.bf16.msra.mxu0 %v1104
  %1400 = vmatprep.subr.bf16.mxu0 0
  %1401 = vmatpush1.bf16.msra.mxu0 %v1105
  %1402 = vmatprep.subr.bf16.mxu0 0
  %1403 = vmatpush1.bf16.msra.mxu0 %v1106
  %1404 = vmatprep.subr.bf16.mxu0 0
  %1405 = vmatpush1.bf16.msra.mxu0 %v1107
  %1406 = vmatprep.subr.bf16.mxu0 0
  %1407 = vmatpush1.bf16.msra.mxu0 %v1108
  %1408 = vmatprep.subr.bf16.mxu0 0
  %1409 = vmatpush1.bf16.msra.mxu0 %v1109
  %1410 = vmatprep.subr.bf16.mxu0 0
  %1411 = vmatpush1.bf16.msra.mxu0 %v1110
  %1412 = vmatprep.subr.bf16.mxu0 0
  %1413 = vmatpush1.bf16.msra.mxu0 %v1111
  %1414 = vmatprep.subr.bf16.mxu0 0
  %1415 = vmatpush1.bf16.msra.mxu0 %v1112
  %1416 = vmatprep.subr.bf16.mxu0 0
  %1417 = vmatpush1.bf16.msra.mxu0 %v1113
  %1418 = vmatprep.mubr.bf16.mxu0 %v451
  %1419 = vmatmul.mubr.bf16.gmra.mrb[0].mxu0 %v450
  %v1420 = vpop.f32.mrb[0].mxu0
  %v1421 = vadd.f32 0.0, %v1420
  %v1422 = vpop.f32.mrb[0].mxu0
  %v1423 = vpop.f32.mrb[0].mxu0
  %v1424 = vadd.f32 0.0, %v1423
  %v1425 = vpop.f32.mrb[0].mxu0
  %1426 = vmatprep.mubr.bf16.mxu0 %v469
  %1427 = vmatmul.mubr.bf16.gmra.mrb[0].mxu0 %v468
  %v1428 = vpop.f32.mrb[0].mxu0
  %v1429 = vadd.f32 0.0, %v1428
  %v1430 = vpop.f32.mrb[0].mxu0
  %v1431 = vpop.f32.mrb[0].mxu0
  %v1432 = vadd.f32 0.0, %v1431
  %v1433 = vpop.f32.mrb[0].mxu0
  %1434 = vdwg.mxu0
  %1435 = vmatprep.subr.bf16.mxu0 0
  %1436 = vmatpush1.bf16.msra.mxu0 %v1114
  %1437 = vmatprep.subr.bf16.mxu0 0
  %1438 = vmatpush1.bf16.msra.mxu0 %v1115
  %1439 = vmatprep.subr.bf16.mxu0 0
  %1440 = vmatpush1.bf16.msra.mxu0 %v1116
  %1441 = vmatprep.subr.bf16.mxu0 0
  %1442 = vmatpush1.bf16.msra.mxu0 %v1117
  %1443 = vmatprep.subr.bf16.mxu0 0
  %1444 = vmatpush1.bf16.msra.mxu0 %v1118
  %1445 = vmatprep.subr.bf16.mxu0 0
  %1446 = vmatpush1.bf16.msra.mxu0 %v1119
  %1447 = vmatprep.subr.bf16.mxu0 0
  %1448 = vmatpush1.bf16.msra.mxu0 %v1120
  %1449 = vmatprep.subr.bf16.mxu0 0
  %1450 = vmatpush1.bf16.msra.mxu0 %v1121
  %1451 = vmatprep.subr.bf16.mxu0 0
  %1452 = vmatpush1.bf16.msra.mxu0 %v1122
  %1453 = vmatprep.subr.bf16.mxu0 0
  %1454 = vmatpush1.bf16.msra.mxu0 %v1123
  %1455 = vmatprep.subr.bf16.mxu0 0
  %1456 = vmatpush1.bf16.msra.mxu0 %v1124
  %1457 = vmatprep.subr.bf16.mxu0 0
  %1458 = vmatpush1.bf16.msra.mxu0 %v1125
  %1459 = vmatprep.subr.bf16.mxu0 0
  %1460 = vmatpush1.bf16.msra.mxu0 %v1126
  %1461 = vmatprep.subr.bf16.mxu0 0
  %1462 = vmatpush1.bf16.msra.mxu0 %v1127
  %1463 = vmatprep.subr.bf16.mxu0 0
  %1464 = vmatpush1.bf16.msra.mxu0 %v1128
  %1465 = vmatprep.subr.bf16.mxu0 0
  %1466 = vmatpush1.bf16.msra.mxu0 %v1129
  %1467 = vmatprep.mubr.bf16.mxu0 %v453
  %1468 = vmatmul.mubr.bf16.gmra.mrb[0].mxu0 %v452
  %v1469 = vpop.f32.mrb[0].mxu0
  %v1470 = vadd.f32 %v1421, %v1469
  %v1471 = vpop.f32.mrb[0].mxu0
  %v1472 = vpop.f32.mrb[0].mxu0
  %v1473 = vadd.f32 %v1424, %v1472
  %v1474 = vpop.f32.mrb[0].mxu0
  %1475 = vmatprep.mubr.bf16.mxu0 %v471
  %1476 = vmatmul.mubr.bf16.gmra.mrb[0].mxu0 %v470
  %v1477 = vpop.f32.mrb[0].mxu0
  %v1478 = vadd.f32 %v1429, %v1477
  %v1479 = vpop.f32.mrb[0].mxu0
  %v1480 = vpop.f32.mrb[0].mxu0
  %v1481 = vadd.f32 %v1432, %v1480
  %v1482 = vpop.f32.mrb[0].mxu0
  %1483 = vdwg.mxu0
  %1484 = vmatprep.subr.bf16.mxu0 0
  %1485 = vmatpush1.bf16.msra.mxu0 %v1130
  %1486 = vmatprep.subr.bf16.mxu0 0
  %1487 = vmatpush1.bf16.msra.mxu0 %v1131
  %1488 = vmatprep.subr.bf16.mxu0 0
  %1489 = vmatpush1.bf16.msra.mxu0 %v1132
  %1490 = vmatprep.subr.bf16.mxu0 0
  %1491 = vmatpush1.bf16.msra.mxu0 %v1133
  %1492 = vmatprep.subr.bf16.mxu0 0
  %1493 = vmatpush1.bf16.msra.mxu0 %v1134
  %1494 = vmatprep.subr.bf16.mxu0 0
  %1495 = vmatpush1.bf16.msra.mxu0 %v1135
  %1496 = vmatprep.subr.bf16.mxu0 0
  %1497 = vmatpush1.bf16.msra.mxu0 %v1136
  %1498 = vmatprep.subr.bf16.mxu0 0
  %1499 = vmatpush1.bf16.msra.mxu0 %v1137
  %1500 = vmatprep.subr.bf16.mxu0 0
  %1501 = vmatpush1.bf16.msra.mxu0 %v1138
  %1502 = vmatprep.subr.bf16.mxu0 0
  %1503 = vmatpush1.bf16.msra.mxu0 %v1139
  %1504 = vmatprep.subr.bf16.mxu0 0
  %1505 = vmatpush1.bf16.msra.mxu0 %v1140
  %1506 = vmatprep.subr.bf16.mxu0 0
  %1507 = vmatpush1.bf16.msra.mxu0 %v1141
  %1508 = vmatprep.subr.bf16.mxu0 0
  %1509 = vmatpush1.bf16.msra.mxu0 %v1142
  %1510 = vmatprep.subr.bf16.mxu0 0
  %1511 = vmatpush1.bf16.msra.mxu0 %v1143
  %1512 = vmatprep.subr.bf16.mxu0 0
  %1513 = vmatpush1.bf16.msra.mxu0 %v1144
  %1514 = vmatprep.subr.bf16.mxu0 0
  %1515 = vmatpush1.bf16.msra.mxu0 %v1145
  %1516 = vmatprep.mubr.bf16.mxu0 %v455
  %1517 = vmatmul.mubr.bf16.gmra.mrb[0].mxu0 %v454
  %v1518 = vpop.f32.mrb[0].mxu0
  %v1519 = vadd.f32 %v1470, %v1518
  %v1520 = vpop.f32.mrb[0].mxu0
  %v1521 = vpop.f32.mrb[0].mxu0
  %v1522 = vadd.f32 %v1473, %v1521
  %v1523 = vpop.f32.mrb[0].mxu0
  %1524 = vmatprep.mubr.bf16.mxu0 %v473
  %1525 = vmatmul.mubr.bf16.gmra.mrb[0].mxu0 %v472
  %v1526 = vpop.f32.mrb[0].mxu0
  %v1527 = vadd.f32 %v1478, %v1526
  %v1528 = vpop.f32.mrb[0].mxu0
  %v1529 = vpop.f32.mrb[0].mxu0
  %v1530 = vadd.f32 %v1481, %v1529
  %v1531 = vpop.f32.mrb[0].mxu0
  %1532 = vdwg.mxu0
  %1533 = vmatprep.subr.bf16.mxu0 0
  %1534 = vmatpush1.bf16.msra.mxu0 %v1146
  %1535 = vmatprep.subr.bf16.mxu0 0
  %1536 = vmatpush1.bf16.msra.mxu0 %v1147
  %1537 = vmatprep.subr.bf16.mxu0 0
  %1538 = vmatpush1.bf16.msra.mxu0 %v1148
  %1539 = vmatprep.subr.bf16.mxu0 0
  %1540 = vmatpush1.bf16.msra.mxu0 %v1149
  %1541 = vmatprep.subr.bf16.mxu0 0
  %1542 = vmatpush1.bf16.msra.mxu0 %v1150
  %1543 = vmatprep.subr.bf16.mxu0 0
  %1544 = vmatpush1.bf16.msra.mxu0 %v1151
  %1545 = vmatprep.subr.bf16.mxu0 0
  %1546 = vmatpush1.bf16.msra.mxu0 %v1152
  %1547 = vmatprep.subr.bf16.mxu0 0
  %1548 = vmatpush1.bf16.msra.mxu0 %v1153
  %1549 = vmatprep.subr.bf16.mxu0 0
  %1550 = vmatpush1.bf16.msra.mxu0 %v1154
  %1551 = vmatprep.subr.bf16.mxu0 0
  %1552 = vmatpush1.bf16.msra.mxu0 %v1155
  %1553 = vmatprep.subr.bf16.mxu0 0
  %1554 = vmatpush1.bf16.msra.mxu0 %v1156
  %1555 = vmatprep.subr.bf16.mxu0 0
  %1556 = vmatpush1.bf16.msra.mxu0 %v1157
  %1557 = vmatprep.subr.bf16.mxu0 0
  %1558 = vmatpush1.bf16.msra.mxu0 %v1158
  %1559 = vmatprep.subr.bf16.mxu0 0
  %1560 = vmatpush1.bf16.msra.mxu0 %v1159
  %1561 = vmatprep.subr.bf16.mxu0 0
  %1562 = vmatpush1.bf16.msra.mxu0 %v1160
  %1563 = vmatprep.subr.bf16.mxu0 0
  %1564 = vmatpush1.bf16.msra.mxu0 %v1161
  %1565 = vmatprep.mubr.bf16.mxu0 %v457
  %1566 = vmatmul.mubr.bf16.gmra.mrb[0].mxu0 %v456
  %v1567 = vpop.f32.mrb[0].mxu0
  %v1568 = vadd.f32 %v1519, %v1567
  %v1569 = vpop.f32.mrb[0].mxu0
  %v1570 = vpop.f32.mrb[0].mxu0
  %v1571 = vadd.f32 %v1522, %v1570
  %v1572 = vpop.f32.mrb[0].mxu0
  %1573 = vmatprep.mubr.bf16.mxu0 %v475
  %1574 = vmatmul.mubr.bf16.gmra.mrb[0].mxu0 %v474
  %v1575 = vpop.f32.mrb[0].mxu0
  %v1576 = vadd.f32 %v1527, %v1575
  %v1577 = vpop.f32.mrb[0].mxu0
  %v1578 = vpop.f32.mrb[0].mxu0
  %v1579 = vadd.f32 %v1530, %v1578
  %v1580 = vpop.f32.mrb[0].mxu0
  %1581 = vdwg.mxu0
  %1582 = vmatprep.subr.bf16.mxu0 0
  %1583 = vmatpush1.bf16.msra.mxu0 %v1162
  %1584 = vmatprep.subr.bf16.mxu0 0
  %1585 = vmatpush1.bf16.msra.mxu0 %v1163
  %1586 = vmatprep.subr.bf16.mxu0 0
  %1587 = vmatpush1.bf16.msra.mxu0 %v1164
  %1588 = vmatprep.subr.bf16.mxu0 0
  %1589 = vmatpush1.bf16.msra.mxu0 %v1165
  %1590 = vmatprep.subr.bf16.mxu0 0
  %1591 = vmatpush1.bf16.msra.mxu0 %v1166
  %1592 = vmatprep.subr.bf16.mxu0 0
  %1593 = vmatpush1.bf16.msra.mxu0 %v1167
  %1594 = vmatprep.subr.bf16.mxu0 0
  %1595 = vmatpush1.bf16.msra.mxu0 %v1168
  %1596 = vmatprep.subr.bf16.mxu0 0
  %1597 = vmatpush1.bf16.msra.mxu0 %v1169
  %1598 = vmatprep.subr.bf16.mxu0 0
  %1599 = vmatpush1.bf16.msra.mxu0 %v1170
  %1600 = vmatprep.subr.bf16.mxu0 0
  %1601 = vmatpush1.bf16.msra.mxu0 %v1171
  %1602 = vmatprep.subr.bf16.mxu0 0
  %1603 = vmatpush1.bf16.msra.mxu0 %v1172
  %1604 = vmatprep.subr.bf16.mxu0 0
  %1605 = vmatpush1.bf16.msra.mxu0 %v1173
  %1606 = vmatprep.subr.bf16.mxu0 0
  %1607 = vmatpush1.bf16.msra.mxu0 %v1174
  %1608 = vmatprep.subr.bf16.mxu0 0
  %1609 = vmatpush1.bf16.msra.mxu0 %v1175
  %1610 = vmatprep.subr.bf16.mxu0 0
  %1611 = vmatpush1.bf16.msra.mxu0 %v1176
  %1612 = vmatprep.subr.bf16.mxu0 0
  %1613 = vmatpush1.bf16.msra.mxu0 %v1177
  %1614 = vmatprep.mubr.bf16.mxu0 %v459
  %1615 = vmatmul.mubr.bf16.gmra.mrb[0].mxu0 %v458
  %v1616 = vpop.f32.mrb[0].mxu0
  %v1617 = vadd.f32 %v1568, %v1616
  %v1618 = vpop.f32.mrb[0].mxu0
  %v1619 = vpop.f32.mrb[0].mxu0
  %v1620 = vadd.f32 %v1571, %v1619
  %v1621 = vpop.f32.mrb[0].mxu0
  %1622 = vmatprep.mubr.bf16.mxu0 %v477
  %1623 = vmatmul.mubr.bf16.gmra.mrb[0].mxu0 %v476
  %v1624 = vpop.f32.mrb[0].mxu0
  %v1625 = vadd.f32 %v1576, %v1624
  %v1626 = vpop.f32.mrb[0].mxu0
  %v1627 = vpop.f32.mrb[0].mxu0
  %v1628 = vadd.f32 %v1579, %v1627
  %v1629 = vpop.f32.mrb[0].mxu0
  %1630 = vdwg.mxu0
  %1631 = vmatprep.subr.bf16.mxu0 0
  %1632 = vmatpush1.bf16.msra.mxu0 %v1178
  %1633 = vmatprep.subr.bf16.mxu0 0
  %1634 = vmatpush1.bf16.msra.mxu0 %v1179
  %1635 = vmatprep.subr.bf16.mxu0 0
  %1636 = vmatpush1.bf16.msra.mxu0 %v1180
  %1637 = vmatprep.subr.bf16.mxu0 0
  %1638 = vmatpush1.bf16.msra.mxu0 %v1181
  %1639 = vmatprep.subr.bf16.mxu0 0
  %1640 = vmatpush1.bf16.msra.mxu0 %v1182
  %1641 = vmatprep.subr.bf16.mxu0 0
  %1642 = vmatpush1.bf16.msra.mxu0 %v1183
  %1643 = vmatprep.subr.bf16.mxu0 0
  %1644 = vmatpush1.bf16.msra.mxu0 %v1184
  %1645 = vmatprep.subr.bf16.mxu0 0
  %1646 = vmatpush1.bf16.msra.mxu0 %v1185
  %1647 = vmatprep.subr.bf16.mxu0 0
  %1648 = vmatpush1.bf16.msra.mxu0 %v1186
  %1649 = vmatprep.subr.bf16.mxu0 0
  %1650 = vmatpush1.bf16.msra.mxu0 %v1187
  %1651 = vmatprep.subr.bf16.mxu0 0
  %1652 = vmatpush1.bf16.msra.mxu0 %v1188
  %1653 = vmatprep.subr.bf16.mxu0 0
  %1654 = vmatpush1.bf16.msra.mxu0 %v1189
  %1655 = vmatprep.subr.bf16.mxu0 0
  %1656 = vmatpush1.bf16.msra.mxu0 %v1190
  %1657 = vmatprep.subr.bf16.mxu0 0
  %1658 = vmatpush1.bf16.msra.mxu0 %v1191
  %1659 = vmatprep.subr.bf16.mxu0 0
  %1660 = vmatpush1.bf16.msra.mxu0 %v1192
  %1661 = vmatprep.subr.bf16.mxu0 0
  %1662 = vmatpush1.bf16.msra.mxu0 %v1193
  %1663 = vmatprep.mubr.bf16.mxu0 %v461
  %1664 = vmatmul.mubr.bf16.gmra.mrb[0].mxu0 %v460
  %v1665 = vpop.f32.mrb[0].mxu0
  %v1666 = vadd.f32 %v1617, %v1665
  %v1667 = vpop.f32.mrb[0].mxu0
  %v1668 = vpop.f32.mrb[0].mxu0
  %v1669 = vadd.f32 %v1620, %v1668
  %v1670 = vpop.f32.mrb[0].mxu0
  %1671 = vmatprep.mubr.bf16.mxu0 %v479
  %1672 = vmatmul.mubr.bf16.gmra.mrb[0].mxu0 %v478
  %v1673 = vpop.f32.mrb[0].mxu0
  %v1674 = vadd.f32 %v1625, %v1673
  %v1675 = vpop.f32.mrb[0].mxu0
  %v1676 = vpop.f32.mrb[0].mxu0
  %v1677 = vadd.f32 %v1628, %v1676
  %v1678 = vpop.f32.mrb[0].mxu0
  %1679 = vdwg.mxu0
  %1680 = vmatprep.subr.bf16.mxu0 0
  %1681 = vmatpush1.bf16.msra.mxu0 %v1194
  %1682 = vmatprep.subr.bf16.mxu0 0
  %1683 = vmatpush1.bf16.msra.mxu0 %v1195
  %1684 = vmatprep.subr.bf16.mxu0 0
  %1685 = vmatpush1.bf16.msra.mxu0 %v1196
  %1686 = vmatprep.subr.bf16.mxu0 0
  %1687 = vmatpush1.bf16.msra.mxu0 %v1197
  %1688 = vmatprep.subr.bf16.mxu0 0
  %1689 = vmatpush1.bf16.msra.mxu0 %v1198
  %1690 = vmatprep.subr.bf16.mxu0 0
  %1691 = vmatpush1.bf16.msra.mxu0 %v1199
  %1692 = vmatprep.subr.bf16.mxu0 0
  %1693 = vmatpush1.bf16.msra.mxu0 %v1200
  %1694 = vmatprep.subr.bf16.mxu0 0
  %1695 = vmatpush1.bf16.msra.mxu0 %v1201
  %1696 = vmatprep.subr.bf16.mxu0 0
  %1697 = vmatpush1.bf16.msra.mxu0 %v1202
  %1698 = vmatprep.subr.bf16.mxu0 0
  %1699 = vmatpush1.bf16.msra.mxu0 %v1203
  %1700 = vmatprep.subr.bf16.mxu0 0
  %1701 = vmatpush1.bf16.msra.mxu0 %v1204
  %1702 = vmatprep.subr.bf16.mxu0 0
  %1703 = vmatpush1.bf16.msra.mxu0 %v1205
  %1704 = vmatprep.subr.bf16.mxu0 0
  %1705 = vmatpush1.bf16.msra.mxu0 %v1206
  %1706 = vmatprep.subr.bf16.mxu0 0
  %1707 = vmatpush1.bf16.msra.mxu0 %v1207
  %1708 = vmatprep.subr.bf16.mxu0 0
  %1709 = vmatpush1.bf16.msra.mxu0 %v1208
  %1710 = vmatprep.subr.bf16.mxu0 0
  %1711 = vmatpush1.bf16.msra.mxu0 %v1209
  %1712 = vmatprep.mubr.bf16.mxu0 %v463
  %1713 = vmatmul.mubr.bf16.gmra.mrb[0].mxu0 %v462
  %v1714 = vpop.f32.mrb[0].mxu0
  %v1715 = vadd.f32 %v1666, %v1714
  %v1716 = vpop.f32.mrb[0].mxu0
  %v1717 = vpop.f32.mrb[0].mxu0
  %v1718 = vadd.f32 %v1669, %v1717
  %v1719 = vpop.f32.mrb[0].mxu0
  %1720 = vmatprep.mubr.bf16.mxu0 %v481
  %1721 = vmatmul.mubr.bf16.gmra.mrb[0].mxu0 %v480
  %v1722 = vpop.f32.mrb[0].mxu0
  %v1723 = vadd.f32 %v1674, %v1722
  %v1724 = vpop.f32.mrb[0].mxu0
  %v1725 = vpop.f32.mrb[0].mxu0
  %v1726 = vadd.f32 %v1677, %v1725
  %v1727 = vpop.f32.mrb[0].mxu0
  %1728 = vdwg.mxu0
  %1729 = vmatprep.subr.bf16.mxu0 0
  %1730 = vmatpush1.bf16.msra.mxu0 %v1210
  %1731 = vmatprep.subr.bf16.mxu0 0
  %1732 = vmatpush1.bf16.msra.mxu0 %v1211
  %1733 = vmatprep.subr.bf16.mxu0 0
  %1734 = vmatpush1.bf16.msra.mxu0 %v1212
  %1735 = vmatprep.subr.bf16.mxu0 0
  %1736 = vmatpush1.bf16.msra.mxu0 %v1213
  %1737 = vmatprep.subr.bf16.mxu0 0
  %1738 = vmatpush1.bf16.msra.mxu0 %v1214
  %1739 = vmatprep.subr.bf16.mxu0 0
  %1740 = vmatpush1.bf16.msra.mxu0 %v1215
  %1741 = vmatprep.subr.bf16.mxu0 0
  %1742 = vmatpush1.bf16.msra.mxu0 %v1216
  %1743 = vmatprep.subr.bf16.mxu0 0
  %1744 = vmatpush1.bf16.msra.mxu0 %v1217
  %1745 = vmatprep.subr.bf16.mxu0 0
  %1746 = vmatpush1.bf16.msra.mxu0 %v1218
  %1747 = vmatprep.subr.bf16.mxu0 0
  %1748 = vmatpush1.bf16.msra.mxu0 %v1219
  %1749 = vmatprep.subr.bf16.mxu0 0
  %1750 = vmatpush1.bf16.msra.mxu0 %v1220
  %1751 = vmatprep.subr.bf16.mxu0 0
  %1752 = vmatpush1.bf16.msra.mxu0 %v1221
  %1753 = vmatprep.subr.bf16.mxu0 0
  %1754 = vmatpush1.bf16.msra.mxu0 %v1222
  %1755 = vmatprep.subr.bf16.mxu0 0
  %1756 = vmatpush1.bf16.msra.mxu0 %v1223
  %1757 = vmatprep.subr.bf16.mxu0 0
  %1758 = vmatpush1.bf16.msra.mxu0 %v1224
  %1759 = vmatprep.subr.bf16.mxu0 0
  %1760 = vmatpush1.bf16.msra.mxu0 %v1225
  %1761 = vmatprep.mubr.bf16.mxu0 %v465
  %1762 = vmatmul.mubr.bf16.gmra.mrb[0].mxu0 %v464
  %v1763 = vpop.f32.mrb[0].mxu0
  %v1764 = vadd.f32 %v1715, %v1763
  %v1765 = vpop.f32.mrb[0].mxu0
  %v1766 = vpop.f32.mrb[0].mxu0
  %v1767 = vadd.f32 %v1718, %v1766
  %v1768 = vpop.f32.mrb[0].mxu0
  %1769 = vmatprep.mubr.bf16.mxu0 %v483
  %1770 = vmatmul.mubr.bf16.gmra.mrb[0].mxu0 %v482
  %v1771 = vpop.f32.mrb[0].mxu0
  %v1772 = vadd.f32 %v1723, %v1771
  %v1773 = vpop.f32.mrb[0].mxu0
  %v1774 = vpop.f32.mrb[0].mxu0
  %v1775 = vadd.f32 %v1726, %v1774
  %v1776 = vpop.f32.mrb[0].mxu0
  %1777 = vdwg.mxu0
  %1778 = vmatprep.subr.bf16.mxu0 0
  %1779 = vmatpush1.bf16.msra.mxu0 %v1226
  %1780 = vmatprep.subr.bf16.mxu0 0
  %1781 = vmatpush1.bf16.msra.mxu0 %v1227
  %1782 = vmatprep.subr.bf16.mxu0 0
  %1783 = vmatpush1.bf16.msra.mxu0 %v1228
  %1784 = vmatprep.subr.bf16.mxu0 0
  %1785 = vmatpush1.bf16.msra.mxu0 %v1229
  %1786 = vmatprep.subr.bf16.mxu0 0
  %1787 = vmatpush1.bf16.msra.mxu0 %v1230
  %1788 = vmatprep.subr.bf16.mxu0 0
  %1789 = vmatpush1.bf16.msra.mxu0 %v1231
  %1790 = vmatprep.subr.bf16.mxu0 0
  %1791 = vmatpush1.bf16.msra.mxu0 %v1232
  %1792 = vmatprep.subr.bf16.mxu0 0
  %1793 = vmatpush1.bf16.msra.mxu0 %v1233
  %1794 = vmatprep.subr.bf16.mxu0 0
  %1795 = vmatpush1.bf16.msra.mxu0 %v1234
  %1796 = vmatprep.subr.bf16.mxu0 0
  %1797 = vmatpush1.bf16.msra.mxu0 %v1235
  %1798 = vmatprep.subr.bf16.mxu0 0
  %1799 = vmatpush1.bf16.msra.mxu0 %v1236
  %1800 = vmatprep.subr.bf16.mxu0 0
  %1801 = vmatpush1.bf16.msra.mxu0 %v1237
  %1802 = vmatprep.subr.bf16.mxu0 0
  %1803 = vmatpush1.bf16.msra.mxu0 %v1238
  %1804 = vmatprep.subr.bf16.mxu0 0
  %1805 = vmatpush1.bf16.msra.mxu0 %v1239
  %1806 = vmatprep.subr.bf16.mxu0 0
  %1807 = vmatpush1.bf16.msra.mxu0 %v1240
  %1808 = vmatprep.subr.bf16.mxu0 0
  %1809 = vmatpush1.bf16.msra.mxu0 %v1241
  %1810 = vmatprep.mubr.bf16.mxu0 %v467
  %1811 = vmatmul.mubr.bf16.gmra.mrb[0].mxu0 %v466
  %v1812 = vpop.f32.mrb[0].mxu0
  %v1813 = vadd.f32 %v1764, %v1812
  %v1814 = vpop.f32.mrb[0].mxu0
  %v1815 = vpop.f32.mrb[0].mxu0
  %v1816 = vadd.f32 %v1767, %v1815
  %v1817 = vpop.f32.mrb[0].mxu0
  %1818 = vmatprep.mubr.bf16.mxu0 %v485
  %1819 = vmatmul.mubr.bf16.gmra.mrb[0].mxu0 %v484
  %v1820 = vpop.f32.mrb[0].mxu0
  %v1821 = vadd.f32 %v1772, %v1820
  %v1822 = vpop.f32.mrb[0].mxu0
  %v1823 = vpop.f32.mrb[0].mxu0
  %v1824 = vadd.f32 %v1775, %v1823
  %v1825 = vpop.f32.mrb[0].mxu0
  %1826 = vdwg.mxu0
  %v1827 = vld [vmem:[%s2] sm:$0x1]
  %v1829 = vlaneseq
  %v1830 = vshrl.u32 %v1829, 7
  %v1831 = vsub.s32 0, %v1830
  %v1832 = vrot.slane %v1827, %v1831
  %v1834 = vmul.f32 %v1813, %v1832
  %v1835 = vmul.f32 %v1816, %v1832
  %v1836 = vmul.f32 %v1821, %v1832
  %v1837 = vmul.f32 %v1824, %v1832
  %v1838 = vld [vmem:[%s3] sm:$0x1]
  %v1840 = vlaneseq
  %v1841 = vshrl.u32 %v1840, 7
  %v1842 = vsub.s32 0, %v1841
  %v1843 = vrot.slane %v1838, %v1842
  %v1845 = vadd.f32 %v1834, %v1843
  %v1846 = vadd.f32 %v1835, %v1843
  %v1847 = vadd.f32 %v1836, %v1843
  %v1848 = vadd.f32 %v1837, %v1843
  %v1849 = vmax.f32 %v1845, 0.0
  %v1850 = vmax.f32 %v1846, 0.0
  %v1851 = vmax.f32 %v1847, 0.0
  %v1852 = vmax.f32 %v1848, 0.0
  %vm1853 = vcmask 261120
  %1854 = vst.msk [vmem:[%s4] sm:$0xff] %vm1853, %v1849
  %1855 = vst.msk [vmem:[%s4 + $0x8] sm:$0xff] %vm1853, %v1850
  %1856 = vst.msk [vmem:[%s4 + $0x10] sm:$0xff] %vm1853, %v1851
  %1857 = vst.msk [vmem:[%s4 + $0x18] sm:$0xff] %vm1853, %v1852
  // Predicated region
  $region18: #{pspnet_forward.122} parent=0 // pred_check
    _
  $region19: #{pspnet_forward.122} parent=0 // pred_check_branch
    %1859 = sbr.rel (0) target = $region21
  $region20: #{pspnet_forward.122} parent=0 // pred_region
    _
  $region21: #{pspnet_forward.122} parent=0 // pred_fallthru
    _
  // Predicated region
  $region22: #{pspnet_forward.122} parent=0 // pred_check
    _
  $region23: #{pspnet_forward.122} parent=0 // pred_check_branch
    %1861 = sbr.rel (0) target = $region25
  $region24: #{pspnet_forward.122} parent=0 // pred_region
    _
  $region25: #{pspnet_forward.122} parent=0 // pred_fallthru
    _

</llo_original>
